<compile_context>
chip_gen: v5e
topology: v5e:2x2
jax: 0.10.0
libtpu: 0.0.40
codegen_flags: <defaults>
</compile_context>

<pallas_src>
import jax
import jax.numpy as jnp
import numpy as np
from jax.experimental import pallas as pl
from jax.experimental.pallas import tpu as pltpu

_VMEM_LIMIT = 32 * 1024 * 1024  # safe on v5e/v6e/v7x; kernels here use << this


# -----------------------------------------------------------------------------
# Kernel 1: ConvTranspose2d(Cin, Cin//2, k=3, s=2) as 4 polyphase sub-convs.
# Output is phase-factored so the wrapper interleave is a free reshape.
# -----------------------------------------------------------------------------

def _upsample_kernel(x1_ref, wt_ref, bt_ref, o_ref, x1p_s):
    """One batch element of the transposed conv, per output phase (no dilation).

    x1_ref : (H1, W1, Cin) f32
    wt_ref : (3, 3, Cin, half) bf16   ConvTranspose weight as [kh, kw, cin, cout]
    bt_ref : (1, half) f32
    o_ref  : (Hp, 2, Wp, 2*half) bf16 with
             o[m, ph, n, pw*half + c] = x1u[2m+ph, 2n+pw, c]
             (slots past the true 2*H1+1 extent are don't-care, cropped later)
    x1p_s  : (H1+2, W1+2, Cin) bf16 scratch: x1 with a zero 1-px border
    """
    H1, W1, cin = x1_ref.shape
    Hp, Wp = H1 + 1, W1 + 1
    half = o_ref.shape[-1] // 2

    # Zero only the 1-px border (interior fully overwritten every step).
    zrow = jnp.zeros((1, W1 + 2, cin), jnp.bfloat16)
    zcol = jnp.zeros((H1 + 2, 1, cin), jnp.bfloat16)
    x1p_s[pl.ds(0, 1), pl.ds(0, W1 + 2), pl.ds(0, cin)] = zrow
    x1p_s[pl.ds(H1 + 1, 1), pl.ds(0, W1 + 2), pl.ds(0, cin)] = zrow
    x1p_s[pl.ds(0, H1 + 2), pl.ds(0, 1), pl.ds(0, cin)] = zcol
    x1p_s[pl.ds(0, H1 + 2), pl.ds(W1 + 1, 1), pl.ds(0, cin)] = zcol
    x1p_s[pl.ds(1, H1), pl.ds(1, W1), pl.ds(0, cin)] = (
        x1_ref[...].astype(jnp.bfloat16))

    for ph in range(2):
        # (window row offset into x1p, ConvTranspose kernel row index)
        r_taps = [(1, 1)] if ph else [(0, 2), (1, 0)]
        for pw in range(2):
            c_taps = [(1, 1)] if pw else [(0, 2), (1, 0)]
            acc = jnp.zeros((Hp * Wp, half), jnp.float32)
            for da, kh in r_taps:
                for db, kw in c_taps:
                    patch = x1p_s[pl.ds(da, Hp), pl.ds(db, Wp), :]
                    patch = patch.reshape(Hp * Wp, cin)          # already bf16
                    acc = acc + jnp.dot(patch, wt_ref[kh, kw],
                                        preferred_element_type=jnp.float32)
            res = (acc + bt_ref[...]).astype(jnp.bfloat16)
            o_ref[pl.ds(0, Hp), pl.ds(ph, 1), pl.ds(0, Wp),
                  pl.ds(pw * half, half)] = res.reshape(Hp, 1, Wp, half)


def _upsample_pallas(x1, wt_k, bt):
    """x1: (B, H1, W1, Cin) f32 -> x1u: (B, 2*H1+2, 2*W1+2, half) bf16
    (row 2*H1+1 / col 2*W1+1 are don't-care; cropped inside the DoubleConv)."""
    B, H1, W1, Cin = x1.shape
    half = wt_k.shape[-1]
    Hp, Wp = H1 + 1, W1 + 1

    out = pl.pallas_call(
        _upsample_kernel,
        out_shape=jax.ShapeDtypeStruct((B, Hp, 2, Wp, 2 * half), jnp.bfloat16),
        grid=(B,),
        in_specs=[
            pl.BlockSpec((None, H1, W1, Cin), lambda b: (b, 0, 0, 0)),
            pl.BlockSpec((3, 3, Cin, half), lambda b: (0, 0, 0, 0)),
            pl.BlockSpec((1, half), lambda b: (0, 0)),
        ],
        out_specs=pl.BlockSpec((None, Hp, 2, Wp, 2 * half),
                               lambda b: (b, 0, 0, 0, 0)),
        scratch_shapes=[pltpu.VMEM((H1 + 2, W1 + 2, Cin), jnp.bfloat16)],
        compiler_params=pltpu.CompilerParams(
            dimension_semantics=("parallel",),
            vmem_limit_bytes=_VMEM_LIMIT),
    )(x1, wt_k, bt.reshape(1, -1))

    # phase-factored -> interleaved: element order is identical, free reshape.
    return out.reshape(B, 2 * Hp, 2 * Wp, half)


# -----------------------------------------------------------------------------
# Kernel 2: fused pad + concat + Conv3x3+BN+ReLU + Conv3x3+BN+ReLU (DoubleConv)
# -----------------------------------------------------------------------------

def _double_conv_kernel(x2_ref, x1u_ref, w1_ref, s1_ref, b1_ref,
                        w2_ref, s2_ref, b2_ref, o_ref, xcat_s, h_s):
    """One batch element of DoubleConv; F.pad/crop + channel concat fused in.

    x2_ref : (H, W, half) f32          skip connection
    x1u_ref: (Hu+1, Wu+1, half) bf16   interleaved upsample (last row/col junk)
    w1_ref : (3, 3, Cin, mid) bf16     conv1 weight (concat folded, Cin = 2*half)
    w2_ref : (3, 3, mid, coutp) bf16   conv2 weight, Cout zero-padded to coutp
    s*/b*  : (1, C) f32                folded eval-mode BatchNorm scale / bias
    o_ref  : (H, W, coutp) f32
    xcat_s : (H+2, W+2, Cin) bf16      zero-bordered concat scratch
    h_s    : (H+2, W+2, mid) bf16      zero-bordered intermediate scratch
    """
    H, W, half = x2_ref.shape
    cin = xcat_s.shape[-1]
    mid = w1_ref.shape[3]
    coutp = w2_ref.shape[3]
    hu = x1u_ref.shape[0] - 1          # true upsample extent 2*H1+1
    wu = x1u_ref.shape[1] - 1
    pad_t = (H - hu) // 2              # torch F.pad: top = diffY // 2
    pad_l = (W - wu) // 2
    th = 8 if (H % 8 == 0 and 8 * W <= 256) else H   # <=~128-row accumulators

    # --- zero only border + F.pad margins (interior fully overwritten below) ---
    n_top = 1 + pad_t
    n_bot = (H + 2) - (1 + pad_t + hu)
    n_lft = 1 + pad_l
    n_rgt = (W + 2) - (1 + pad_l + wu)
    xcat_s[pl.ds(0, n_top), pl.ds(0, W + 2), pl.ds(0, cin)] = (
        jnp.zeros((n_top, W + 2, cin), jnp.bfloat16))
    xcat_s[pl.ds(1 + pad_t + hu, n_bot), pl.ds(0, W + 2), pl.ds(0, cin)] = (
        jnp.zeros((n_bot, W + 2, cin), jnp.bfloat16))
    xcat_s[pl.ds(0, H + 2), pl.ds(0, n_lft), pl.ds(0, cin)] = (
        jnp.zeros((H + 2, n_lft, cin), jnp.bfloat16))
    xcat_s[pl.ds(0, H + 2), pl.ds(1 + pad_l + wu, n_rgt), pl.ds(0, cin)] = (
        jnp.zeros((H + 2, n_rgt, cin), jnp.bfloat16))

    # concat: x2 -> channels [0, half), cropped+padded x1u -> channels [half, cin)
    xcat_s[pl.ds(1, H), pl.ds(1, W), pl.ds(0, half)] = (
        x2_ref[...].astype(jnp.bfloat16))
    xcat_s[pl.ds(1 + pad_t, hu), pl.ds(1 + pad_l, wu), pl.ds(half, half)] = (
        x1u_ref[pl.ds(0, hu), pl.ds(0, wu), :])

    # h scratch: zero only the 1-px border
    h_s[pl.ds(0, 1), pl.ds(0, W + 2), pl.ds(0, mid)] = (
        jnp.zeros((1, W + 2, mid), jnp.bfloat16))
    h_s[pl.ds(H + 1, 1), pl.ds(0, W + 2), pl.ds(0, mid)] = (
        jnp.zeros((1, W + 2, mid), jnp.bfloat16))
    h_s[pl.ds(0, H + 2), pl.ds(0, 1), pl.ds(0, mid)] = (
        jnp.zeros((H + 2, 1, mid), jnp.bfloat16))
    h_s[pl.ds(0, H + 2), pl.ds(W + 1, 1), pl.ds(0, mid)] = (
        jnp.zeros((H + 2, 1, mid), jnp.bfloat16))

    # --- conv1 + BN + ReLU: 9 accumulated (th*W, Cin) @ (Cin, mid) dots -------
    for y0 in range(0, H, th):
        acc = jnp.zeros((th * W, mid), jnp.float32)
        for kh in range(3):
            for kw in range(3):
                patch = xcat_s[pl.ds(y0 + kh, th), pl.ds(kw, W), :]
                acc = acc + jnp.dot(patch.reshape(th * W, cin), w1_ref[kh, kw],
                                    preferred_element_type=jnp.float32)
        hblk = jnp.maximum(acc * s1_ref[...] + b1_ref[...], 0.0)
        h_s[pl.ds(1 + y0, th), pl.ds(1, W), pl.ds(0, mid)] = (
            hblk.astype(jnp.bfloat16).reshape(th, W, mid))

    # --- conv2 + BN + ReLU over the VMEM-resident intermediate ----------------
    for y0 in range(0, H, th):
        acc = jnp.zeros((th * W, coutp), jnp.float32)
        for kh in range(3):
            for kw in range(3):
                patch = h_s[pl.ds(y0 + kh, th), pl.ds(kw, W), :]
                acc = acc + jnp.dot(patch.reshape(th * W, mid), w2_ref[kh, kw],
                                    preferred_element_type=jnp.float32)
        yblk = jnp.maximum(acc * s2_ref[...] + b2_ref[...], 0.0)
        o_ref[pl.ds(y0, th), pl.ds(0, W), pl.ds(0, coutp)] = (
            yblk.reshape(th, W, coutp))


def _double_conv_pallas(x2, x1u, w1_r, s1, b1, w2_r, s2, b2, cout):
    B, H, W, half = x2.shape
    Hu1, Wu1 = x1u.shape[1], x1u.shape[2]
    cin = w1_r.shape[2]
    mid = w1_r.shape[3]
    coutp = ((cout + 127) // 128) * 128   # lane-dense output stores

    # Pad Cout channels with zeros (they produce relu(0)=0 and are sliced off).
    w2_p = jnp.zeros((3, 3, mid, coutp), jnp.bfloat16)
    w2_p = w2_p.at[:, :, :, :cout].set(w2_r.astype(jnp.bfloat16))
    s2_p = jnp.zeros((coutp,), jnp.float32).at[:cout].set(s2)
    b2_p = jnp.zeros((coutp,), jnp.float32).at[:cout].set(b2)

    out = pl.pallas_call(
        _double_conv_kernel,
        out_shape=jax.ShapeDtypeStruct((B, H, W, coutp), jnp.float32),
        grid=(B,),
        in_specs=[
            pl.BlockSpec((None, H, W, half), lambda b: (b, 0, 0, 0)),
            pl.BlockSpec((None, Hu1, Wu1, half), lambda b: (b, 0, 0, 0)),
            pl.BlockSpec((3, 3, cin, mid), lambda b: (0, 0, 0, 0)),
            pl.BlockSpec((1, mid), lambda b: (0, 0)),
            pl.BlockSpec((1, mid), lambda b: (0, 0)),
            pl.BlockSpec((3, 3, mid, coutp), lambda b: (0, 0, 0, 0)),
            pl.BlockSpec((1, coutp), lambda b: (0, 0)),
            pl.BlockSpec((1, coutp), lambda b: (0, 0)),
        ],
        out_specs=pl.BlockSpec((None, H, W, coutp), lambda b: (b, 0, 0, 0)),
        scratch_shapes=[
            pltpu.VMEM((H + 2, W + 2, cin), jnp.bfloat16),
            pltpu.VMEM((H + 2, W + 2, mid), jnp.bfloat16),
        ],
        compiler_params=pltpu.CompilerParams(
            dimension_semantics=("parallel",),
            vmem_limit_bytes=_VMEM_LIMIT),
    )(x2, x1u, w1_r.astype(jnp.bfloat16),
      s1.reshape(1, -1), b1.reshape(1, -1),
      w2_p, s2_p.reshape(1, -1), b2_p.reshape(1, -1))
    return out[..., :cout]


# ------------------------------- Up.forward ----------------------------------

def up_forward(p, x1_nchw, x2_nchw):
    eps = 1e-5
    # NCHW -> NHWC once at the module boundary (channels on the TPU lane axis).
    x1 = jnp.transpose(x1_nchw, (0, 2, 3, 1)).astype(jnp.float32)
    x2 = jnp.transpose(x2_nchw, (0, 2, 3, 1)).astype(jnp.float32)
    B, H1, W1, Cin = x1.shape
    H2, W2 = x2.shape[1], x2.shape[2]
    half = Cin // 2
    cout = p['w2'].shape[0]
    assert H2 >= 2 * H1 + 1 and W2 >= 2 * W1 + 1

    # --- self.up: ConvTranspose2d(Cin, Cin//2, k=3, s=2) (+bias), polyphase ---
    wt_k = jnp.transpose(p['wt'], (2, 3, 0, 1)).astype(jnp.bfloat16)
    x1u = _upsample_pallas(x1, wt_k, p['bt'])     # (B, 2*H1+2, 2*W1+2, half) bf16

    # --- DoubleConv (eval); F.pad/crop + concat handled inside the kernel ---
    s1 = p['g1'] / jnp.sqrt(p['v1'] + eps)
    bb1 = p['b1'] - p['m1'] * s1
    s2 = p['g2'] / jnp.sqrt(p['v2'] + eps)
    bb2 = p['b2'] - p['m2'] * s2
    w1_r = jnp.transpose(p['w1'], (2, 3, 1, 0))   # (3,3,Cin,mid)
    w2_r = jnp.transpose(p['w2'], (2, 3, 1, 0))   # (3,3,mid,Cout)

    out = _double_conv_pallas(x2, x1u, w1_r, s1, bb1, w2_r, s2, bb2, cout)
    return jnp.transpose(out, (0, 3, 1, 2))       # back to NCHW


# ------------------------- pure-JAX reference ---------------------------------

def up_forward_ref(p, x1_nchw, x2_nchw):
    """Independent lowering (zero-dilation ConvTranspose, explicit concat) with
    the same bf16 operand / f32 accumulation dtypes as the Pallas path."""
    eps = 1e-5
    x1 = jnp.transpose(x1_nchw, (0, 2, 3, 1)).astype(jnp.float32)
    x2 = jnp.transpose(x2_nchw, (0, 2, 3, 1)).astype(jnp.float32)
    B, H1, W1, Cin = x1.shape
    half = Cin // 2
    H2, W2 = x2.shape[1], x2.shape[2]

    def conv3x3(x_pad, w, scale, bias, relu):
        xb = x_pad.astype(jnp.bfloat16)
        wb = w.astype(jnp.bfloat16)
        H, W = x_pad.shape[1] - 2, x_pad.shape[2] - 2
        acc = jnp.zeros((x_pad.shape[0], H, W, w.shape[-1]), jnp.float32)
        for kh in range(3):
            for kw in range(3):
                acc = acc + jnp.einsum('bhwc,cd->bhwd',
                                       xb[:, kh:kh + H, kw:kw + W, :], wb[kh, kw],
                                       preferred_element_type=jnp.float32)
        y = acc * scale + bias
        return jnp.maximum(y, 0.0) if relu else y

    # ConvTranspose2d = zero-dilate (stride 2) + pad 2 + valid conv w/ flipped kernel
    xd = jnp.zeros((B, 2 * H1 - 1, 2 * W1 - 1, Cin), jnp.float32)
    xd = xd.at[:, ::2, ::2, :].set(x1)
    xd = jnp.pad(xd, ((0, 0), (2, 2), (2, 2), (0, 0)))
    wt_conv = jnp.transpose(jnp.flip(p['wt'], (2, 3)), (2, 3, 0, 1))
    x1u = conv3x3(xd, wt_conv, jnp.ones((half,), jnp.float32), p['bt'], relu=False)

    diffY = H2 - x1u.shape[1]
    diffX = W2 - x1u.shape[2]
    x1u = jnp.pad(x1u, ((0, 0), (diffY // 2, diffY - diffY // 2),
                        (diffX // 2, diffX - diffX // 2), (0, 0)))
    x = jnp.concatenate([x2, x1u], axis=-1)

    s1 = p['g1'] / jnp.sqrt(p['v1'] + eps)
    bb1 = p['b1'] - p['m1'] * s1
    w1 = jnp.transpose(p['w1'], (2, 3, 1, 0))
    h = conv3x3(jnp.pad(x, ((0, 0), (1, 1), (1, 1), (0, 0))), w1, s1, bb1, relu=True)

    s2 = p['g2'] / jnp.sqrt(p['v2'] + eps)
    bb2 = p['b2'] - p['m2'] * s2
    w2 = jnp.transpose(p['w2'], (2, 3, 1, 0))
    out = conv3x3(jnp.pad(h, ((0, 0), (1, 1), (1, 1), (0, 0))), w2, s2, bb2, relu=True)
    return jnp.transpose(out, (0, 3, 1, 2))


# --------------------------- deterministic params -----------------------------

def init_params(key, in_channels, out_channels):
    mid = out_channels                    # DoubleConv default mid_channels
    half = in_channels // 2
    ks = jax.random.split(key, 12)
    p = {}
    p['wt'] = 0.1 * jax.random.normal(ks[0], (in_channels, half, 3, 3), jnp.float32)
    p['bt'] = 0.05 * jax.random.normal(ks[1], (half,), jnp.float32)
    p['w1'] = 0.1 * jax.random.normal(ks[2], (mid, in_channels, 3, 3), jnp.float32)
    p['g1'] = 1.0 + 0.1 * jax.random.normal(ks[3], (mid,), jnp.float32)
    p['b1'] = 0.1 * jax.random.normal(ks[4], (mid,), jnp.float32)
    p['m1'] = 0.1 * jax.random.normal(ks[5], (mid,), jnp.float32)
    p['v1'] = jax.random.uniform(ks[6], (mid,), jnp.float32, 0.5, 1.5)
    p['w2'] = 0.1 * jax.random.normal(ks[7], (out_channels, mid, 3, 3), jnp.float32)
    p['g2'] = 1.0 + 0.1 * jax.random.normal(ks[8], (out_channels,), jnp.float32)
    p['b2'] = 0.1 * jax.random.normal(ks[9], (out_channels,), jnp.float32)
    p['m2'] = 0.1 * jax.random.normal(ks[10], (out_channels,), jnp.float32)
    p['v2'] = jax.random.uniform(ks[11], (out_channels,), jnp.float32, 0.5, 1.5)
    return p


if __name__ == "__main__":
    key = jax.random.PRNGKey(0)
    k1, k2, kp = jax.random.split(key, 3)

    in_channels, out_channels = 8, 4
    # x1: low-res feature map (NCHW), x2: skip connection (NCHW).
    # ConvTranspose(k=3,s=2): 7 -> 15, padded to 16 to match x2.
    x1 = jax.random.normal(k1, (2, in_channels, 7, 7), jnp.float32)
    x2 = jax.random.normal(k2, (2, in_channels // 2, 16, 16), jnp.float32)
    params = init_params(kp, in_channels, out_channels)

    up_pallas = jax.jit(up_forward)
    out = jax.block_until_ready(up_pallas(params, x1, x2))
    ref = jax.block_until_ready(up_forward_ref(params, x1, x2))

    assert out.shape == (2, out_channels, 16, 16), out.shape
    max_err = float(np.max(np.abs(np.asarray(out) - np.asarray(ref))))
    assert np.allclose(np.asarray(out), np.asarray(ref), atol=1e-2, rtol=1e-2), max_err
    print("KERNEL_OK")
</pallas_src>

<mosaic_0001>
module attributes {stable_mosaic.version = 11 : i64} {
  func.func @_upsample_kernel(%arg0: i32, %arg1: memref<1x7x7x8xf32, #tpu.memory_space<vmem>>, %arg2: memref<3x3x8x4xbf16, #tpu.memory_space<vmem>>, %arg3: memref<1x4xf32, #tpu.memory_space<vmem>>, %arg4: memref<1x8x2x8x8xbf16, #tpu.memory_space<vmem>>, %arg5: memref<9x9x8xbf16, #tpu.memory_space<vmem>>) attributes {dimension_semantics = [#tpu.dimension_semantics<parallel>], iteration_bounds = array<i64: 2>, scalar_prefetch = 0 : i64, scratch_operands = 1 : i64, tpu.core_type = #tpu.core_type<tc>, window_params = [{transform_indices = @transform_0, window_bounds = array<i64: 1, 7, 7, 8>}, {pipeline_mode = #tpu.pipeline_mode<synchronous>, transform_indices = @transform_1, window_bounds = array<i64: 3, 3, 8, 4>}, {pipeline_mode = #tpu.pipeline_mode<synchronous>, transform_indices = @transform_2, window_bounds = array<i64: 1, 4>}, {transform_indices = @transform_3, window_bounds = array<i64: 1, 8, 2, 8, 8>}]} {
    %cst = arith.constant 0.000000e+00 : bf16
    %0 = vector.broadcast %cst : bf16 to vector<1x9x8xbf16>
    %cst_0 = arith.constant 0.000000e+00 : bf16
    %1 = vector.broadcast %cst_0 : bf16 to vector<9x1x8xbf16>
    %c0 = arith.constant 0 : index
    %c0_1 = arith.constant 0 : index
    %c0_2 = arith.constant 0 : index
    %2 = vector.load %arg5[%c0, %c0_1, %c0_2] : memref<9x9x8xbf16, #tpu.memory_space<vmem>>, vector<1x9x8xbf16>
    tpu.vector_store %arg5[%c0, %c0_1, %c0_2], %0 {strides = array<i32>} : memref<9x9x8xbf16, #tpu.memory_space<vmem>>, vector<1x9x8xbf16>,
    %c8 = arith.constant 8 : index
    %c0_3 = arith.constant 0 : index
    %c0_4 = arith.constant 0 : index
    %3 = vector.load %arg5[%c8, %c0_3, %c0_4] : memref<9x9x8xbf16, #tpu.memory_space<vmem>>, vector<1x9x8xbf16>
    tpu.vector_store %arg5[%c8, %c0_3, %c0_4], %0 {strides = array<i32>} : memref<9x9x8xbf16, #tpu.memory_space<vmem>>, vector<1x9x8xbf16>,
    %c0_5 = arith.constant 0 : index
    %c0_6 = arith.constant 0 : index
    %c0_7 = arith.constant 0 : index
    %4 = vector.load %arg5[%c0_5, %c0_6, %c0_7] : memref<9x9x8xbf16, #tpu.memory_space<vmem>>, vector<9x1x8xbf16>
    tpu.vector_store %arg5[%c0_5, %c0_6, %c0_7], %1 {strides = array<i32>} : memref<9x9x8xbf16, #tpu.memory_space<vmem>>, vector<9x1x8xbf16>,
    %c0_8 = arith.constant 0 : index
    %c8_9 = arith.constant 8 : index
    %c0_10 = arith.constant 0 : index
    %5 = vector.load %arg5[%c0_8, %c8_9, %c0_10] : memref<9x9x8xbf16, #tpu.memory_space<vmem>>, vector<9x1x8xbf16>
    tpu.vector_store %arg5[%c0_8, %c8_9, %c0_10], %1 {strides = array<i32>} : memref<9x9x8xbf16, #tpu.memory_space<vmem>>, vector<9x1x8xbf16>,
    %c0_11 = arith.constant 0 : index
    %c0_12 = arith.constant 0 : index
    %c0_13 = arith.constant 0 : index
    %c0_14 = arith.constant 0 : index
    %6 = vector.load %arg1[%c0_11, %c0_12, %c0_13, %c0_14] : memref<1x7x7x8xf32, #tpu.memory_space<vmem>>, vector<1x7x7x8xf32>
    %7 = vector.shape_cast %6 : vector<1x7x7x8xf32> to vector<7x7x8xf32>
    %8 = arith.truncf %7 : vector<7x7x8xf32> to vector<7x7x8xbf16>
    %c1 = arith.constant 1 : index
    %c1_15 = arith.constant 1 : index
    %c0_16 = arith.constant 0 : index
    %9 = vector.load %arg5[%c1, %c1_15, %c0_16] : memref<9x9x8xbf16, #tpu.memory_space<vmem>>, vector<7x7x8xbf16>
    tpu.vector_store %arg5[%c1, %c1_15, %c0_16], %8 {strides = array<i32>} : memref<9x9x8xbf16, #tpu.memory_space<vmem>>, vector<7x7x8xbf16>,
    %cst_17 = arith.constant 0.000000e+00 : f32
    %10 = vector.broadcast %cst_17 : f32 to vector<64x4xf32>
    %c0_18 = arith.constant 0 : index
    %c0_19 = arith.constant 0 : index
    %c0_20 = arith.constant 0 : index
    %11 = vector.load %arg5[%c0_18, %c0_19, %c0_20] : memref<9x9x8xbf16, #tpu.memory_space<vmem>>, vector<8x8x8xbf16>
    %12 = vector.shape_cast %11 : vector<8x8x8xbf16> to vector<64x8xbf16>
    %c2 = arith.constant 2 : index
    %c2_21 = arith.constant 2 : index
    %c0_22 = arith.constant 0 : index
    %c0_23 = arith.constant 0 : index
    %13 = vector.load %arg2[%c2, %c2_21, %c0_22, %c0_23] : memref<3x3x8x4xbf16, #tpu.memory_space<vmem>>, vector<1x1x8x4xbf16>
    %14 = vector.shape_cast %13 : vector<1x1x8x4xbf16> to vector<8x4xbf16>
    %cst_24 = arith.constant dense<0.000000e+00> : vector<64x4xf32>
    %15 = tpu.matmul %12, %14, %cst_24 {dimension_numbers = #tpu.dot_dimension_numbers<[1], [0], [0], [1], [0, 0, 1, 1], [], []>} : vector<64x8xbf16>, vector<8x4xbf16>, vector<64x4xf32> -> vector<64x4xf32>
    %16 = arith.addf %10, %15 : vector<64x4xf32>
    %c0_25 = arith.constant 0 : index
    %c1_26 = arith.constant 1 : index
    %c0_27 = arith.constant 0 : index
    %17 = vector.load %arg5[%c0_25, %c1_26, %c0_27] : memref<9x9x8xbf16, #tpu.memory_space<vmem>>, vector<8x8x8xbf16>
    %18 = vector.shape_cast %17 : vector<8x8x8xbf16> to vector<64x8xbf16>
    %c2_28 = arith.constant 2 : index
    %c0_29 = arith.constant 0 : index
    %c0_30 = arith.constant 0 : index
    %c0_31 = arith.constant 0 : index
    %19 = vector.load %arg2[%c2_28, %c0_29, %c0_30, %c0_31] : memref<3x3x8x4xbf16, #tpu.memory_space<vmem>>, vector<1x1x8x4xbf16>
    %20 = vector.shape_cast %19 : vector<1x1x8x4xbf16> to vector<8x4xbf16>
    %cst_32 = arith.constant dense<0.000000e+00> : vector<64x4xf32>
    %21 = tpu.matmul %18, %20, %cst_32 {dimension_numbers = #tpu.dot_dimension_numbers<[1], [0], [0], [1], [0, 0, 1, 1], [], []>} : vector<64x8xbf16>, vector<8x4xbf16>, vector<64x4xf32> -> vector<64x4xf32>
    %22 = arith.addf %16, %21 : vector<64x4xf32>
    %c1_33 = arith.constant 1 : index
    %c0_34 = arith.constant 0 : index
    %c0_35 = arith.constant 0 : index
    %23 = vector.load %arg5[%c1_33, %c0_34, %c0_35] : memref<9x9x8xbf16, #tpu.memory_space<vmem>>, vector<8x8x8xbf16>
    %24 = vector.shape_cast %23 : vector<8x8x8xbf16> to vector<64x8xbf16>
    %c0_36 = arith.constant 0 : index
    %c2_37 = arith.constant 2 : index
    %c0_38 = arith.constant 0 : index
    %c0_39 = arith.constant 0 : index
    %25 = vector.load %arg2[%c0_36, %c2_37, %c0_38, %c0_39] : memref<3x3x8x4xbf16, #tpu.memory_space<vmem>>, vector<1x1x8x4xbf16>
    %26 = vector.shape_cast %25 : vector<1x1x8x4xbf16> to vector<8x4xbf16>
    %cst_40 = arith.constant dense<0.000000e+00> : vector<64x4xf32>
    %27 = tpu.matmul %24, %26, %cst_40 {dimension_numbers = #tpu.dot_dimension_numbers<[1], [0], [0], [1], [0, 0, 1, 1], [], []>} : vector<64x8xbf16>, vector<8x4xbf16>, vector<64x4xf32> -> vector<64x4xf32>
    %28 = arith.addf %22, %27 : vector<64x4xf32>
    %c1_41 = arith.constant 1 : index
    %c1_42 = arith.constant 1 : index
    %c0_43 = arith.constant 0 : index
    %29 = vector.load %arg5[%c1_41, %c1_42, %c0_43] : memref<9x9x8xbf16, #tpu.memory_space<vmem>>, vector<8x8x8xbf16>
    %30 = vector.shape_cast %29 : vector<8x8x8xbf16> to vector<64x8xbf16>
    %c0_44 = arith.constant 0 : index
    %c0_45 = arith.constant 0 : index
    %c0_46 = arith.constant 0 : index
    %c0_47 = arith.constant 0 : index
    %31 = vector.load %arg2[%c0_44, %c0_45, %c0_46, %c0_47] : memref<3x3x8x4xbf16, #tpu.memory_space<vmem>>, vector<1x1x8x4xbf16>
    %32 = vector.shape_cast %31 : vector<1x1x8x4xbf16> to vector<8x4xbf16>
    %cst_48 = arith.constant dense<0.000000e+00> : vector<64x4xf32>
    %33 = tpu.matmul %30, %32, %cst_48 {dimension_numbers = #tpu.dot_dimension_numbers<[1], [0], [0], [1], [0, 0, 1, 1], [], []>} : vector<64x8xbf16>, vector<8x4xbf16>, vector<64x4xf32> -> vector<64x4xf32>
    %34 = arith.addf %28, %33 : vector<64x4xf32>
    %c0_49 = arith.constant 0 : index
    %c0_50 = arith.constant 0 : index
    %35 = vector.load %arg3[%c0_49, %c0_50] : memref<1x4xf32, #tpu.memory_space<vmem>>, vector<1x4xf32>
    %36 = vector.broadcast %35 : vector<1x4xf32> to vector<64x4xf32>
    %37 = arith.addf %34, %36 : vector<64x4xf32>
    %38 = arith.truncf %37 : vector<64x4xf32> to vector<64x4xbf16>
    %39 = vector.shape_cast %38 : vector<64x4xbf16> to vector<8x1x8x4xbf16>
    %c0_51 = arith.constant 0 : index
    %c0_52 = arith.constant 0 : index
    %c0_53 = arith.constant 0 : index
    %c0_54 = arith.constant 0 : index
    %c0_55 = arith.constant 0 : index
    %40 = vector.load %arg4[%c0_51, %c0_52, %c0_53, %c0_54, %c0_55] : memref<1x8x2x8x8xbf16, #tpu.memory_space<vmem>>, vector<1x8x1x8x4xbf16>
    %41 = vector.shape_cast %40 : vector<1x8x1x8x4xbf16> to vector<8x1x8x4xbf16>
    %42 = vector.shape_cast %39 : vector<8x1x8x4xbf16> to vector<1x8x1x8x4xbf16>
    tpu.vector_store %arg4[%c0_51, %c0_52, %c0_53, %c0_54, %c0_55], %42 {strides = array<i32>} : memref<1x8x2x8x8xbf16, #tpu.memory_space<vmem>>, vector<1x8x1x8x4xbf16>,
    %cst_56 = arith.constant 0.000000e+00 : f32
    %43 = vector.broadcast %cst_56 : f32 to vector<64x4xf32>
    %c0_57 = arith.constant 0 : index
    %c1_58 = arith.constant 1 : index
    %c0_59 = arith.constant 0 : index
    %44 = vector.load %arg5[%c0_57, %c1_58, %c0_59] : memref<9x9x8xbf16, #tpu.memory_space<vmem>>, vector<8x8x8xbf16>
    %45 = vector.shape_cast %44 : vector<8x8x8xbf16> to vector<64x8xbf16>
    %c2_60 = arith.constant 2 : index
    %c1_61 = arith.constant 1 : index
    %c0_62 = arith.constant 0 : index
    %c0_63 = arith.constant 0 : index
    %46 = vector.load %arg2[%c2_60, %c1_61, %c0_62, %c0_63] : memref<3x3x8x4xbf16, #tpu.memory_space<vmem>>, vector<1x1x8x4xbf16>
    %47 = vector.shape_cast %46 : vector<1x1x8x4xbf16> to vector<8x4xbf16>
    %cst_64 = arith.constant dense<0.000000e+00> : vector<64x4xf32>
    %48 = tpu.matmul %45, %47, %cst_64 {dimension_numbers = #tpu.dot_dimension_numbers<[1], [0], [0], [1], [0, 0, 1, 1], [], []>} : vector<64x8xbf16>, vector<8x4xbf16>, vector<64x4xf32> -> vector<64x4xf32>
    %49 = arith.addf %43, %48 : vector<64x4xf32>
    %c1_65 = arith.constant 1 : index
    %c1_66 = arith.constant 1 : index
    %c0_67 = arith.constant 0 : index
    %50 = vector.load %arg5[%c1_65, %c1_66, %c0_67] : memref<9x9x8xbf16, #tpu.memory_space<vmem>>, vector<8x8x8xbf16>
    %51 = vector.shape_cast %50 : vector<8x8x8xbf16> to vector<64x8xbf16>
    %c0_68 = arith.constant 0 : index
    %c1_69 = arith.constant 1 : index
    %c0_70 = arith.constant 0 : index
    %c0_71 = arith.constant 0 : index
    %52 = vector.load %arg2[%c0_68, %c1_69, %c0_70, %c0_71] : memref<3x3x8x4xbf16, #tpu.memory_space<vmem>>, vector<1x1x8x4xbf16>
    %53 = vector.shape_cast %52 : vector<1x1x8x4xbf16> to vector<8x4xbf16>
    %cst_72 = arith.constant dense<0.000000e+00> : vector<64x4xf32>
    %54 = tpu.matmul %51, %53, %cst_72 {dimension_numbers = #tpu.dot_dimension_numbers<[1], [0], [0], [1], [0, 0, 1, 1], [], []>} : vector<64x8xbf16>, vector<8x4xbf16>, vector<64x4xf32> -> vector<64x4xf32>
    %55 = arith.addf %49, %54 : vector<64x4xf32>
    %c0_73 = arith.constant 0 : index
    %c0_74 = arith.constant 0 : index
    %56 = vector.load %arg3[%c0_73, %c0_74] : memref<1x4xf32, #tpu.memory_space<vmem>>, vector<1x4xf32>
    %57 = vector.broadcast %56 : vector<1x4xf32> to vector<64x4xf32>
    %58 = arith.addf %55, %57 : vector<64x4xf32>
    %59 = arith.truncf %58 : vector<64x4xf32> to vector<64x4xbf16>
    %60 = vector.shape_cast %59 : vector<64x4xbf16> to vector<8x1x8x4xbf16>
    %c0_75 = arith.constant 0 : index
    %c0_76 = arith.constant 0 : index
    %c0_77 = arith.constant 0 : index
    %c0_78 = arith.constant 0 : index
    %c4 = arith.constant 4 : index
    %61 = vector.load %arg4[%c0_75, %c0_76, %c0_77, %c0_78, %c4] : memref<1x8x2x8x8xbf16, #tpu.memory_space<vmem>>, vector<1x8x1x8x4xbf16>
    %62 = vector.shape_cast %61 : vector<1x8x1x8x4xbf16> to vector<8x1x8x4xbf16>
    %63 = vector.shape_cast %60 : vector<8x1x8x4xbf16> to vector<1x8x1x8x4xbf16>
    tpu.vector_store %arg4[%c0_75, %c0_76, %c0_77, %c0_78, %c4], %63 {strides = array<i32>} : memref<1x8x2x8x8xbf16, #tpu.memory_space<vmem>>, vector<1x8x1x8x4xbf16>,
    %cst_79 = arith.constant 0.000000e+00 : f32
    %64 = vector.broadcast %cst_79 : f32 to vector<64x4xf32>
    %c1_80 = arith.constant 1 : index
    %c0_81 = arith.constant 0 : index
    %c0_82 = arith.constant 0 : index
    %65 = vector.load %arg5[%c1_80, %c0_81, %c0_82] : memref<9x9x8xbf16, #tpu.memory_space<vmem>>, vector<8x8x8xbf16>
    %66 = vector.shape_cast %65 : vector<8x8x8xbf16> to vector<64x8xbf16>
    %c1_83 = arith.constant 1 : index
    %c2_84 = arith.constant 2 : index
    %c0_85 = arith.constant 0 : index
    %c0_86 = arith.constant 0 : index
    %67 = vector.load %arg2[%c1_83, %c2_84, %c0_85, %c0_86] : memref<3x3x8x4xbf16, #tpu.memory_space<vmem>>, vector<1x1x8x4xbf16>
    %68 = vector.shape_cast %67 : vector<1x1x8x4xbf16> to vector<8x4xbf16>
    %cst_87 = arith.constant dense<0.000000e+00> : vector<64x4xf32>
    %69 = tpu.matmul %66, %68, %cst_87 {dimension_numbers = #tpu.dot_dimension_numbers<[1], [0], [0], [1], [0, 0, 1, 1], [], []>} : vector<64x8xbf16>, vector<8x4xbf16>, vector<64x4xf32> -> vector<64x4xf32>
    %70 = arith.addf %64, %69 : vector<64x4xf32>
    %c1_88 = arith.constant 1 : index
    %c1_89 = arith.constant 1 : index
    %c0_90 = arith.constant 0 : index
    %71 = vector.load %arg5[%c1_88, %c1_89, %c0_90] : memref<9x9x8xbf16, #tpu.memory_space<vmem>>, vector<8x8x8xbf16>
    %72 = vector.shape_cast %71 : vector<8x8x8xbf16> to vector<64x8xbf16>
    %c1_91 = arith.constant 1 : index
    %c0_92 = arith.constant 0 : index
    %c0_93 = arith.constant 0 : index
    %c0_94 = arith.constant 0 : index
    %73 = vector.load %arg2[%c1_91, %c0_92, %c0_93, %c0_94] : memref<3x3x8x4xbf16, #tpu.memory_space<vmem>>, vector<1x1x8x4xbf16>
    %74 = vector.shape_cast %73 : vector<1x1x8x4xbf16> to vector<8x4xbf16>
    %cst_95 = arith.constant dense<0.000000e+00> : vector<64x4xf32>
    %75 = tpu.matmul %72, %74, %cst_95 {dimension_numbers = #tpu.dot_dimension_numbers<[1], [0], [0], [1], [0, 0, 1, 1], [], []>} : vector<64x8xbf16>, vector<8x4xbf16>, vector<64x4xf32> -> vector<64x4xf32>
    %76 = arith.addf %70, %75 : vector<64x4xf32>
    %c0_96 = arith.constant 0 : index
    %c0_97 = arith.constant 0 : index
    %77 = vector.load %arg3[%c0_96, %c0_97] : memref<1x4xf32, #tpu.memory_space<vmem>>, vector<1x4xf32>
    %78 = vector.broadcast %77 : vector<1x4xf32> to vector<64x4xf32>
    %79 = arith.addf %76, %78 : vector<64x4xf32>
    %80 = arith.truncf %79 : vector<64x4xf32> to vector<64x4xbf16>
    %81 = vector.shape_cast %80 : vector<64x4xbf16> to vector<8x1x8x4xbf16>
    %c0_98 = arith.constant 0 : index
    %c0_99 = arith.constant 0 : index
    %c1_100 = arith.constant 1 : index
    %c0_101 = arith.constant 0 : index
    %c0_102 = arith.constant 0 : index
    %82 = vector.load %arg4[%c0_98, %c0_99, %c1_100, %c0_101, %c0_102] : memref<1x8x2x8x8xbf16, #tpu.memory_space<vmem>>, vector<1x8x1x8x4xbf16>
    %83 = vector.shape_cast %82 : vector<1x8x1x8x4xbf16> to vector<8x1x8x4xbf16>
    %84 = vector.shape_cast %81 : vector<8x1x8x4xbf16> to vector<1x8x1x8x4xbf16>
    tpu.vector_store %arg4[%c0_98, %c0_99, %c1_100, %c0_101, %c0_102], %84 {strides = array<i32>} : memref<1x8x2x8x8xbf16, #tpu.memory_space<vmem>>, vector<1x8x1x8x4xbf16>,
    %cst_103 = arith.constant 0.000000e+00 : f32
    %85 = vector.broadcast %cst_103 : f32 to vector<64x4xf32>
    %c1_104 = arith.constant 1 : index
    %c1_105 = arith.constant 1 : index
    %c0_106 = arith.constant 0 : index
    %86 = vector.load %arg5[%c1_104, %c1_105, %c0_106] : memref<9x9x8xbf16, #tpu.memory_space<vmem>>, vector<8x8x8xbf16>
    %87 = vector.shape_cast %86 : vector<8x8x8xbf16> to vector<64x8xbf16>
    %c1_107 = arith.constant 1 : index
    %c1_108 = arith.constant 1 : index
    %c0_109 = arith.constant 0 : index
    %c0_110 = arith.constant 0 : index
    %88 = vector.load %arg2[%c1_107, %c1_108, %c0_109, %c0_110] : memref<3x3x8x4xbf16, #tpu.memory_space<vmem>>, vector<1x1x8x4xbf16>
    %89 = vector.shape_cast %88 : vector<1x1x8x4xbf16> to vector<8x4xbf16>
    %cst_111 = arith.constant dense<0.000000e+00> : vector<64x4xf32>
    %90 = tpu.matmul %87, %89, %cst_111 {dimension_numbers = #tpu.dot_dimension_numbers<[1], [0], [0], [1], [0, 0, 1, 1], [], []>} : vector<64x8xbf16>, vector<8x4xbf16>, vector<64x4xf32> -> vector<64x4xf32>
    %91 = arith.addf %85, %90 : vector<64x4xf32>
    %c0_112 = arith.constant 0 : index
    %c0_113 = arith.constant 0 : index
    %92 = vector.load %arg3[%c0_112, %c0_113] : memref<1x4xf32, #tpu.memory_space<vmem>>, vector<1x4xf32>
    %93 = vector.broadcast %92 : vector<1x4xf32> to vector<64x4xf32>
    %94 = arith.addf %91, %93 : vector<64x4xf32>
    %95 = arith.truncf %94 : vector<64x4xf32> to vector<64x4xbf16>
    %96 = vector.shape_cast %95 : vector<64x4xbf16> to vector<8x1x8x4xbf16>
    %c0_114 = arith.constant 0 : index
    %c0_115 = arith.constant 0 : index
    %c1_116 = arith.constant 1 : index
    %c0_117 = arith.constant 0 : index
    %c4_118 = arith.constant 4 : index
    %97 = vector.load %arg4[%c0_114, %c0_115, %c1_116, %c0_117, %c4_118] : memref<1x8x2x8x8xbf16, #tpu.memory_space<vmem>>, vector<1x8x1x8x4xbf16>
    %98 = vector.shape_cast %97 : vector<1x8x1x8x4xbf16> to vector<8x1x8x4xbf16>
    %99 = vector.shape_cast %96 : vector<8x1x8x4xbf16> to vector<1x8x1x8x4xbf16>
    tpu.vector_store %arg4[%c0_114, %c0_115, %c1_116, %c0_117, %c4_118], %99 {strides = array<i32>} : memref<1x8x2x8x8xbf16, #tpu.memory_space<vmem>>, vector<1x8x1x8x4xbf16>,
    return
  }
  func.func @transform_0(%arg0: i32) -> (i32, i32, i32, i32) {
    %c0_i32 = arith.constant 0 : i32
    %c0_i32_0 = arith.constant 0 : i32
    %c0_i32_1 = arith.constant 0 : i32
    %c0_i32_2 = arith.constant 0 : i32
    return %arg0, %c0_i32, %c0_i32_0, %c0_i32_1 : i32, i32, i32, i32
  }
  func.func @transform_1(%arg0: i32) -> (i32, i32, i32, i32) {
    %c0_i32 = arith.constant 0 : i32
    %c0_i32_0 = arith.constant 0 : i32
    %c0_i32_1 = arith.constant 0 : i32
    %c0_i32_2 = arith.constant 0 : i32
    %c0_i32_3 = arith.constant 0 : i32
    return %c0_i32, %c0_i32_0, %c0_i32_1, %c0_i32_2 : i32, i32, i32, i32
  }
  func.func @transform_2(%arg0: i32) -> (i32, i32) {
    %c0_i32 = arith.constant 0 : i32
    %c0_i32_0 = arith.constant 0 : i32
    %c0_i32_1 = arith.constant 0 : i32
    return %c0_i32, %c0_i32_0 : i32, i32
  }
  func.func @transform_3(%arg0: i32) -> (i32, i32, i32, i32, i32) {
    %c0_i32 = arith.constant 0 : i32
    %c0_i32_0 = arith.constant 0 : i32
    %c0_i32_1 = arith.constant 0 : i32
    %c0_i32_2 = arith.constant 0 : i32
    %c0_i32_3 = arith.constant 0 : i32
    return %arg0, %c0_i32, %c0_i32_0, %c0_i32_1, %c0_i32_2 : i32, i32, i32, i32, i32
  }
}

module attributes {stable_mosaic.version = 11 : i64} {
  func.func @_double_conv_kernel(%arg0: i32, %arg1: memref<1x16x16x4xf32, #tpu.memory_space<vmem>>, %arg2: memref<1x16x16x4xbf16, #tpu.memory_space<vmem>>, %arg3: memref<3x3x8x4xbf16, #tpu.memory_space<vmem>>, %arg4: memref<1x4xf32, #tpu.memory_space<vmem>>, %arg5: memref<1x4xf32, #tpu.memory_space<vmem>>, %arg6: memref<3x3x4x128xbf16, #tpu.memory_space<vmem>>, %arg7: memref<1x128xf32, #tpu.memory_space<vmem>>, %arg8: memref<1x128xf32, #tpu.memory_space<vmem>>, %arg9: memref<1x16x16x128xf32, #tpu.memory_space<vmem>>, %arg10: memref<18x18x8xbf16, #tpu.memory_space<vmem>>, %arg11: memref<18x18x4xbf16, #tpu.memory_space<vmem>>) attributes {dimension_semantics = [#tpu.dimension_semantics<parallel>], iteration_bounds = array<i64: 2>, scalar_prefetch = 0 : i64, scratch_operands = 2 : i64, tpu.core_type = #tpu.core_type<tc>, window_params = [{transform_indices = @transform_0, window_bounds = array<i64: 1, 16, 16, 4>}, {transform_indices = @transform_1, window_bounds = array<i64: 1, 16, 16, 4>}, {pipeline_mode = #tpu.pipeline_mode<synchronous>, transform_indices = @transform_2, window_bounds = array<i64: 3, 3, 8, 4>}, {pipeline_mode = #tpu.pipeline_mode<synchronous>, transform_indices = @transform_3, window_bounds = array<i64: 1, 4>}, {pipeline_mode = #tpu.pipeline_mode<synchronous>, transform_indices = @transform_4, window_bounds = array<i64: 1, 4>}, {pipeline_mode = #tpu.pipeline_mode<synchronous>, transform_indices = @transform_5, window_bounds = array<i64: 3, 3, 4, 128>}, {pipeline_mode = #tpu.pipeline_mode<synchronous>, transform_indices = @transform_6, window_bounds = array<i64: 1, 128>}, {pipeline_mode = #tpu.pipeline_mode<synchronous>, transform_indices = @transform_7, window_bounds = array<i64: 1, 128>}, {transform_indices = @transform_8, window_bounds = array<i64: 1, 16, 16, 128>}]} {
    %cst = arith.constant 0.000000e+00 : bf16
    %0 = vector.broadcast %cst : bf16 to vector<1x18x8xbf16>
    %c0 = arith.constant 0 : index
    %c0_0 = arith.constant 0 : index
    %c0_1 = arith.constant 0 : index
    %1 = vector.load %arg10[%c0, %c0_0, %c0_1] : memref<18x18x8xbf16, #tpu.memory_space<vmem>>, vector<1x18x8xbf16>
    tpu.vector_store %arg10[%c0, %c0_0, %c0_1], %0 {strides = array<i32>} : memref<18x18x8xbf16, #tpu.memory_space<vmem>>, vector<1x18x8xbf16>,
    %cst_2 = arith.constant 0.000000e+00 : bf16
    %2 = vector.broadcast %cst_2 : bf16 to vector<2x18x8xbf16>
    %c16 = arith.constant 16 : index
    %c0_3 = arith.constant 0 : index
    %c0_4 = arith.constant 0 : index
    %3 = vector.load %arg10[%c16, %c0_3, %c0_4] : memref<18x18x8xbf16, #tpu.memory_space<vmem>>, vector<2x18x8xbf16>
    tpu.vector_store %arg10[%c16, %c0_3, %c0_4], %2 {strides = array<i32>} : memref<18x18x8xbf16, #tpu.memory_space<vmem>>, vector<2x18x8xbf16>,
    %cst_5 = arith.constant 0.000000e+00 : bf16
    %4 = vector.broadcast %cst_5 : bf16 to vector<18x1x8xbf16>
    %c0_6 = arith.constant 0 : index
    %c0_7 = arith.constant 0 : index
    %c0_8 = arith.constant 0 : index
    %5 = vector.load %arg10[%c0_6, %c0_7, %c0_8] : memref<18x18x8xbf16, #tpu.memory_space<vmem>>, vector<18x1x8xbf16>
    tpu.vector_store %arg10[%c0_6, %c0_7, %c0_8], %4 {strides = array<i32>} : memref<18x18x8xbf16, #tpu.memory_space<vmem>>, vector<18x1x8xbf16>,
    %cst_9 = arith.constant 0.000000e+00 : bf16
    %6 = vector.broadcast %cst_9 : bf16 to vector<18x2x8xbf16>
    %c0_10 = arith.constant 0 : index
    %c16_11 = arith.constant 16 : index
    %c0_12 = arith.constant 0 : index
    %7 = vector.load %arg10[%c0_10, %c16_11, %c0_12] : memref<18x18x8xbf16, #tpu.memory_space<vmem>>, vector<18x2x8xbf16>
    tpu.vector_store %arg10[%c0_10, %c16_11, %c0_12], %6 {strides = array<i32>} : memref<18x18x8xbf16, #tpu.memory_space<vmem>>, vector<18x2x8xbf16>,
    %c0_13 = arith.constant 0 : index
    %c0_14 = arith.constant 0 : index
    %c0_15 = arith.constant 0 : index
    %c0_16 = arith.constant 0 : index
    %8 = vector.load %arg1[%c0_13, %c0_14, %c0_15, %c0_16] : memref<1x16x16x4xf32, #tpu.memory_space<vmem>>, vector<1x16x16x4xf32>
    %9 = vector.shape_cast %8 : vector<1x16x16x4xf32> to vector<16x16x4xf32>
    %10 = arith.truncf %9 : vector<16x16x4xf32> to vector<16x16x4xbf16>
    %c1 = arith.constant 1 : index
    %c1_17 = arith.constant 1 : index
    %c0_18 = arith.constant 0 : index
    %11 = vector.load %arg10[%c1, %c1_17, %c0_18] : memref<18x18x8xbf16, #tpu.memory_space<vmem>>, vector<16x16x4xbf16>
    tpu.vector_store %arg10[%c1, %c1_17, %c0_18], %10 {strides = array<i32>} : memref<18x18x8xbf16, #tpu.memory_space<vmem>>, vector<16x16x4xbf16>,
    %c0_19 = arith.constant 0 : index
    %c0_20 = arith.constant 0 : index
    %c0_21 = arith.constant 0 : index
    %c0_22 = arith.constant 0 : index
    %12 = vector.load %arg2[%c0_19, %c0_20, %c0_21, %c0_22] : memref<1x16x16x4xbf16, #tpu.memory_space<vmem>>, vector<1x15x15x4xbf16>
    %13 = vector.shape_cast %12 : vector<1x15x15x4xbf16> to vector<15x15x4xbf16>
    %c1_23 = arith.constant 1 : index
    %c1_24 = arith.constant 1 : index
    %c4 = arith.constant 4 : index
    %14 = vector.load %arg10[%c1_23, %c1_24, %c4] : memref<18x18x8xbf16, #tpu.memory_space<vmem>>, vector<15x15x4xbf16>
    tpu.vector_store %arg10[%c1_23, %c1_24, %c4], %13 {strides = array<i32>} : memref<18x18x8xbf16, #tpu.memory_space<vmem>>, vector<15x15x4xbf16>,
    %cst_25 = arith.constant 0.000000e+00 : bf16
    %15 = vector.broadcast %cst_25 : bf16 to vector<1x18x4xbf16>
    %c0_26 = arith.constant 0 : index
    %c0_27 = arith.constant 0 : index
    %c0_28 = arith.constant 0 : index
    %16 = vector.load %arg11[%c0_26, %c0_27, %c0_28] : memref<18x18x4xbf16, #tpu.memory_space<vmem>>, vector<1x18x4xbf16>
    tpu.vector_store %arg11[%c0_26, %c0_27, %c0_28], %15 {strides = array<i32>} : memref<18x18x4xbf16, #tpu.memory_space<vmem>>, vector<1x18x4xbf16>,
    %cst_29 = arith.constant 0.000000e+00 : bf16
    %17 = vector.broadcast %cst_29 : bf16 to vector<1x18x4xbf16>
    %c17 = arith.constant 17 : index
    %c0_30 = arith.constant 0 : index
    %c0_31 = arith.constant 0 : index
    %18 = vector.load %arg11[%c17, %c0_30, %c0_31] : memref<18x18x4xbf16, #tpu.memory_space<vmem>>, vector<1x18x4xbf16>
    tpu.vector_store %arg11[%c17, %c0_30, %c0_31], %17 {strides = array<i32>} : memref<18x18x4xbf16, #tpu.memory_space<vmem>>, vector<1x18x4xbf16>,
    %cst_32 = arith.constant 0.000000e+00 : bf16
    %19 = vector.broadcast %cst_32 : bf16 to vector<18x1x4xbf16>
    %c0_33 = arith.constant 0 : index
    %c0_34 = arith.constant 0 : index
    %c0_35 = arith.constant 0 : index
    %20 = vector.load %arg11[%c0_33, %c0_34, %c0_35] : memref<18x18x4xbf16, #tpu.memory_space<vmem>>, vector<18x1x4xbf16>
    tpu.vector_store %arg11[%c0_33, %c0_34, %c0_35], %19 {strides = array<i32>} : memref<18x18x4xbf16, #tpu.memory_space<vmem>>, vector<18x1x4xbf16>,
    %cst_36 = arith.constant 0.000000e+00 : bf16
    %21 = vector.broadcast %cst_36 : bf16 to vector<18x1x4xbf16>
    %c0_37 = arith.constant 0 : index
    %c17_38 = arith.constant 17 : index
    %c0_39 = arith.constant 0 : index
    %22 = vector.load %arg11[%c0_37, %c17_38, %c0_39] : memref<18x18x4xbf16, #tpu.memory_space<vmem>>, vector<18x1x4xbf16>
    tpu.vector_store %arg11[%c0_37, %c17_38, %c0_39], %21 {strides = array<i32>} : memref<18x18x4xbf16, #tpu.memory_space<vmem>>, vector<18x1x4xbf16>,
    %cst_40 = arith.constant 0.000000e+00 : f32
    %23 = vector.broadcast %cst_40 : f32 to vector<128x4xf32>
    %c0_41 = arith.constant 0 : index
    %c0_42 = arith.constant 0 : index
    %c0_43 = arith.constant 0 : index
    %24 = vector.load %arg10[%c0_41, %c0_42, %c0_43] : memref<18x18x8xbf16, #tpu.memory_space<vmem>>, vector<8x16x8xbf16>
    %25 = vector.shape_cast %24 : vector<8x16x8xbf16> to vector<128x8xbf16>
    %c0_44 = arith.constant 0 : index
    %c0_45 = arith.constant 0 : index
    %c0_46 = arith.constant 0 : index
    %c0_47 = arith.constant 0 : index
    %26 = vector.load %arg3[%c0_44, %c0_45, %c0_46, %c0_47] : memref<3x3x8x4xbf16, #tpu.memory_space<vmem>>, vector<1x1x8x4xbf16>
    %27 = vector.shape_cast %26 : vector<1x1x8x4xbf16> to vector<8x4xbf16>
    %cst_48 = arith.constant dense<0.000000e+00> : vector<128x4xf32>
    %28 = tpu.matmul %25, %27, %cst_48 {dimension_numbers = #tpu.dot_dimension_numbers<[1], [0], [0], [1], [0, 0, 1, 1], [], []>} : vector<128x8xbf16>, vector<8x4xbf16>, vector<128x4xf32> -> vector<128x4xf32>
    %29 = arith.addf %23, %28 : vector<128x4xf32>
    %c0_49 = arith.constant 0 : index
    %c1_50 = arith.constant 1 : index
    %c0_51 = arith.constant 0 : index
    %30 = vector.load %arg10[%c0_49, %c1_50, %c0_51] : memref<18x18x8xbf16, #tpu.memory_space<vmem>>, vector<8x16x8xbf16>
    %31 = vector.shape_cast %30 : vector<8x16x8xbf16> to vector<128x8xbf16>
    %c0_52 = arith.constant 0 : index
    %c1_53 = arith.constant 1 : index
    %c0_54 = arith.constant 0 : index
    %c0_55 = arith.constant 0 : index
    %32 = vector.load %arg3[%c0_52, %c1_53, %c0_54, %c0_55] : memref<3x3x8x4xbf16, #tpu.memory_space<vmem>>, vector<1x1x8x4xbf16>
    %33 = vector.shape_cast %32 : vector<1x1x8x4xbf16> to vector<8x4xbf16>
    %cst_56 = arith.constant dense<0.000000e+00> : vector<128x4xf32>
    %34 = tpu.matmul %31, %33, %cst_56 {dimension_numbers = #tpu.dot_dimension_numbers<[1], [0], [0], [1], [0, 0, 1, 1], [], []>} : vector<128x8xbf16>, vector<8x4xbf16>, vector<128x4xf32> -> vector<128x4xf32>
    %35 = arith.addf %29, %34 : vector<128x4xf32>
    %c0_57 = arith.constant 0 : index
    %c2 = arith.constant 2 : index
    %c0_58 = arith.constant 0 : index
    %36 = vector.load %arg10[%c0_57, %c2, %c0_58] : memref<18x18x8xbf16, #tpu.memory_space<vmem>>, vector<8x16x8xbf16>
    %37 = vector.shape_cast %36 : vector<8x16x8xbf16> to vector<128x8xbf16>
    %c0_59 = arith.constant 0 : index
    %c2_60 = arith.constant 2 : index
    %c0_61 = arith.constant 0 : index
    %c0_62 = arith.constant 0 : index
    %38 = vector.load %arg3[%c0_59, %c2_60, %c0_61, %c0_62] : memref<3x3x8x4xbf16, #tpu.memory_space<vmem>>, vector<1x1x8x4xbf16>
    %39 = vector.shape_cast %38 : vector<1x1x8x4xbf16> to vector<8x4xbf16>
    %cst_63 = arith.constant dense<0.000000e+00> : vector<128x4xf32>
    %40 = tpu.matmul %37, %39, %cst_63 {dimension_numbers = #tpu.dot_dimension_numbers<[1], [0], [0], [1], [0, 0, 1, 1], [], []>} : vector<128x8xbf16>, vector<8x4xbf16>, vector<128x4xf32> -> vector<128x4xf32>
    %41 = arith.addf %35, %40 : vector<128x4xf32>
    %c1_64 = arith.constant 1 : index
    %c0_65 = arith.constant 0 : index
    %c0_66 = arith.constant 0 : index
    %42 = vector.load %arg10[%c1_64, %c0_65, %c0_66] : memref<18x18x8xbf16, #tpu.memory_space<vmem>>, vector<8x16x8xbf16>
    %43 = vector.shape_cast %42 : vector<8x16x8xbf16> to vector<128x8xbf16>
    %c1_67 = arith.constant 1 : index
    %c0_68 = arith.constant 0 : index
    %c0_69 = arith.constant 0 : index
    %c0_70 = arith.constant 0 : index
    %44 = vector.load %arg3[%c1_67, %c0_68, %c0_69, %c0_70] : memref<3x3x8x4xbf16, #tpu.memory_space<vmem>>, vector<1x1x8x4xbf16>
    %45 = vector.shape_cast %44 : vector<1x1x8x4xbf16> to vector<8x4xbf16>
    %cst_71 = arith.constant dense<0.000000e+00> : vector<128x4xf32>
    %46 = tpu.matmul %43, %45, %cst_71 {dimension_numbers = #tpu.dot_dimension_numbers<[1], [0], [0], [1], [0, 0, 1, 1], [], []>} : vector<128x8xbf16>, vector<8x4xbf16>, vector<128x4xf32> -> vector<128x4xf32>
    %47 = arith.addf %41, %46 : vector<128x4xf32>
    %c1_72 = arith.constant 1 : index
    %c1_73 = arith.constant 1 : index
    %c0_74 = arith.constant 0 : index
    %48 = vector.load %arg10[%c1_72, %c1_73, %c0_74] : memref<18x18x8xbf16, #tpu.memory_space<vmem>>, vector<8x16x8xbf16>
    %49 = vector.shape_cast %48 : vector<8x16x8xbf16> to vector<128x8xbf16>
    %c1_75 = arith.constant 1 : index
    %c1_76 = arith.constant 1 : index
    %c0_77 = arith.constant 0 : index
    %c0_78 = arith.constant 0 : index
    %50 = vector.load %arg3[%c1_75, %c1_76, %c0_77, %c0_78] : memref<3x3x8x4xbf16, #tpu.memory_space<vmem>>, vector<1x1x8x4xbf16>
    %51 = vector.shape_cast %50 : vector<1x1x8x4xbf16> to vector<8x4xbf16>
    %cst_79 = arith.constant dense<0.000000e+00> : vector<128x4xf32>
    %52 = tpu.matmul %49, %51, %cst_79 {dimension_numbers = #tpu.dot_dimension_numbers<[1], [0], [0], [1], [0, 0, 1, 1], [], []>} : vector<128x8xbf16>, vector<8x4xbf16>, vector<128x4xf32> -> vector<128x4xf32>
    %53 = arith.addf %47, %52 : vector<128x4xf32>
    %c1_80 = arith.constant 1 : index
    %c2_81 = arith.constant 2 : index
    %c0_82 = arith.constant 0 : index
    %54 = vector.load %arg10[%c1_80, %c2_81, %c0_82] : memref<18x18x8xbf16, #tpu.memory_space<vmem>>, vector<8x16x8xbf16>
    %55 = vector.shape_cast %54 : vector<8x16x8xbf16> to vector<128x8xbf16>
    %c1_83 = arith.constant 1 : index
    %c2_84 = arith.constant 2 : index
    %c0_85 = arith.constant 0 : index
    %c0_86 = arith.constant 0 : index
    %56 = vector.load %arg3[%c1_83, %c2_84, %c0_85, %c0_86] : memref<3x3x8x4xbf16, #tpu.memory_space<vmem>>, vector<1x1x8x4xbf16>
    %57 = vector.shape_cast %56 : vector<1x1x8x4xbf16> to vector<8x4xbf16>
    %cst_87 = arith.constant dense<0.000000e+00> : vector<128x4xf32>
    %58 = tpu.matmul %55, %57, %cst_87 {dimension_numbers = #tpu.dot_dimension_numbers<[1], [0], [0], [1], [0, 0, 1, 1], [], []>} : vector<128x8xbf16>, vector<8x4xbf16>, vector<128x4xf32> -> vector<128x4xf32>
    %59 = arith.addf %53, %58 : vector<128x4xf32>
    %c2_88 = arith.constant 2 : index
    %c0_89 = arith.constant 0 : index
    %c0_90 = arith.constant 0 : index
    %60 = vector.load %arg10[%c2_88, %c0_89, %c0_90] : memref<18x18x8xbf16, #tpu.memory_space<vmem>>, vector<8x16x8xbf16>
    %61 = vector.shape_cast %60 : vector<8x16x8xbf16> to vector<128x8xbf16>
    %c2_91 = arith.constant 2 : index
    %c0_92 = arith.constant 0 : index
    %c0_93 = arith.constant 0 : index
    %c0_94 = arith.constant 0 : index
    %62 = vector.load %arg3[%c2_91, %c0_92, %c0_93, %c0_94] : memref<3x3x8x4xbf16, #tpu.memory_space<vmem>>, vector<1x1x8x4xbf16>
    %63 = vector.shape_cast %62 : vector<1x1x8x4xbf16> to vector<8x4xbf16>
    %cst_95 = arith.constant dense<0.000000e+00> : vector<128x4xf32>
    %64 = tpu.matmul %61, %63, %cst_95 {dimension_numbers = #tpu.dot_dimension_numbers<[1], [0], [0], [1], [0, 0, 1, 1], [], []>} : vector<128x8xbf16>, vector<8x4xbf16>, vector<128x4xf32> -> vector<128x4xf32>
    %65 = arith.addf %59, %64 : vector<128x4xf32>
    %c2_96 = arith.constant 2 : index
    %c1_97 = arith.constant 1 : index
    %c0_98 = arith.constant 0 : index
    %66 = vector.load %arg10[%c2_96, %c1_97, %c0_98] : memref<18x18x8xbf16, #tpu.memory_space<vmem>>, vector<8x16x8xbf16>
    %67 = vector.shape_cast %66 : vector<8x16x8xbf16> to vector<128x8xbf16>
    %c2_99 = arith.constant 2 : index
    %c1_100 = arith.constant 1 : index
    %c0_101 = arith.constant 0 : index
    %c0_102 = arith.constant 0 : index
    %68 = vector.load %arg3[%c2_99, %c1_100, %c0_101, %c0_102] : memref<3x3x8x4xbf16, #tpu.memory_space<vmem>>, vector<1x1x8x4xbf16>
    %69 = vector.shape_cast %68 : vector<1x1x8x4xbf16> to vector<8x4xbf16>
    %cst_103 = arith.constant dense<0.000000e+00> : vector<128x4xf32>
    %70 = tpu.matmul %67, %69, %cst_103 {dimension_numbers = #tpu.dot_dimension_numbers<[1], [0], [0], [1], [0, 0, 1, 1], [], []>} : vector<128x8xbf16>, vector<8x4xbf16>, vector<128x4xf32> -> vector<128x4xf32>
    %71 = arith.addf %65, %70 : vector<128x4xf32>
    %c2_104 = arith.constant 2 : index
    %c2_105 = arith.constant 2 : index
    %c0_106 = arith.constant 0 : index
    %72 = vector.load %arg10[%c2_104, %c2_105, %c0_106] : memref<18x18x8xbf16, #tpu.memory_space<vmem>>, vector<8x16x8xbf16>
    %73 = vector.shape_cast %72 : vector<8x16x8xbf16> to vector<128x8xbf16>
    %c2_107 = arith.constant 2 : index
    %c2_108 = arith.constant 2 : index
    %c0_109 = arith.constant 0 : index
    %c0_110 = arith.constant 0 : index
    %74 = vector.load %arg3[%c2_107, %c2_108, %c0_109, %c0_110] : memref<3x3x8x4xbf16, #tpu.memory_space<vmem>>, vector<1x1x8x4xbf16>
    %75 = vector.shape_cast %74 : vector<1x1x8x4xbf16> to vector<8x4xbf16>
    %cst_111 = arith.constant dense<0.000000e+00> : vector<128x4xf32>
    %76 = tpu.matmul %73, %75, %cst_111 {dimension_numbers = #tpu.dot_dimension_numbers<[1], [0], [0], [1], [0, 0, 1, 1], [], []>} : vector<128x8xbf16>, vector<8x4xbf16>, vector<128x4xf32> -> vector<128x4xf32>
    %77 = arith.addf %71, %76 : vector<128x4xf32>
    %c0_112 = arith.constant 0 : index
    %c0_113 = arith.constant 0 : index
    %78 = vector.load %arg4[%c0_112, %c0_113] : memref<1x4xf32, #tpu.memory_space<vmem>>, vector<1x4xf32>
    %79 = vector.broadcast %78 : vector<1x4xf32> to vector<128x4xf32>
    %80 = arith.mulf %77, %79 : vector<128x4xf32>
    %c0_114 = arith.constant 0 : index
    %c0_115 = arith.constant 0 : index
    %81 = vector.load %arg5[%c0_114, %c0_115] : memref<1x4xf32, #tpu.memory_space<vmem>>, vector<1x4xf32>
    %82 = vector.broadcast %81 : vector<1x4xf32> to vector<128x4xf32>
    %83 = arith.addf %80, %82 : vector<128x4xf32>
    %cst_116 = arith.constant 0.000000e+00 : f32
    %84 = vector.broadcast %cst_116 : f32 to vector<128x4xf32>
    %85 = arith.maximumf %83, %84 : vector<128x4xf32>
    %86 = arith.truncf %85 : vector<128x4xf32> to vector<128x4xbf16>
    %87 = vector.shape_cast %86 : vector<128x4xbf16> to vector<8x16x4xbf16>
    %c1_117 = arith.constant 1 : index
    %c1_118 = arith.constant 1 : index
    %c0_119 = arith.constant 0 : index
    %88 = vector.load %arg11[%c1_117, %c1_118, %c0_119] : memref<18x18x4xbf16, #tpu.memory_space<vmem>>, vector<8x16x4xbf16>
    tpu.vector_store %arg11[%c1_117, %c1_118, %c0_119], %87 {strides = array<i32>} : memref<18x18x4xbf16, #tpu.memory_space<vmem>>, vector<8x16x4xbf16>,
    %cst_120 = arith.constant 0.000000e+00 : f32
    %89 = vector.broadcast %cst_120 : f32 to vector<128x4xf32>
    %c8 = arith.constant 8 : index
    %c0_121 = arith.constant 0 : index
    %c0_122 = arith.constant 0 : index
    %90 = vector.load %arg10[%c8, %c0_121, %c0_122] : memref<18x18x8xbf16, #tpu.memory_space<vmem>>, vector<8x16x8xbf16>
    %91 = vector.shape_cast %90 : vector<8x16x8xbf16> to vector<128x8xbf16>
    %c0_123 = arith.constant 0 : index
    %c0_124 = arith.constant 0 : index
    %c0_125 = arith.constant 0 : index
    %c0_126 = arith.constant 0 : index
    %92 = vector.load %arg3[%c0_123, %c0_124, %c0_125, %c0_126] : memref<3x3x8x4xbf16, #tpu.memory_space<vmem>>, vector<1x1x8x4xbf16>
    %93 = vector.shape_cast %92 : vector<1x1x8x4xbf16> to vector<8x4xbf16>
    %cst_127 = arith.constant dense<0.000000e+00> : vector<128x4xf32>
    %94 = tpu.matmul %91, %93, %cst_127 {dimension_numbers = #tpu.dot_dimension_numbers<[1], [0], [0], [1], [0, 0, 1, 1], [], []>} : vector<128x8xbf16>, vector<8x4xbf16>, vector<128x4xf32> -> vector<128x4xf32>
    %95 = arith.addf %89, %94 : vector<128x4xf32>
    %c8_128 = arith.constant 8 : index
    %c1_129 = arith.constant 1 : index
    %c0_130 = arith.constant 0 : index
    %96 = vector.load %arg10[%c8_128, %c1_129, %c0_130] : memref<18x18x8xbf16, #tpu.memory_space<vmem>>, vector<8x16x8xbf16>
    %97 = vector.shape_cast %96 : vector<8x16x8xbf16> to vector<128x8xbf16>
    %c0_131 = arith.constant 0 : index
    %c1_132 = arith.constant 1 : index
    %c0_133 = arith.constant 0 : index
    %c0_134 = arith.constant 0 : index
    %98 = vector.load %arg3[%c0_131, %c1_132, %c0_133, %c0_134] : memref<3x3x8x4xbf16, #tpu.memory_space<vmem>>, vector<1x1x8x4xbf16>
    %99 = vector.shape_cast %98 : vector<1x1x8x4xbf16> to vector<8x4xbf16>
    %cst_135 = arith.constant dense<0.000000e+00> : vector<128x4xf32>
    %100 = tpu.matmul %97, %99, %cst_135 {dimension_numbers = #tpu.dot_dimension_numbers<[1], [0], [0], [1], [0, 0, 1, 1], [], []>} : vector<128x8xbf16>, vector<8x4xbf16>, vector<128x4xf32> -> vector<128x4xf32>
    %101 = arith.addf %95, %100 : vector<128x4xf32>
    %c8_136 = arith.constant 8 : index
    %c2_137 = arith.constant 2 : index
    %c0_138 = arith.constant 0 : index
    %102 = vector.load %arg10[%c8_136, %c2_137, %c0_138] : memref<18x18x8xbf16, #tpu.memory_space<vmem>>, vector<8x16x8xbf16>
    %103 = vector.shape_cast %102 : vector<8x16x8xbf16> to vector<128x8xbf16>
    %c0_139 = arith.constant 0 : index
    %c2_140 = arith.constant 2 : index
    %c0_141 = arith.constant 0 : index
    %c0_142 = arith.constant 0 : index
    %104 = vector.load %arg3[%c0_139, %c2_140, %c0_141, %c0_142] : memref<3x3x8x4xbf16, #tpu.memory_space<vmem>>, vector<1x1x8x4xbf16>
    %105 = vector.shape_cast %104 : vector<1x1x8x4xbf16> to vector<8x4xbf16>
    %cst_143 = arith.constant dense<0.000000e+00> : vector<128x4xf32>
    %106 = tpu.matmul %103, %105, %cst_143 {dimension_numbers = #tpu.dot_dimension_numbers<[1], [0], [0], [1], [0, 0, 1, 1], [], []>} : vector<128x8xbf16>, vector<8x4xbf16>, vector<128x4xf32> -> vector<128x4xf32>
    %107 = arith.addf %101, %106 : vector<128x4xf32>
    %c9 = arith.constant 9 : index
    %c0_144 = arith.constant 0 : index
    %c0_145 = arith.constant 0 : index
    %108 = vector.load %arg10[%c9, %c0_144, %c0_145] : memref<18x18x8xbf16, #tpu.memory_space<vmem>>, vector<8x16x8xbf16>
    %109 = vector.shape_cast %108 : vector<8x16x8xbf16> to vector<128x8xbf16>
    %c1_146 = arith.constant 1 : index
    %c0_147 = arith.constant 0 : index
    %c0_148 = arith.constant 0 : index
    %c0_149 = arith.constant 0 : index
    %110 = vector.load %arg3[%c1_146, %c0_147, %c0_148, %c0_149] : memref<3x3x8x4xbf16, #tpu.memory_space<vmem>>, vector<1x1x8x4xbf16>
    %111 = vector.shape_cast %110 : vector<1x1x8x4xbf16> to vector<8x4xbf16>
    %cst_150 = arith.constant dense<0.000000e+00> : vector<128x4xf32>
    %112 = tpu.matmul %109, %111, %cst_150 {dimension_numbers = #tpu.dot_dimension_numbers<[1], [0], [0], [1], [0, 0, 1, 1], [], []>} : vector<128x8xbf16>, vector<8x4xbf16>, vector<128x4xf32> -> vector<128x4xf32>
    %113 = arith.addf %107, %112 : vector<128x4xf32>
    %c9_151 = arith.constant 9 : index
    %c1_152 = arith.constant 1 : index
    %c0_153 = arith.constant 0 : index
    %114 = vector.load %arg10[%c9_151, %c1_152, %c0_153] : memref<18x18x8xbf16, #tpu.memory_space<vmem>>, vector<8x16x8xbf16>
    %115 = vector.shape_cast %114 : vector<8x16x8xbf16> to vector<128x8xbf16>
    %c1_154 = arith.constant 1 : index
    %c1_155 = arith.constant 1 : index
    %c0_156 = arith.constant 0 : index
    %c0_157 = arith.constant 0 : index
    %116 = vector.load %arg3[%c1_154, %c1_155, %c0_156, %c0_157] : memref<3x3x8x4xbf16, #tpu.memory_space<vmem>>, vector<1x1x8x4xbf16>
    %117 = vector.shape_cast %116 : vector<1x1x8x4xbf16> to vector<8x4xbf16>
    %cst_158 = arith.constant dense<0.000000e+00> : vector<128x4xf32>
    %118 = tpu.matmul %115, %117, %cst_158 {dimension_numbers = #tpu.dot_dimension_numbers<[1], [0], [0], [1], [0, 0, 1, 1], [], []>} : vector<128x8xbf16>, vector<8x4xbf16>, vector<128x4xf32> -> vector<128x4xf32>
    %119 = arith.addf %113, %118 : vector<128x4xf32>
    %c9_159 = arith.constant 9 : index
    %c2_160 = arith.constant 2 : index
    %c0_161 = arith.constant 0 : index
    %120 = vector.load %arg10[%c9_159, %c2_160, %c0_161] : memref<18x18x8xbf16, #tpu.memory_space<vmem>>, vector<8x16x8xbf16>
    %121 = vector.shape_cast %120 : vector<8x16x8xbf16> to vector<128x8xbf16>
    %c1_162 = arith.constant 1 : index
    %c2_163 = arith.constant 2 : index
    %c0_164 = arith.constant 0 : index
    %c0_165 = arith.constant 0 : index
    %122 = vector.load %arg3[%c1_162, %c2_163, %c0_164, %c0_165] : memref<3x3x8x4xbf16, #tpu.memory_space<vmem>>, vector<1x1x8x4xbf16>
    %123 = vector.shape_cast %122 : vector<1x1x8x4xbf16> to vector<8x4xbf16>
    %cst_166 = arith.constant dense<0.000000e+00> : vector<128x4xf32>
    %124 = tpu.matmul %121, %123, %cst_166 {dimension_numbers = #tpu.dot_dimension_numbers<[1], [0], [0], [1], [0, 0, 1, 1], [], []>} : vector<128x8xbf16>, vector<8x4xbf16>, vector<128x4xf32> -> vector<128x4xf32>
    %125 = arith.addf %119, %124 : vector<128x4xf32>
    %c10 = arith.constant 10 : index
    %c0_167 = arith.constant 0 : index
    %c0_168 = arith.constant 0 : index
    %126 = vector.load %arg10[%c10, %c0_167, %c0_168] : memref<18x18x8xbf16, #tpu.memory_space<vmem>>, vector<8x16x8xbf16>
    %127 = vector.shape_cast %126 : vector<8x16x8xbf16> to vector<128x8xbf16>
    %c2_169 = arith.constant 2 : index
    %c0_170 = arith.constant 0 : index
    %c0_171 = arith.constant 0 : index
    %c0_172 = arith.constant 0 : index
    %128 = vector.load %arg3[%c2_169, %c0_170, %c0_171, %c0_172] : memref<3x3x8x4xbf16, #tpu.memory_space<vmem>>, vector<1x1x8x4xbf16>
    %129 = vector.shape_cast %128 : vector<1x1x8x4xbf16> to vector<8x4xbf16>
    %cst_173 = arith.constant dense<0.000000e+00> : vector<128x4xf32>
    %130 = tpu.matmul %127, %129, %cst_173 {dimension_numbers = #tpu.dot_dimension_numbers<[1], [0], [0], [1], [0, 0, 1, 1], [], []>} : vector<128x8xbf16>, vector<8x4xbf16>, vector<128x4xf32> -> vector<128x4xf32>
    %131 = arith.addf %125, %130 : vector<128x4xf32>
    %c10_174 = arith.constant 10 : index
    %c1_175 = arith.constant 1 : index
    %c0_176 = arith.constant 0 : index
    %132 = vector.load %arg10[%c10_174, %c1_175, %c0_176] : memref<18x18x8xbf16, #tpu.memory_space<vmem>>, vector<8x16x8xbf16>
    %133 = vector.shape_cast %132 : vector<8x16x8xbf16> to vector<128x8xbf16>
    %c2_177 = arith.constant 2 : index
    %c1_178 = arith.constant 1 : index
    %c0_179 = arith.constant 0 : index
    %c0_180 = arith.constant 0 : index
    %134 = vector.load %arg3[%c2_177, %c1_178, %c0_179, %c0_180] : memref<3x3x8x4xbf16, #tpu.memory_space<vmem>>, vector<1x1x8x4xbf16>
    %135 = vector.shape_cast %134 : vector<1x1x8x4xbf16> to vector<8x4xbf16>
    %cst_181 = arith.constant dense<0.000000e+00> : vector<128x4xf32>
    %136 = tpu.matmul %133, %135, %cst_181 {dimension_numbers = #tpu.dot_dimension_numbers<[1], [0], [0], [1], [0, 0, 1, 1], [], []>} : vector<128x8xbf16>, vector<8x4xbf16>, vector<128x4xf32> -> vector<128x4xf32>
    %137 = arith.addf %131, %136 : vector<128x4xf32>
    %c10_182 = arith.constant 10 : index
    %c2_183 = arith.constant 2 : index
    %c0_184 = arith.constant 0 : index
    %138 = vector.load %arg10[%c10_182, %c2_183, %c0_184] : memref<18x18x8xbf16, #tpu.memory_space<vmem>>, vector<8x16x8xbf16>
    %139 = vector.shape_cast %138 : vector<8x16x8xbf16> to vector<128x8xbf16>
    %c2_185 = arith.constant 2 : index
    %c2_186 = arith.constant 2 : index
    %c0_187 = arith.constant 0 : index
    %c0_188 = arith.constant 0 : index
    %140 = vector.load %arg3[%c2_185, %c2_186, %c0_187, %c0_188] : memref<3x3x8x4xbf16, #tpu.memory_space<vmem>>, vector<1x1x8x4xbf16>
    %141 = vector.shape_cast %140 : vector<1x1x8x4xbf16> to vector<8x4xbf16>
    %cst_189 = arith.constant dense<0.000000e+00> : vector<128x4xf32>
    %142 = tpu.matmul %139, %141, %cst_189 {dimension_numbers = #tpu.dot_dimension_numbers<[1], [0], [0], [1], [0, 0, 1, 1], [], []>} : vector<128x8xbf16>, vector<8x4xbf16>, vector<128x4xf32> -> vector<128x4xf32>
    %143 = arith.addf %137, %142 : vector<128x4xf32>
    %c0_190 = arith.constant 0 : index
    %c0_191 = arith.constant 0 : index
    %144 = vector.load %arg4[%c0_190, %c0_191] : memref<1x4xf32, #tpu.memory_space<vmem>>, vector<1x4xf32>
    %145 = vector.broadcast %144 : vector<1x4xf32> to vector<128x4xf32>
    %146 = arith.mulf %143, %145 : vector<128x4xf32>
    %c0_192 = arith.constant 0 : index
    %c0_193 = arith.constant 0 : index
    %147 = vector.load %arg5[%c0_192, %c0_193] : memref<1x4xf32, #tpu.memory_space<vmem>>, vector<1x4xf32>
    %148 = vector.broadcast %147 : vector<1x4xf32> to vector<128x4xf32>
    %149 = arith.addf %146, %148 : vector<128x4xf32>
    %cst_194 = arith.constant 0.000000e+00 : f32
    %150 = vector.broadcast %cst_194 : f32 to vector<128x4xf32>
    %151 = arith.maximumf %149, %150 : vector<128x4xf32>
    %152 = arith.truncf %151 : vector<128x4xf32> to vector<128x4xbf16>
    %153 = vector.shape_cast %152 : vector<128x4xbf16> to vector<8x16x4xbf16>
    %c9_195 = arith.constant 9 : index
    %c1_196 = arith.constant 1 : index
    %c0_197 = arith.constant 0 : index
    %154 = vector.load %arg11[%c9_195, %c1_196, %c0_197] : memref<18x18x4xbf16, #tpu.memory_space<vmem>>, vector<8x16x4xbf16>
    tpu.vector_store %arg11[%c9_195, %c1_196, %c0_197], %153 {strides = array<i32>} : memref<18x18x4xbf16, #tpu.memory_space<vmem>>, vector<8x16x4xbf16>,
    %cst_198 = arith.constant 0.000000e+00 : f32
    %155 = vector.broadcast %cst_198 : f32 to vector<128x128xf32>
    %c0_199 = arith.constant 0 : index
    %c0_200 = arith.constant 0 : index
    %c0_201 = arith.constant 0 : index
    %156 = vector.load %arg11[%c0_199, %c0_200, %c0_201] : memref<18x18x4xbf16, #tpu.memory_space<vmem>>, vector<8x16x4xbf16>
    %157 = vector.shape_cast %156 : vector<8x16x4xbf16> to vector<128x4xbf16>
    %c0_202 = arith.constant 0 : index
    %c0_203 = arith.constant 0 : index
    %c0_204 = arith.constant 0 : index
    %c0_205 = arith.constant 0 : index
    %158 = vector.load %arg6[%c0_202, %c0_203, %c0_204, %c0_205] : memref<3x3x4x128xbf16, #tpu.memory_space<vmem>>, vector<1x1x4x128xbf16>
    %159 = vector.shape_cast %158 : vector<1x1x4x128xbf16> to vector<4x128xbf16>
    %cst_206 = arith.constant dense<0.000000e+00> : vector<128x128xf32>
    %160 = tpu.matmul %157, %159, %cst_206 {dimension_numbers = #tpu.dot_dimension_numbers<[1], [0], [0], [1], [0, 0, 1, 1], [], []>} : vector<128x4xbf16>, vector<4x128xbf16>, vector<128x128xf32> -> vector<128x128xf32>
    %161 = arith.addf %155, %160 : vector<128x128xf32>
    %c0_207 = arith.constant 0 : index
    %c1_208 = arith.constant 1 : index
    %c0_209 = arith.constant 0 : index
    %162 = vector.load %arg11[%c0_207, %c1_208, %c0_209] : memref<18x18x4xbf16, #tpu.memory_space<vmem>>, vector<8x16x4xbf16>
    %163 = vector.shape_cast %162 : vector<8x16x4xbf16> to vector<128x4xbf16>
    %c0_210 = arith.constant 0 : index
    %c1_211 = arith.constant 1 : index
    %c0_212 = arith.constant 0 : index
    %c0_213 = arith.constant 0 : index
    %164 = vector.load %arg6[%c0_210, %c1_211, %c0_212, %c0_213] : memref<3x3x4x128xbf16, #tpu.memory_space<vmem>>, vector<1x1x4x128xbf16>
    %165 = vector.shape_cast %164 : vector<1x1x4x128xbf16> to vector<4x128xbf16>
    %cst_214 = arith.constant dense<0.000000e+00> : vector<128x128xf32>
    %166 = tpu.matmul %163, %165, %cst_214 {dimension_numbers = #tpu.dot_dimension_numbers<[1], [0], [0], [1], [0, 0, 1, 1], [], []>} : vector<128x4xbf16>, vector<4x128xbf16>, vector<128x128xf32> -> vector<128x128xf32>
    %167 = arith.addf %161, %166 : vector<128x128xf32>
    %c0_215 = arith.constant 0 : index
    %c2_216 = arith.constant 2 : index
    %c0_217 = arith.constant 0 : index
    %168 = vector.load %arg11[%c0_215, %c2_216, %c0_217] : memref<18x18x4xbf16, #tpu.memory_space<vmem>>, vector<8x16x4xbf16>
    %169 = vector.shape_cast %168 : vector<8x16x4xbf16> to vector<128x4xbf16>
    %c0_218 = arith.constant 0 : index
    %c2_219 = arith.constant 2 : index
    %c0_220 = arith.constant 0 : index
    %c0_221 = arith.constant 0 : index
    %170 = vector.load %arg6[%c0_218, %c2_219, %c0_220, %c0_221] : memref<3x3x4x128xbf16, #tpu.memory_space<vmem>>, vector<1x1x4x128xbf16>
    %171 = vector.shape_cast %170 : vector<1x1x4x128xbf16> to vector<4x128xbf16>
    %cst_222 = arith.constant dense<0.000000e+00> : vector<128x128xf32>
    %172 = tpu.matmul %169, %171, %cst_222 {dimension_numbers = #tpu.dot_dimension_numbers<[1], [0], [0], [1], [0, 0, 1, 1], [], []>} : vector<128x4xbf16>, vector<4x128xbf16>, vector<128x128xf32> -> vector<128x128xf32>
    %173 = arith.addf %167, %172 : vector<128x128xf32>
    %c1_223 = arith.constant 1 : index
    %c0_224 = arith.constant 0 : index
    %c0_225 = arith.constant 0 : index
    %174 = vector.load %arg11[%c1_223, %c0_224, %c0_225] : memref<18x18x4xbf16, #tpu.memory_space<vmem>>, vector<8x16x4xbf16>
    %175 = vector.shape_cast %174 : vector<8x16x4xbf16> to vector<128x4xbf16>
    %c1_226 = arith.constant 1 : index
    %c0_227 = arith.constant 0 : index
    %c0_228 = arith.constant 0 : index
    %c0_229 = arith.constant 0 : index
    %176 = vector.load %arg6[%c1_226, %c0_227, %c0_228, %c0_229] : memref<3x3x4x128xbf16, #tpu.memory_space<vmem>>, vector<1x1x4x128xbf16>
    %177 = vector.shape_cast %176 : vector<1x1x4x128xbf16> to vector<4x128xbf16>
    %cst_230 = arith.constant dense<0.000000e+00> : vector<128x128xf32>
    %178 = tpu.matmul %175, %177, %cst_230 {dimension_numbers = #tpu.dot_dimension_numbers<[1], [0], [0], [1], [0, 0, 1, 1], [], []>} : vector<128x4xbf16>, vector<4x128xbf16>, vector<128x128xf32> -> vector<128x128xf32>
    %179 = arith.addf %173, %178 : vector<128x128xf32>
    %c1_231 = arith.constant 1 : index
    %c1_232 = arith.constant 1 : index
    %c0_233 = arith.constant 0 : index
    %180 = vector.load %arg11[%c1_231, %c1_232, %c0_233] : memref<18x18x4xbf16, #tpu.memory_space<vmem>>, vector<8x16x4xbf16>
    %181 = vector.shape_cast %180 : vector<8x16x4xbf16> to vector<128x4xbf16>
    %c1_234 = arith.constant 1 : index
    %c1_235 = arith.constant 1 : index
    %c0_236 = arith.constant 0 : index
    %c0_237 = arith.constant 0 : index
    %182 = vector.load %arg6[%c1_234, %c1_235, %c0_236, %c0_237] : memref<3x3x4x128xbf16, #tpu.memory_space<vmem>>, vector<1x1x4x128xbf16>
    %183 = vector.shape_cast %182 : vector<1x1x4x128xbf16> to vector<4x128xbf16>
    %cst_238 = arith.constant dense<0.000000e+00> : vector<128x128xf32>
    %184 = tpu.matmul %181, %183, %cst_238 {dimension_numbers = #tpu.dot_dimension_numbers<[1], [0], [0], [1], [0, 0, 1, 1], [], []>} : vector<128x4xbf16>, vector<4x128xbf16>, vector<128x128xf32> -> vector<128x128xf32>
    %185 = arith.addf %179, %184 : vector<128x128xf32>
    %c1_239 = arith.constant 1 : index
    %c2_240 = arith.constant 2 : index
    %c0_241 = arith.constant 0 : index
    %186 = vector.load %arg11[%c1_239, %c2_240, %c0_241] : memref<18x18x4xbf16, #tpu.memory_space<vmem>>, vector<8x16x4xbf16>
    %187 = vector.shape_cast %186 : vector<8x16x4xbf16> to vector<128x4xbf16>
    %c1_242 = arith.constant 1 : index
    %c2_243 = arith.constant 2 : index
    %c0_244 = arith.constant 0 : index
    %c0_245 = arith.constant 0 : index
    %188 = vector.load %arg6[%c1_242, %c2_243, %c0_244, %c0_245] : memref<3x3x4x128xbf16, #tpu.memory_space<vmem>>, vector<1x1x4x128xbf16>
    %189 = vector.shape_cast %188 : vector<1x1x4x128xbf16> to vector<4x128xbf16>
    %cst_246 = arith.constant dense<0.000000e+00> : vector<128x128xf32>
    %190 = tpu.matmul %187, %189, %cst_246 {dimension_numbers = #tpu.dot_dimension_numbers<[1], [0], [0], [1], [0, 0, 1, 1], [], []>} : vector<128x4xbf16>, vector<4x128xbf16>, vector<128x128xf32> -> vector<128x128xf32>
    %191 = arith.addf %185, %190 : vector<128x128xf32>
    %c2_247 = arith.constant 2 : index
    %c0_248 = arith.constant 0 : index
    %c0_249 = arith.constant 0 : index
    %192 = vector.load %arg11[%c2_247, %c0_248, %c0_249] : memref<18x18x4xbf16, #tpu.memory_space<vmem>>, vector<8x16x4xbf16>
    %193 = vector.shape_cast %192 : vector<8x16x4xbf16> to vector<128x4xbf16>
    %c2_250 = arith.constant 2 : index
    %c0_251 = arith.constant 0 : index
    %c0_252 = arith.constant 0 : index
    %c0_253 = arith.constant 0 : index
    %194 = vector.load %arg6[%c2_250, %c0_251, %c0_252, %c0_253] : memref<3x3x4x128xbf16, #tpu.memory_space<vmem>>, vector<1x1x4x128xbf16>
    %195 = vector.shape_cast %194 : vector<1x1x4x128xbf16> to vector<4x128xbf16>
    %cst_254 = arith.constant dense<0.000000e+00> : vector<128x128xf32>
    %196 = tpu.matmul %193, %195, %cst_254 {dimension_numbers = #tpu.dot_dimension_numbers<[1], [0], [0], [1], [0, 0, 1, 1], [], []>} : vector<128x4xbf16>, vector<4x128xbf16>, vector<128x128xf32> -> vector<128x128xf32>
    %197 = arith.addf %191, %196 : vector<128x128xf32>
    %c2_255 = arith.constant 2 : index
    %c1_256 = arith.constant 1 : index
    %c0_257 = arith.constant 0 : index
    %198 = vector.load %arg11[%c2_255, %c1_256, %c0_257] : memref<18x18x4xbf16, #tpu.memory_space<vmem>>, vector<8x16x4xbf16>
    %199 = vector.shape_cast %198 : vector<8x16x4xbf16> to vector<128x4xbf16>
    %c2_258 = arith.constant 2 : index
    %c1_259 = arith.constant 1 : index
    %c0_260 = arith.constant 0 : index
    %c0_261 = arith.constant 0 : index
    %200 = vector.load %arg6[%c2_258, %c1_259, %c0_260, %c0_261] : memref<3x3x4x128xbf16, #tpu.memory_space<vmem>>, vector<1x1x4x128xbf16>
    %201 = vector.shape_cast %200 : vector<1x1x4x128xbf16> to vector<4x128xbf16>
    %cst_262 = arith.constant dense<0.000000e+00> : vector<128x128xf32>
    %202 = tpu.matmul %199, %201, %cst_262 {dimension_numbers = #tpu.dot_dimension_numbers<[1], [0], [0], [1], [0, 0, 1, 1], [], []>} : vector<128x4xbf16>, vector<4x128xbf16>, vector<128x128xf32> -> vector<128x128xf32>
    %203 = arith.addf %197, %202 : vector<128x128xf32>
    %c2_263 = arith.constant 2 : index
    %c2_264 = arith.constant 2 : index
    %c0_265 = arith.constant 0 : index
    %204 = vector.load %arg11[%c2_263, %c2_264, %c0_265] : memref<18x18x4xbf16, #tpu.memory_space<vmem>>, vector<8x16x4xbf16>
    %205 = vector.shape_cast %204 : vector<8x16x4xbf16> to vector<128x4xbf16>
    %c2_266 = arith.constant 2 : index
    %c2_267 = arith.constant 2 : index
    %c0_268 = arith.constant 0 : index
    %c0_269 = arith.constant 0 : index
    %206 = vector.load %arg6[%c2_266, %c2_267, %c0_268, %c0_269] : memref<3x3x4x128xbf16, #tpu.memory_space<vmem>>, vector<1x1x4x128xbf16>
    %207 = vector.shape_cast %206 : vector<1x1x4x128xbf16> to vector<4x128xbf16>
    %cst_270 = arith.constant dense<0.000000e+00> : vector<128x128xf32>
    %208 = tpu.matmul %205, %207, %cst_270 {dimension_numbers = #tpu.dot_dimension_numbers<[1], [0], [0], [1], [0, 0, 1, 1], [], []>} : vector<128x4xbf16>, vector<4x128xbf16>, vector<128x128xf32> -> vector<128x128xf32>
    %209 = arith.addf %203, %208 : vector<128x128xf32>
    %c0_271 = arith.constant 0 : index
    %c0_272 = arith.constant 0 : index
    %210 = vector.load %arg7[%c0_271, %c0_272] : memref<1x128xf32, #tpu.memory_space<vmem>>, vector<1x128xf32>
    %211 = vector.broadcast %210 : vector<1x128xf32> to vector<128x128xf32>
    %212 = arith.mulf %209, %211 : vector<128x128xf32>
    %c0_273 = arith.constant 0 : index
    %c0_274 = arith.constant 0 : index
    %213 = vector.load %arg8[%c0_273, %c0_274] : memref<1x128xf32, #tpu.memory_space<vmem>>, vector<1x128xf32>
    %214 = vector.broadcast %213 : vector<1x128xf32> to vector<128x128xf32>
    %215 = arith.addf %212, %214 : vector<128x128xf32>
    %cst_275 = arith.constant 0.000000e+00 : f32
    %216 = vector.broadcast %cst_275 : f32 to vector<128x128xf32>
    %217 = arith.maximumf %215, %216 : vector<128x128xf32>
    %218 = vector.shape_cast %217 : vector<128x128xf32> to vector<8x16x128xf32>
    %c0_276 = arith.constant 0 : index
    %c0_277 = arith.constant 0 : index
    %c0_278 = arith.constant 0 : index
    %c0_279 = arith.constant 0 : index
    %219 = vector.load %arg9[%c0_276, %c0_277, %c0_278, %c0_279] : memref<1x16x16x128xf32, #tpu.memory_space<vmem>>, vector<1x8x16x128xf32>
    %220 = vector.shape_cast %219 : vector<1x8x16x128xf32> to vector<8x16x128xf32>
    %221 = vector.shape_cast %218 : vector<8x16x128xf32> to vector<1x8x16x128xf32>
    tpu.vector_store %arg9[%c0_276, %c0_277, %c0_278, %c0_279], %221 {strides = array<i32>} : memref<1x16x16x128xf32, #tpu.memory_space<vmem>>, vector<1x8x16x128xf32>,
    %cst_280 = arith.constant 0.000000e+00 : f32
    %222 = vector.broadcast %cst_280 : f32 to vector<128x128xf32>
    %c8_281 = arith.constant 8 : index
    %c0_282 = arith.constant 0 : index
    %c0_283 = arith.constant 0 : index
    %223 = vector.load %arg11[%c8_281, %c0_282, %c0_283] : memref<18x18x4xbf16, #tpu.memory_space<vmem>>, vector<8x16x4xbf16>
    %224 = vector.shape_cast %223 : vector<8x16x4xbf16> to vector<128x4xbf16>
    %c0_284 = arith.constant 0 : index
    %c0_285 = arith.constant 0 : index
    %c0_286 = arith.constant 0 : index
    %c0_287 = arith.constant 0 : index
    %225 = vector.load %arg6[%c0_284, %c0_285, %c0_286, %c0_287] : memref<3x3x4x128xbf16, #tpu.memory_space<vmem>>, vector<1x1x4x128xbf16>
    %226 = vector.shape_cast %225 : vector<1x1x4x128xbf16> to vector<4x128xbf16>
    %cst_288 = arith.constant dense<0.000000e+00> : vector<128x128xf32>
    %227 = tpu.matmul %224, %226, %cst_288 {dimension_numbers = #tpu.dot_dimension_numbers<[1], [0], [0], [1], [0, 0, 1, 1], [], []>} : vector<128x4xbf16>, vector<4x128xbf16>, vector<128x128xf32> -> vector<128x128xf32>
    %228 = arith.addf %222, %227 : vector<128x128xf32>
    %c8_289 = arith.constant 8 : index
    %c1_290 = arith.constant 1 : index
    %c0_291 = arith.constant 0 : index
    %229 = vector.load %arg11[%c8_289, %c1_290, %c0_291] : memref<18x18x4xbf16, #tpu.memory_space<vmem>>, vector<8x16x4xbf16>
    %230 = vector.shape_cast %229 : vector<8x16x4xbf16> to vector<128x4xbf16>
    %c0_292 = arith.constant 0 : index
    %c1_293 = arith.constant 1 : index
    %c0_294 = arith.constant 0 : index
    %c0_295 = arith.constant 0 : index
    %231 = vector.load %arg6[%c0_292, %c1_293, %c0_294, %c0_295] : memref<3x3x4x128xbf16, #tpu.memory_space<vmem>>, vector<1x1x4x128xbf16>
    %232 = vector.shape_cast %231 : vector<1x1x4x128xbf16> to vector<4x128xbf16>
    %cst_296 = arith.constant dense<0.000000e+00> : vector<128x128xf32>
    %233 = tpu.matmul %230, %232, %cst_296 {dimension_numbers = #tpu.dot_dimension_numbers<[1], [0], [0], [1], [0, 0, 1, 1], [], []>} : vector<128x4xbf16>, vector<4x128xbf16>, vector<128x128xf32> -> vector<128x128xf32>
    %234 = arith.addf %228, %233 : vector<128x128xf32>
    %c8_297 = arith.constant 8 : index
    %c2_298 = arith.constant 2 : index
    %c0_299 = arith.constant 0 : index
    %235 = vector.load %arg11[%c8_297, %c2_298, %c0_299] : memref<18x18x4xbf16, #tpu.memory_space<vmem>>, vector<8x16x4xbf16>
    %236 = vector.shape_cast %235 : vector<8x16x4xbf16> to vector<128x4xbf16>
    %c0_300 = arith.constant 0 : index
    %c2_301 = arith.constant 2 : index
    %c0_302 = arith.constant 0 : index
    %c0_303 = arith.constant 0 : index
    %237 = vector.load %arg6[%c0_300, %c2_301, %c0_302, %c0_303] : memref<3x3x4x128xbf16, #tpu.memory_space<vmem>>, vector<1x1x4x128xbf16>
    %238 = vector.shape_cast %237 : vector<1x1x4x128xbf16> to vector<4x128xbf16>
    %cst_304 = arith.constant dense<0.000000e+00> : vector<128x128xf32>
    %239 = tpu.matmul %236, %238, %cst_304 {dimension_numbers = #tpu.dot_dimension_numbers<[1], [0], [0], [1], [0, 0, 1, 1], [], []>} : vector<128x4xbf16>, vector<4x128xbf16>, vector<128x128xf32> -> vector<128x128xf32>
    %240 = arith.addf %234, %239 : vector<128x128xf32>
    %c9_305 = arith.constant 9 : index
    %c0_306 = arith.constant 0 : index
    %c0_307 = arith.constant 0 : index
    %241 = vector.load %arg11[%c9_305, %c0_306, %c0_307] : memref<18x18x4xbf16, #tpu.memory_space<vmem>>, vector<8x16x4xbf16>
    %242 = vector.shape_cast %241 : vector<8x16x4xbf16> to vector<128x4xbf16>
    %c1_308 = arith.constant 1 : index
    %c0_309 = arith.constant 0 : index
    %c0_310 = arith.constant 0 : index
    %c0_311 = arith.constant 0 : index
    %243 = vector.load %arg6[%c1_308, %c0_309, %c0_310, %c0_311] : memref<3x3x4x128xbf16, #tpu.memory_space<vmem>>, vector<1x1x4x128xbf16>
    %244 = vector.shape_cast %243 : vector<1x1x4x128xbf16> to vector<4x128xbf16>
    %cst_312 = arith.constant dense<0.000000e+00> : vector<128x128xf32>
    %245 = tpu.matmul %242, %244, %cst_312 {dimension_numbers = #tpu.dot_dimension_numbers<[1], [0], [0], [1], [0, 0, 1, 1], [], []>} : vector<128x4xbf16>, vector<4x128xbf16>, vector<128x128xf32> -> vector<128x128xf32>
    %246 = arith.addf %240, %245 : vector<128x128xf32>
    %c9_313 = arith.constant 9 : index
    %c1_314 = arith.constant 1 : index
    %c0_315 = arith.constant 0 : index
    %247 = vector.load %arg11[%c9_313, %c1_314, %c0_315] : memref<18x18x4xbf16, #tpu.memory_space<vmem>>, vector<8x16x4xbf16>
    %248 = vector.shape_cast %247 : vector<8x16x4xbf16> to vector<128x4xbf16>
    %c1_316 = arith.constant 1 : index
    %c1_317 = arith.constant 1 : index
    %c0_318 = arith.constant 0 : index
    %c0_319 = arith.constant 0 : index
    %249 = vector.load %arg6[%c1_316, %c1_317, %c0_318, %c0_319] : memref<3x3x4x128xbf16, #tpu.memory_space<vmem>>, vector<1x1x4x128xbf16>
    %250 = vector.shape_cast %249 : vector<1x1x4x128xbf16> to vector<4x128xbf16>
    %cst_320 = arith.constant dense<0.000000e+00> : vector<128x128xf32>
    %251 = tpu.matmul %248, %250, %cst_320 {dimension_numbers = #tpu.dot_dimension_numbers<[1], [0], [0], [1], [0, 0, 1, 1], [], []>} : vector<128x4xbf16>, vector<4x128xbf16>, vector<128x128xf32> -> vector<128x128xf32>
    %252 = arith.addf %246, %251 : vector<128x128xf32>
    %c9_321 = arith.constant 9 : index
    %c2_322 = arith.constant 2 : index
    %c0_323 = arith.constant 0 : index
    %253 = vector.load %arg11[%c9_321, %c2_322, %c0_323] : memref<18x18x4xbf16, #tpu.memory_space<vmem>>, vector<8x16x4xbf16>
    %254 = vector.shape_cast %253 : vector<8x16x4xbf16> to vector<128x4xbf16>
    %c1_324 = arith.constant 1 : index
    %c2_325 = arith.constant 2 : index
    %c0_326 = arith.constant 0 : index
    %c0_327 = arith.constant 0 : index
    %255 = vector.load %arg6[%c1_324, %c2_325, %c0_326, %c0_327] : memref<3x3x4x128xbf16, #tpu.memory_space<vmem>>, vector<1x1x4x128xbf16>
    %256 = vector.shape_cast %255 : vector<1x1x4x128xbf16> to vector<4x128xbf16>
    %cst_328 = arith.constant dense<0.000000e+00> : vector<128x128xf32>
    %257 = tpu.matmul %254, %256, %cst_328 {dimension_numbers = #tpu.dot_dimension_numbers<[1], [0], [0], [1], [0, 0, 1, 1], [], []>} : vector<128x4xbf16>, vector<4x128xbf16>, vector<128x128xf32> -> vector<128x128xf32>
    %258 = arith.addf %252, %257 : vector<128x128xf32>
    %c10_329 = arith.constant 10 : index
    %c0_330 = arith.constant 0 : index
    %c0_331 = arith.constant 0 : index
    %259 = vector.load %arg11[%c10_329, %c0_330, %c0_331] : memref<18x18x4xbf16, #tpu.memory_space<vmem>>, vector<8x16x4xbf16>
    %260 = vector.shape_cast %259 : vector<8x16x4xbf16> to vector<128x4xbf16>
    %c2_332 = arith.constant 2 : index
    %c0_333 = arith.constant 0 : index
    %c0_334 = arith.constant 0 : index
    %c0_335 = arith.constant 0 : index
    %261 = vector.load %arg6[%c2_332, %c0_333, %c0_334, %c0_335] : memref<3x3x4x128xbf16, #tpu.memory_space<vmem>>, vector<1x1x4x128xbf16>
    %262 = vector.shape_cast %261 : vector<1x1x4x128xbf16> to vector<4x128xbf16>
    %cst_336 = arith.constant dense<0.000000e+00> : vector<128x128xf32>
    %263 = tpu.matmul %260, %262, %cst_336 {dimension_numbers = #tpu.dot_dimension_numbers<[1], [0], [0], [1], [0, 0, 1, 1], [], []>} : vector<128x4xbf16>, vector<4x128xbf16>, vector<128x128xf32> -> vector<128x128xf32>
    %264 = arith.addf %258, %263 : vector<128x128xf32>
    %c10_337 = arith.constant 10 : index
    %c1_338 = arith.constant 1 : index
    %c0_339 = arith.constant 0 : index
    %265 = vector.load %arg11[%c10_337, %c1_338, %c0_339] : memref<18x18x4xbf16, #tpu.memory_space<vmem>>, vector<8x16x4xbf16>
    %266 = vector.shape_cast %265 : vector<8x16x4xbf16> to vector<128x4xbf16>
    %c2_340 = arith.constant 2 : index
    %c1_341 = arith.constant 1 : index
    %c0_342 = arith.constant 0 : index
    %c0_343 = arith.constant 0 : index
    %267 = vector.load %arg6[%c2_340, %c1_341, %c0_342, %c0_343] : memref<3x3x4x128xbf16, #tpu.memory_space<vmem>>, vector<1x1x4x128xbf16>
    %268 = vector.shape_cast %267 : vector<1x1x4x128xbf16> to vector<4x128xbf16>
    %cst_344 = arith.constant dense<0.000000e+00> : vector<128x128xf32>
    %269 = tpu.matmul %266, %268, %cst_344 {dimension_numbers = #tpu.dot_dimension_numbers<[1], [0], [0], [1], [0, 0, 1, 1], [], []>} : vector<128x4xbf16>, vector<4x128xbf16>, vector<128x128xf32> -> vector<128x128xf32>
    %270 = arith.addf %264, %269 : vector<128x128xf32>
    %c10_345 = arith.constant 10 : index
    %c2_346 = arith.constant 2 : index
    %c0_347 = arith.constant 0 : index
    %271 = vector.load %arg11[%c10_345, %c2_346, %c0_347] : memref<18x18x4xbf16, #tpu.memory_space<vmem>>, vector<8x16x4xbf16>
    %272 = vector.shape_cast %271 : vector<8x16x4xbf16> to vector<128x4xbf16>
    %c2_348 = arith.constant 2 : index
    %c2_349 = arith.constant 2 : index
    %c0_350 = arith.constant 0 : index
    %c0_351 = arith.constant 0 : index
    %273 = vector.load %arg6[%c2_348, %c2_349, %c0_350, %c0_351] : memref<3x3x4x128xbf16, #tpu.memory_space<vmem>>, vector<1x1x4x128xbf16>
    %274 = vector.shape_cast %273 : vector<1x1x4x128xbf16> to vector<4x128xbf16>
    %cst_352 = arith.constant dense<0.000000e+00> : vector<128x128xf32>
    %275 = tpu.matmul %272, %274, %cst_352 {dimension_numbers = #tpu.dot_dimension_numbers<[1], [0], [0], [1], [0, 0, 1, 1], [], []>} : vector<128x4xbf16>, vector<4x128xbf16>, vector<128x128xf32> -> vector<128x128xf32>
    %276 = arith.addf %270, %275 : vector<128x128xf32>
    %c0_353 = arith.constant 0 : index
    %c0_354 = arith.constant 0 : index
    %277 = vector.load %arg7[%c0_353, %c0_354] : memref<1x128xf32, #tpu.memory_space<vmem>>, vector<1x128xf32>
    %278 = vector.broadcast %277 : vector<1x128xf32> to vector<128x128xf32>
    %279 = arith.mulf %276, %278 : vector<128x128xf32>
    %c0_355 = arith.constant 0 : index
    %c0_356 = arith.constant 0 : index
    %280 = vector.load %arg8[%c0_355, %c0_356] : memref<1x128xf32, #tpu.memory_space<vmem>>, vector<1x128xf32>
    %281 = vector.broadcast %280 : vector<1x128xf32> to vector<128x128xf32>
    %282 = arith.addf %279, %281 : vector<128x128xf32>
    %cst_357 = arith.constant 0.000000e+00 : f32
    %283 = vector.broadcast %cst_357 : f32 to vector<128x128xf32>
    %284 = arith.maximumf %282, %283 : vector<128x128xf32>
    %285 = vector.shape_cast %284 : vector<128x128xf32> to vector<8x16x128xf32>
    %c0_358 = arith.constant 0 : index
    %c8_359 = arith.constant 8 : index
    %c0_360 = arith.constant 0 : index
    %c0_361 = arith.constant 0 : index
    %286 = vector.load %arg9[%c0_358, %c8_359, %c0_360, %c0_361] : memref<1x16x16x128xf32, #tpu.memory_space<vmem>>, vector<1x8x16x128xf32>
    %287 = vector.shape_cast %286 : vector<1x8x16x128xf32> to vector<8x16x128xf32>
    %288 = vector.shape_cast %285 : vector<8x16x128xf32> to vector<1x8x16x128xf32>
    tpu.vector_store %arg9[%c0_358, %c8_359, %c0_360, %c0_361], %288 {strides = array<i32>} : memref<1x16x16x128xf32, #tpu.memory_space<vmem>>, vector<1x8x16x128xf32>,
    return
  }
  func.func @transform_0(%arg0: i32) -> (i32, i32, i32, i32) {
    %c0_i32 = arith.constant 0 : i32
    %c0_i32_0 = arith.constant 0 : i32
    %c0_i32_1 = arith.constant 0 : i32
    %c0_i32_2 = arith.constant 0 : i32
    return %arg0, %c0_i32, %c0_i32_0, %c0_i32_1 : i32, i32, i32, i32
  }
  func.func @transform_1(%arg0: i32) -> (i32, i32, i32, i32) {
    %c0_i32 = arith.constant 0 : i32
    %c0_i32_0 = arith.constant 0 : i32
    %c0_i32_1 = arith.constant 0 : i32
    %c0_i32_2 = arith.constant 0 : i32
    return %arg0, %c0_i32, %c0_i32_0, %c0_i32_1 : i32, i32, i32, i32
  }
  func.func @transform_2(%arg0: i32) -> (i32, i32, i32, i32) {
    %c0_i32 = arith.constant 0 : i32
    %c0_i32_0 = arith.constant 0 : i32
    %c0_i32_1 = arith.constant 0 : i32
    %c0_i32_2 = arith.constant 0 : i32
    %c0_i32_3 = arith.constant 0 : i32
    return %c0_i32, %c0_i32_0, %c0_i32_1, %c0_i32_2 : i32, i32, i32, i32
  }
  func.func @transform_3(%arg0: i32) -> (i32, i32) {
    %c0_i32 = arith.constant 0 : i32
    %c0_i32_0 = arith.constant 0 : i32
    %c0_i32_1 = arith.constant 0 : i32
    return %c0_i32, %c0_i32_0 : i32, i32
  }
  func.func @transform_4(%arg0: i32) -> (i32, i32) {
    %c0_i32 = arith.constant 0 : i32
    %c0_i32_0 = arith.constant 0 : i32
    %c0_i32_1 = arith.constant 0 : i32
    return %c0_i32, %c0_i32_0 : i32, i32
  }
  func.func @transform_5(%arg0: i32) -> (i32, i32, i32, i32) {
    %c0_i32 = arith.constant 0 : i32
    %c0_i32_0 = arith.constant 0 : i32
    %c0_i32_1 = arith.constant 0 : i32
    %c0_i32_2 = arith.constant 0 : i32
    %c0_i32_3 = arith.constant 0 : i32
    return %c0_i32, %c0_i32_0, %c0_i32_1, %c0_i32_2 : i32, i32, i32, i32
  }
  func.func @transform_6(%arg0: i32) -> (i32, i32) {
    %c0_i32 = arith.constant 0 : i32
    %c0_i32_0 = arith.constant 0 : i32
    %c0_i32_1 = arith.constant 0 : i32
    return %c0_i32, %c0_i32_0 : i32, i32
  }
  func.func @transform_7(%arg0: i32) -> (i32, i32) {
    %c0_i32 = arith.constant 0 : i32
    %c0_i32_0 = arith.constant 0 : i32
    %c0_i32_1 = arith.constant 0 : i32
    return %c0_i32, %c0_i32_0 : i32, i32
  }
  func.func @transform_8(%arg0: i32) -> (i32, i32, i32, i32) {
    %c0_i32 = arith.constant 0 : i32
    %c0_i32_0 = arith.constant 0 : i32
    %c0_i32_1 = arith.constant 0 : i32
    %c0_i32_2 = arith.constant 0 : i32
    return %arg0, %c0_i32, %c0_i32_0, %c0_i32_1 : i32, i32, i32, i32
  }
}

</mosaic_0001>

<llo_original>
// kernel: up_forward.2
$region0: #{up_forward.2}
  #allocation0 [shape = 'u32[]', space=smem, size = 0x4, offset = 0x4, fixed_abs, tag = 'smem constant byte address 0x4 - core index']
  #allocation1 [shape = 'u32[72,128]{1,0:T(1,128)}', space=vmem, size = 0x9000, scoped, tag = 'internal scratch']
  #allocation2 [shape = 'bf16[9,9,8]{2,1,0:T(8,128)(2,1)}', space=vmem, size = 0x9000, scoped, tag = 'scratch operand']
  %s0 = inlined_call_operand.vmem [shape: f32[2,7,7,8], index: 0, kind: input, shape index: {}]
  %s1 = inlined_call_operand.vmem [shape: bf16[3,3,8,4], index: 1, kind: input, shape index: {}]
  %s2 = inlined_call_operand.vmem [shape: f32[1,4], index: 2, kind: input, shape index: {}]
  %s3 = inlined_call_operand.vmem [shape: bf16[2,8,2,8,8], index: 3, kind: output, shape index: {}]
  %s4 = sld [smem:[#allocation0]]
  $region45: #{up_forward.2} parent=0
    _
  %s6 = ssub.s32 1, %s4
  %s7 = scalar_select 0, %s6, %s4
  loop: start=0, step=1, limit=4
  $region2: #{up_forward.2} parent=0 // loop_pre_header
    _
  $region3: #{up_forward.2} parent=0 // loop_header
    %s9 = sphi 0, %s13
    %p10 = scmp.ge.s32.totalorder %s9, 4
    %s19 = sphi 0, %s21
    %s22 = sphi 0, %s19
    %s23 = sphi 0, %s22
    %s39 = sphi 0, %s23
    %s43 = sphi 0, %s43
    %s45 = sphi 0, %s43
    %s46 = sphi 0, %s45
    %s60 = sphi 0, %s46
    %s64 = sphi 0, %s64
    %s66 = sphi 0, %s64
    %s67 = sphi 0, %s66
    %s81 = sphi 0, %s67
    %s87 = sphi 0, %s89
    %s90 = sphi 0, %s87
    %s91 = sphi 0, %s90
    %s107 = sphi 0, %s91
  $region4: #{up_forward.2} parent=0 // loop_header_branch
    %12 = sbr.rel (%p10) target = $region8
  $region5: #{up_forward.2} parent=0 // loop_body
    %s14 = ssub.s32 %s9, 1
    %s15 = ssub.s32 %s9, 2
    %s16 = sadd.s32 %s9, 1
    %s17 = ssub.s32 %s9, %s16
    %p18 = scmp.eq.s32.totalorder %s17, 0
    %s20 = sadd.s32 %s19, 1
    %s21 = scalar_select %p18, %s19, %s20
    %p24 = pneg %p18
    %p25 = scmp.eq.s32.totalorder %s9, 1
    %p26 = por %p24, %p25
    %p27 = scmp.ne.s32.totalorder %s19, %s22
    %p28 = scmp.eq.s32.totalorder %s9, 0
    %p29 = por %p27, %p28
    %p30 = scmp.ne.s32.totalorder %s19, %s22
    %p31 = scmp.eq.s32.totalorder %s14, 1
    %p32 = por %p30, %p31
    %p33 = scmp.ne.s32.totalorder %s22, %s23
    %p34 = scmp.eq.s32.totalorder %s14, 0
    %p35 = por %p33, %p34
    %p36 = scmp.ne.s32.totalorder %s22, %s23
    %p37 = scmp.eq.s32.totalorder %s15, 1
    %p38 = por %p36, %p37
    %p40 = scmp.ne.s32.totalorder %s23, %s39
    %p41 = scmp.eq.s32.totalorder %s15, 0
    %p42 = por %p40, %p41
    %s44 = sadd.s32 %s43, 1
    %p47 = scmp.eq.s32.totalorder %s9, 1
    %p48 = scmp.ne.s32.totalorder %s43, %s45
    %p49 = scmp.eq.s32.totalorder %s9, 0
    %p50 = por %p48, %p49
    %p51 = scmp.ne.s32.totalorder %s43, %s45
    %p52 = scmp.eq.s32.totalorder %s14, 1
    %p53 = por %p51, %p52
    %p54 = scmp.ne.s32.totalorder %s45, %s46
    %p55 = scmp.eq.s32.totalorder %s14, 0
    %p56 = por %p54, %p55
    %p57 = scmp.ne.s32.totalorder %s45, %s46
    %p58 = scmp.eq.s32.totalorder %s15, 1
    %p59 = por %p57, %p58
    %p61 = scmp.ne.s32.totalorder %s46, %s60
    %p62 = scmp.eq.s32.totalorder %s15, 0
    %p63 = por %p61, %p62
    %s65 = sadd.s32 %s64, 1
    %p68 = scmp.eq.s32.totalorder %s9, 1
    %p69 = scmp.ne.s32.totalorder %s64, %s66
    %p70 = scmp.eq.s32.totalorder %s9, 0
    %p71 = por %p69, %p70
    %p72 = scmp.ne.s32.totalorder %s64, %s66
    %p73 = scmp.eq.s32.totalorder %s14, 1
    %p74 = por %p72, %p73
    %p75 = scmp.ne.s32.totalorder %s66, %s67
    %p76 = scmp.eq.s32.totalorder %s14, 0
    %p77 = por %p75, %p76
    %p78 = scmp.ne.s32.totalorder %s66, %s67
    %p79 = scmp.eq.s32.totalorder %s15, 1
    %p80 = por %p78, %p79
    %p82 = scmp.ne.s32.totalorder %s67, %s81
    %p83 = scmp.eq.s32.totalorder %s15, 0
    %p84 = por %p82, %p83
    %s85 = ssub.s32 %s9, %s16
    %p86 = scmp.eq.s32.totalorder %s85, 0
    %s88 = sadd.s32 %s87, 1
    %s89 = scalar_select %p86, %s87, %s88
    %p92 = pneg %p86
    %p93 = scmp.eq.s32.totalorder %s9, 1
    %p94 = por %p92, %p93
    %p95 = scmp.ne.s32.totalorder %s87, %s90
    %p96 = scmp.eq.s32.totalorder %s9, 0
    %p97 = por %p95, %p96
    %p98 = scmp.ne.s32.totalorder %s87, %s90
    %p99 = scmp.eq.s32.totalorder %s14, 1
    %p100 = por %p98, %p99
    %p101 = scmp.ne.s32.totalorder %s90, %s91
    %p102 = scmp.eq.s32.totalorder %s14, 0
    %p103 = por %p101, %p102
    %p104 = scmp.ne.s32.totalorder %s90, %s91
    %p105 = scmp.eq.s32.totalorder %s15, 1
    %p106 = por %p104, %p105
    %p108 = scmp.ne.s32.totalorder %s91, %s107
    %p109 = scmp.eq.s32.totalorder %s15, 0
    %p110 = por %p108, %p109
    %p111 = scmp.le.s32.totalorder 1, %s9
    %p112 = scmp.lt.s32.totalorder %s9, 3
    %p113 = pnand %p111, %p112
    %p114 = pneg %p113
    // Predicated region
    $region9: #{up_forward.2} parent=5 // pred_check
      _
    $region10: #{up_forward.2} parent=5 // pred_check_branch
      %116 = sbr.rel (%p113) target = $region12
    $region11: #{up_forward.2} parent=5 // pred_region
      %s117 = ssub.s32 %s9, 1
      // Predicated region
      $region13: #{up_forward.2} parent=11 // pred_check
        %p118 = pneg %p56
      $region14: #{up_forward.2} parent=11 // pred_check_branch
        %120 = sbr.rel (%p118) target = $region16
      $region15: #{up_forward.2} parent=11 // pred_region
        _
      $region16: #{up_forward.2} parent=11 // pred_fallthru
        _
      // Predicated region
      $region17: #{up_forward.2} parent=11 // pred_check
        %p121 = pneg %p77
      $region18: #{up_forward.2} parent=11 // pred_check_branch
        %123 = sbr.rel (%p121) target = $region20
      $region19: #{up_forward.2} parent=11 // pred_region
        _
      $region20: #{up_forward.2} parent=11 // pred_fallthru
        _
    $region12: #{up_forward.2} parent=5 // pred_fallthru
      _
    %p124 = scmp.lt.s32.totalorder %s9, 2
    // Predicated region
    $region21: #{up_forward.2} parent=5 // pred_check
      %p125 = pneg %p124
    $region22: #{up_forward.2} parent=5 // pred_check_branch
      %127 = sbr.rel (%p125) target = $region24
    $region23: #{up_forward.2} parent=5 // pred_region
      // Predicated region
      $region25: #{up_forward.2} parent=23 // pred_check
        %p128 = pneg %p29
      $region26: #{up_forward.2} parent=23 // pred_check_branch
        %130 = sbr.rel (%p128) target = $region28
      $region27: #{up_forward.2} parent=23 // pred_region
        %p131 = scmp.lt.s32.totalorder %s9, 1
        %s132 = scalar_select %p131, %s9, 1
        %s133 = smul.addr %s132, 7
        %s134 = smul.addr %s133, 8
        %s135 = scalar_lea.vmem %s0, %s134
      $region28: #{up_forward.2} parent=23 // pred_fallthru
        _
    $region24: #{up_forward.2} parent=5 // pred_fallthru
      _
    %p136 = scmp.le.s32.totalorder 1, %s9
    %p137 = scmp.lt.s32.totalorder %s9, 3
    %p138 = pnand %p136, %p137
    %p139 = pneg %p138
    // Predicated region
    $region29: #{up_forward.2} parent=5 // pred_check
      _
    $region30: #{up_forward.2} parent=5 // pred_check_branch
      %141 = sbr.rel (%p138) target = $region32
    $region31: #{up_forward.2} parent=5 // pred_region
      %s142 = ssub.s32 %s9, 1
      %p143 = scmp.lt.s32.totalorder %s14, 1
      %s144 = scalar_select %p143, %s14, 1
      %s145 = smul.addr %s144, 7
      %s146 = smul.addr %s145, 8
      %s147 = scalar_lea.vmem %s0, %s146
      %p148 = pneg %p35
      %p149 = pneg %p32
      %p150 = pneg %p56
      %p151 = pneg %p53
      %p152 = pneg %p77
      %p153 = pneg %p74
      %p154 = pneg %p103
      %p155 = pneg %p100
      %p156 = scmp.lt.s32.totalorder %s14, 1
      %s157 = scalar_select %p156, %s14, 1
      %s158 = smul.addr %s157, 16
      %s159 = smul.addr %s158, 4
      %s160 = scalar_lea.vmem %s3, %s159
      %p161 = scmp.lt.s32.totalorder %s14, 1
      %s162 = scalar_select %p161, %s14, 1
      %s163 = smul.addr %s162, 7
      %s164 = smul.addr %s163, 8
      %s165 = scalar_lea.vmem %s0, %s164
      %p166 = scmp.lt.s32.totalorder %s14, 1
      %s167 = scalar_select %p166, %s14, 1
      %s168 = smul.addr %s167, 16
      %s169 = smul.addr %s168, 4
      %s170 = scalar_lea.vmem %s3, %s169
      %vm172 = vcmask 60416
      %173 = vst.msk [vmem:[#allocation2] sm:$0xf] %vm172, 0
      %vm174 = vcmask 57344
      %vm175 = vsmask.f32 256
      %vm176 = vmand %vm174, %vm175
      %v177 = vld [vmem:[#allocation2 + $0x4] sm:$0x1]
      %v178 = vsel %vm176, 0, %v177
      %179 = vst [vmem:[#allocation2 + $0x4] sm:$0x1] %v178
      %s180 = scalar_lea.vmem [#allocation2], 64
      %181 = vst.msk [vmem:[%s180] sm:$0xf] %vm172, 0
      %v182 = vld [vmem:[%s180 + $0x4] sm:$0x1]
      %v183 = vsel %vm176, 0, %v182
      %184 = vst [vmem:[%s180 + $0x4] sm:$0x1] %v183
      %v185 = vld [vmem:[#allocation2] sm:$0x1]
      %v186 = vsel %vm176, 0, %v185
      %187 = vst [vmem:[#allocation2] sm:$0x1] %v186
      %v188 = vld [vmem:[#allocation2 + $0x8] sm:$0x1]
      %v189 = vsel %vm176, 0, %v188
      %190 = vst [vmem:[#allocation2 + $0x8] sm:$0x1] %v189
      %v191 = vld [vmem:[#allocation2 + $0x10] sm:$0x1]
      %v192 = vsel %vm176, 0, %v191
      %193 = vst [vmem:[#allocation2 + $0x10] sm:$0x1] %v192
      %v194 = vld [vmem:[#allocation2 + $0x18] sm:$0x1]
      %v195 = vsel %vm176, 0, %v194
      %196 = vst [vmem:[#allocation2 + $0x18] sm:$0x1] %v195
      %v197 = vld [vmem:[#allocation2 + $0x20] sm:$0x1]
      %v198 = vsel %vm176, 0, %v197
      %199 = vst [vmem:[#allocation2 + $0x20] sm:$0x1] %v198
      %v200 = vld [vmem:[#allocation2 + $0x28] sm:$0x1]
      %v201 = vsel %vm176, 0, %v200
      %202 = vst [vmem:[#allocation2 + $0x28] sm:$0x1] %v201
      %v203 = vld [vmem:[#allocation2 + $0x30] sm:$0x1]
      %v204 = vsel %vm176, 0, %v203
      %205 = vst [vmem:[#allocation2 + $0x30] sm:$0x1] %v204
      %v206 = vld [vmem:[#allocation2 + $0x38] sm:$0x1]
      %v207 = vsel %vm176, 0, %v206
      %208 = vst [vmem:[#allocation2 + $0x38] sm:$0x1] %v207
      %v209 = vld [vmem:[#allocation2 + $0x40] sm:$0x1]
      %v210 = vsel %vm176, 0, %v209
      %211 = vst [vmem:[#allocation2 + $0x40] sm:$0x1] %v210
      %v212 = vld [vmem:[#allocation2 + $0x4] sm:$0x1]
      %v213 = vsel %vm176, 0, %v212
      %214 = vst [vmem:[#allocation2 + $0x4] sm:$0x1] %v213
      %v215 = vld [vmem:[#allocation2 + $0xc] sm:$0x1]
      %v216 = vsel %vm176, 0, %v215
      %217 = vst [vmem:[#allocation2 + $0xc] sm:$0x1] %v216
      %v218 = vld [vmem:[#allocation2 + $0x14] sm:$0x1]
      %v219 = vsel %vm176, 0, %v218
      %220 = vst [vmem:[#allocation2 + $0x14] sm:$0x1] %v219
      %v221 = vld [vmem:[#allocation2 + $0x1c] sm:$0x1]
      %v222 = vsel %vm176, 0, %v221
      %223 = vst [vmem:[#allocation2 + $0x1c] sm:$0x1] %v222
      %v224 = vld [vmem:[#allocation2 + $0x24] sm:$0x1]
      %v225 = vsel %vm176, 0, %v224
      %226 = vst [vmem:[#allocation2 + $0x24] sm:$0x1] %v225
      %v227 = vld [vmem:[#allocation2 + $0x2c] sm:$0x1]
      %v228 = vsel %vm176, 0, %v227
      %229 = vst [vmem:[#allocation2 + $0x2c] sm:$0x1] %v228
      %v230 = vld [vmem:[#allocation2 + $0x34] sm:$0x1]
      %v231 = vsel %vm176, 0, %v230
      %232 = vst [vmem:[#allocation2 + $0x34] sm:$0x1] %v231
      %v233 = vld [vmem:[#allocation2 + $0x3c] sm:$0x1]
      %v234 = vsel %vm176, 0, %v233
      %235 = vst [vmem:[#allocation2 + $0x3c] sm:$0x1] %v234
      %v236 = vld [vmem:[#allocation2 + $0x44] sm:$0x1]
      %v237 = vsel %vm176, 0, %v236
      %238 = vst [vmem:[#allocation2 + $0x44] sm:$0x1] %v237
      %v239 = vld [vmem:[%s165] sm:$0x7f]
      %v240 = vld [vmem:[%s165 + $0x8] sm:$0x7f]
      %v241 = vld [vmem:[%s165 + $0x10] sm:$0x7f]
      %v242 = vld [vmem:[%s165 + $0x18] sm:$0x7f]
      %v243 = vld [vmem:[%s165 + $0x20] sm:$0x7f]
      %v244 = vld [vmem:[%s165 + $0x28] sm:$0x7f]
      %v245 = vld [vmem:[%s165 + $0x30] sm:$0x7f]
      %v246 = vpack.c.bf16 %v239, %v239
      %v247 = vpack.c.bf16 %v240, %v240
      %v248 = vpack.c.bf16 %v241, %v241
      %v249 = vpack.c.bf16 %v242, %v242
      %v250 = vpack.c.bf16 %v243, %v243
      %v251 = vpack.c.bf16 %v244, %v244
      %v252 = vpack.c.bf16 %v245, %v245
      %v254 = vshrl.u32 %v246, 16
      %v256 = vrot.slane %v254, 7
      %v257 = vshll.u32 %v246, 16
      %v259 = vor.u32 %v256, %v257
      %v261 = vshrl.u32 %v247, 16
      %v263 = vrot.slane %v261, 7
      %v264 = vshll.u32 %v247, 16
      %v266 = vor.u32 %v263, %v264
      %v268 = vshrl.u32 %v248, 16
      %v270 = vrot.slane %v268, 7
      %v271 = vshll.u32 %v248, 16
      %v273 = vor.u32 %v270, %v271
      %v275 = vshrl.u32 %v249, 16
      %v277 = vrot.slane %v275, 7
      %v278 = vshll.u32 %v249, 16
      %v280 = vor.u32 %v277, %v278
      %v282 = vshrl.u32 %v250, 16
      %v284 = vrot.slane %v282, 7
      %v285 = vshll.u32 %v250, 16
      %v287 = vor.u32 %v284, %v285
      %v289 = vshrl.u32 %v251, 16
      %v291 = vrot.slane %v289, 7
      %v292 = vshll.u32 %v251, 16
      %v294 = vor.u32 %v291, %v292
      %v296 = vshrl.u32 %v252, 16
      %v298 = vrot.slane %v296, 7
      %v299 = vshll.u32 %v252, 16
      %v301 = vor.u32 %v298, %v299
      %s309 = scalar_lea.vmem [#allocation2], 8
      %vm310 = vcmask 60416
      %vm311 = vsmask.f32 7938
      %vm312 = vmand %vm310, %vm311
      %v313 = vld [vmem:[%s309] sm:$0xf]
      %v314 = vsel %vm312, %v259, %v313
      %315 = vst [vmem:[%s309] sm:$0xf] %v314
      %v316 = vld [vmem:[%s309 + $0x8] sm:$0xf]
      %v317 = vsel %vm312, %v266, %v316
      %318 = vst [vmem:[%s309 + $0x8] sm:$0xf] %v317
      %v319 = vld [vmem:[%s309 + $0x10] sm:$0xf]
      %v320 = vsel %vm312, %v273, %v319
      %321 = vst [vmem:[%s309 + $0x10] sm:$0xf] %v320
      %v322 = vld [vmem:[%s309 + $0x18] sm:$0xf]
      %v323 = vsel %vm312, %v280, %v322
      %324 = vst [vmem:[%s309 + $0x18] sm:$0xf] %v323
      %v325 = vld [vmem:[%s309 + $0x20] sm:$0xf]
      %v326 = vsel %vm312, %v287, %v325
      %327 = vst [vmem:[%s309 + $0x20] sm:$0xf] %v326
      %v328 = vld [vmem:[%s309 + $0x28] sm:$0xf]
      %v329 = vsel %vm312, %v294, %v328
      %330 = vst [vmem:[%s309 + $0x28] sm:$0xf] %v329
      %v331 = vld [vmem:[%s309 + $0x30] sm:$0xf]
      %v332 = vsel %vm312, %v301, %v331
      %333 = vst [vmem:[%s309 + $0x30] sm:$0xf] %v332
      %v334 = vld [vmem:[#allocation2] sm:$0xf]
      %v335 = vld [vmem:[#allocation2 + $0x8] sm:$0xf]
      %v336 = vld [vmem:[#allocation2 + $0x10] sm:$0xf]
      %v337 = vld [vmem:[#allocation2 + $0x18] sm:$0xf]
      %v338 = vld [vmem:[#allocation2 + $0x20] sm:$0xf]
      %v339 = vld [vmem:[#allocation2 + $0x28] sm:$0xf]
      %v340 = vld [vmem:[#allocation2 + $0x30] sm:$0xf]
      %v341 = vld [vmem:[#allocation2 + $0x38] sm:$0xf]
      %s342 = scalar_lea.vmem %s1, 32
      %v343 = vld [vmem:[%s342] sm:$0xf]
      %v344 = vld [vmem:[#allocation2 + $0x4] sm:$0x1]
      %v345 = vld [vmem:[#allocation2 + $0xc] sm:$0x1]
      %v346 = vld [vmem:[#allocation2 + $0x14] sm:$0x1]
      %v347 = vld [vmem:[#allocation2 + $0x1c] sm:$0x1]
      %v348 = vld [vmem:[#allocation2 + $0x24] sm:$0x1]
      %v349 = vld [vmem:[#allocation2 + $0x2c] sm:$0x1]
      %v350 = vld [vmem:[#allocation2 + $0x34] sm:$0x1]
      %v351 = vld [vmem:[#allocation2 + $0x3c] sm:$0x1]
      %vm352 = vsmask.f32 3328
      %vm353 = vsmask.f32 7440
      %vm354 = vmor %vm352, %vm353
      %v356 = vshrl.u32 %v334, 16
      %v358 = vrot.slane %v356, 4
      %v359 = vshll.u32 %v334, 16
      %v361 = vrot.slane %v359, 5
      %v362 = vor.u32 %v358, %v361
      %v363 = vrot.slane %v362, 4
      %v365 = vshll.u32 %v344, 16
      %v367 = vrot.slane %v365, 5
      %v368 = vsel %vm354, %v363, %v367
      %v370 = vshrl.u32 %v335, 16
      %v372 = vrot.slane %v370, 4
      %v373 = vshll.u32 %v335, 16
      %v375 = vrot.slane %v373, 5
      %v376 = vor.u32 %v372, %v375
      %v377 = vrot.slane %v376, 4
      %v379 = vshll.u32 %v345, 16
      %v381 = vrot.slane %v379, 5
      %v382 = vsel %vm354, %v377, %v381
      %v384 = vshrl.u32 %v336, 16
      %v386 = vrot.slane %v384, 4
      %v387 = vshll.u32 %v336, 16
      %v389 = vrot.slane %v387, 5
      %v390 = vor.u32 %v386, %v389
      %v391 = vrot.slane %v390, 4
      %v393 = vshll.u32 %v346, 16
      %v395 = vrot.slane %v393, 5
      %v396 = vsel %vm354, %v391, %v395
      %v398 = vshrl.u32 %v337, 16
      %v400 = vrot.slane %v398, 4
      %v401 = vshll.u32 %v337, 16
      %v403 = vrot.slane %v401, 5
      %v404 = vor.u32 %v400, %v403
      %v405 = vrot.slane %v404, 4
      %v407 = vshll.u32 %v347, 16
      %v409 = vrot.slane %v407, 5
      %v410 = vsel %vm354, %v405, %v409
      %v412 = vshrl.u32 %v338, 16
      %v414 = vrot.slane %v412, 4
      %v415 = vshll.u32 %v338, 16
      %v417 = vrot.slane %v415, 5
      %v418 = vor.u32 %v414, %v417
      %v419 = vrot.slane %v418, 4
      %v421 = vshll.u32 %v348, 16
      %v423 = vrot.slane %v421, 5
      %v424 = vsel %vm354, %v419, %v423
      %v426 = vshrl.u32 %v339, 16
      %v428 = vrot.slane %v426, 4
      %v429 = vshll.u32 %v339, 16
      %v431 = vrot.slane %v429, 5
      %v432 = vor.u32 %v428, %v431
      %v433 = vrot.slane %v432, 4
      %v435 = vshll.u32 %v349, 16
      %v437 = vrot.slane %v435, 5
      %v438 = vsel %vm354, %v433, %v437
      %v440 = vshrl.u32 %v340, 16
      %v442 = vrot.slane %v440, 4
      %v443 = vshll.u32 %v340, 16
      %v445 = vrot.slane %v443, 5
      %v446 = vor.u32 %v442, %v445
      %v447 = vrot.slane %v446, 4
      %v449 = vshll.u32 %v350, 16
      %v451 = vrot.slane %v449, 5
      %v452 = vsel %vm354, %v447, %v451
      %v454 = vshrl.u32 %v341, 16
      %v456 = vrot.slane %v454, 4
      %v457 = vshll.u32 %v341, 16
      %v459 = vrot.slane %v457, 5
      %v460 = vor.u32 %v456, %v459
      %v461 = vrot.slane %v460, 4
      %v463 = vshll.u32 %v351, 16
      %v465 = vrot.slane %v463, 5
      %v466 = vsel %vm354, %v461, %v465
      %s467 = scalar_lea.vmem %s1, 24
      %v468 = vld [vmem:[%s467] sm:$0xf]
      %v469 = vunpack.c.l.b16 %v368
      %v470 = vunpack.c.l.b16 %v382
      %v471 = vunpack.c.l.b16 %v396
      %v472 = vunpack.c.l.b16 %v410
      %v473 = vunpack.c.l.b16 %v424
      %v474 = vunpack.c.l.b16 %v438
      %v475 = vunpack.c.l.b16 %v452
      %v476 = vunpack.c.l.b16 %v466
      %v477 = vpack.c.b16 %v470, %v469
      %v478 = vpack.c.b16 %v472, %v471
      %v479 = vpack.c.b16 %v474, %v473
      %v480 = vpack.c.b16 %v476, %v475
      %vm481 = vcmask 64512
      %v483 = vsel %vm481, %v477, 0
      %v486 = vsel %vm481, %v478, 0
      %v489 = vsel %vm481, %v479, 0
      %v492 = vsel %vm481, %v480, 0
      %vm494 = vcmask 1043456
      %v496 = vsel %vm494, %v468, 0
      %498 = vmatpush.bf16.msra.mxu0 0
      %499 = vmatpush.bf16.msra.mxu0 0
      %500 = vmatpush.bf16.msra.mxu0 0
      %501 = vmatpush.bf16.msra.mxu0 0
      %502 = vmatpush.bf16.msra.mxu0 0
      %503 = vmatpush.bf16.msra.mxu0 0
      %504 = vmatpush.bf16.msra.mxu0 0
      %505 = vmatpush.bf16.msra.mxu0 %v496
      %506 = vmatmul.bf16.gmra.mxu0 %v483
      %v507 = vpop.f32.mrf.mxu0
      %v508 = vadd.f32 0.0, %v507
      %v509 = vpop.f32.mrf.mxu0
      %v510 = vadd.f32 0.0, %v509
      %511 = vmatmul.bf16.gmra.mxu0 %v486
      %v512 = vpop.f32.mrf.mxu0
      %v513 = vadd.f32 0.0, %v512
      %v514 = vpop.f32.mrf.mxu0
      %v515 = vadd.f32 0.0, %v514
      %516 = vmatmul.bf16.gmra.mxu0 %v489
      %v517 = vpop.f32.mrf.mxu0
      %v518 = vadd.f32 0.0, %v517
      %v519 = vpop.f32.mrf.mxu0
      %v520 = vadd.f32 0.0, %v519
      %521 = vmatmul.bf16.gmra.mxu0 %v492
      %v522 = vpop.f32.mrf.mxu0
      %v523 = vadd.f32 0.0, %v522
      %v524 = vpop.f32.mrf.mxu0
      %v525 = vadd.f32 0.0, %v524
      %526 = vdwg.mxu0
      %v535 = vunpack.c.l.b16 %v334
      %v536 = vunpack.c.l.b16 %v335
      %v537 = vunpack.c.l.b16 %v336
      %v538 = vunpack.c.l.b16 %v337
      %v539 = vunpack.c.l.b16 %v338
      %v540 = vunpack.c.l.b16 %v339
      %v541 = vunpack.c.l.b16 %v340
      %v542 = vunpack.c.l.b16 %v341
      %v543 = vpack.c.b16 %v536, %v535
      %v544 = vpack.c.b16 %v538, %v537
      %v545 = vpack.c.b16 %v540, %v539
      %v546 = vpack.c.b16 %v542, %v541
      %v548 = vsel %vm481, %v543, 0
      %v551 = vsel %vm481, %v544, 0
      %v554 = vsel %vm481, %v545, 0
      %v557 = vsel %vm481, %v546, 0
      %v560 = vsel %vm494, %v343, 0
      %562 = vmatpush.bf16.msra.mxu0 0
      %563 = vmatpush.bf16.msra.mxu0 0
      %564 = vmatpush.bf16.msra.mxu0 0
      %565 = vmatpush.bf16.msra.mxu0 0
      %566 = vmatpush.bf16.msra.mxu0 0
      %567 = vmatpush.bf16.msra.mxu0 0
      %568 = vmatpush.bf16.msra.mxu0 0
      %569 = vmatpush.bf16.msra.mxu0 %v560
      %570 = vmatmul.bf16.gmra.mxu0 %v548
      %v571 = vpop.f32.mrf.mxu0
      %v572 = vadd.f32 %v508, %v571
      %v573 = vpop.f32.mrf.mxu0
      %v574 = vadd.f32 %v510, %v573
      %575 = vmatmul.bf16.gmra.mxu0 %v551
      %v576 = vpop.f32.mrf.mxu0
      %v577 = vadd.f32 %v513, %v576
      %v578 = vpop.f32.mrf.mxu0
      %v579 = vadd.f32 %v515, %v578
      %580 = vmatmul.bf16.gmra.mxu0 %v554
      %v581 = vpop.f32.mrf.mxu0
      %v582 = vadd.f32 %v518, %v581
      %v583 = vpop.f32.mrf.mxu0
      %v584 = vadd.f32 %v520, %v583
      %585 = vmatmul.bf16.gmra.mxu0 %v557
      %v586 = vpop.f32.mrf.mxu0
      %v587 = vadd.f32 %v523, %v586
      %v588 = vpop.f32.mrf.mxu0
      %v589 = vadd.f32 %v525, %v588
      %590 = vdwg.mxu0
      %v591 = vld [vmem:[%s309] sm:$0xf]
      %v592 = vld [vmem:[%s309 + $0x8] sm:$0xf]
      %v593 = vld [vmem:[%s309 + $0x10] sm:$0xf]
      %v594 = vld [vmem:[%s309 + $0x18] sm:$0xf]
      %v595 = vld [vmem:[%s309 + $0x20] sm:$0xf]
      %v596 = vld [vmem:[%s309 + $0x28] sm:$0xf]
      %v597 = vld [vmem:[%s309 + $0x30] sm:$0xf]
      %v598 = vld [vmem:[%s309 + $0x38] sm:$0xf]
      %s599 = scalar_lea.vmem %s1, 8
      %v600 = vld [vmem:[%s599] sm:$0xf]
      %v609 = vunpack.c.l.b16 %v591
      %v610 = vunpack.c.l.b16 %v592
      %v611 = vunpack.c.l.b16 %v593
      %v612 = vunpack.c.l.b16 %v594
      %v613 = vunpack.c.l.b16 %v595
      %v614 = vunpack.c.l.b16 %v596
      %v615 = vunpack.c.l.b16 %v597
      %v616 = vunpack.c.l.b16 %v598
      %v617 = vpack.c.b16 %v610, %v609
      %v618 = vpack.c.b16 %v612, %v611
      %v619 = vpack.c.b16 %v614, %v613
      %v620 = vpack.c.b16 %v616, %v615
      %v622 = vsel %vm481, %v617, 0
      %v625 = vsel %vm481, %v618, 0
      %v628 = vsel %vm481, %v619, 0
      %v631 = vsel %vm481, %v620, 0
      %v634 = vsel %vm494, %v600, 0
      %636 = vmatpush.bf16.msra.mxu0 0
      %637 = vmatpush.bf16.msra.mxu0 0
      %638 = vmatpush.bf16.msra.mxu0 0
      %639 = vmatpush.bf16.msra.mxu0 0
      %640 = vmatpush.bf16.msra.mxu0 0
      %641 = vmatpush.bf16.msra.mxu0 0
      %642 = vmatpush.bf16.msra.mxu0 0
      %643 = vmatpush.bf16.msra.mxu0 %v634
      %644 = vmatmul.bf16.gmra.mxu0 %v622
      %v645 = vpop.f32.mrf.mxu0
      %v646 = vadd.f32 0.0, %v645
      %v647 = vpop.f32.mrf.mxu0
      %v648 = vadd.f32 0.0, %v647
      %649 = vmatmul.bf16.gmra.mxu0 %v625
      %v650 = vpop.f32.mrf.mxu0
      %v651 = vadd.f32 0.0, %v650
      %v652 = vpop.f32.mrf.mxu0
      %v653 = vadd.f32 0.0, %v652
      %654 = vmatmul.bf16.gmra.mxu0 %v628
      %v655 = vpop.f32.mrf.mxu0
      %v656 = vadd.f32 0.0, %v655
      %v657 = vpop.f32.mrf.mxu0
      %v658 = vadd.f32 0.0, %v657
      %659 = vmatmul.bf16.gmra.mxu0 %v631
      %v660 = vpop.f32.mrf.mxu0
      %v661 = vadd.f32 0.0, %v660
      %v662 = vpop.f32.mrf.mxu0
      %v663 = vadd.f32 0.0, %v662
      %664 = vdwg.mxu0
      %v665 = vadd.f32 %v572, %v646
      %v666 = vadd.f32 %v574, %v648
      %v667 = vadd.f32 %v577, %v651
      %v668 = vadd.f32 %v579, %v653
      %v669 = vadd.f32 %v582, %v656
      %v670 = vadd.f32 %v584, %v658
      %v671 = vadd.f32 %v587, %v661
      %v672 = vadd.f32 %v589, %v663
      %v673 = vld [vmem:[%s309] sm:$0xf]
      %v674 = vld [vmem:[%s309 + $0x4] sm:$0x1]
      %v675 = vld [vmem:[%s309 + $0x8] sm:$0xf]
      %v676 = vld [vmem:[%s309 + $0xc] sm:$0x1]
      %v677 = vld [vmem:[%s309 + $0x10] sm:$0xf]
      %v678 = vld [vmem:[%s309 + $0x14] sm:$0x1]
      %v679 = vld [vmem:[%s309 + $0x18] sm:$0xf]
      %v680 = vld [vmem:[%s309 + $0x1c] sm:$0x1]
      %v681 = vld [vmem:[%s309 + $0x20] sm:$0xf]
      %v682 = vld [vmem:[%s309 + $0x24] sm:$0x1]
      %v683 = vld [vmem:[%s309 + $0x28] sm:$0xf]
      %v684 = vld [vmem:[%s309 + $0x2c] sm:$0x1]
      %v685 = vld [vmem:[%s309 + $0x30] sm:$0xf]
      %v686 = vld [vmem:[%s309 + $0x34] sm:$0x1]
      %v687 = vld [vmem:[%s309 + $0x38] sm:$0xf]
      %v688 = vld [vmem:[%s309 + $0x3c] sm:$0x1]
      %v690 = vshrl.u32 %v673, 16
      %v692 = vrot.slane %v690, 4
      %v693 = vshll.u32 %v673, 16
      %v695 = vrot.slane %v693, 5
      %v696 = vor.u32 %v692, %v695
      %v697 = vrot.slane %v696, 4
      %v699 = vshll.u32 %v674, 16
      %v701 = vrot.slane %v699, 5
      %v702 = vsel %vm354, %v697, %v701
      %v704 = vshrl.u32 %v675, 16
      %v706 = vrot.slane %v704, 4
      %v707 = vshll.u32 %v675, 16
      %v709 = vrot.slane %v707, 5
      %v710 = vor.u32 %v706, %v709
      %v711 = vrot.slane %v710, 4
      %v713 = vshll.u32 %v676, 16
      %v715 = vrot.slane %v713, 5
      %v716 = vsel %vm354, %v711, %v715
      %v718 = vshrl.u32 %v677, 16
      %v720 = vrot.slane %v718, 4
      %v721 = vshll.u32 %v677, 16
      %v723 = vrot.slane %v721, 5
      %v724 = vor.u32 %v720, %v723
      %v725 = vrot.slane %v724, 4
      %v727 = vshll.u32 %v678, 16
      %v729 = vrot.slane %v727, 5
      %v730 = vsel %vm354, %v725, %v729
      %v732 = vshrl.u32 %v679, 16
      %v734 = vrot.slane %v732, 4
      %v735 = vshll.u32 %v679, 16
      %v737 = vrot.slane %v735, 5
      %v738 = vor.u32 %v734, %v737
      %v739 = vrot.slane %v738, 4
      %v741 = vshll.u32 %v680, 16
      %v743 = vrot.slane %v741, 5
      %v744 = vsel %vm354, %v739, %v743
      %v746 = vshrl.u32 %v681, 16
      %v748 = vrot.slane %v746, 4
      %v749 = vshll.u32 %v681, 16
      %v751 = vrot.slane %v749, 5
      %v752 = vor.u32 %v748, %v751
      %v753 = vrot.slane %v752, 4
      %v755 = vshll.u32 %v682, 16
      %v757 = vrot.slane %v755, 5
      %v758 = vsel %vm354, %v753, %v757
      %v760 = vshrl.u32 %v683, 16
      %v762 = vrot.slane %v760, 4
      %v763 = vshll.u32 %v683, 16
      %v765 = vrot.slane %v763, 5
      %v766 = vor.u32 %v762, %v765
      %v767 = vrot.slane %v766, 4
      %v769 = vshll.u32 %v684, 16
      %v771 = vrot.slane %v769, 5
      %v772 = vsel %vm354, %v767, %v771
      %v774 = vshrl.u32 %v685, 16
      %v776 = vrot.slane %v774, 4
      %v777 = vshll.u32 %v685, 16
      %v779 = vrot.slane %v777, 5
      %v780 = vor.u32 %v776, %v779
      %v781 = vrot.slane %v780, 4
      %v783 = vshll.u32 %v686, 16
      %v785 = vrot.slane %v783, 5
      %v786 = vsel %vm354, %v781, %v785
      %v788 = vshrl.u32 %v687, 16
      %v790 = vrot.slane %v788, 4
      %v791 = vshll.u32 %v687, 16
      %v793 = vrot.slane %v791, 5
      %v794 = vor.u32 %v790, %v793
      %v795 = vrot.slane %v794, 4
      %v797 = vshll.u32 %v688, 16
      %v799 = vrot.slane %v797, 5
      %v800 = vsel %vm354, %v795, %v799
      %v801 = vld [vmem:[%s1] sm:$0xf]
      %v802 = vunpack.c.l.b16 %v702
      %v803 = vunpack.c.l.b16 %v716
      %v804 = vunpack.c.l.b16 %v730
      %v805 = vunpack.c.l.b16 %v744
      %v806 = vunpack.c.l.b16 %v758
      %v807 = vunpack.c.l.b16 %v772
      %v808 = vunpack.c.l.b16 %v786
      %v809 = vunpack.c.l.b16 %v800
      %v810 = vpack.c.b16 %v803, %v802
      %v811 = vpack.c.b16 %v805, %v804
      %v812 = vpack.c.b16 %v807, %v806
      %v813 = vpack.c.b16 %v809, %v808
      %v815 = vsel %vm481, %v810, 0
      %v818 = vsel %vm481, %v811, 0
      %v821 = vsel %vm481, %v812, 0
      %v824 = vsel %vm481, %v813, 0
      %v827 = vsel %vm494, %v801, 0
      %829 = vmatpush.bf16.msra.mxu0 0
      %830 = vmatpush.bf16.msra.mxu0 0
      %831 = vmatpush.bf16.msra.mxu0 0
      %832 = vmatpush.bf16.msra.mxu0 0
      %833 = vmatpush.bf16.msra.mxu0 0
      %834 = vmatpush.bf16.msra.mxu0 0
      %835 = vmatpush.bf16.msra.mxu0 0
      %836 = vmatpush.bf16.msra.mxu0 %v827
      %837 = vmatmul.bf16.gmra.mxu0 %v815
      %v838 = vpop.f32.mrf.mxu0
      %v839 = vadd.f32 0.0, %v838
      %v840 = vpop.f32.mrf.mxu0
      %v841 = vadd.f32 0.0, %v840
      %842 = vmatmul.bf16.gmra.mxu0 %v818
      %v843 = vpop.f32.mrf.mxu0
      %v844 = vadd.f32 0.0, %v843
      %v845 = vpop.f32.mrf.mxu0
      %v846 = vadd.f32 0.0, %v845
      %847 = vmatmul.bf16.gmra.mxu0 %v821
      %v848 = vpop.f32.mrf.mxu0
      %v849 = vadd.f32 0.0, %v848
      %v850 = vpop.f32.mrf.mxu0
      %v851 = vadd.f32 0.0, %v850
      %852 = vmatmul.bf16.gmra.mxu0 %v824
      %v853 = vpop.f32.mrf.mxu0
      %v854 = vadd.f32 0.0, %v853
      %v855 = vpop.f32.mrf.mxu0
      %v856 = vadd.f32 0.0, %v855
      %857 = vdwg.mxu0
      %v858 = vadd.f32 %v665, %v839
      %v859 = vadd.f32 %v666, %v841
      %v860 = vadd.f32 %v667, %v844
      %v861 = vadd.f32 %v668, %v846
      %v862 = vadd.f32 %v669, %v849
      %v863 = vadd.f32 %v670, %v851
      %v864 = vadd.f32 %v671, %v854
      %v865 = vadd.f32 %v672, %v856
      %v866 = vld [vmem:[%s2] sm:$0x1]
      %v868 = vperm.slane %v866, 0
      %v870 = vadd.f32 %v858, %v868
      %v871 = vadd.f32 %v859, %v868
      %v872 = vadd.f32 %v860, %v868
      %v873 = vadd.f32 %v861, %v868
      %v874 = vadd.f32 %v862, %v868
      %v875 = vadd.f32 %v863, %v868
      %v876 = vadd.f32 %v864, %v868
      %v877 = vadd.f32 %v865, %v868
      %v878 = vpack.c.bf16 %v870, %v870
      %v879 = vpack.c.bf16 %v871, %v871
      %v880 = vpack.c.bf16 %v872, %v872
      %v881 = vpack.c.bf16 %v873, %v873
      %v882 = vpack.c.bf16 %v874, %v874
      %v883 = vpack.c.bf16 %v875, %v875
      %v884 = vpack.c.bf16 %v876, %v876
      %v885 = vpack.c.bf16 %v877, %v877
      %vm886 = vcmask 27648
      %887 = vst.msk [vmem:[%s170] sm:$0xf] %vm886, %v878
      %888 = vst.msk [vmem:[%s170 + $0x8] sm:$0xf] %vm886, %v879
      %889 = vst.msk [vmem:[%s170 + $0x10] sm:$0xf] %vm886, %v880
      %890 = vst.msk [vmem:[%s170 + $0x18] sm:$0xf] %vm886, %v881
      %891 = vst.msk [vmem:[%s170 + $0x20] sm:$0xf] %vm886, %v882
      %892 = vst.msk [vmem:[%s170 + $0x28] sm:$0xf] %vm886, %v883
      %893 = vst.msk [vmem:[%s170 + $0x30] sm:$0xf] %vm886, %v884
      %894 = vst.msk [vmem:[%s170 + $0x38] sm:$0xf] %vm886, %v885
      %v895 = vld [vmem:[#allocation2] sm:$0xf]
      %v896 = vld [vmem:[#allocation2 + $0x4] sm:$0x1]
      %v897 = vld [vmem:[#allocation2 + $0x8] sm:$0xf]
      %v898 = vld [vmem:[#allocation2 + $0xc] sm:$0x1]
      %v899 = vld [vmem:[#allocation2 + $0x10] sm:$0xf]
      %v900 = vld [vmem:[#allocation2 + $0x14] sm:$0x1]
      %v901 = vld [vmem:[#allocation2 + $0x18] sm:$0xf]
      %v902 = vld [vmem:[#allocation2 + $0x1c] sm:$0x1]
      %v903 = vld [vmem:[#allocation2 + $0x20] sm:$0xf]
      %v904 = vld [vmem:[#allocation2 + $0x24] sm:$0x1]
      %v905 = vld [vmem:[#allocation2 + $0x28] sm:$0xf]
      %v906 = vld [vmem:[#allocation2 + $0x2c] sm:$0x1]
      %v907 = vld [vmem:[#allocation2 + $0x30] sm:$0xf]
      %v908 = vld [vmem:[#allocation2 + $0x34] sm:$0x1]
      %v909 = vld [vmem:[#allocation2 + $0x38] sm:$0xf]
      %v910 = vld [vmem:[#allocation2 + $0x3c] sm:$0x1]
      %v912 = vshrl.u32 %v895, 16
      %v914 = vrot.slane %v912, 4
      %v915 = vshll.u32 %v895, 16
      %v917 = vrot.slane %v915, 5
      %v918 = vor.u32 %v914, %v917
      %v919 = vrot.slane %v918, 4
      %v921 = vshll.u32 %v896, 16
      %v923 = vrot.slane %v921, 5
      %v924 = vsel %vm354, %v919, %v923
      %v926 = vshrl.u32 %v897, 16
      %v928 = vrot.slane %v926, 4
      %v929 = vshll.u32 %v897, 16
      %v931 = vrot.slane %v929, 5
      %v932 = vor.u32 %v928, %v931
      %v933 = vrot.slane %v932, 4
      %v935 = vshll.u32 %v898, 16
      %v937 = vrot.slane %v935, 5
      %v938 = vsel %vm354, %v933, %v937
      %v940 = vshrl.u32 %v899, 16
      %v942 = vrot.slane %v940, 4
      %v943 = vshll.u32 %v899, 16
      %v945 = vrot.slane %v943, 5
      %v946 = vor.u32 %v942, %v945
      %v947 = vrot.slane %v946, 4
      %v949 = vshll.u32 %v900, 16
      %v951 = vrot.slane %v949, 5
      %v952 = vsel %vm354, %v947, %v951
      %v954 = vshrl.u32 %v901, 16
      %v956 = vrot.slane %v954, 4
      %v957 = vshll.u32 %v901, 16
      %v959 = vrot.slane %v957, 5
      %v960 = vor.u32 %v956, %v959
      %v961 = vrot.slane %v960, 4
      %v963 = vshll.u32 %v902, 16
      %v965 = vrot.slane %v963, 5
      %v966 = vsel %vm354, %v961, %v965
      %v968 = vshrl.u32 %v903, 16
      %v970 = vrot.slane %v968, 4
      %v971 = vshll.u32 %v903, 16
      %v973 = vrot.slane %v971, 5
      %v974 = vor.u32 %v970, %v973
      %v975 = vrot.slane %v974, 4
      %v977 = vshll.u32 %v904, 16
      %v979 = vrot.slane %v977, 5
      %v980 = vsel %vm354, %v975, %v979
      %v982 = vshrl.u32 %v905, 16
      %v984 = vrot.slane %v982, 4
      %v985 = vshll.u32 %v905, 16
      %v987 = vrot.slane %v985, 5
      %v988 = vor.u32 %v984, %v987
      %v989 = vrot.slane %v988, 4
      %v991 = vshll.u32 %v906, 16
      %v993 = vrot.slane %v991, 5
      %v994 = vsel %vm354, %v989, %v993
      %v996 = vshrl.u32 %v907, 16
      %v998 = vrot.slane %v996, 4
      %v999 = vshll.u32 %v907, 16
      %v1001 = vrot.slane %v999, 5
      %v1002 = vor.u32 %v998, %v1001
      %v1003 = vrot.slane %v1002, 4
      %v1005 = vshll.u32 %v908, 16
      %v1007 = vrot.slane %v1005, 5
      %v1008 = vsel %vm354, %v1003, %v1007
      %v1010 = vshrl.u32 %v909, 16
      %v1012 = vrot.slane %v1010, 4
      %v1013 = vshll.u32 %v909, 16
      %v1015 = vrot.slane %v1013, 5
      %v1016 = vor.u32 %v1012, %v1015
      %v1017 = vrot.slane %v1016, 4
      %v1019 = vshll.u32 %v910, 16
      %v1021 = vrot.slane %v1019, 5
      %v1022 = vsel %vm354, %v1017, %v1021
      %s1023 = scalar_lea.vmem %s1, 28
      %v1024 = vld [vmem:[%s1023] sm:$0xf]
      %v1025 = vld [vmem:[%s309] sm:$0xf]
      %v1026 = vld [vmem:[%s309 + $0x4] sm:$0x1]
      %v1027 = vld [vmem:[%s309 + $0x8] sm:$0xf]
      %v1028 = vld [vmem:[%s309 + $0xc] sm:$0x1]
      %v1029 = vld [vmem:[%s309 + $0x10] sm:$0xf]
      %v1030 = vld [vmem:[%s309 + $0x14] sm:$0x1]
      %v1031 = vld [vmem:[%s309 + $0x18] sm:$0xf]
      %v1032 = vld [vmem:[%s309 + $0x1c] sm:$0x1]
      %v1033 = vld [vmem:[%s309 + $0x20] sm:$0xf]
      %v1034 = vld [vmem:[%s309 + $0x24] sm:$0x1]
      %v1035 = vld [vmem:[%s309 + $0x28] sm:$0xf]
      %v1036 = vld [vmem:[%s309 + $0x2c] sm:$0x1]
      %v1037 = vld [vmem:[%s309 + $0x30] sm:$0xf]
      %v1038 = vld [vmem:[%s309 + $0x34] sm:$0x1]
      %v1039 = vld [vmem:[%s309 + $0x38] sm:$0xf]
      %v1040 = vld [vmem:[%s309 + $0x3c] sm:$0x1]
      %v1042 = vshrl.u32 %v1025, 16
      %v1044 = vrot.slane %v1042, 4
      %v1045 = vshll.u32 %v1025, 16
      %v1047 = vrot.slane %v1045, 5
      %v1048 = vor.u32 %v1044, %v1047
      %v1049 = vrot.slane %v1048, 4
      %v1051 = vshll.u32 %v1026, 16
      %v1053 = vrot.slane %v1051, 5
      %v1054 = vsel %vm354, %v1049, %v1053
      %v1056 = vshrl.u32 %v1027, 16
      %v1058 = vrot.slane %v1056, 4
      %v1059 = vshll.u32 %v1027, 16
      %v1061 = vrot.slane %v1059, 5
      %v1062 = vor.u32 %v1058, %v1061
      %v1063 = vrot.slane %v1062, 4
      %v1065 = vshll.u32 %v1028, 16
      %v1067 = vrot.slane %v1065, 5
      %v1068 = vsel %vm354, %v1063, %v1067
      %v1070 = vshrl.u32 %v1029, 16
      %v1072 = vrot.slane %v1070, 4
      %v1073 = vshll.u32 %v1029, 16
      %v1075 = vrot.slane %v1073, 5
      %v1076 = vor.u32 %v1072, %v1075
      %v1077 = vrot.slane %v1076, 4
      %v1079 = vshll.u32 %v1030, 16
      %v1081 = vrot.slane %v1079, 5
      %v1082 = vsel %vm354, %v1077, %v1081
      %v1084 = vshrl.u32 %v1031, 16
      %v1086 = vrot.slane %v1084, 4
      %v1087 = vshll.u32 %v1031, 16
      %v1089 = vrot.slane %v1087, 5
      %v1090 = vor.u32 %v1086, %v1089
      %v1091 = vrot.slane %v1090, 4
      %v1093 = vshll.u32 %v1032, 16
      %v1095 = vrot.slane %v1093, 5
      %v1096 = vsel %vm354, %v1091, %v1095
      %v1098 = vshrl.u32 %v1033, 16
      %v1100 = vrot.slane %v1098, 4
      %v1101 = vshll.u32 %v1033, 16
      %v1103 = vrot.slane %v1101, 5
      %v1104 = vor.u32 %v1100, %v1103
      %v1105 = vrot.slane %v1104, 4
      %v1107 = vshll.u32 %v1034, 16
      %v1109 = vrot.slane %v1107, 5
      %v1110 = vsel %vm354, %v1105, %v1109
      %v1112 = vshrl.u32 %v1035, 16
      %v1114 = vrot.slane %v1112, 4
      %v1115 = vshll.u32 %v1035, 16
      %v1117 = vrot.slane %v1115, 5
      %v1118 = vor.u32 %v1114, %v1117
      %v1119 = vrot.slane %v1118, 4
      %v1121 = vshll.u32 %v1036, 16
      %v1123 = vrot.slane %v1121, 5
      %v1124 = vsel %vm354, %v1119, %v1123
      %v1126 = vshrl.u32 %v1037, 16
      %v1128 = vrot.slane %v1126, 4
      %v1129 = vshll.u32 %v1037, 16
      %v1131 = vrot.slane %v1129, 5
      %v1132 = vor.u32 %v1128, %v1131
      %v1133 = vrot.slane %v1132, 4
      %v1135 = vshll.u32 %v1038, 16
      %v1137 = vrot.slane %v1135, 5
      %v1138 = vsel %vm354, %v1133, %v1137
      %v1140 = vshrl.u32 %v1039, 16
      %v1142 = vrot.slane %v1140, 4
      %v1143 = vshll.u32 %v1039, 16
      %v1145 = vrot.slane %v1143, 5
      %v1146 = vor.u32 %v1142, %v1145
      %v1147 = vrot.slane %v1146, 4
      %v1149 = vshll.u32 %v1040, 16
      %v1151 = vrot.slane %v1149, 5
      %v1152 = vsel %vm354, %v1147, %v1151
      %s1153 = scalar_lea.vmem %s1, 4
      %v1154 = vld [vmem:[%s1153] sm:$0xf]
      %v1155 = vunpack.c.l.b16 %v1054
      %v1156 = vunpack.c.l.b16 %v1068
      %v1157 = vunpack.c.l.b16 %v1082
      %v1158 = vunpack.c.l.b16 %v1096
      %v1159 = vunpack.c.l.b16 %v1110
      %v1160 = vunpack.c.l.b16 %v1124
      %v1161 = vunpack.c.l.b16 %v1138
      %v1162 = vunpack.c.l.b16 %v1152
      %v1163 = vpack.c.b16 %v1156, %v1155
      %v1164 = vpack.c.b16 %v1158, %v1157
      %v1165 = vpack.c.b16 %v1160, %v1159
      %v1166 = vpack.c.b16 %v1162, %v1161
      %v1168 = vsel %vm481, %v1163, 0
      %v1171 = vsel %vm481, %v1164, 0
      %v1174 = vsel %vm481, %v1165, 0
      %v1177 = vsel %vm481, %v1166, 0
      %v1180 = vsel %vm494, %v1154, 0
      %1182 = vmatpush.bf16.msra.mxu0 0
      %1183 = vmatpush.bf16.msra.mxu0 0
      %1184 = vmatpush.bf16.msra.mxu0 0
      %1185 = vmatpush.bf16.msra.mxu0 0
      %1186 = vmatpush.bf16.msra.mxu0 0
      %1187 = vmatpush.bf16.msra.mxu0 0
      %1188 = vmatpush.bf16.msra.mxu0 0
      %1189 = vmatpush.bf16.msra.mxu0 %v1180
      %1190 = vmatmul.bf16.gmra.mxu0 %v1168
      %v1191 = vpop.f32.mrf.mxu0
      %v1192 = vadd.f32 0.0, %v1191
      %v1193 = vpop.f32.mrf.mxu0
      %v1194 = vadd.f32 0.0, %v1193
      %1195 = vmatmul.bf16.gmra.mxu0 %v1171
      %v1196 = vpop.f32.mrf.mxu0
      %v1197 = vadd.f32 0.0, %v1196
      %v1198 = vpop.f32.mrf.mxu0
      %v1199 = vadd.f32 0.0, %v1198
      %1200 = vmatmul.bf16.gmra.mxu0 %v1174
      %v1201 = vpop.f32.mrf.mxu0
      %v1202 = vadd.f32 0.0, %v1201
      %v1203 = vpop.f32.mrf.mxu0
      %v1204 = vadd.f32 0.0, %v1203
      %1205 = vmatmul.bf16.gmra.mxu0 %v1177
      %v1206 = vpop.f32.mrf.mxu0
      %v1207 = vadd.f32 0.0, %v1206
      %v1208 = vpop.f32.mrf.mxu0
      %v1209 = vadd.f32 0.0, %v1208
      %1210 = vdwg.mxu0
      %v1211 = vunpack.c.l.b16 %v924
      %v1212 = vunpack.c.l.b16 %v938
      %v1213 = vunpack.c.l.b16 %v952
      %v1214 = vunpack.c.l.b16 %v966
      %v1215 = vunpack.c.l.b16 %v980
      %v1216 = vunpack.c.l.b16 %v994
      %v1217 = vunpack.c.l.b16 %v1008
      %v1218 = vunpack.c.l.b16 %v1022
      %v1219 = vpack.c.b16 %v1212, %v1211
      %v1220 = vpack.c.b16 %v1214, %v1213
      %v1221 = vpack.c.b16 %v1216, %v1215
      %v1222 = vpack.c.b16 %v1218, %v1217
      %v1224 = vsel %vm481, %v1219, 0
      %v1227 = vsel %vm481, %v1220, 0
      %v1230 = vsel %vm481, %v1221, 0
      %v1233 = vsel %vm481, %v1222, 0
      %v1236 = vsel %vm494, %v1024, 0
      %1238 = vmatpush.bf16.msra.mxu0 0
      %1239 = vmatpush.bf16.msra.mxu0 0
      %1240 = vmatpush.bf16.msra.mxu0 0
      %1241 = vmatpush.bf16.msra.mxu0 0
      %1242 = vmatpush.bf16.msra.mxu0 0
      %1243 = vmatpush.bf16.msra.mxu0 0
      %1244 = vmatpush.bf16.msra.mxu0 0
      %1245 = vmatpush.bf16.msra.mxu0 %v1236
      %1246 = vmatmul.bf16.gmra.mxu0 %v1224
      %v1247 = vpop.f32.mrf.mxu0
      %v1248 = vadd.f32 %v1192, %v1247
      %v1249 = vpop.f32.mrf.mxu0
      %v1250 = vadd.f32 %v1194, %v1249
      %1251 = vmatmul.bf16.gmra.mxu0 %v1227
      %v1252 = vpop.f32.mrf.mxu0
      %v1253 = vadd.f32 %v1197, %v1252
      %v1254 = vpop.f32.mrf.mxu0
      %v1255 = vadd.f32 %v1199, %v1254
      %1256 = vmatmul.bf16.gmra.mxu0 %v1230
      %v1257 = vpop.f32.mrf.mxu0
      %v1258 = vadd.f32 %v1202, %v1257
      %v1259 = vpop.f32.mrf.mxu0
      %v1260 = vadd.f32 %v1204, %v1259
      %1261 = vmatmul.bf16.gmra.mxu0 %v1233
      %v1262 = vpop.f32.mrf.mxu0
      %v1263 = vadd.f32 %v1207, %v1262
      %v1264 = vpop.f32.mrf.mxu0
      %v1265 = vadd.f32 %v1209, %v1264
      %1266 = vdwg.mxu0
      %v1267 = vld [vmem:[%s2] sm:$0x1]
      %v1269 = vperm.slane %v1267, 0
      %v1271 = vadd.f32 %v1248, %v1269
      %v1272 = vadd.f32 %v1250, %v1269
      %v1273 = vadd.f32 %v1253, %v1269
      %v1274 = vadd.f32 %v1255, %v1269
      %v1275 = vadd.f32 %v1258, %v1269
      %v1276 = vadd.f32 %v1260, %v1269
      %v1277 = vadd.f32 %v1263, %v1269
      %v1278 = vadd.f32 %v1265, %v1269
      %v1279 = vpack.c.bf16 %v1271, %v1271
      %v1280 = vpack.c.bf16 %v1272, %v1272
      %v1281 = vpack.c.bf16 %v1273, %v1273
      %v1282 = vpack.c.bf16 %v1274, %v1274
      %v1283 = vpack.c.bf16 %v1275, %v1275
      %v1284 = vpack.c.bf16 %v1276, %v1276
      %v1285 = vpack.c.bf16 %v1277, %v1277
      %v1286 = vpack.c.bf16 %v1278, %v1278
      %1295 = vrot.lane.b32.xlu0 %v1279, 4
      %v1296 = vpop.permute.xlu0 %1295
      %1297 = vrot.lane.b32.xlu0 %v1280, 4
      %v1298 = vpop.permute.xlu0 %1297
      %1299 = vrot.lane.b32.xlu0 %v1281, 4
      %v1300 = vpop.permute.xlu0 %1299
      %1301 = vrot.lane.b32.xlu0 %v1282, 4
      %v1302 = vpop.permute.xlu0 %1301
      %1303 = vrot.lane.b32.xlu0 %v1283, 4
      %v1304 = vpop.permute.xlu0 %1303
      %1305 = vrot.lane.b32.xlu0 %v1284, 4
      %v1306 = vpop.permute.xlu0 %1305
      %1307 = vrot.lane.b32.xlu0 %v1285, 4
      %v1308 = vpop.permute.xlu0 %1307
      %1309 = vrot.lane.b32.xlu0 %v1286, 4
      %v1310 = vpop.permute.xlu0 %1309
      %vm1319 = vcmask 60448
      %1320 = vst.msk [vmem:[%s170] sm:$0xf] %vm1319, %v1296
      %1321 = vst.msk [vmem:[%s170 + $0x8] sm:$0xf] %vm1319, %v1298
      %1322 = vst.msk [vmem:[%s170 + $0x10] sm:$0xf] %vm1319, %v1300
      %1323 = vst.msk [vmem:[%s170 + $0x18] sm:$0xf] %vm1319, %v1302
      %1324 = vst.msk [vmem:[%s170 + $0x20] sm:$0xf] %vm1319, %v1304
      %1325 = vst.msk [vmem:[%s170 + $0x28] sm:$0xf] %vm1319, %v1306
      %1326 = vst.msk [vmem:[%s170 + $0x30] sm:$0xf] %vm1319, %v1308
      %1327 = vst.msk [vmem:[%s170 + $0x38] sm:$0xf] %vm1319, %v1310
      %v1328 = vld [vmem:[%s309] sm:$0xf]
      %v1329 = vld [vmem:[%s309 + $0x8] sm:$0xf]
      %v1330 = vld [vmem:[%s309 + $0x10] sm:$0xf]
      %v1331 = vld [vmem:[%s309 + $0x18] sm:$0xf]
      %v1332 = vld [vmem:[%s309 + $0x20] sm:$0xf]
      %v1333 = vld [vmem:[%s309 + $0x28] sm:$0xf]
      %v1334 = vld [vmem:[%s309 + $0x30] sm:$0xf]
      %v1335 = vld [vmem:[%s309 + $0x38] sm:$0xf]
      %s1336 = scalar_lea.vmem %s1, 20
      %v1337 = vld [vmem:[%s1336] sm:$0xf]
      %v1338 = vld [vmem:[%s309 + $0x4] sm:$0x1]
      %v1339 = vld [vmem:[%s309 + $0xc] sm:$0x1]
      %v1340 = vld [vmem:[%s309 + $0x14] sm:$0x1]
      %v1341 = vld [vmem:[%s309 + $0x1c] sm:$0x1]
      %v1342 = vld [vmem:[%s309 + $0x24] sm:$0x1]
      %v1343 = vld [vmem:[%s309 + $0x2c] sm:$0x1]
      %v1344 = vld [vmem:[%s309 + $0x34] sm:$0x1]
      %v1345 = vld [vmem:[%s309 + $0x3c] sm:$0x1]
      %v1347 = vshrl.u32 %v1328, 16
      %v1349 = vrot.slane %v1347, 4
      %v1350 = vshll.u32 %v1328, 16
      %v1352 = vrot.slane %v1350, 5
      %v1353 = vor.u32 %v1349, %v1352
      %v1354 = vrot.slane %v1353, 4
      %v1356 = vshll.u32 %v1338, 16
      %v1358 = vrot.slane %v1356, 5
      %v1359 = vsel %vm354, %v1354, %v1358
      %v1361 = vshrl.u32 %v1329, 16
      %v1363 = vrot.slane %v1361, 4
      %v1364 = vshll.u32 %v1329, 16
      %v1366 = vrot.slane %v1364, 5
      %v1367 = vor.u32 %v1363, %v1366
      %v1368 = vrot.slane %v1367, 4
      %v1370 = vshll.u32 %v1339, 16
      %v1372 = vrot.slane %v1370, 5
      %v1373 = vsel %vm354, %v1368, %v1372
      %v1375 = vshrl.u32 %v1330, 16
      %v1377 = vrot.slane %v1375, 4
      %v1378 = vshll.u32 %v1330, 16
      %v1380 = vrot.slane %v1378, 5
      %v1381 = vor.u32 %v1377, %v1380
      %v1382 = vrot.slane %v1381, 4
      %v1384 = vshll.u32 %v1340, 16
      %v1386 = vrot.slane %v1384, 5
      %v1387 = vsel %vm354, %v1382, %v1386
      %v1389 = vshrl.u32 %v1331, 16
      %v1391 = vrot.slane %v1389, 4
      %v1392 = vshll.u32 %v1331, 16
      %v1394 = vrot.slane %v1392, 5
      %v1395 = vor.u32 %v1391, %v1394
      %v1396 = vrot.slane %v1395, 4
      %v1398 = vshll.u32 %v1341, 16
      %v1400 = vrot.slane %v1398, 5
      %v1401 = vsel %vm354, %v1396, %v1400
      %v1403 = vshrl.u32 %v1332, 16
      %v1405 = vrot.slane %v1403, 4
      %v1406 = vshll.u32 %v1332, 16
      %v1408 = vrot.slane %v1406, 5
      %v1409 = vor.u32 %v1405, %v1408
      %v1410 = vrot.slane %v1409, 4
      %v1412 = vshll.u32 %v1342, 16
      %v1414 = vrot.slane %v1412, 5
      %v1415 = vsel %vm354, %v1410, %v1414
      %v1417 = vshrl.u32 %v1333, 16
      %v1419 = vrot.slane %v1417, 4
      %v1420 = vshll.u32 %v1333, 16
      %v1422 = vrot.slane %v1420, 5
      %v1423 = vor.u32 %v1419, %v1422
      %v1424 = vrot.slane %v1423, 4
      %v1426 = vshll.u32 %v1343, 16
      %v1428 = vrot.slane %v1426, 5
      %v1429 = vsel %vm354, %v1424, %v1428
      %v1431 = vshrl.u32 %v1334, 16
      %v1433 = vrot.slane %v1431, 4
      %v1434 = vshll.u32 %v1334, 16
      %v1436 = vrot.slane %v1434, 5
      %v1437 = vor.u32 %v1433, %v1436
      %v1438 = vrot.slane %v1437, 4
      %v1440 = vshll.u32 %v1344, 16
      %v1442 = vrot.slane %v1440, 5
      %v1443 = vsel %vm354, %v1438, %v1442
      %v1445 = vshrl.u32 %v1335, 16
      %v1447 = vrot.slane %v1445, 4
      %v1448 = vshll.u32 %v1335, 16
      %v1450 = vrot.slane %v1448, 5
      %v1451 = vor.u32 %v1447, %v1450
      %v1452 = vrot.slane %v1451, 4
      %v1454 = vshll.u32 %v1345, 16
      %v1456 = vrot.slane %v1454, 5
      %v1457 = vsel %vm354, %v1452, %v1456
      %s1458 = scalar_lea.vmem %s1, 12
      %v1459 = vld [vmem:[%s1458] sm:$0xf]
      %v1460 = vunpack.c.l.b16 %v1359
      %v1461 = vunpack.c.l.b16 %v1373
      %v1462 = vunpack.c.l.b16 %v1387
      %v1463 = vunpack.c.l.b16 %v1401
      %v1464 = vunpack.c.l.b16 %v1415
      %v1465 = vunpack.c.l.b16 %v1429
      %v1466 = vunpack.c.l.b16 %v1443
      %v1467 = vunpack.c.l.b16 %v1457
      %v1468 = vpack.c.b16 %v1461, %v1460
      %v1469 = vpack.c.b16 %v1463, %v1462
      %v1470 = vpack.c.b16 %v1465, %v1464
      %v1471 = vpack.c.b16 %v1467, %v1466
      %v1473 = vsel %vm481, %v1468, 0
      %v1476 = vsel %vm481, %v1469, 0
      %v1479 = vsel %vm481, %v1470, 0
      %v1482 = vsel %vm481, %v1471, 0
      %v1485 = vsel %vm494, %v1459, 0
      %1487 = vmatpush.bf16.msra.mxu0 0
      %1488 = vmatpush.bf16.msra.mxu0 0
      %1489 = vmatpush.bf16.msra.mxu0 0
      %1490 = vmatpush.bf16.msra.mxu0 0
      %1491 = vmatpush.bf16.msra.mxu0 0
      %1492 = vmatpush.bf16.msra.mxu0 0
      %1493 = vmatpush.bf16.msra.mxu0 0
      %1494 = vmatpush.bf16.msra.mxu0 %v1485
      %1495 = vmatmul.bf16.gmra.mxu0 %v1473
      %v1496 = vpop.f32.mrf.mxu0
      %v1497 = vadd.f32 0.0, %v1496
      %v1498 = vpop.f32.mrf.mxu0
      %v1499 = vadd.f32 0.0, %v1498
      %1500 = vmatmul.bf16.gmra.mxu0 %v1476
      %v1501 = vpop.f32.mrf.mxu0
      %v1502 = vadd.f32 0.0, %v1501
      %v1503 = vpop.f32.mrf.mxu0
      %v1504 = vadd.f32 0.0, %v1503
      %1505 = vmatmul.bf16.gmra.mxu0 %v1479
      %v1506 = vpop.f32.mrf.mxu0
      %v1507 = vadd.f32 0.0, %v1506
      %v1508 = vpop.f32.mrf.mxu0
      %v1509 = vadd.f32 0.0, %v1508
      %1510 = vmatmul.bf16.gmra.mxu0 %v1482
      %v1511 = vpop.f32.mrf.mxu0
      %v1512 = vadd.f32 0.0, %v1511
      %v1513 = vpop.f32.mrf.mxu0
      %v1514 = vadd.f32 0.0, %v1513
      %1515 = vdwg.mxu0
      %v1524 = vunpack.c.l.b16 %v1328
      %v1525 = vunpack.c.l.b16 %v1329
      %v1526 = vunpack.c.l.b16 %v1330
      %v1527 = vunpack.c.l.b16 %v1331
      %v1528 = vunpack.c.l.b16 %v1332
      %v1529 = vunpack.c.l.b16 %v1333
      %v1530 = vunpack.c.l.b16 %v1334
      %v1531 = vunpack.c.l.b16 %v1335
      %v1532 = vpack.c.b16 %v1525, %v1524
      %v1533 = vpack.c.b16 %v1527, %v1526
      %v1534 = vpack.c.b16 %v1529, %v1528
      %v1535 = vpack.c.b16 %v1531, %v1530
      %v1537 = vsel %vm481, %v1532, 0
      %v1540 = vsel %vm481, %v1533, 0
      %v1543 = vsel %vm481, %v1534, 0
      %v1546 = vsel %vm481, %v1535, 0
      %v1549 = vsel %vm494, %v1337, 0
      %1551 = vmatpush.bf16.msra.mxu0 0
      %1552 = vmatpush.bf16.msra.mxu0 0
      %1553 = vmatpush.bf16.msra.mxu0 0
      %1554 = vmatpush.bf16.msra.mxu0 0
      %1555 = vmatpush.bf16.msra.mxu0 0
      %1556 = vmatpush.bf16.msra.mxu0 0
      %1557 = vmatpush.bf16.msra.mxu0 0
      %1558 = vmatpush.bf16.msra.mxu0 %v1549
      %1559 = vmatmul.bf16.gmra.mxu0 %v1537
      %v1560 = vpop.f32.mrf.mxu0
      %v1561 = vadd.f32 %v1497, %v1560
      %v1562 = vpop.f32.mrf.mxu0
      %v1563 = vadd.f32 %v1499, %v1562
      %1564 = vmatmul.bf16.gmra.mxu0 %v1540
      %v1565 = vpop.f32.mrf.mxu0
      %v1566 = vadd.f32 %v1502, %v1565
      %v1567 = vpop.f32.mrf.mxu0
      %v1568 = vadd.f32 %v1504, %v1567
      %1569 = vmatmul.bf16.gmra.mxu0 %v1543
      %v1570 = vpop.f32.mrf.mxu0
      %v1571 = vadd.f32 %v1507, %v1570
      %v1572 = vpop.f32.mrf.mxu0
      %v1573 = vadd.f32 %v1509, %v1572
      %1574 = vmatmul.bf16.gmra.mxu0 %v1546
      %v1575 = vpop.f32.mrf.mxu0
      %v1576 = vadd.f32 %v1512, %v1575
      %v1577 = vpop.f32.mrf.mxu0
      %v1578 = vadd.f32 %v1514, %v1577
      %1579 = vdwg.mxu0
      %v1580 = vld [vmem:[%s2] sm:$0x1]
      %v1582 = vperm.slane %v1580, 0
      %v1584 = vadd.f32 %v1561, %v1582
      %v1585 = vadd.f32 %v1563, %v1582
      %v1586 = vadd.f32 %v1566, %v1582
      %v1587 = vadd.f32 %v1568, %v1582
      %v1588 = vadd.f32 %v1571, %v1582
      %v1589 = vadd.f32 %v1573, %v1582
      %v1590 = vadd.f32 %v1576, %v1582
      %v1591 = vadd.f32 %v1578, %v1582
      %v1592 = vpack.c.bf16 %v1584, %v1584
      %v1593 = vpack.c.bf16 %v1585, %v1585
      %v1594 = vpack.c.bf16 %v1586, %v1586
      %v1595 = vpack.c.bf16 %v1587, %v1587
      %v1596 = vpack.c.bf16 %v1588, %v1588
      %v1597 = vpack.c.bf16 %v1589, %v1589
      %v1598 = vpack.c.bf16 %v1590, %v1590
      %v1599 = vpack.c.bf16 %v1591, %v1591
      %s1600 = scalar_lea.vmem %s170, 4
      %1601 = vst.msk [vmem:[%s1600] sm:$0xf] %vm886, %v1592
      %1602 = vst.msk [vmem:[%s1600 + $0x8] sm:$0xf] %vm886, %v1593
      %1603 = vst.msk [vmem:[%s1600 + $0x10] sm:$0xf] %vm886, %v1594
      %1604 = vst.msk [vmem:[%s1600 + $0x18] sm:$0xf] %vm886, %v1595
      %1605 = vst.msk [vmem:[%s1600 + $0x20] sm:$0xf] %vm886, %v1596
      %1606 = vst.msk [vmem:[%s1600 + $0x28] sm:$0xf] %vm886, %v1597
      %1607 = vst.msk [vmem:[%s1600 + $0x30] sm:$0xf] %vm886, %v1598
      %1608 = vst.msk [vmem:[%s1600 + $0x38] sm:$0xf] %vm886, %v1599
      %v1609 = vld [vmem:[%s309] sm:$0xf]
      %v1610 = vld [vmem:[%s309 + $0x4] sm:$0x1]
      %v1611 = vld [vmem:[%s309 + $0x8] sm:$0xf]
      %v1612 = vld [vmem:[%s309 + $0xc] sm:$0x1]
      %v1613 = vld [vmem:[%s309 + $0x10] sm:$0xf]
      %v1614 = vld [vmem:[%s309 + $0x14] sm:$0x1]
      %v1615 = vld [vmem:[%s309 + $0x18] sm:$0xf]
      %v1616 = vld [vmem:[%s309 + $0x1c] sm:$0x1]
      %v1617 = vld [vmem:[%s309 + $0x20] sm:$0xf]
      %v1618 = vld [vmem:[%s309 + $0x24] sm:$0x1]
      %v1619 = vld [vmem:[%s309 + $0x28] sm:$0xf]
      %v1620 = vld [vmem:[%s309 + $0x2c] sm:$0x1]
      %v1621 = vld [vmem:[%s309 + $0x30] sm:$0xf]
      %v1622 = vld [vmem:[%s309 + $0x34] sm:$0x1]
      %v1623 = vld [vmem:[%s309 + $0x38] sm:$0xf]
      %v1624 = vld [vmem:[%s309 + $0x3c] sm:$0x1]
      %v1626 = vshrl.u32 %v1609, 16
      %v1628 = vrot.slane %v1626, 4
      %v1629 = vshll.u32 %v1609, 16
      %v1631 = vrot.slane %v1629, 5
      %v1632 = vor.u32 %v1628, %v1631
      %v1633 = vrot.slane %v1632, 4
      %v1635 = vshll.u32 %v1610, 16
      %v1637 = vrot.slane %v1635, 5
      %v1638 = vsel %vm354, %v1633, %v1637
      %v1640 = vshrl.u32 %v1611, 16
      %v1642 = vrot.slane %v1640, 4
      %v1643 = vshll.u32 %v1611, 16
      %v1645 = vrot.slane %v1643, 5
      %v1646 = vor.u32 %v1642, %v1645
      %v1647 = vrot.slane %v1646, 4
      %v1649 = vshll.u32 %v1612, 16
      %v1651 = vrot.slane %v1649, 5
      %v1652 = vsel %vm354, %v1647, %v1651
      %v1654 = vshrl.u32 %v1613, 16
      %v1656 = vrot.slane %v1654, 4
      %v1657 = vshll.u32 %v1613, 16
      %v1659 = vrot.slane %v1657, 5
      %v1660 = vor.u32 %v1656, %v1659
      %v1661 = vrot.slane %v1660, 4
      %v1663 = vshll.u32 %v1614, 16
      %v1665 = vrot.slane %v1663, 5
      %v1666 = vsel %vm354, %v1661, %v1665
      %v1668 = vshrl.u32 %v1615, 16
      %v1670 = vrot.slane %v1668, 4
      %v1671 = vshll.u32 %v1615, 16
      %v1673 = vrot.slane %v1671, 5
      %v1674 = vor.u32 %v1670, %v1673
      %v1675 = vrot.slane %v1674, 4
      %v1677 = vshll.u32 %v1616, 16
      %v1679 = vrot.slane %v1677, 5
      %v1680 = vsel %vm354, %v1675, %v1679
      %v1682 = vshrl.u32 %v1617, 16
      %v1684 = vrot.slane %v1682, 4
      %v1685 = vshll.u32 %v1617, 16
      %v1687 = vrot.slane %v1685, 5
      %v1688 = vor.u32 %v1684, %v1687
      %v1689 = vrot.slane %v1688, 4
      %v1691 = vshll.u32 %v1618, 16
      %v1693 = vrot.slane %v1691, 5
      %v1694 = vsel %vm354, %v1689, %v1693
      %v1696 = vshrl.u32 %v1619, 16
      %v1698 = vrot.slane %v1696, 4
      %v1699 = vshll.u32 %v1619, 16
      %v1701 = vrot.slane %v1699, 5
      %v1702 = vor.u32 %v1698, %v1701
      %v1703 = vrot.slane %v1702, 4
      %v1705 = vshll.u32 %v1620, 16
      %v1707 = vrot.slane %v1705, 5
      %v1708 = vsel %vm354, %v1703, %v1707
      %v1710 = vshrl.u32 %v1621, 16
      %v1712 = vrot.slane %v1710, 4
      %v1713 = vshll.u32 %v1621, 16
      %v1715 = vrot.slane %v1713, 5
      %v1716 = vor.u32 %v1712, %v1715
      %v1717 = vrot.slane %v1716, 4
      %v1719 = vshll.u32 %v1622, 16
      %v1721 = vrot.slane %v1719, 5
      %v1722 = vsel %vm354, %v1717, %v1721
      %v1724 = vshrl.u32 %v1623, 16
      %v1726 = vrot.slane %v1724, 4
      %v1727 = vshll.u32 %v1623, 16
      %v1729 = vrot.slane %v1727, 5
      %v1730 = vor.u32 %v1726, %v1729
      %v1731 = vrot.slane %v1730, 4
      %v1733 = vshll.u32 %v1624, 16
      %v1735 = vrot.slane %v1733, 5
      %v1736 = vsel %vm354, %v1731, %v1735
      %s1737 = scalar_lea.vmem %s1, 16
      %v1738 = vld [vmem:[%s1737] sm:$0xf]
      %v1739 = vld [vmem:[%s2] sm:$0x1]
      %v1741 = vperm.slane %v1739, 0
      %v1743 = vunpack.c.l.b16 %v1638
      %v1744 = vunpack.c.l.b16 %v1652
      %v1745 = vunpack.c.l.b16 %v1666
      %v1746 = vunpack.c.l.b16 %v1680
      %v1747 = vunpack.c.l.b16 %v1694
      %v1748 = vunpack.c.l.b16 %v1708
      %v1749 = vunpack.c.l.b16 %v1722
      %v1750 = vunpack.c.l.b16 %v1736
      %v1751 = vpack.c.b16 %v1744, %v1743
      %v1752 = vpack.c.b16 %v1746, %v1745
      %v1753 = vpack.c.b16 %v1748, %v1747
      %v1754 = vpack.c.b16 %v1750, %v1749
      %v1756 = vsel %vm481, %v1751, 0
      %v1759 = vsel %vm481, %v1752, 0
      %v1762 = vsel %vm481, %v1753, 0
      %v1765 = vsel %vm481, %v1754, 0
      %v1768 = vsel %vm494, %v1738, 0
      %1770 = vmatpush.bf16.msra.mxu0 0
      %1771 = vmatpush.bf16.msra.mxu0 0
      %1772 = vmatpush.bf16.msra.mxu0 0
      %1773 = vmatpush.bf16.msra.mxu0 0
      %1774 = vmatpush.bf16.msra.mxu0 0
      %1775 = vmatpush.bf16.msra.mxu0 0
      %1776 = vmatpush.bf16.msra.mxu0 0
      %1777 = vmatpush.bf16.msra.mxu0 %v1768
      %1778 = vmatmul.bf16.gmra.mxu0 %v1756
      %v1779 = vpop.f32.mrf.mxu0
      %v1780 = vadd.f32 %v1741, %v1779
      %v1781 = vpop.f32.mrf.mxu0
      %v1782 = vadd.f32 %v1741, %v1781
      %1783 = vmatmul.bf16.gmra.mxu0 %v1759
      %v1784 = vpop.f32.mrf.mxu0
      %v1785 = vadd.f32 %v1741, %v1784
      %v1786 = vpop.f32.mrf.mxu0
      %v1787 = vadd.f32 %v1741, %v1786
      %1788 = vmatmul.bf16.gmra.mxu0 %v1762
      %v1789 = vpop.f32.mrf.mxu0
      %v1790 = vadd.f32 %v1741, %v1789
      %v1791 = vpop.f32.mrf.mxu0
      %v1792 = vadd.f32 %v1741, %v1791
      %1793 = vmatmul.bf16.gmra.mxu0 %v1765
      %v1794 = vpop.f32.mrf.mxu0
      %v1795 = vadd.f32 %v1741, %v1794
      %v1796 = vpop.f32.mrf.mxu0
      %v1797 = vadd.f32 %v1741, %v1796
      %1798 = vdwg.mxu0
      %v1799 = vpack.c.bf16 %v1780, %v1780
      %v1800 = vpack.c.bf16 %v1782, %v1782
      %v1801 = vpack.c.bf16 %v1785, %v1785
      %v1802 = vpack.c.bf16 %v1787, %v1787
      %v1803 = vpack.c.bf16 %v1790, %v1790
      %v1804 = vpack.c.bf16 %v1792, %v1792
      %v1805 = vpack.c.bf16 %v1795, %v1795
      %v1806 = vpack.c.bf16 %v1797, %v1797
      %1815 = vrot.lane.b32.xlu0 %v1799, 4
      %v1816 = vpop.permute.xlu0 %1815
      %1817 = vrot.lane.b32.xlu0 %v1800, 4
      %v1818 = vpop.permute.xlu0 %1817
      %1819 = vrot.lane.b32.xlu0 %v1801, 4
      %v1820 = vpop.permute.xlu0 %1819
      %1821 = vrot.lane.b32.xlu0 %v1802, 4
      %v1822 = vpop.permute.xlu0 %1821
      %1823 = vrot.lane.b32.xlu0 %v1803, 4
      %v1824 = vpop.permute.xlu0 %1823
      %1825 = vrot.lane.b32.xlu0 %v1804, 4
      %v1826 = vpop.permute.xlu0 %1825
      %1827 = vrot.lane.b32.xlu0 %v1805, 4
      %v1828 = vpop.permute.xlu0 %1827
      %1829 = vrot.lane.b32.xlu0 %v1806, 4
      %v1830 = vpop.permute.xlu0 %1829
      %1839 = vst.msk [vmem:[%s1600] sm:$0xf] %vm1319, %v1816
      %1840 = vst.msk [vmem:[%s1600 + $0x8] sm:$0xf] %vm1319, %v1818
      %1841 = vst.msk [vmem:[%s1600 + $0x10] sm:$0xf] %vm1319, %v1820
      %1842 = vst.msk [vmem:[%s1600 + $0x18] sm:$0xf] %vm1319, %v1822
      %1843 = vst.msk [vmem:[%s1600 + $0x20] sm:$0xf] %vm1319, %v1824
      %1844 = vst.msk [vmem:[%s1600 + $0x28] sm:$0xf] %vm1319, %v1826
      %1845 = vst.msk [vmem:[%s1600 + $0x30] sm:$0xf] %vm1319, %v1828
      %1846 = vst.msk [vmem:[%s1600 + $0x38] sm:$0xf] %vm1319, %v1830
      %p1847 = scmp.lt.s32.totalorder %s14, 1
      %s1848 = scalar_select %p1847, %s14, 1
      %s1849 = smul.addr %s1848, 16
      %s1850 = smul.addr %s1849, 4
      %s1851 = scalar_lea.vmem %s3, %s1850
      // Predicated region
      $region33: #{up_forward.2} parent=31 // pred_check
        %p1852 = pneg %p100
      $region34: #{up_forward.2} parent=31 // pred_check_branch
        %1854 = sbr.rel (%p1852) target = $region36
      $region35: #{up_forward.2} parent=31 // pred_region
        _
      $region36: #{up_forward.2} parent=31 // pred_fallthru
        _
    $region32: #{up_forward.2} parent=5 // pred_fallthru
      _
    %p1855 = scmp.le.s32.totalorder 2, %s9
    // Predicated region
    $region37: #{up_forward.2} parent=5 // pred_check
      %p1856 = pneg %p1855
    $region38: #{up_forward.2} parent=5 // pred_check_branch
      %1858 = sbr.rel (%p1856) target = $region40
    $region39: #{up_forward.2} parent=5 // pred_region
      %s1859 = ssub.s32 %s9, 2
      // Predicated region
      $region41: #{up_forward.2} parent=39 // pred_check
        %p1860 = pneg %p106
      $region42: #{up_forward.2} parent=39 // pred_check_branch
        %1862 = sbr.rel (%p1860) target = $region44
      $region43: #{up_forward.2} parent=39 // pred_region
        %p1863 = scmp.lt.s32.totalorder %s15, 1
        %s1864 = scalar_select %p1863, %s15, 1
        %s1865 = smul.addr %s1864, 16
        %s1866 = smul.addr %s1865, 4
        %s1867 = scalar_lea.vmem %s3, %s1866
      $region44: #{up_forward.2} parent=39 // pred_fallthru
        _
    $region40: #{up_forward.2} parent=5 // pred_fallthru
      _
  $region6: #{up_forward.2} parent=0 // loop_footer
    %s13 = sadd.s32 1, %s9
  $region7: #{up_forward.2} parent=0 // loop_footer_branch
    %8 = sbr.rel target = $region3
  $region8: #{up_forward.2} parent=0 // loop_exit
    _

// kernel: up_forward.3
$region0: #{up_forward.3}
  #allocation0 [shape = 'u32[]', space=smem, size = 0x4, offset = 0x4, fixed_abs, tag = 'smem constant byte address 0x4 - core index']
  #allocation1 [shape = 'u32[72,128]{1,0:T(1,128)}', space=vmem, size = 0x9000, scoped, tag = 'internal scratch']
  #allocation2 [shape = 'bf16[18,18,8]{2,1,0:T(8,128)(2,1)}', space=vmem, size = 0x1b000, scoped, tag = 'scratch operand']
  #allocation3 [shape = 'bf16[18,18,4]{2,1,0:T(8,128)(2,1)}', space=vmem, size = 0x1b000, scoped, tag = 'scratch operand']
  %s0 = inlined_call_operand.vmem [shape: f32[2,16,16,4], index: 0, kind: input, shape index: {}]
  %s1 = inlined_call_operand.vmem [shape: bf16[2,16,16,4], index: 1, kind: input, shape index: {}]
  %s2 = inlined_call_operand.vmem [shape: bf16[3,3,8,4], index: 2, kind: input, shape index: {}]
  %s3 = inlined_call_operand.vmem [shape: f32[1,4], index: 3, kind: input, shape index: {}]
  %s4 = inlined_call_operand.vmem [shape: f32[1,4], index: 4, kind: input, shape index: {}]
  %s5 = inlined_call_operand.vmem [shape: bf16[3,3,4,128], index: 5, kind: input, shape index: {}]
  %s6 = inlined_call_operand.vmem [shape: f32[1,128], index: 6, kind: input, shape index: {}]
  %s7 = inlined_call_operand.vmem [shape: f32[1,128], index: 7, kind: input, shape index: {}]
  %s8 = inlined_call_operand.vmem [shape: f32[2,16,16,128], index: 8, kind: output, shape index: {}]
  %s9 = sld [smem:[#allocation0]]
  $region65: #{up_forward.3} parent=0
    _
  %s11 = ssub.s32 1, %s9
  %s12 = scalar_select 0, %s11, %s9
  loop: start=0, step=1, limit=4
  $region2: #{up_forward.3} parent=0 // loop_pre_header
    _
  $region3: #{up_forward.3} parent=0 // loop_header
    %s14 = sphi 0, %s18
    %p15 = scmp.ge.s32.totalorder %s14, 4
    %s24 = sphi 0, %s26
    %s27 = sphi 0, %s24
    %s28 = sphi 0, %s27
    %s44 = sphi 0, %s28
    %s50 = sphi 0, %s52
    %s53 = sphi 0, %s50
    %s54 = sphi 0, %s53
    %s70 = sphi 0, %s54
    %s74 = sphi 0, %s74
    %s76 = sphi 0, %s74
    %s77 = sphi 0, %s76
    %s91 = sphi 0, %s77
    %s95 = sphi 0, %s95
    %s97 = sphi 0, %s95
    %s98 = sphi 0, %s97
    %s112 = sphi 0, %s98
    %s116 = sphi 0, %s116
    %s118 = sphi 0, %s116
    %s119 = sphi 0, %s118
    %s133 = sphi 0, %s119
    %s137 = sphi 0, %s137
    %s139 = sphi 0, %s137
    %s140 = sphi 0, %s139
    %s154 = sphi 0, %s140
    %s158 = sphi 0, %s158
    %s160 = sphi 0, %s158
    %s161 = sphi 0, %s160
    %s175 = sphi 0, %s161
    %s179 = sphi 0, %s179
    %s181 = sphi 0, %s179
    %s182 = sphi 0, %s181
    %s196 = sphi 0, %s182
    %s202 = sphi 0, %s204
    %s205 = sphi 0, %s202
    %s206 = sphi 0, %s205
    %s222 = sphi 0, %s206
  $region4: #{up_forward.3} parent=0 // loop_header_branch
    %17 = sbr.rel (%p15) target = $region8
  $region5: #{up_forward.3} parent=0 // loop_body
    %s19 = ssub.s32 %s14, 1
    %s20 = ssub.s32 %s14, 2
    %s21 = sadd.s32 %s14, 1
    %s22 = ssub.s32 %s14, %s21
    %p23 = scmp.eq.s32.totalorder %s22, 0
    %s25 = sadd.s32 %s24, 1
    %s26 = scalar_select %p23, %s24, %s25
    %p29 = pneg %p23
    %p30 = scmp.eq.s32.totalorder %s14, 1
    %p31 = por %p29, %p30
    %p32 = scmp.ne.s32.totalorder %s24, %s27
    %p33 = scmp.eq.s32.totalorder %s14, 0
    %p34 = por %p32, %p33
    %p35 = scmp.ne.s32.totalorder %s24, %s27
    %p36 = scmp.eq.s32.totalorder %s19, 1
    %p37 = por %p35, %p36
    %p38 = scmp.ne.s32.totalorder %s27, %s28
    %p39 = scmp.eq.s32.totalorder %s19, 0
    %p40 = por %p38, %p39
    %p41 = scmp.ne.s32.totalorder %s27, %s28
    %p42 = scmp.eq.s32.totalorder %s20, 1
    %p43 = por %p41, %p42
    %p45 = scmp.ne.s32.totalorder %s28, %s44
    %p46 = scmp.eq.s32.totalorder %s20, 0
    %p47 = por %p45, %p46
    %s48 = ssub.s32 %s14, %s21
    %p49 = scmp.eq.s32.totalorder %s48, 0
    %s51 = sadd.s32 %s50, 1
    %s52 = scalar_select %p49, %s50, %s51
    %p55 = pneg %p49
    %p56 = scmp.eq.s32.totalorder %s14, 1
    %p57 = por %p55, %p56
    %p58 = scmp.ne.s32.totalorder %s50, %s53
    %p59 = scmp.eq.s32.totalorder %s14, 0
    %p60 = por %p58, %p59
    %p61 = scmp.ne.s32.totalorder %s50, %s53
    %p62 = scmp.eq.s32.totalorder %s19, 1
    %p63 = por %p61, %p62
    %p64 = scmp.ne.s32.totalorder %s53, %s54
    %p65 = scmp.eq.s32.totalorder %s19, 0
    %p66 = por %p64, %p65
    %p67 = scmp.ne.s32.totalorder %s53, %s54
    %p68 = scmp.eq.s32.totalorder %s20, 1
    %p69 = por %p67, %p68
    %p71 = scmp.ne.s32.totalorder %s54, %s70
    %p72 = scmp.eq.s32.totalorder %s20, 0
    %p73 = por %p71, %p72
    %s75 = sadd.s32 %s74, 1
    %p78 = scmp.eq.s32.totalorder %s14, 1
    %p79 = scmp.ne.s32.totalorder %s74, %s76
    %p80 = scmp.eq.s32.totalorder %s14, 0
    %p81 = por %p79, %p80
    %p82 = scmp.ne.s32.totalorder %s74, %s76
    %p83 = scmp.eq.s32.totalorder %s19, 1
    %p84 = por %p82, %p83
    %p85 = scmp.ne.s32.totalorder %s76, %s77
    %p86 = scmp.eq.s32.totalorder %s19, 0
    %p87 = por %p85, %p86
    %p88 = scmp.ne.s32.totalorder %s76, %s77
    %p89 = scmp.eq.s32.totalorder %s20, 1
    %p90 = por %p88, %p89
    %p92 = scmp.ne.s32.totalorder %s77, %s91
    %p93 = scmp.eq.s32.totalorder %s20, 0
    %p94 = por %p92, %p93
    %s96 = sadd.s32 %s95, 1
    %p99 = scmp.eq.s32.totalorder %s14, 1
    %p100 = scmp.ne.s32.totalorder %s95, %s97
    %p101 = scmp.eq.s32.totalorder %s14, 0
    %p102 = por %p100, %p101
    %p103 = scmp.ne.s32.totalorder %s95, %s97
    %p104 = scmp.eq.s32.totalorder %s19, 1
    %p105 = por %p103, %p104
    %p106 = scmp.ne.s32.totalorder %s97, %s98
    %p107 = scmp.eq.s32.totalorder %s19, 0
    %p108 = por %p106, %p107
    %p109 = scmp.ne.s32.totalorder %s97, %s98
    %p110 = scmp.eq.s32.totalorder %s20, 1
    %p111 = por %p109, %p110
    %p113 = scmp.ne.s32.totalorder %s98, %s112
    %p114 = scmp.eq.s32.totalorder %s20, 0
    %p115 = por %p113, %p114
    %s117 = sadd.s32 %s116, 1
    %p120 = scmp.eq.s32.totalorder %s14, 1
    %p121 = scmp.ne.s32.totalorder %s116, %s118
    %p122 = scmp.eq.s32.totalorder %s14, 0
    %p123 = por %p121, %p122
    %p124 = scmp.ne.s32.totalorder %s116, %s118
    %p125 = scmp.eq.s32.totalorder %s19, 1
    %p126 = por %p124, %p125
    %p127 = scmp.ne.s32.totalorder %s118, %s119
    %p128 = scmp.eq.s32.totalorder %s19, 0
    %p129 = por %p127, %p128
    %p130 = scmp.ne.s32.totalorder %s118, %s119
    %p131 = scmp.eq.s32.totalorder %s20, 1
    %p132 = por %p130, %p131
    %p134 = scmp.ne.s32.totalorder %s119, %s133
    %p135 = scmp.eq.s32.totalorder %s20, 0
    %p136 = por %p134, %p135
    %s138 = sadd.s32 %s137, 1
    %p141 = scmp.eq.s32.totalorder %s14, 1
    %p142 = scmp.ne.s32.totalorder %s137, %s139
    %p143 = scmp.eq.s32.totalorder %s14, 0
    %p144 = por %p142, %p143
    %p145 = scmp.ne.s32.totalorder %s137, %s139
    %p146 = scmp.eq.s32.totalorder %s19, 1
    %p147 = por %p145, %p146
    %p148 = scmp.ne.s32.totalorder %s139, %s140
    %p149 = scmp.eq.s32.totalorder %s19, 0
    %p150 = por %p148, %p149
    %p151 = scmp.ne.s32.totalorder %s139, %s140
    %p152 = scmp.eq.s32.totalorder %s20, 1
    %p153 = por %p151, %p152
    %p155 = scmp.ne.s32.totalorder %s140, %s154
    %p156 = scmp.eq.s32.totalorder %s20, 0
    %p157 = por %p155, %p156
    %s159 = sadd.s32 %s158, 1
    %p162 = scmp.eq.s32.totalorder %s14, 1
    %p163 = scmp.ne.s32.totalorder %s158, %s160
    %p164 = scmp.eq.s32.totalorder %s14, 0
    %p165 = por %p163, %p164
    %p166 = scmp.ne.s32.totalorder %s158, %s160
    %p167 = scmp.eq.s32.totalorder %s19, 1
    %p168 = por %p166, %p167
    %p169 = scmp.ne.s32.totalorder %s160, %s161
    %p170 = scmp.eq.s32.totalorder %s19, 0
    %p171 = por %p169, %p170
    %p172 = scmp.ne.s32.totalorder %s160, %s161
    %p173 = scmp.eq.s32.totalorder %s20, 1
    %p174 = por %p172, %p173
    %p176 = scmp.ne.s32.totalorder %s161, %s175
    %p177 = scmp.eq.s32.totalorder %s20, 0
    %p178 = por %p176, %p177
    %s180 = sadd.s32 %s179, 1
    %p183 = scmp.eq.s32.totalorder %s14, 1
    %p184 = scmp.ne.s32.totalorder %s179, %s181
    %p185 = scmp.eq.s32.totalorder %s14, 0
    %p186 = por %p184, %p185
    %p187 = scmp.ne.s32.totalorder %s179, %s181
    %p188 = scmp.eq.s32.totalorder %s19, 1
    %p189 = por %p187, %p188
    %p190 = scmp.ne.s32.totalorder %s181, %s182
    %p191 = scmp.eq.s32.totalorder %s19, 0
    %p192 = por %p190, %p191
    %p193 = scmp.ne.s32.totalorder %s181, %s182
    %p194 = scmp.eq.s32.totalorder %s20, 1
    %p195 = por %p193, %p194
    %p197 = scmp.ne.s32.totalorder %s182, %s196
    %p198 = scmp.eq.s32.totalorder %s20, 0
    %p199 = por %p197, %p198
    %s200 = ssub.s32 %s14, %s21
    %p201 = scmp.eq.s32.totalorder %s200, 0
    %s203 = sadd.s32 %s202, 1
    %s204 = scalar_select %p201, %s202, %s203
    %p207 = pneg %p201
    %p208 = scmp.eq.s32.totalorder %s14, 1
    %p209 = por %p207, %p208
    %p210 = scmp.ne.s32.totalorder %s202, %s205
    %p211 = scmp.eq.s32.totalorder %s14, 0
    %p212 = por %p210, %p211
    %p213 = scmp.ne.s32.totalorder %s202, %s205
    %p214 = scmp.eq.s32.totalorder %s19, 1
    %p215 = por %p213, %p214
    %p216 = scmp.ne.s32.totalorder %s205, %s206
    %p217 = scmp.eq.s32.totalorder %s19, 0
    %p218 = por %p216, %p217
    %p219 = scmp.ne.s32.totalorder %s205, %s206
    %p220 = scmp.eq.s32.totalorder %s20, 1
    %p221 = por %p219, %p220
    %p223 = scmp.ne.s32.totalorder %s206, %s222
    %p224 = scmp.eq.s32.totalorder %s20, 0
    %p225 = por %p223, %p224
    %p226 = scmp.le.s32.totalorder 1, %s14
    %p227 = scmp.lt.s32.totalorder %s14, 3
    %p228 = pnand %p226, %p227
    %p229 = pneg %p228
    // Predicated region
    $region9: #{up_forward.3} parent=5 // pred_check
      _
    $region10: #{up_forward.3} parent=5 // pred_check_branch
      %231 = sbr.rel (%p228) target = $region12
    $region11: #{up_forward.3} parent=5 // pred_region
      %s232 = ssub.s32 %s14, 1
      // Predicated region
      $region13: #{up_forward.3} parent=11 // pred_check
        %p233 = pneg %p87
      $region14: #{up_forward.3} parent=11 // pred_check_branch
        %235 = sbr.rel (%p233) target = $region16
      $region15: #{up_forward.3} parent=11 // pred_region
        _
      $region16: #{up_forward.3} parent=11 // pred_fallthru
        _
      // Predicated region
      $region17: #{up_forward.3} parent=11 // pred_check
        %p236 = pneg %p108
      $region18: #{up_forward.3} parent=11 // pred_check_branch
        %238 = sbr.rel (%p236) target = $region20
      $region19: #{up_forward.3} parent=11 // pred_region
        _
      $region20: #{up_forward.3} parent=11 // pred_fallthru
        _
      // Predicated region
      $region21: #{up_forward.3} parent=11 // pred_check
        %p239 = pneg %p129
      $region22: #{up_forward.3} parent=11 // pred_check_branch
        %241 = sbr.rel (%p239) target = $region24
      $region23: #{up_forward.3} parent=11 // pred_region
        _
      $region24: #{up_forward.3} parent=11 // pred_fallthru
        _
      // Predicated region
      $region25: #{up_forward.3} parent=11 // pred_check
        %p242 = pneg %p150
      $region26: #{up_forward.3} parent=11 // pred_check_branch
        %244 = sbr.rel (%p242) target = $region28
      $region27: #{up_forward.3} parent=11 // pred_region
        _
      $region28: #{up_forward.3} parent=11 // pred_fallthru
        _
      // Predicated region
      $region29: #{up_forward.3} parent=11 // pred_check
        %p245 = pneg %p171
      $region30: #{up_forward.3} parent=11 // pred_check_branch
        %247 = sbr.rel (%p245) target = $region32
      $region31: #{up_forward.3} parent=11 // pred_region
        _
      $region32: #{up_forward.3} parent=11 // pred_fallthru
        _
      // Predicated region
      $region33: #{up_forward.3} parent=11 // pred_check
        %p248 = pneg %p192
      $region34: #{up_forward.3} parent=11 // pred_check_branch
        %250 = sbr.rel (%p248) target = $region36
      $region35: #{up_forward.3} parent=11 // pred_region
        _
      $region36: #{up_forward.3} parent=11 // pred_fallthru
        _
    $region12: #{up_forward.3} parent=5 // pred_fallthru
      _
    %p251 = scmp.lt.s32.totalorder %s14, 2
    // Predicated region
    $region37: #{up_forward.3} parent=5 // pred_check
      %p252 = pneg %p251
    $region38: #{up_forward.3} parent=5 // pred_check_branch
      %254 = sbr.rel (%p252) target = $region40
    $region39: #{up_forward.3} parent=5 // pred_region
      // Predicated region
      $region41: #{up_forward.3} parent=39 // pred_check
        %p255 = pneg %p34
      $region42: #{up_forward.3} parent=39 // pred_check_branch
        %257 = sbr.rel (%p255) target = $region44
      $region43: #{up_forward.3} parent=39 // pred_region
        %p258 = scmp.lt.s32.totalorder %s14, 1
        %s259 = scalar_select %p258, %s14, 1
        %s260 = smul.addr %s259, 32
        %s261 = smul.addr %s260, 8
        %s262 = scalar_lea.vmem %s0, %s261
      $region44: #{up_forward.3} parent=39 // pred_fallthru
        _
      // Predicated region
      $region45: #{up_forward.3} parent=39 // pred_check
        %p263 = pneg %p60
      $region46: #{up_forward.3} parent=39 // pred_check_branch
        %265 = sbr.rel (%p263) target = $region48
      $region47: #{up_forward.3} parent=39 // pred_region
        %p266 = scmp.lt.s32.totalorder %s14, 1
        %s267 = scalar_select %p266, %s14, 1
        %s268 = smul.addr %s267, 32
        %s269 = smul.addr %s268, 4
        %s270 = scalar_lea.vmem %s1, %s269
      $region48: #{up_forward.3} parent=39 // pred_fallthru
        _
    $region40: #{up_forward.3} parent=5 // pred_fallthru
      _
    %p271 = scmp.le.s32.totalorder 1, %s14
    %p272 = scmp.lt.s32.totalorder %s14, 3
    %p273 = pnand %p271, %p272
    %p274 = pneg %p273
    // Predicated region
    $region49: #{up_forward.3} parent=5 // pred_check
      _
    $region50: #{up_forward.3} parent=5 // pred_check_branch
      %276 = sbr.rel (%p273) target = $region52
    $region51: #{up_forward.3} parent=5 // pred_region
      %s277 = ssub.s32 %s14, 1
      %p278 = scmp.lt.s32.totalorder %s19, 1
      %s279 = scalar_select %p278, %s19, 1
      %s280 = smul.addr %s279, 32
      %s281 = smul.addr %s280, 8
      %s282 = scalar_lea.vmem %s0, %s281
      %p283 = pneg %p40
      %p284 = pneg %p37
      %p285 = scmp.lt.s32.totalorder %s19, 1
      %s286 = scalar_select %p285, %s19, 1
      %s287 = smul.addr %s286, 32
      %s288 = smul.addr %s287, 4
      %s289 = scalar_lea.vmem %s1, %s288
      %p290 = pneg %p66
      %p291 = pneg %p63
      %p292 = pneg %p87
      %p293 = pneg %p84
      %p294 = pneg %p108
      %p295 = pneg %p105
      %p296 = pneg %p129
      %p297 = pneg %p126
      %p298 = pneg %p150
      %p299 = pneg %p147
      %p300 = pneg %p171
      %p301 = pneg %p168
      %p302 = pneg %p192
      %p303 = pneg %p189
      %p304 = pneg %p218
      %p305 = pneg %p215
      %p306 = scmp.lt.s32.totalorder %s19, 1
      %s307 = scalar_select %p306, %s19, 1
      %s308 = smul.addr %s307, 32
      %s309 = smul.addr %s308, 8
      %s310 = scalar_lea.vmem %s8, %s309
      %p311 = scmp.lt.s32.totalorder %s19, 1
      %s312 = scalar_select %p311, %s19, 1
      %s313 = smul.addr %s312, 32
      %s314 = smul.addr %s313, 8
      %s315 = scalar_lea.vmem %s0, %s314
      %p316 = scmp.lt.s32.totalorder %s19, 1
      %s317 = scalar_select %p316, %s19, 1
      %s318 = smul.addr %s317, 32
      %s319 = smul.addr %s318, 4
      %s320 = scalar_lea.vmem %s1, %s319
      %p321 = scmp.lt.s32.totalorder %s19, 1
      %s322 = scalar_select %p321, %s19, 1
      %s323 = smul.addr %s322, 32
      %s324 = smul.addr %s323, 8
      %s325 = scalar_lea.vmem %s8, %s324
      %vm327 = vcmask 60416
      %328 = vst.msk [vmem:[#allocation2] sm:$0xf] %vm327, 0
      %329 = vst.msk [vmem:[#allocation2 + $0x4] sm:$0xf] %vm327, 0
      %vm330 = vcmask 57344
      %331 = vst.msk [vmem:[#allocation2 + $0x8] sm:$0x1] %vm330, 0
      %s332 = scalar_lea.vmem [#allocation2], 192
      %333 = vst.msk [vmem:[%s332] sm:$0xf] %vm327, 0
      %334 = vst.msk [vmem:[%s332 + $0x4] sm:$0xf] %vm327, 0
      %335 = vst.msk [vmem:[%s332 + $0x8] sm:$0x1] %vm330, 0
      %336 = vst.msk [vmem:[%s332 + $0xc] sm:$0xf] %vm327, 0
      %337 = vst.msk [vmem:[%s332 + $0x10] sm:$0xf] %vm327, 0
      %338 = vst.msk [vmem:[%s332 + $0x14] sm:$0x1] %vm330, 0
      %vm339 = vcmask 57344
      %vm340 = vsmask.f32 256
      %vm341 = vmand %vm339, %vm340
      %v342 = vld [vmem:[#allocation2] sm:$0x1]
      %v343 = vsel %vm341, 0, %v342
      %344 = vst [vmem:[#allocation2] sm:$0x1] %v343
      %v345 = vld [vmem:[#allocation2 + $0xc] sm:$0x1]
      %v346 = vsel %vm341, 0, %v345
      %347 = vst [vmem:[#allocation2 + $0xc] sm:$0x1] %v346
      %v348 = vld [vmem:[#allocation2 + $0x18] sm:$0x1]
      %v349 = vsel %vm341, 0, %v348
      %350 = vst [vmem:[#allocation2 + $0x18] sm:$0x1] %v349
      %v351 = vld [vmem:[#allocation2 + $0x24] sm:$0x1]
      %v352 = vsel %vm341, 0, %v351
      %353 = vst [vmem:[#allocation2 + $0x24] sm:$0x1] %v352
      %v354 = vld [vmem:[#allocation2 + $0x30] sm:$0x1]
      %v355 = vsel %vm341, 0, %v354
      %356 = vst [vmem:[#allocation2 + $0x30] sm:$0x1] %v355
      %v357 = vld [vmem:[#allocation2 + $0x3c] sm:$0x1]
      %v358 = vsel %vm341, 0, %v357
      %359 = vst [vmem:[#allocation2 + $0x3c] sm:$0x1] %v358
      %v360 = vld [vmem:[#allocation2 + $0x48] sm:$0x1]
      %v361 = vsel %vm341, 0, %v360
      %362 = vst [vmem:[#allocation2 + $0x48] sm:$0x1] %v361
      %v363 = vld [vmem:[#allocation2 + $0x54] sm:$0x1]
      %v364 = vsel %vm341, 0, %v363
      %365 = vst [vmem:[#allocation2 + $0x54] sm:$0x1] %v364
      %v366 = vld [vmem:[#allocation2 + $0x60] sm:$0x1]
      %v367 = vsel %vm341, 0, %v366
      %368 = vst [vmem:[#allocation2 + $0x60] sm:$0x1] %v367
      %v369 = vld [vmem:[#allocation2 + $0x6c] sm:$0x1]
      %v370 = vsel %vm341, 0, %v369
      %371 = vst [vmem:[#allocation2 + $0x6c] sm:$0x1] %v370
      %v372 = vld [vmem:[#allocation2 + $0x78] sm:$0x1]
      %v373 = vsel %vm341, 0, %v372
      %374 = vst [vmem:[#allocation2 + $0x78] sm:$0x1] %v373
      %v375 = vld [vmem:[#allocation2 + $0x84] sm:$0x1]
      %v376 = vsel %vm341, 0, %v375
      %377 = vst [vmem:[#allocation2 + $0x84] sm:$0x1] %v376
      %v378 = vld [vmem:[#allocation2 + $0x90] sm:$0x1]
      %v379 = vsel %vm341, 0, %v378
      %380 = vst [vmem:[#allocation2 + $0x90] sm:$0x1] %v379
      %v381 = vld [vmem:[#allocation2 + $0x9c] sm:$0x1]
      %v382 = vsel %vm341, 0, %v381
      %383 = vst [vmem:[#allocation2 + $0x9c] sm:$0x1] %v382
      %v384 = vld [vmem:[#allocation2 + $0xa8] sm:$0x1]
      %v385 = vsel %vm341, 0, %v384
      %386 = vst [vmem:[#allocation2 + $0xa8] sm:$0x1] %v385
      %v387 = vld [vmem:[#allocation2 + $0xb4] sm:$0x1]
      %v388 = vsel %vm341, 0, %v387
      %389 = vst [vmem:[#allocation2 + $0xb4] sm:$0x1] %v388
      %v390 = vld [vmem:[#allocation2 + $0xc0] sm:$0x1]
      %v391 = vsel %vm341, 0, %v390
      %392 = vst [vmem:[#allocation2 + $0xc0] sm:$0x1] %v391
      %v393 = vld [vmem:[#allocation2 + $0xcc] sm:$0x1]
      %v394 = vsel %vm341, 0, %v393
      %395 = vst [vmem:[#allocation2 + $0xcc] sm:$0x1] %v394
      %396 = vst.msk [vmem:[#allocation2 + $0x8] sm:$0x1] %vm330, 0
      %397 = vst.msk [vmem:[#allocation2 + $0x14] sm:$0x1] %vm330, 0
      %398 = vst.msk [vmem:[#allocation2 + $0x20] sm:$0x1] %vm330, 0
      %399 = vst.msk [vmem:[#allocation2 + $0x2c] sm:$0x1] %vm330, 0
      %400 = vst.msk [vmem:[#allocation2 + $0x38] sm:$0x1] %vm330, 0
      %401 = vst.msk [vmem:[#allocation2 + $0x44] sm:$0x1] %vm330, 0
      %402 = vst.msk [vmem:[#allocation2 + $0x50] sm:$0x1] %vm330, 0
      %403 = vst.msk [vmem:[#allocation2 + $0x5c] sm:$0x1] %vm330, 0
      %404 = vst.msk [vmem:[#allocation2 + $0x68] sm:$0x1] %vm330, 0
      %405 = vst.msk [vmem:[#allocation2 + $0x74] sm:$0x1] %vm330, 0
      %406 = vst.msk [vmem:[#allocation2 + $0x80] sm:$0x1] %vm330, 0
      %407 = vst.msk [vmem:[#allocation2 + $0x8c] sm:$0x1] %vm330, 0
      %408 = vst.msk [vmem:[#allocation2 + $0x98] sm:$0x1] %vm330, 0
      %409 = vst.msk [vmem:[#allocation2 + $0xa4] sm:$0x1] %vm330, 0
      %410 = vst.msk [vmem:[#allocation2 + $0xb0] sm:$0x1] %vm330, 0
      %411 = vst.msk [vmem:[#allocation2 + $0xbc] sm:$0x1] %vm330, 0
      %412 = vst.msk [vmem:[#allocation2 + $0xc8] sm:$0x1] %vm330, 0
      %413 = vst.msk [vmem:[#allocation2 + $0xd4] sm:$0x1] %vm330, 0
      %v414 = vld [vmem:[%s315] sm:$0xff]
      %v415 = vld [vmem:[%s315 + $0x8] sm:$0xff]
      %v416 = vld [vmem:[%s315 + $0x10] sm:$0xff]
      %v417 = vld [vmem:[%s315 + $0x18] sm:$0xff]
      %v418 = vld [vmem:[%s315 + $0x20] sm:$0xff]
      %v419 = vld [vmem:[%s315 + $0x28] sm:$0xff]
      %v420 = vld [vmem:[%s315 + $0x30] sm:$0xff]
      %v421 = vld [vmem:[%s315 + $0x38] sm:$0xff]
      %v422 = vld [vmem:[%s315 + $0x40] sm:$0xff]
      %v423 = vld [vmem:[%s315 + $0x48] sm:$0xff]
      %v424 = vld [vmem:[%s315 + $0x50] sm:$0xff]
      %v425 = vld [vmem:[%s315 + $0x58] sm:$0xff]
      %v426 = vld [vmem:[%s315 + $0x60] sm:$0xff]
      %v427 = vld [vmem:[%s315 + $0x68] sm:$0xff]
      %v428 = vld [vmem:[%s315 + $0x70] sm:$0xff]
      %v429 = vld [vmem:[%s315 + $0x78] sm:$0xff]
      %v430 = vld [vmem:[%s315 + $0x80] sm:$0xff]
      %v431 = vld [vmem:[%s315 + $0x88] sm:$0xff]
      %v432 = vld [vmem:[%s315 + $0x90] sm:$0xff]
      %v433 = vld [vmem:[%s315 + $0x98] sm:$0xff]
      %v434 = vld [vmem:[%s315 + $0xa0] sm:$0xff]
      %v435 = vld [vmem:[%s315 + $0xa8] sm:$0xff]
      %v436 = vld [vmem:[%s315 + $0xb0] sm:$0xff]
      %v437 = vld [vmem:[%s315 + $0xb8] sm:$0xff]
      %v438 = vld [vmem:[%s315 + $0xc0] sm:$0xff]
      %v439 = vld [vmem:[%s315 + $0xc8] sm:$0xff]
      %v440 = vld [vmem:[%s315 + $0xd0] sm:$0xff]
      %v441 = vld [vmem:[%s315 + $0xd8] sm:$0xff]
      %v442 = vld [vmem:[%s315 + $0xe0] sm:$0xff]
      %v443 = vld [vmem:[%s315 + $0xe8] sm:$0xff]
      %v444 = vld [vmem:[%s315 + $0xf0] sm:$0xff]
      %v445 = vld [vmem:[%s315 + $0xf8] sm:$0xff]
      %v446 = vpack.c.bf16 %v414, %v414
      %v447 = vpack.c.bf16 %v415, %v415
      %v448 = vpack.c.bf16 %v416, %v416
      %v449 = vpack.c.bf16 %v417, %v417
      %v450 = vpack.c.bf16 %v418, %v418
      %v451 = vpack.c.bf16 %v419, %v419
      %v452 = vpack.c.bf16 %v420, %v420
      %v453 = vpack.c.bf16 %v421, %v421
      %v454 = vpack.c.bf16 %v422, %v422
      %v455 = vpack.c.bf16 %v423, %v423
      %v456 = vpack.c.bf16 %v424, %v424
      %v457 = vpack.c.bf16 %v425, %v425
      %v458 = vpack.c.bf16 %v426, %v426
      %v459 = vpack.c.bf16 %v427, %v427
      %v460 = vpack.c.bf16 %v428, %v428
      %v461 = vpack.c.bf16 %v429, %v429
      %v462 = vpack.c.bf16 %v430, %v430
      %v463 = vpack.c.bf16 %v431, %v431
      %v464 = vpack.c.bf16 %v432, %v432
      %v465 = vpack.c.bf16 %v433, %v433
      %v466 = vpack.c.bf16 %v434, %v434
      %v467 = vpack.c.bf16 %v435, %v435
      %v468 = vpack.c.bf16 %v436, %v436
      %v469 = vpack.c.bf16 %v437, %v437
      %v470 = vpack.c.bf16 %v438, %v438
      %v471 = vpack.c.bf16 %v439, %v439
      %v472 = vpack.c.bf16 %v440, %v440
      %v473 = vpack.c.bf16 %v441, %v441
      %v474 = vpack.c.bf16 %v442, %v442
      %v475 = vpack.c.bf16 %v443, %v443
      %v476 = vpack.c.bf16 %v444, %v444
      %v477 = vpack.c.bf16 %v445, %v445
      %vm478 = vsmask.f32 4368
      %vm479 = vmor %vm340, %vm478
      %v481 = vshrl.u32 %v446, 16
      %v483 = vrot.slane %v481, 7
      %v484 = vshll.u32 %v446, 16
      %v486 = vor.u32 %v483, %v484
      %v487 = vrot.slane %v483, 4
      %v489 = vshrl.u32 %v447, 16
      %v491 = vrot.slane %v489, 7
      %v492 = vshll.u32 %v447, 16
      %v494 = vor.u32 %v491, %v492
      %v495 = vsel %vm479, %v487, %v494
      %v496 = vrot.slane %v491, 4
      %v498 = vshrl.u32 %v448, 16
      %v500 = vrot.slane %v498, 7
      %v501 = vshll.u32 %v448, 16
      %v503 = vor.u32 %v500, %v501
      %v504 = vrot.slane %v500, 4
      %v506 = vshrl.u32 %v449, 16
      %v508 = vrot.slane %v506, 7
      %v509 = vshll.u32 %v449, 16
      %v511 = vor.u32 %v508, %v509
      %v512 = vsel %vm479, %v504, %v511
      %v513 = vrot.slane %v508, 4
      %v515 = vshrl.u32 %v450, 16
      %v517 = vrot.slane %v515, 7
      %v518 = vshll.u32 %v450, 16
      %v520 = vor.u32 %v517, %v518
      %v521 = vrot.slane %v517, 4
      %v523 = vshrl.u32 %v451, 16
      %v525 = vrot.slane %v523, 7
      %v526 = vshll.u32 %v451, 16
      %v528 = vor.u32 %v525, %v526
      %v529 = vsel %vm479, %v521, %v528
      %v530 = vrot.slane %v525, 4
      %v532 = vshrl.u32 %v452, 16
      %v534 = vrot.slane %v532, 7
      %v535 = vshll.u32 %v452, 16
      %v537 = vor.u32 %v534, %v535
      %v538 = vrot.slane %v534, 4
      %v540 = vshrl.u32 %v453, 16
      %v542 = vrot.slane %v540, 7
      %v543 = vshll.u32 %v453, 16
      %v545 = vor.u32 %v542, %v543
      %v546 = vsel %vm479, %v538, %v545
      %v547 = vrot.slane %v542, 4
      %v549 = vshrl.u32 %v454, 16
      %v551 = vrot.slane %v549, 7
      %v552 = vshll.u32 %v454, 16
      %v554 = vor.u32 %v551, %v552
      %v555 = vrot.slane %v551, 4
      %v557 = vshrl.u32 %v455, 16
      %v559 = vrot.slane %v557, 7
      %v560 = vshll.u32 %v455, 16
      %v562 = vor.u32 %v559, %v560
      %v563 = vsel %vm479, %v555, %v562
      %v564 = vrot.slane %v559, 4
      %v566 = vshrl.u32 %v456, 16
      %v568 = vrot.slane %v566, 7
      %v569 = vshll.u32 %v456, 16
      %v571 = vor.u32 %v568, %v569
      %v572 = vrot.slane %v568, 4
      %v574 = vshrl.u32 %v457, 16
      %v576 = vrot.slane %v574, 7
      %v577 = vshll.u32 %v457, 16
      %v579 = vor.u32 %v576, %v577
      %v580 = vsel %vm479, %v572, %v579
      %v581 = vrot.slane %v576, 4
      %v583 = vshrl.u32 %v458, 16
      %v585 = vrot.slane %v583, 7
      %v586 = vshll.u32 %v458, 16
      %v588 = vor.u32 %v585, %v586
      %v589 = vrot.slane %v585, 4
      %v591 = vshrl.u32 %v459, 16
      %v593 = vrot.slane %v591, 7
      %v594 = vshll.u32 %v459, 16
      %v596 = vor.u32 %v593, %v594
      %v597 = vsel %vm479, %v589, %v596
      %v598 = vrot.slane %v593, 4
      %v600 = vshrl.u32 %v460, 16
      %v602 = vrot.slane %v600, 7
      %v603 = vshll.u32 %v460, 16
      %v605 = vor.u32 %v602, %v603
      %v606 = vrot.slane %v602, 4
      %v608 = vshrl.u32 %v461, 16
      %v610 = vrot.slane %v608, 7
      %v611 = vshll.u32 %v461, 16
      %v613 = vor.u32 %v610, %v611
      %v614 = vsel %vm479, %v606, %v613
      %v615 = vrot.slane %v610, 4
      %v617 = vshrl.u32 %v462, 16
      %v619 = vrot.slane %v617, 7
      %v620 = vshll.u32 %v462, 16
      %v622 = vor.u32 %v619, %v620
      %v623 = vrot.slane %v619, 4
      %v625 = vshrl.u32 %v463, 16
      %v627 = vrot.slane %v625, 7
      %v628 = vshll.u32 %v463, 16
      %v630 = vor.u32 %v627, %v628
      %v631 = vsel %vm479, %v623, %v630
      %v632 = vrot.slane %v627, 4
      %v634 = vshrl.u32 %v464, 16
      %v636 = vrot.slane %v634, 7
      %v637 = vshll.u32 %v464, 16
      %v639 = vor.u32 %v636, %v637
      %v640 = vrot.slane %v636, 4
      %v642 = vshrl.u32 %v465, 16
      %v644 = vrot.slane %v642, 7
      %v645 = vshll.u32 %v465, 16
      %v647 = vor.u32 %v644, %v645
      %v648 = vsel %vm479, %v640, %v647
      %v649 = vrot.slane %v644, 4
      %v651 = vshrl.u32 %v466, 16
      %v653 = vrot.slane %v651, 7
      %v654 = vshll.u32 %v466, 16
      %v656 = vor.u32 %v653, %v654
      %v657 = vrot.slane %v653, 4
      %v659 = vshrl.u32 %v467, 16
      %v661 = vrot.slane %v659, 7
      %v662 = vshll.u32 %v467, 16
      %v664 = vor.u32 %v661, %v662
      %v665 = vsel %vm479, %v657, %v664
      %v666 = vrot.slane %v661, 4
      %v668 = vshrl.u32 %v468, 16
      %v670 = vrot.slane %v668, 7
      %v671 = vshll.u32 %v468, 16
      %v673 = vor.u32 %v670, %v671
      %v674 = vrot.slane %v670, 4
      %v676 = vshrl.u32 %v469, 16
      %v678 = vrot.slane %v676, 7
      %v679 = vshll.u32 %v469, 16
      %v681 = vor.u32 %v678, %v679
      %v682 = vsel %vm479, %v674, %v681
      %v683 = vrot.slane %v678, 4
      %v685 = vshrl.u32 %v470, 16
      %v687 = vrot.slane %v685, 7
      %v688 = vshll.u32 %v470, 16
      %v690 = vor.u32 %v687, %v688
      %v691 = vrot.slane %v687, 4
      %v693 = vshrl.u32 %v471, 16
      %v695 = vrot.slane %v693, 7
      %v696 = vshll.u32 %v471, 16
      %v698 = vor.u32 %v695, %v696
      %v699 = vsel %vm479, %v691, %v698
      %v700 = vrot.slane %v695, 4
      %v702 = vshrl.u32 %v472, 16
      %v704 = vrot.slane %v702, 7
      %v705 = vshll.u32 %v472, 16
      %v707 = vor.u32 %v704, %v705
      %v708 = vrot.slane %v704, 4
      %v710 = vshrl.u32 %v473, 16
      %v712 = vrot.slane %v710, 7
      %v713 = vshll.u32 %v473, 16
      %v715 = vor.u32 %v712, %v713
      %v716 = vsel %vm479, %v708, %v715
      %v717 = vrot.slane %v712, 4
      %v719 = vshrl.u32 %v474, 16
      %v721 = vrot.slane %v719, 7
      %v722 = vshll.u32 %v474, 16
      %v724 = vor.u32 %v721, %v722
      %v725 = vrot.slane %v721, 4
      %v727 = vshrl.u32 %v475, 16
      %v729 = vrot.slane %v727, 7
      %v730 = vshll.u32 %v475, 16
      %v732 = vor.u32 %v729, %v730
      %v733 = vsel %vm479, %v725, %v732
      %v734 = vrot.slane %v729, 4
      %v736 = vshrl.u32 %v476, 16
      %v738 = vrot.slane %v736, 7
      %v739 = vshll.u32 %v476, 16
      %v741 = vor.u32 %v738, %v739
      %v742 = vrot.slane %v738, 4
      %v744 = vshrl.u32 %v477, 16
      %v746 = vrot.slane %v744, 7
      %v747 = vshll.u32 %v477, 16
      %v749 = vor.u32 %v746, %v747
      %v750 = vsel %vm479, %v742, %v749
      %v751 = vrot.slane %v746, 4
      %s800 = scalar_lea.vmem [#allocation2], 12
      %vm801 = vcmask 27648
      %vm802 = vsmask.f32 7938
      %vm803 = vmand %vm801, %vm802
      %v804 = vld [vmem:[%s800] sm:$0xf]
      %v805 = vsel %vm803, %v486, %v804
      %806 = vst [vmem:[%s800] sm:$0xf] %v805
      %vm807 = vcmask 27648
      %808 = vst.msk [vmem:[%s800 + $0x4] sm:$0xf] %vm807, %v495
      %vm809 = vcmask 24576
      %vm810 = vmand %vm809, %vm340
      %v811 = vld [vmem:[%s800 + $0x8] sm:$0x1]
      %v812 = vsel %vm810, %v496, %v811
      %813 = vst [vmem:[%s800 + $0x8] sm:$0x1] %v812
      %v814 = vld [vmem:[%s800 + $0xc] sm:$0xf]
      %v815 = vsel %vm803, %v503, %v814
      %816 = vst [vmem:[%s800 + $0xc] sm:$0xf] %v815
      %817 = vst.msk [vmem:[%s800 + $0x10] sm:$0xf] %vm807, %v512
      %v818 = vld [vmem:[%s800 + $0x14] sm:$0x1]
      %v819 = vsel %vm810, %v513, %v818
      %820 = vst [vmem:[%s800 + $0x14] sm:$0x1] %v819
      %v821 = vld [vmem:[%s800 + $0x18] sm:$0xf]
      %v822 = vsel %vm803, %v520, %v821
      %823 = vst [vmem:[%s800 + $0x18] sm:$0xf] %v822
      %824 = vst.msk [vmem:[%s800 + $0x1c] sm:$0xf] %vm807, %v529
      %v825 = vld [vmem:[%s800 + $0x20] sm:$0x1]
      %v826 = vsel %vm810, %v530, %v825
      %827 = vst [vmem:[%s800 + $0x20] sm:$0x1] %v826
      %v828 = vld [vmem:[%s800 + $0x24] sm:$0xf]
      %v829 = vsel %vm803, %v537, %v828
      %830 = vst [vmem:[%s800 + $0x24] sm:$0xf] %v829
      %831 = vst.msk [vmem:[%s800 + $0x28] sm:$0xf] %vm807, %v546
      %v832 = vld [vmem:[%s800 + $0x2c] sm:$0x1]
      %v833 = vsel %vm810, %v547, %v832
      %834 = vst [vmem:[%s800 + $0x2c] sm:$0x1] %v833
      %v835 = vld [vmem:[%s800 + $0x30] sm:$0xf]
      %v836 = vsel %vm803, %v554, %v835
      %837 = vst [vmem:[%s800 + $0x30] sm:$0xf] %v836
      %838 = vst.msk [vmem:[%s800 + $0x34] sm:$0xf] %vm807, %v563
      %v839 = vld [vmem:[%s800 + $0x38] sm:$0x1]
      %v840 = vsel %vm810, %v564, %v839
      %841 = vst [vmem:[%s800 + $0x38] sm:$0x1] %v840
      %v842 = vld [vmem:[%s800 + $0x3c] sm:$0xf]
      %v843 = vsel %vm803, %v571, %v842
      %844 = vst [vmem:[%s800 + $0x3c] sm:$0xf] %v843
      %845 = vst.msk [vmem:[%s800 + $0x40] sm:$0xf] %vm807, %v580
      %v846 = vld [vmem:[%s800 + $0x44] sm:$0x1]
      %v847 = vsel %vm810, %v581, %v846
      %848 = vst [vmem:[%s800 + $0x44] sm:$0x1] %v847
      %v849 = vld [vmem:[%s800 + $0x48] sm:$0xf]
      %v850 = vsel %vm803, %v588, %v849
      %851 = vst [vmem:[%s800 + $0x48] sm:$0xf] %v850
      %852 = vst.msk [vmem:[%s800 + $0x4c] sm:$0xf] %vm807, %v597
      %v853 = vld [vmem:[%s800 + $0x50] sm:$0x1]
      %v854 = vsel %vm810, %v598, %v853
      %855 = vst [vmem:[%s800 + $0x50] sm:$0x1] %v854
      %v856 = vld [vmem:[%s800 + $0x54] sm:$0xf]
      %v857 = vsel %vm803, %v605, %v856
      %858 = vst [vmem:[%s800 + $0x54] sm:$0xf] %v857
      %859 = vst.msk [vmem:[%s800 + $0x58] sm:$0xf] %vm807, %v614
      %v860 = vld [vmem:[%s800 + $0x5c] sm:$0x1]
      %v861 = vsel %vm810, %v615, %v860
      %862 = vst [vmem:[%s800 + $0x5c] sm:$0x1] %v861
      %v863 = vld [vmem:[%s800 + $0x60] sm:$0xf]
      %v864 = vsel %vm803, %v622, %v863
      %865 = vst [vmem:[%s800 + $0x60] sm:$0xf] %v864
      %866 = vst.msk [vmem:[%s800 + $0x64] sm:$0xf] %vm807, %v631
      %v867 = vld [vmem:[%s800 + $0x68] sm:$0x1]
      %v868 = vsel %vm810, %v632, %v867
      %869 = vst [vmem:[%s800 + $0x68] sm:$0x1] %v868
      %v870 = vld [vmem:[%s800 + $0x6c] sm:$0xf]
      %v871 = vsel %vm803, %v639, %v870
      %872 = vst [vmem:[%s800 + $0x6c] sm:$0xf] %v871
      %873 = vst.msk [vmem:[%s800 + $0x70] sm:$0xf] %vm807, %v648
      %v874 = vld [vmem:[%s800 + $0x74] sm:$0x1]
      %v875 = vsel %vm810, %v649, %v874
      %876 = vst [vmem:[%s800 + $0x74] sm:$0x1] %v875
      %v877 = vld [vmem:[%s800 + $0x78] sm:$0xf]
      %v878 = vsel %vm803, %v656, %v877
      %879 = vst [vmem:[%s800 + $0x78] sm:$0xf] %v878
      %880 = vst.msk [vmem:[%s800 + $0x7c] sm:$0xf] %vm807, %v665
      %v881 = vld [vmem:[%s800 + $0x80] sm:$0x1]
      %v882 = vsel %vm810, %v666, %v881
      %883 = vst [vmem:[%s800 + $0x80] sm:$0x1] %v882
      %v884 = vld [vmem:[%s800 + $0x84] sm:$0xf]
      %v885 = vsel %vm803, %v673, %v884
      %886 = vst [vmem:[%s800 + $0x84] sm:$0xf] %v885
      %887 = vst.msk [vmem:[%s800 + $0x88] sm:$0xf] %vm807, %v682
      %v888 = vld [vmem:[%s800 + $0x8c] sm:$0x1]
      %v889 = vsel %vm810, %v683, %v888
      %890 = vst [vmem:[%s800 + $0x8c] sm:$0x1] %v889
      %v891 = vld [vmem:[%s800 + $0x90] sm:$0xf]
      %v892 = vsel %vm803, %v690, %v891
      %893 = vst [vmem:[%s800 + $0x90] sm:$0xf] %v892
      %894 = vst.msk [vmem:[%s800 + $0x94] sm:$0xf] %vm807, %v699
      %v895 = vld [vmem:[%s800 + $0x98] sm:$0x1]
      %v896 = vsel %vm810, %v700, %v895
      %897 = vst [vmem:[%s800 + $0x98] sm:$0x1] %v896
      %v898 = vld [vmem:[%s800 + $0x9c] sm:$0xf]
      %v899 = vsel %vm803, %v707, %v898
      %900 = vst [vmem:[%s800 + $0x9c] sm:$0xf] %v899
      %901 = vst.msk [vmem:[%s800 + $0xa0] sm:$0xf] %vm807, %v716
      %v902 = vld [vmem:[%s800 + $0xa4] sm:$0x1]
      %v903 = vsel %vm810, %v717, %v902
      %904 = vst [vmem:[%s800 + $0xa4] sm:$0x1] %v903
      %v905 = vld [vmem:[%s800 + $0xa8] sm:$0xf]
      %v906 = vsel %vm803, %v724, %v905
      %907 = vst [vmem:[%s800 + $0xa8] sm:$0xf] %v906
      %908 = vst.msk [vmem:[%s800 + $0xac] sm:$0xf] %vm807, %v733
      %v909 = vld [vmem:[%s800 + $0xb0] sm:$0x1]
      %v910 = vsel %vm810, %v734, %v909
      %911 = vst [vmem:[%s800 + $0xb0] sm:$0x1] %v910
      %v912 = vld [vmem:[%s800 + $0xb4] sm:$0xf]
      %v913 = vsel %vm803, %v741, %v912
      %914 = vst [vmem:[%s800 + $0xb4] sm:$0xf] %v913
      %915 = vst.msk [vmem:[%s800 + $0xb8] sm:$0xf] %vm807, %v750
      %v916 = vld [vmem:[%s800 + $0xbc] sm:$0x1]
      %v917 = vsel %vm810, %v751, %v916
      %918 = vst [vmem:[%s800 + $0xbc] sm:$0x1] %v917
      %v919 = vld [vmem:[%s320] sm:$0xf]
      %v920 = vld [vmem:[%s320 + $0x4] sm:$0xf]
      %v921 = vld [vmem:[%s320 + $0x8] sm:$0xf]
      %v922 = vld [vmem:[%s320 + $0xc] sm:$0xf]
      %v923 = vld [vmem:[%s320 + $0x10] sm:$0xf]
      %v924 = vld [vmem:[%s320 + $0x14] sm:$0xf]
      %v925 = vld [vmem:[%s320 + $0x18] sm:$0xf]
      %v926 = vld [vmem:[%s320 + $0x1c] sm:$0xf]
      %v927 = vld [vmem:[%s320 + $0x20] sm:$0xf]
      %v928 = vld [vmem:[%s320 + $0x24] sm:$0xf]
      %v929 = vld [vmem:[%s320 + $0x28] sm:$0xf]
      %v930 = vld [vmem:[%s320 + $0x2c] sm:$0xf]
      %v931 = vld [vmem:[%s320 + $0x30] sm:$0xf]
      %v932 = vld [vmem:[%s320 + $0x34] sm:$0xf]
      %v933 = vld [vmem:[%s320 + $0x38] sm:$0xf]
      %v934 = vld [vmem:[%s320 + $0x3c] sm:$0xf]
      %v935 = vld [vmem:[%s320 + $0x40] sm:$0xf]
      %v936 = vld [vmem:[%s320 + $0x44] sm:$0xf]
      %v937 = vld [vmem:[%s320 + $0x48] sm:$0xf]
      %v938 = vld [vmem:[%s320 + $0x4c] sm:$0xf]
      %v939 = vld [vmem:[%s320 + $0x50] sm:$0xf]
      %v940 = vld [vmem:[%s320 + $0x54] sm:$0xf]
      %v941 = vld [vmem:[%s320 + $0x58] sm:$0xf]
      %v942 = vld [vmem:[%s320 + $0x5c] sm:$0xf]
      %v943 = vld [vmem:[%s320 + $0x60] sm:$0xf]
      %v944 = vld [vmem:[%s320 + $0x64] sm:$0xf]
      %v945 = vld [vmem:[%s320 + $0x68] sm:$0xf]
      %v946 = vld [vmem:[%s320 + $0x6c] sm:$0xf]
      %v947 = vld [vmem:[%s320 + $0x70] sm:$0xf]
      %v948 = vld [vmem:[%s320 + $0x74] sm:$0xf]
      %v950 = vshrl.u32 %v919, 16
      %v952 = vrot.slane %v950, 7
      %v953 = vshll.u32 %v919, 16
      %v955 = vor.u32 %v952, %v953
      %v956 = vrot.slane %v952, 4
      %v958 = vshrl.u32 %v920, 16
      %v960 = vrot.slane %v958, 7
      %v961 = vshll.u32 %v920, 16
      %v963 = vor.u32 %v960, %v961
      %v964 = vsel %vm479, %v956, %v963
      %v966 = vshrl.u32 %v921, 16
      %v968 = vrot.slane %v966, 7
      %v969 = vshll.u32 %v921, 16
      %v971 = vor.u32 %v968, %v969
      %v972 = vrot.slane %v968, 4
      %v974 = vshrl.u32 %v922, 16
      %v976 = vrot.slane %v974, 7
      %v977 = vshll.u32 %v922, 16
      %v979 = vor.u32 %v976, %v977
      %v980 = vsel %vm479, %v972, %v979
      %v982 = vshrl.u32 %v923, 16
      %v984 = vrot.slane %v982, 7
      %v985 = vshll.u32 %v923, 16
      %v987 = vor.u32 %v984, %v985
      %v988 = vrot.slane %v984, 4
      %v990 = vshrl.u32 %v924, 16
      %v992 = vrot.slane %v990, 7
      %v993 = vshll.u32 %v924, 16
      %v995 = vor.u32 %v992, %v993
      %v996 = vsel %vm479, %v988, %v995
      %v998 = vshrl.u32 %v925, 16
      %v1000 = vrot.slane %v998, 7
      %v1001 = vshll.u32 %v925, 16
      %v1003 = vor.u32 %v1000, %v1001
      %v1004 = vrot.slane %v1000, 4
      %v1006 = vshrl.u32 %v926, 16
      %v1008 = vrot.slane %v1006, 7
      %v1009 = vshll.u32 %v926, 16
      %v1011 = vor.u32 %v1008, %v1009
      %v1012 = vsel %vm479, %v1004, %v1011
      %v1014 = vshrl.u32 %v927, 16
      %v1016 = vrot.slane %v1014, 7
      %v1017 = vshll.u32 %v927, 16
      %v1019 = vor.u32 %v1016, %v1017
      %v1020 = vrot.slane %v1016, 4
      %v1022 = vshrl.u32 %v928, 16
      %v1024 = vrot.slane %v1022, 7
      %v1025 = vshll.u32 %v928, 16
      %v1027 = vor.u32 %v1024, %v1025
      %v1028 = vsel %vm479, %v1020, %v1027
      %v1030 = vshrl.u32 %v929, 16
      %v1032 = vrot.slane %v1030, 7
      %v1033 = vshll.u32 %v929, 16
      %v1035 = vor.u32 %v1032, %v1033
      %v1036 = vrot.slane %v1032, 4
      %v1038 = vshrl.u32 %v930, 16
      %v1040 = vrot.slane %v1038, 7
      %v1041 = vshll.u32 %v930, 16
      %v1043 = vor.u32 %v1040, %v1041
      %v1044 = vsel %vm479, %v1036, %v1043
      %v1046 = vshrl.u32 %v931, 16
      %v1048 = vrot.slane %v1046, 7
      %v1049 = vshll.u32 %v931, 16
      %v1051 = vor.u32 %v1048, %v1049
      %v1052 = vrot.slane %v1048, 4
      %v1054 = vshrl.u32 %v932, 16
      %v1056 = vrot.slane %v1054, 7
      %v1057 = vshll.u32 %v932, 16
      %v1059 = vor.u32 %v1056, %v1057
      %v1060 = vsel %vm479, %v1052, %v1059
      %v1062 = vshrl.u32 %v933, 16
      %v1064 = vrot.slane %v1062, 7
      %v1065 = vshll.u32 %v933, 16
      %v1067 = vor.u32 %v1064, %v1065
      %v1068 = vrot.slane %v1064, 4
      %v1070 = vshrl.u32 %v934, 16
      %v1072 = vrot.slane %v1070, 7
      %v1073 = vshll.u32 %v934, 16
      %v1075 = vor.u32 %v1072, %v1073
      %v1076 = vsel %vm479, %v1068, %v1075
      %v1078 = vshrl.u32 %v935, 16
      %v1080 = vrot.slane %v1078, 7
      %v1081 = vshll.u32 %v935, 16
      %v1083 = vor.u32 %v1080, %v1081
      %v1084 = vrot.slane %v1080, 4
      %v1086 = vshrl.u32 %v936, 16
      %v1088 = vrot.slane %v1086, 7
      %v1089 = vshll.u32 %v936, 16
      %v1091 = vor.u32 %v1088, %v1089
      %v1092 = vsel %vm479, %v1084, %v1091
      %v1094 = vshrl.u32 %v937, 16
      %v1096 = vrot.slane %v1094, 7
      %v1097 = vshll.u32 %v937, 16
      %v1099 = vor.u32 %v1096, %v1097
      %v1100 = vrot.slane %v1096, 4
      %v1102 = vshrl.u32 %v938, 16
      %v1104 = vrot.slane %v1102, 7
      %v1105 = vshll.u32 %v938, 16
      %v1107 = vor.u32 %v1104, %v1105
      %v1108 = vsel %vm479, %v1100, %v1107
      %v1110 = vshrl.u32 %v939, 16
      %v1112 = vrot.slane %v1110, 7
      %v1113 = vshll.u32 %v939, 16
      %v1115 = vor.u32 %v1112, %v1113
      %v1116 = vrot.slane %v1112, 4
      %v1118 = vshrl.u32 %v940, 16
      %v1120 = vrot.slane %v1118, 7
      %v1121 = vshll.u32 %v940, 16
      %v1123 = vor.u32 %v1120, %v1121
      %v1124 = vsel %vm479, %v1116, %v1123
      %v1126 = vshrl.u32 %v941, 16
      %v1128 = vrot.slane %v1126, 7
      %v1129 = vshll.u32 %v941, 16
      %v1131 = vor.u32 %v1128, %v1129
      %v1132 = vrot.slane %v1128, 4
      %v1134 = vshrl.u32 %v942, 16
      %v1136 = vrot.slane %v1134, 7
      %v1137 = vshll.u32 %v942, 16
      %v1139 = vor.u32 %v1136, %v1137
      %v1140 = vsel %vm479, %v1132, %v1139
      %v1142 = vshrl.u32 %v943, 16
      %v1144 = vrot.slane %v1142, 7
      %v1145 = vshll.u32 %v943, 16
      %v1147 = vor.u32 %v1144, %v1145
      %v1148 = vrot.slane %v1144, 4
      %v1150 = vshrl.u32 %v944, 16
      %v1152 = vrot.slane %v1150, 7
      %v1153 = vshll.u32 %v944, 16
      %v1155 = vor.u32 %v1152, %v1153
      %v1156 = vsel %vm479, %v1148, %v1155
      %v1158 = vshrl.u32 %v945, 16
      %v1160 = vrot.slane %v1158, 7
      %v1161 = vshll.u32 %v945, 16
      %v1163 = vor.u32 %v1160, %v1161
      %v1164 = vrot.slane %v1160, 4
      %v1166 = vshrl.u32 %v946, 16
      %v1168 = vrot.slane %v1166, 7
      %v1169 = vshll.u32 %v946, 16
      %v1171 = vor.u32 %v1168, %v1169
      %v1172 = vsel %vm479, %v1164, %v1171
      %v1174 = vshrl.u32 %v947, 16
      %v1176 = vrot.slane %v1174, 7
      %v1177 = vshll.u32 %v947, 16
      %v1179 = vor.u32 %v1176, %v1177
      %v1180 = vrot.slane %v1176, 4
      %v1182 = vshrl.u32 %v948, 16
      %v1184 = vrot.slane %v1182, 7
      %v1185 = vshll.u32 %v948, 16
      %v1187 = vor.u32 %v1184, %v1185
      %v1188 = vsel %vm479, %v1180, %v1187
      %1189 = vrot.lane.b32.xlu0 %v955, 4
      %v1190 = vpop.permute.xlu0 %1189
      %1191 = vrot.lane.b32.xlu0 %v964, 4
      %v1192 = vpop.permute.xlu0 %1191
      %1193 = vrot.lane.b32.xlu0 %v971, 4
      %v1194 = vpop.permute.xlu0 %1193
      %1195 = vrot.lane.b32.xlu0 %v980, 4
      %v1196 = vpop.permute.xlu0 %1195
      %1197 = vrot.lane.b32.xlu0 %v987, 4
      %v1198 = vpop.permute.xlu0 %1197
      %1199 = vrot.lane.b32.xlu0 %v996, 4
      %v1200 = vpop.permute.xlu0 %1199
      %1201 = vrot.lane.b32.xlu0 %v1003, 4
      %v1202 = vpop.permute.xlu0 %1201
      %1203 = vrot.lane.b32.xlu0 %v1012, 4
      %v1204 = vpop.permute.xlu0 %1203
      %1205 = vrot.lane.b32.xlu0 %v1019, 4
      %v1206 = vpop.permute.xlu0 %1205
      %1207 = vrot.lane.b32.xlu0 %v1028, 4
      %v1208 = vpop.permute.xlu0 %1207
      %1209 = vrot.lane.b32.xlu0 %v1035, 4
      %v1210 = vpop.permute.xlu0 %1209
      %1211 = vrot.lane.b32.xlu0 %v1044, 4
      %v1212 = vpop.permute.xlu0 %1211
      %1213 = vrot.lane.b32.xlu0 %v1051, 4
      %v1214 = vpop.permute.xlu0 %1213
      %1215 = vrot.lane.b32.xlu0 %v1060, 4
      %v1216 = vpop.permute.xlu0 %1215
      %1217 = vrot.lane.b32.xlu0 %v1067, 4
      %v1218 = vpop.permute.xlu0 %1217
      %1219 = vrot.lane.b32.xlu0 %v1076, 4
      %v1220 = vpop.permute.xlu0 %1219
      %1221 = vrot.lane.b32.xlu0 %v1083, 4
      %v1222 = vpop.permute.xlu0 %1221
      %1223 = vrot.lane.b32.xlu0 %v1092, 4
      %v1224 = vpop.permute.xlu0 %1223
      %1225 = vrot.lane.b32.xlu0 %v1099, 4
      %v1226 = vpop.permute.xlu0 %1225
      %1227 = vrot.lane.b32.xlu0 %v1108, 4
      %v1228 = vpop.permute.xlu0 %1227
      %1229 = vrot.lane.b32.xlu0 %v1115, 4
      %v1230 = vpop.permute.xlu0 %1229
      %1231 = vrot.lane.b32.xlu0 %v1124, 4
      %v1232 = vpop.permute.xlu0 %1231
      %1233 = vrot.lane.b32.xlu0 %v1131, 4
      %v1234 = vpop.permute.xlu0 %1233
      %1235 = vrot.lane.b32.xlu0 %v1140, 4
      %v1236 = vpop.permute.xlu0 %1235
      %1237 = vrot.lane.b32.xlu0 %v1147, 4
      %v1238 = vpop.permute.xlu0 %1237
      %1239 = vrot.lane.b32.xlu0 %v1156, 4
      %v1240 = vpop.permute.xlu0 %1239
      %1241 = vrot.lane.b32.xlu0 %v1163, 4
      %v1242 = vpop.permute.xlu0 %1241
      %1243 = vrot.lane.b32.xlu0 %v1172, 4
      %v1244 = vpop.permute.xlu0 %1243
      %1245 = vrot.lane.b32.xlu0 %v1179, 4
      %v1246 = vpop.permute.xlu0 %1245
      %1247 = vrot.lane.b32.xlu0 %v1188, 4
      %v1248 = vpop.permute.xlu0 %1247
      %vm1279 = vcmask 60448
      %vm1280 = vmand %vm1279, %vm802
      %v1281 = vld [vmem:[%s800] sm:$0xf]
      %v1282 = vsel %vm1280, %v1190, %v1281
      %1283 = vst [vmem:[%s800] sm:$0xf] %v1282
      %vm1284 = vcmask 60448
      %1285 = vst.msk [vmem:[%s800 + $0x4] sm:$0xf] %vm1284, %v1192
      %v1286 = vld [vmem:[%s800 + $0xc] sm:$0xf]
      %v1287 = vsel %vm1280, %v1194, %v1286
      %1288 = vst [vmem:[%s800 + $0xc] sm:$0xf] %v1287
      %1289 = vst.msk [vmem:[%s800 + $0x10] sm:$0xf] %vm1284, %v1196
      %v1290 = vld [vmem:[%s800 + $0x18] sm:$0xf]
      %v1291 = vsel %vm1280, %v1198, %v1290
      %1292 = vst [vmem:[%s800 + $0x18] sm:$0xf] %v1291
      %1293 = vst.msk [vmem:[%s800 + $0x1c] sm:$0xf] %vm1284, %v1200
      %v1294 = vld [vmem:[%s800 + $0x24] sm:$0xf]
      %v1295 = vsel %vm1280, %v1202, %v1294
      %1296 = vst [vmem:[%s800 + $0x24] sm:$0xf] %v1295
      %1297 = vst.msk [vmem:[%s800 + $0x28] sm:$0xf] %vm1284, %v1204
      %v1298 = vld [vmem:[%s800 + $0x30] sm:$0xf]
      %v1299 = vsel %vm1280, %v1206, %v1298
      %1300 = vst [vmem:[%s800 + $0x30] sm:$0xf] %v1299
      %1301 = vst.msk [vmem:[%s800 + $0x34] sm:$0xf] %vm1284, %v1208
      %v1302 = vld [vmem:[%s800 + $0x3c] sm:$0xf]
      %v1303 = vsel %vm1280, %v1210, %v1302
      %1304 = vst [vmem:[%s800 + $0x3c] sm:$0xf] %v1303
      %1305 = vst.msk [vmem:[%s800 + $0x40] sm:$0xf] %vm1284, %v1212
      %v1306 = vld [vmem:[%s800 + $0x48] sm:$0xf]
      %v1307 = vsel %vm1280, %v1214, %v1306
      %1308 = vst [vmem:[%s800 + $0x48] sm:$0xf] %v1307
      %1309 = vst.msk [vmem:[%s800 + $0x4c] sm:$0xf] %vm1284, %v1216
      %v1310 = vld [vmem:[%s800 + $0x54] sm:$0xf]
      %v1311 = vsel %vm1280, %v1218, %v1310
      %1312 = vst [vmem:[%s800 + $0x54] sm:$0xf] %v1311
      %1313 = vst.msk [vmem:[%s800 + $0x58] sm:$0xf] %vm1284, %v1220
      %v1314 = vld [vmem:[%s800 + $0x60] sm:$0xf]
      %v1315 = vsel %vm1280, %v1222, %v1314
      %1316 = vst [vmem:[%s800 + $0x60] sm:$0xf] %v1315
      %1317 = vst.msk [vmem:[%s800 + $0x64] sm:$0xf] %vm1284, %v1224
      %v1318 = vld [vmem:[%s800 + $0x6c] sm:$0xf]
      %v1319 = vsel %vm1280, %v1226, %v1318
      %1320 = vst [vmem:[%s800 + $0x6c] sm:$0xf] %v1319
      %1321 = vst.msk [vmem:[%s800 + $0x70] sm:$0xf] %vm1284, %v1228
      %v1322 = vld [vmem:[%s800 + $0x78] sm:$0xf]
      %v1323 = vsel %vm1280, %v1230, %v1322
      %1324 = vst [vmem:[%s800 + $0x78] sm:$0xf] %v1323
      %1325 = vst.msk [vmem:[%s800 + $0x7c] sm:$0xf] %vm1284, %v1232
      %v1326 = vld [vmem:[%s800 + $0x84] sm:$0xf]
      %v1327 = vsel %vm1280, %v1234, %v1326
      %1328 = vst [vmem:[%s800 + $0x84] sm:$0xf] %v1327
      %1329 = vst.msk [vmem:[%s800 + $0x88] sm:$0xf] %vm1284, %v1236
      %v1330 = vld [vmem:[%s800 + $0x90] sm:$0xf]
      %v1331 = vsel %vm1280, %v1238, %v1330
      %1332 = vst [vmem:[%s800 + $0x90] sm:$0xf] %v1331
      %1333 = vst.msk [vmem:[%s800 + $0x94] sm:$0xf] %vm1284, %v1240
      %v1334 = vld [vmem:[%s800 + $0x9c] sm:$0xf]
      %v1335 = vsel %vm1280, %v1242, %v1334
      %1336 = vst [vmem:[%s800 + $0x9c] sm:$0xf] %v1335
      %1337 = vst.msk [vmem:[%s800 + $0xa0] sm:$0xf] %vm1284, %v1244
      %v1338 = vld [vmem:[%s800 + $0xa8] sm:$0xf]
      %v1339 = vsel %vm1280, %v1246, %v1338
      %1340 = vst [vmem:[%s800 + $0xa8] sm:$0xf] %v1339
      %1341 = vst.msk [vmem:[%s800 + $0xac] sm:$0xf] %vm1284, %v1248
      %1342 = vst.msk [vmem:[#allocation3] sm:$0xf] %vm807, 0
      %1343 = vst.msk [vmem:[#allocation3 + $0x4] sm:$0xf] %vm807, 0
      %vm1344 = vcmask 24576
      %1345 = vst.msk [vmem:[#allocation3 + $0x8] sm:$0x1] %vm1344, 0
      %s1346 = scalar_lea.vmem [#allocation3], 204
      %1347 = vst.msk [vmem:[%s1346] sm:$0xf] %vm807, 0
      %1348 = vst.msk [vmem:[%s1346 + $0x4] sm:$0xf] %vm807, 0
      %1349 = vst.msk [vmem:[%s1346 + $0x8] sm:$0x1] %vm1344, 0
      %v1350 = vld [vmem:[#allocation3] sm:$0x1]
      %v1351 = vsel %vm810, 0, %v1350
      %1352 = vst [vmem:[#allocation3] sm:$0x1] %v1351
      %v1353 = vld [vmem:[#allocation3 + $0xc] sm:$0x1]
      %v1354 = vsel %vm810, 0, %v1353
      %1355 = vst [vmem:[#allocation3 + $0xc] sm:$0x1] %v1354
      %v1356 = vld [vmem:[#allocation3 + $0x18] sm:$0x1]
      %v1357 = vsel %vm810, 0, %v1356
      %1358 = vst [vmem:[#allocation3 + $0x18] sm:$0x1] %v1357
      %v1359 = vld [vmem:[#allocation3 + $0x24] sm:$0x1]
      %v1360 = vsel %vm810, 0, %v1359
      %1361 = vst [vmem:[#allocation3 + $0x24] sm:$0x1] %v1360
      %v1362 = vld [vmem:[#allocation3 + $0x30] sm:$0x1]
      %v1363 = vsel %vm810, 0, %v1362
      %1364 = vst [vmem:[#allocation3 + $0x30] sm:$0x1] %v1363
      %v1365 = vld [vmem:[#allocation3 + $0x3c] sm:$0x1]
      %v1366 = vsel %vm810, 0, %v1365
      %1367 = vst [vmem:[#allocation3 + $0x3c] sm:$0x1] %v1366
      %v1368 = vld [vmem:[#allocation3 + $0x48] sm:$0x1]
      %v1369 = vsel %vm810, 0, %v1368
      %1370 = vst [vmem:[#allocation3 + $0x48] sm:$0x1] %v1369
      %v1371 = vld [vmem:[#allocation3 + $0x54] sm:$0x1]
      %v1372 = vsel %vm810, 0, %v1371
      %1373 = vst [vmem:[#allocation3 + $0x54] sm:$0x1] %v1372
      %v1374 = vld [vmem:[#allocation3 + $0x60] sm:$0x1]
      %v1375 = vsel %vm810, 0, %v1374
      %1376 = vst [vmem:[#allocation3 + $0x60] sm:$0x1] %v1375
      %v1377 = vld [vmem:[#allocation3 + $0x6c] sm:$0x1]
      %v1378 = vsel %vm810, 0, %v1377
      %1379 = vst [vmem:[#allocation3 + $0x6c] sm:$0x1] %v1378
      %v1380 = vld [vmem:[#allocation3 + $0x78] sm:$0x1]
      %v1381 = vsel %vm810, 0, %v1380
      %1382 = vst [vmem:[#allocation3 + $0x78] sm:$0x1] %v1381
      %v1383 = vld [vmem:[#allocation3 + $0x84] sm:$0x1]
      %v1384 = vsel %vm810, 0, %v1383
      %1385 = vst [vmem:[#allocation3 + $0x84] sm:$0x1] %v1384
      %v1386 = vld [vmem:[#allocation3 + $0x90] sm:$0x1]
      %v1387 = vsel %vm810, 0, %v1386
      %1388 = vst [vmem:[#allocation3 + $0x90] sm:$0x1] %v1387
      %v1389 = vld [vmem:[#allocation3 + $0x9c] sm:$0x1]
      %v1390 = vsel %vm810, 0, %v1389
      %1391 = vst [vmem:[#allocation3 + $0x9c] sm:$0x1] %v1390
      %v1392 = vld [vmem:[#allocation3 + $0xa8] sm:$0x1]
      %v1393 = vsel %vm810, 0, %v1392
      %1394 = vst [vmem:[#allocation3 + $0xa8] sm:$0x1] %v1393
      %v1395 = vld [vmem:[#allocation3 + $0xb4] sm:$0x1]
      %v1396 = vsel %vm810, 0, %v1395
      %1397 = vst [vmem:[#allocation3 + $0xb4] sm:$0x1] %v1396
      %v1398 = vld [vmem:[#allocation3 + $0xc0] sm:$0x1]
      %v1399 = vsel %vm810, 0, %v1398
      %1400 = vst [vmem:[#allocation3 + $0xc0] sm:$0x1] %v1399
      %v1401 = vld [vmem:[#allocation3 + $0xcc] sm:$0x1]
      %v1402 = vsel %vm810, 0, %v1401
      %1403 = vst [vmem:[#allocation3 + $0xcc] sm:$0x1] %v1402
      %vm1404 = vmand %vm809, %vm802
      %v1405 = vld [vmem:[#allocation3 + $0x8] sm:$0x1]
      %v1406 = vsel %vm1404, 0, %v1405
      %1407 = vst [vmem:[#allocation3 + $0x8] sm:$0x1] %v1406
      %v1408 = vld [vmem:[#allocation3 + $0x14] sm:$0x1]
      %v1409 = vsel %vm1404, 0, %v1408
      %1410 = vst [vmem:[#allocation3 + $0x14] sm:$0x1] %v1409
      %v1411 = vld [vmem:[#allocation3 + $0x20] sm:$0x1]
      %v1412 = vsel %vm1404, 0, %v1411
      %1413 = vst [vmem:[#allocation3 + $0x20] sm:$0x1] %v1412
      %v1414 = vld [vmem:[#allocation3 + $0x2c] sm:$0x1]
      %v1415 = vsel %vm1404, 0, %v1414
      %1416 = vst [vmem:[#allocation3 + $0x2c] sm:$0x1] %v1415
      %v1417 = vld [vmem:[#allocation3 + $0x38] sm:$0x1]
      %v1418 = vsel %vm1404, 0, %v1417
      %1419 = vst [vmem:[#allocation3 + $0x38] sm:$0x1] %v1418
      %v1420 = vld [vmem:[#allocation3 + $0x44] sm:$0x1]
      %v1421 = vsel %vm1404, 0, %v1420
      %1422 = vst [vmem:[#allocation3 + $0x44] sm:$0x1] %v1421
      %v1423 = vld [vmem:[#allocation3 + $0x50] sm:$0x1]
      %v1424 = vsel %vm1404, 0, %v1423
      %1425 = vst [vmem:[#allocation3 + $0x50] sm:$0x1] %v1424
      %v1426 = vld [vmem:[#allocation3 + $0x5c] sm:$0x1]
      %v1427 = vsel %vm1404, 0, %v1426
      %1428 = vst [vmem:[#allocation3 + $0x5c] sm:$0x1] %v1427
      %v1429 = vld [vmem:[#allocation3 + $0x68] sm:$0x1]
      %v1430 = vsel %vm1404, 0, %v1429
      %1431 = vst [vmem:[#allocation3 + $0x68] sm:$0x1] %v1430
      %v1432 = vld [vmem:[#allocation3 + $0x74] sm:$0x1]
      %v1433 = vsel %vm1404, 0, %v1432
      %1434 = vst [vmem:[#allocation3 + $0x74] sm:$0x1] %v1433
      %v1435 = vld [vmem:[#allocation3 + $0x80] sm:$0x1]
      %v1436 = vsel %vm1404, 0, %v1435
      %1437 = vst [vmem:[#allocation3 + $0x80] sm:$0x1] %v1436
      %v1438 = vld [vmem:[#allocation3 + $0x8c] sm:$0x1]
      %v1439 = vsel %vm1404, 0, %v1438
      %1440 = vst [vmem:[#allocation3 + $0x8c] sm:$0x1] %v1439
      %v1441 = vld [vmem:[#allocation3 + $0x98] sm:$0x1]
      %v1442 = vsel %vm1404, 0, %v1441
      %1443 = vst [vmem:[#allocation3 + $0x98] sm:$0x1] %v1442
      %v1444 = vld [vmem:[#allocation3 + $0xa4] sm:$0x1]
      %v1445 = vsel %vm1404, 0, %v1444
      %1446 = vst [vmem:[#allocation3 + $0xa4] sm:$0x1] %v1445
      %v1447 = vld [vmem:[#allocation3 + $0xb0] sm:$0x1]
      %v1448 = vsel %vm1404, 0, %v1447
      %1449 = vst [vmem:[#allocation3 + $0xb0] sm:$0x1] %v1448
      %v1450 = vld [vmem:[#allocation3 + $0xbc] sm:$0x1]
      %v1451 = vsel %vm1404, 0, %v1450
      %1452 = vst [vmem:[#allocation3 + $0xbc] sm:$0x1] %v1451
      %v1453 = vld [vmem:[#allocation3 + $0xc8] sm:$0x1]
      %v1454 = vsel %vm1404, 0, %v1453
      %1455 = vst [vmem:[#allocation3 + $0xc8] sm:$0x1] %v1454
      %v1456 = vld [vmem:[#allocation3 + $0xd4] sm:$0x1]
      %v1457 = vsel %vm1404, 0, %v1456
      %1458 = vst [vmem:[#allocation3 + $0xd4] sm:$0x1] %v1457
      %v1459 = vld [vmem:[#allocation2] sm:$0xf]
      %v1460 = vld [vmem:[#allocation2 + $0x4] sm:$0xf]
      %v1461 = vld [vmem:[#allocation2 + $0xc] sm:$0xf]
      %v1462 = vld [vmem:[#allocation2 + $0x10] sm:$0xf]
      %v1463 = vld [vmem:[#allocation2 + $0x18] sm:$0xf]
      %v1464 = vld [vmem:[#allocation2 + $0x1c] sm:$0xf]
      %v1465 = vld [vmem:[#allocation2 + $0x24] sm:$0xf]
      %v1466 = vld [vmem:[#allocation2 + $0x28] sm:$0xf]
      %v1467 = vld [vmem:[#allocation2 + $0x30] sm:$0xf]
      %v1468 = vld [vmem:[#allocation2 + $0x34] sm:$0xf]
      %v1469 = vld [vmem:[#allocation2 + $0x3c] sm:$0xf]
      %v1470 = vld [vmem:[#allocation2 + $0x40] sm:$0xf]
      %v1471 = vld [vmem:[#allocation2 + $0x48] sm:$0xf]
      %v1472 = vld [vmem:[#allocation2 + $0x4c] sm:$0xf]
      %v1473 = vld [vmem:[#allocation2 + $0x54] sm:$0xf]
      %v1474 = vld [vmem:[#allocation2 + $0x58] sm:$0xf]
      %v1475 = vld [vmem:[%s2] sm:$0xf]
      %v1476 = vld [vmem:[#allocation2 + $0x8] sm:$0x1]
      %v1477 = vld [vmem:[#allocation2 + $0x14] sm:$0x1]
      %v1478 = vld [vmem:[#allocation2 + $0x20] sm:$0x1]
      %v1479 = vld [vmem:[#allocation2 + $0x2c] sm:$0x1]
      %v1480 = vld [vmem:[#allocation2 + $0x38] sm:$0x1]
      %v1481 = vld [vmem:[#allocation2 + $0x44] sm:$0x1]
      %v1482 = vld [vmem:[#allocation2 + $0x50] sm:$0x1]
      %v1483 = vld [vmem:[#allocation2 + $0x5c] sm:$0x1]
      %vm1484 = vsmask.f32 3328
      %vm1485 = vsmask.f32 7440
      %vm1486 = vmor %vm1484, %vm1485
      %v1488 = vshrl.u32 %v1459, 16
      %v1490 = vrot.slane %v1488, 4
      %v1491 = vshll.u32 %v1459, 16
      %v1493 = vrot.slane %v1491, 5
      %v1494 = vor.u32 %v1490, %v1493
      %v1495 = vrot.slane %v1494, 4
      %v1497 = vshll.u32 %v1460, 16
      %v1499 = vrot.slane %v1497, 5
      %v1500 = vsel %vm1486, %v1495, %v1499
      %v1501 = vshrl.u32 %v1460, 16
      %v1503 = vrot.slane %v1501, 4
      %v1504 = vor.u32 %v1503, %v1499
      %v1505 = vrot.slane %v1504, 4
      %v1507 = vshll.u32 %v1476, 16
      %v1509 = vrot.slane %v1507, 5
      %v1510 = vsel %vm1486, %v1505, %v1509
      %v1512 = vshrl.u32 %v1461, 16
      %v1514 = vrot.slane %v1512, 4
      %v1515 = vshll.u32 %v1461, 16
      %v1517 = vrot.slane %v1515, 5
      %v1518 = vor.u32 %v1514, %v1517
      %v1519 = vrot.slane %v1518, 4
      %v1521 = vshll.u32 %v1462, 16
      %v1523 = vrot.slane %v1521, 5
      %v1524 = vsel %vm1486, %v1519, %v1523
      %v1525 = vshrl.u32 %v1462, 16
      %v1527 = vrot.slane %v1525, 4
      %v1528 = vor.u32 %v1527, %v1523
      %v1529 = vrot.slane %v1528, 4
      %v1531 = vshll.u32 %v1477, 16
      %v1533 = vrot.slane %v1531, 5
      %v1534 = vsel %vm1486, %v1529, %v1533
      %v1536 = vshrl.u32 %v1463, 16
      %v1538 = vrot.slane %v1536, 4
      %v1539 = vshll.u32 %v1463, 16
      %v1541 = vrot.slane %v1539, 5
      %v1542 = vor.u32 %v1538, %v1541
      %v1543 = vrot.slane %v1542, 4
      %v1545 = vshll.u32 %v1464, 16
      %v1547 = vrot.slane %v1545, 5
      %v1548 = vsel %vm1486, %v1543, %v1547
      %v1549 = vshrl.u32 %v1464, 16
      %v1551 = vrot.slane %v1549, 4
      %v1552 = vor.u32 %v1551, %v1547
      %v1553 = vrot.slane %v1552, 4
      %v1555 = vshll.u32 %v1478, 16
      %v1557 = vrot.slane %v1555, 5
      %v1558 = vsel %vm1486, %v1553, %v1557
      %v1560 = vshrl.u32 %v1465, 16
      %v1562 = vrot.slane %v1560, 4
      %v1563 = vshll.u32 %v1465, 16
      %v1565 = vrot.slane %v1563, 5
      %v1566 = vor.u32 %v1562, %v1565
      %v1567 = vrot.slane %v1566, 4
      %v1569 = vshll.u32 %v1466, 16
      %v1571 = vrot.slane %v1569, 5
      %v1572 = vsel %vm1486, %v1567, %v1571
      %v1573 = vshrl.u32 %v1466, 16
      %v1575 = vrot.slane %v1573, 4
      %v1576 = vor.u32 %v1575, %v1571
      %v1577 = vrot.slane %v1576, 4
      %v1579 = vshll.u32 %v1479, 16
      %v1581 = vrot.slane %v1579, 5
      %v1582 = vsel %vm1486, %v1577, %v1581
      %v1584 = vshrl.u32 %v1467, 16
      %v1586 = vrot.slane %v1584, 4
      %v1587 = vshll.u32 %v1467, 16
      %v1589 = vrot.slane %v1587, 5
      %v1590 = vor.u32 %v1586, %v1589
      %v1591 = vrot.slane %v1590, 4
      %v1593 = vshll.u32 %v1468, 16
      %v1595 = vrot.slane %v1593, 5
      %v1596 = vsel %vm1486, %v1591, %v1595
      %v1597 = vshrl.u32 %v1468, 16
      %v1599 = vrot.slane %v1597, 4
      %v1600 = vor.u32 %v1599, %v1595
      %v1601 = vrot.slane %v1600, 4
      %v1603 = vshll.u32 %v1480, 16
      %v1605 = vrot.slane %v1603, 5
      %v1606 = vsel %vm1486, %v1601, %v1605
      %v1608 = vshrl.u32 %v1469, 16
      %v1610 = vrot.slane %v1608, 4
      %v1611 = vshll.u32 %v1469, 16
      %v1613 = vrot.slane %v1611, 5
      %v1614 = vor.u32 %v1610, %v1613
      %v1615 = vrot.slane %v1614, 4
      %v1617 = vshll.u32 %v1470, 16
      %v1619 = vrot.slane %v1617, 5
      %v1620 = vsel %vm1486, %v1615, %v1619
      %v1621 = vshrl.u32 %v1470, 16
      %v1623 = vrot.slane %v1621, 4
      %v1624 = vor.u32 %v1623, %v1619
      %v1625 = vrot.slane %v1624, 4
      %v1627 = vshll.u32 %v1481, 16
      %v1629 = vrot.slane %v1627, 5
      %v1630 = vsel %vm1486, %v1625, %v1629
      %v1632 = vshrl.u32 %v1471, 16
      %v1634 = vrot.slane %v1632, 4
      %v1635 = vshll.u32 %v1471, 16
      %v1637 = vrot.slane %v1635, 5
      %v1638 = vor.u32 %v1634, %v1637
      %v1639 = vrot.slane %v1638, 4
      %v1641 = vshll.u32 %v1472, 16
      %v1643 = vrot.slane %v1641, 5
      %v1644 = vsel %vm1486, %v1639, %v1643
      %v1645 = vshrl.u32 %v1472, 16
      %v1647 = vrot.slane %v1645, 4
      %v1648 = vor.u32 %v1647, %v1643
      %v1649 = vrot.slane %v1648, 4
      %v1651 = vshll.u32 %v1482, 16
      %v1653 = vrot.slane %v1651, 5
      %v1654 = vsel %vm1486, %v1649, %v1653
      %v1656 = vshrl.u32 %v1473, 16
      %v1658 = vrot.slane %v1656, 4
      %v1659 = vshll.u32 %v1473, 16
      %v1661 = vrot.slane %v1659, 5
      %v1662 = vor.u32 %v1658, %v1661
      %v1663 = vrot.slane %v1662, 4
      %v1665 = vshll.u32 %v1474, 16
      %v1667 = vrot.slane %v1665, 5
      %v1668 = vsel %vm1486, %v1663, %v1667
      %v1669 = vshrl.u32 %v1474, 16
      %v1671 = vrot.slane %v1669, 4
      %v1672 = vor.u32 %v1671, %v1667
      %v1673 = vrot.slane %v1672, 4
      %v1675 = vshll.u32 %v1483, 16
      %v1677 = vrot.slane %v1675, 5
      %v1678 = vsel %vm1486, %v1673, %v1677
      %s1679 = scalar_lea.vmem %s2, 4
      %v1680 = vld [vmem:[%s1679] sm:$0xf]
      %v1681 = vunpack.c.l.b16 %v1500
      %v1682 = vunpack.c.l.b16 %v1510
      %v1683 = vunpack.c.l.b16 %v1524
      %v1684 = vunpack.c.l.b16 %v1534
      %v1685 = vunpack.c.l.b16 %v1548
      %v1686 = vunpack.c.l.b16 %v1558
      %v1687 = vunpack.c.l.b16 %v1572
      %v1688 = vunpack.c.l.b16 %v1582
      %v1689 = vunpack.c.l.b16 %v1596
      %v1690 = vunpack.c.l.b16 %v1606
      %v1691 = vunpack.c.l.b16 %v1620
      %v1692 = vunpack.c.l.b16 %v1630
      %v1693 = vunpack.c.l.b16 %v1644
      %v1694 = vunpack.c.l.b16 %v1654
      %v1695 = vunpack.c.l.b16 %v1668
      %v1696 = vunpack.c.l.b16 %v1678
      %v1697 = vpack.c.b16 %v1682, %v1681
      %v1698 = vpack.c.b16 %v1684, %v1683
      %v1699 = vpack.c.b16 %v1686, %v1685
      %v1700 = vpack.c.b16 %v1688, %v1687
      %v1701 = vpack.c.b16 %v1690, %v1689
      %v1702 = vpack.c.b16 %v1692, %v1691
      %v1703 = vpack.c.b16 %v1694, %v1693
      %v1704 = vpack.c.b16 %v1696, %v1695
      %vm1705 = vcmask 64512
      %v1707 = vsel %vm1705, %v1697, 0
      %v1710 = vsel %vm1705, %v1698, 0
      %v1713 = vsel %vm1705, %v1699, 0
      %v1716 = vsel %vm1705, %v1700, 0
      %v1719 = vsel %vm1705, %v1701, 0
      %v1722 = vsel %vm1705, %v1702, 0
      %v1725 = vsel %vm1705, %v1703, 0
      %v1728 = vsel %vm1705, %v1704, 0
      %vm1730 = vcmask 1043456
      %v1732 = vsel %vm1730, %v1680, 0
      %1734 = vmatpush.bf16.msra.mxu0 0
      %1735 = vmatpush.bf16.msra.mxu0 0
      %1736 = vmatpush.bf16.msra.mxu0 0
      %1737 = vmatpush.bf16.msra.mxu0 0
      %1738 = vmatpush.bf16.msra.mxu0 0
      %1739 = vmatpush.bf16.msra.mxu0 0
      %1740 = vmatpush.bf16.msra.mxu0 0
      %1741 = vmatpush.bf16.msra.mxu0 %v1732
      %1742 = vmatmul.bf16.gmra.mxu0 %v1707
      %v1743 = vpop.f32.mrf.mxu0
      %v1744 = vadd.f32 0.0, %v1743
      %v1745 = vpop.f32.mrf.mxu0
      %v1746 = vadd.f32 0.0, %v1745
      %1747 = vmatmul.bf16.gmra.mxu0 %v1710
      %v1748 = vpop.f32.mrf.mxu0
      %v1749 = vadd.f32 0.0, %v1748
      %v1750 = vpop.f32.mrf.mxu0
      %v1751 = vadd.f32 0.0, %v1750
      %1752 = vmatmul.bf16.gmra.mxu0 %v1713
      %v1753 = vpop.f32.mrf.mxu0
      %v1754 = vadd.f32 0.0, %v1753
      %v1755 = vpop.f32.mrf.mxu0
      %v1756 = vadd.f32 0.0, %v1755
      %1757 = vmatmul.bf16.gmra.mxu0 %v1716
      %v1758 = vpop.f32.mrf.mxu0
      %v1759 = vadd.f32 0.0, %v1758
      %v1760 = vpop.f32.mrf.mxu0
      %v1761 = vadd.f32 0.0, %v1760
      %1762 = vmatmul.bf16.gmra.mxu0 %v1719
      %v1763 = vpop.f32.mrf.mxu0
      %v1764 = vadd.f32 0.0, %v1763
      %v1765 = vpop.f32.mrf.mxu0
      %v1766 = vadd.f32 0.0, %v1765
      %1767 = vmatmul.bf16.gmra.mxu0 %v1722
      %v1768 = vpop.f32.mrf.mxu0
      %v1769 = vadd.f32 0.0, %v1768
      %v1770 = vpop.f32.mrf.mxu0
      %v1771 = vadd.f32 0.0, %v1770
      %1772 = vmatmul.bf16.gmra.mxu0 %v1725
      %v1773 = vpop.f32.mrf.mxu0
      %v1774 = vadd.f32 0.0, %v1773
      %v1775 = vpop.f32.mrf.mxu0
      %v1776 = vadd.f32 0.0, %v1775
      %1777 = vmatmul.bf16.gmra.mxu0 %v1728
      %v1778 = vpop.f32.mrf.mxu0
      %v1779 = vadd.f32 0.0, %v1778
      %v1780 = vpop.f32.mrf.mxu0
      %v1781 = vadd.f32 0.0, %v1780
      %1782 = vdwg.mxu0
      %v1799 = vunpack.c.l.b16 %v1459
      %v1800 = vunpack.c.l.b16 %v1460
      %v1801 = vunpack.c.l.b16 %v1461
      %v1802 = vunpack.c.l.b16 %v1462
      %v1803 = vunpack.c.l.b16 %v1463
      %v1804 = vunpack.c.l.b16 %v1464
      %v1805 = vunpack.c.l.b16 %v1465
      %v1806 = vunpack.c.l.b16 %v1466
      %v1807 = vunpack.c.l.b16 %v1467
      %v1808 = vunpack.c.l.b16 %v1468
      %v1809 = vunpack.c.l.b16 %v1469
      %v1810 = vunpack.c.l.b16 %v1470
      %v1811 = vunpack.c.l.b16 %v1471
      %v1812 = vunpack.c.l.b16 %v1472
      %v1813 = vunpack.c.l.b16 %v1473
      %v1814 = vunpack.c.l.b16 %v1474
      %v1815 = vpack.c.b16 %v1800, %v1799
      %v1816 = vpack.c.b16 %v1802, %v1801
      %v1817 = vpack.c.b16 %v1804, %v1803
      %v1818 = vpack.c.b16 %v1806, %v1805
      %v1819 = vpack.c.b16 %v1808, %v1807
      %v1820 = vpack.c.b16 %v1810, %v1809
      %v1821 = vpack.c.b16 %v1812, %v1811
      %v1822 = vpack.c.b16 %v1814, %v1813
      %v1824 = vsel %vm1705, %v1815, 0
      %v1827 = vsel %vm1705, %v1816, 0
      %v1830 = vsel %vm1705, %v1817, 0
      %v1833 = vsel %vm1705, %v1818, 0
      %v1836 = vsel %vm1705, %v1819, 0
      %v1839 = vsel %vm1705, %v1820, 0
      %v1842 = vsel %vm1705, %v1821, 0
      %v1845 = vsel %vm1705, %v1822, 0
      %v1848 = vsel %vm1730, %v1475, 0
      %1850 = vmatpush.bf16.msra.mxu0 0
      %1851 = vmatpush.bf16.msra.mxu0 0
      %1852 = vmatpush.bf16.msra.mxu0 0
      %1853 = vmatpush.bf16.msra.mxu0 0
      %1854 = vmatpush.bf16.msra.mxu0 0
      %1855 = vmatpush.bf16.msra.mxu0 0
      %1856 = vmatpush.bf16.msra.mxu0 0
      %1857 = vmatpush.bf16.msra.mxu0 %v1848
      %1858 = vmatmul.bf16.gmra.mxu0 %v1824
      %v1859 = vpop.f32.mrf.mxu0
      %v1860 = vadd.f32 %v1744, %v1859
      %v1861 = vpop.f32.mrf.mxu0
      %v1862 = vadd.f32 %v1746, %v1861
      %1863 = vmatmul.bf16.gmra.mxu0 %v1827
      %v1864 = vpop.f32.mrf.mxu0
      %v1865 = vadd.f32 %v1749, %v1864
      %v1866 = vpop.f32.mrf.mxu0
      %v1867 = vadd.f32 %v1751, %v1866
      %1868 = vmatmul.bf16.gmra.mxu0 %v1830
      %v1869 = vpop.f32.mrf.mxu0
      %v1870 = vadd.f32 %v1754, %v1869
      %v1871 = vpop.f32.mrf.mxu0
      %v1872 = vadd.f32 %v1756, %v1871
      %1873 = vmatmul.bf16.gmra.mxu0 %v1833
      %v1874 = vpop.f32.mrf.mxu0
      %v1875 = vadd.f32 %v1759, %v1874
      %v1876 = vpop.f32.mrf.mxu0
      %v1877 = vadd.f32 %v1761, %v1876
      %1878 = vmatmul.bf16.gmra.mxu0 %v1836
      %v1879 = vpop.f32.mrf.mxu0
      %v1880 = vadd.f32 %v1764, %v1879
      %v1881 = vpop.f32.mrf.mxu0
      %v1882 = vadd.f32 %v1766, %v1881
      %1883 = vmatmul.bf16.gmra.mxu0 %v1839
      %v1884 = vpop.f32.mrf.mxu0
      %v1885 = vadd.f32 %v1769, %v1884
      %v1886 = vpop.f32.mrf.mxu0
      %v1887 = vadd.f32 %v1771, %v1886
      %1888 = vmatmul.bf16.gmra.mxu0 %v1842
      %v1889 = vpop.f32.mrf.mxu0
      %v1890 = vadd.f32 %v1774, %v1889
      %v1891 = vpop.f32.mrf.mxu0
      %v1892 = vadd.f32 %v1776, %v1891
      %1893 = vmatmul.bf16.gmra.mxu0 %v1845
      %v1894 = vpop.f32.mrf.mxu0
      %v1895 = vadd.f32 %v1779, %v1894
      %v1896 = vpop.f32.mrf.mxu0
      %v1897 = vadd.f32 %v1781, %v1896
      %1898 = vdwg.mxu0
      %v1899 = vld [vmem:[#allocation2] sm:$0xe]
      %v1900 = vld [vmem:[#allocation2 + $0xc] sm:$0xe]
      %v1901 = vld [vmem:[#allocation2 + $0x18] sm:$0xe]
      %v1902 = vld [vmem:[#allocation2 + $0x24] sm:$0xe]
      %v1903 = vld [vmem:[#allocation2 + $0x30] sm:$0xe]
      %v1904 = vld [vmem:[#allocation2 + $0x3c] sm:$0xe]
      %v1905 = vld [vmem:[#allocation2 + $0x48] sm:$0xe]
      %v1906 = vld [vmem:[#allocation2 + $0x54] sm:$0xe]
      %vm1923 = vcmask 1042432
      %vm1924 = vcmask 1046532
      %vm1925 = vmor %vm1923, %vm1924
      %v1926 = vrot.slane %v1899, 5
      %v1927 = vrot.slane %v1926, 4
      %v1928 = vrot.slane %v1460, 5
      %v1929 = vsel %vm1925, %v1927, %v1928
      %v1930 = vrot.slane %v1928, 4
      %v1931 = vrot.slane %v1476, 5
      %v1932 = vsel %vm1925, %v1930, %v1931
      %v1933 = vrot.slane %v1900, 5
      %v1934 = vrot.slane %v1933, 4
      %v1935 = vrot.slane %v1462, 5
      %v1936 = vsel %vm1925, %v1934, %v1935
      %v1937 = vrot.slane %v1935, 4
      %v1938 = vrot.slane %v1477, 5
      %v1939 = vsel %vm1925, %v1937, %v1938
      %v1940 = vrot.slane %v1901, 5
      %v1941 = vrot.slane %v1940, 4
      %v1942 = vrot.slane %v1464, 5
      %v1943 = vsel %vm1925, %v1941, %v1942
      %v1944 = vrot.slane %v1942, 4
      %v1945 = vrot.slane %v1478, 5
      %v1946 = vsel %vm1925, %v1944, %v1945
      %v1947 = vrot.slane %v1902, 5
      %v1948 = vrot.slane %v1947, 4
      %v1949 = vrot.slane %v1466, 5
      %v1950 = vsel %vm1925, %v1948, %v1949
      %v1951 = vrot.slane %v1949, 4
      %v1952 = vrot.slane %v1479, 5
      %v1953 = vsel %vm1925, %v1951, %v1952
      %v1954 = vrot.slane %v1903, 5
      %v1955 = vrot.slane %v1954, 4
      %v1956 = vrot.slane %v1468, 5
      %v1957 = vsel %vm1925, %v1955, %v1956
      %v1958 = vrot.slane %v1956, 4
      %v1959 = vrot.slane %v1480, 5
      %v1960 = vsel %vm1925, %v1958, %v1959
      %v1961 = vrot.slane %v1904, 5
      %v1962 = vrot.slane %v1961, 4
      %v1963 = vrot.slane %v1470, 5
      %v1964 = vsel %vm1925, %v1962, %v1963
      %v1965 = vrot.slane %v1963, 4
      %v1966 = vrot.slane %v1481, 5
      %v1967 = vsel %vm1925, %v1965, %v1966
      %v1968 = vrot.slane %v1905, 5
      %v1969 = vrot.slane %v1968, 4
      %v1970 = vrot.slane %v1472, 5
      %v1971 = vsel %vm1925, %v1969, %v1970
      %v1972 = vrot.slane %v1970, 4
      %v1973 = vrot.slane %v1482, 5
      %v1974 = vsel %vm1925, %v1972, %v1973
      %v1975 = vrot.slane %v1906, 5
      %v1976 = vrot.slane %v1975, 4
      %v1977 = vrot.slane %v1474, 5
      %v1978 = vsel %vm1925, %v1976, %v1977
      %v1979 = vrot.slane %v1977, 4
      %v1980 = vrot.slane %v1483, 5
      %v1981 = vsel %vm1925, %v1979, %v1980
      %s1982 = scalar_lea.vmem %s2, 8
      %v1983 = vld [vmem:[%s1982] sm:$0xf]
      %v1984 = vunpack.c.l.b16 %v1929
      %v1985 = vunpack.c.l.b16 %v1932
      %v1986 = vunpack.c.l.b16 %v1936
      %v1987 = vunpack.c.l.b16 %v1939
      %v1988 = vunpack.c.l.b16 %v1943
      %v1989 = vunpack.c.l.b16 %v1946
      %v1990 = vunpack.c.l.b16 %v1950
      %v1991 = vunpack.c.l.b16 %v1953
      %v1992 = vunpack.c.l.b16 %v1957
      %v1993 = vunpack.c.l.b16 %v1960
      %v1994 = vunpack.c.l.b16 %v1964
      %v1995 = vunpack.c.l.b16 %v1967
      %v1996 = vunpack.c.l.b16 %v1971
      %v1997 = vunpack.c.l.b16 %v1974
      %v1998 = vunpack.c.l.b16 %v1978
      %v1999 = vunpack.c.l.b16 %v1981
      %v2000 = vpack.c.b16 %v1985, %v1984
      %v2001 = vpack.c.b16 %v1987, %v1986
      %v2002 = vpack.c.b16 %v1989, %v1988
      %v2003 = vpack.c.b16 %v1991, %v1990
      %v2004 = vpack.c.b16 %v1993, %v1992
      %v2005 = vpack.c.b16 %v1995, %v1994
      %v2006 = vpack.c.b16 %v1997, %v1996
      %v2007 = vpack.c.b16 %v1999, %v1998
      %v2009 = vsel %vm1705, %v2000, 0
      %v2012 = vsel %vm1705, %v2001, 0
      %v2015 = vsel %vm1705, %v2002, 0
      %v2018 = vsel %vm1705, %v2003, 0
      %v2021 = vsel %vm1705, %v2004, 0
      %v2024 = vsel %vm1705, %v2005, 0
      %v2027 = vsel %vm1705, %v2006, 0
      %v2030 = vsel %vm1705, %v2007, 0
      %v2033 = vsel %vm1730, %v1983, 0
      %2035 = vmatpush.bf16.msra.mxu0 0
      %2036 = vmatpush.bf16.msra.mxu0 0
      %2037 = vmatpush.bf16.msra.mxu0 0
      %2038 = vmatpush.bf16.msra.mxu0 0
      %2039 = vmatpush.bf16.msra.mxu0 0
      %2040 = vmatpush.bf16.msra.mxu0 0
      %2041 = vmatpush.bf16.msra.mxu0 0
      %2042 = vmatpush.bf16.msra.mxu0 %v2033
      %2043 = vmatmul.bf16.gmra.mxu0 %v2009
      %v2044 = vpop.f32.mrf.mxu0
      %v2045 = vadd.f32 0.0, %v2044
      %v2046 = vpop.f32.mrf.mxu0
      %v2047 = vadd.f32 0.0, %v2046
      %2048 = vmatmul.bf16.gmra.mxu0 %v2012
      %v2049 = vpop.f32.mrf.mxu0
      %v2050 = vadd.f32 0.0, %v2049
      %v2051 = vpop.f32.mrf.mxu0
      %v2052 = vadd.f32 0.0, %v2051
      %2053 = vmatmul.bf16.gmra.mxu0 %v2015
      %v2054 = vpop.f32.mrf.mxu0
      %v2055 = vadd.f32 0.0, %v2054
      %v2056 = vpop.f32.mrf.mxu0
      %v2057 = vadd.f32 0.0, %v2056
      %2058 = vmatmul.bf16.gmra.mxu0 %v2018
      %v2059 = vpop.f32.mrf.mxu0
      %v2060 = vadd.f32 0.0, %v2059
      %v2061 = vpop.f32.mrf.mxu0
      %v2062 = vadd.f32 0.0, %v2061
      %2063 = vmatmul.bf16.gmra.mxu0 %v2021
      %v2064 = vpop.f32.mrf.mxu0
      %v2065 = vadd.f32 0.0, %v2064
      %v2066 = vpop.f32.mrf.mxu0
      %v2067 = vadd.f32 0.0, %v2066
      %2068 = vmatmul.bf16.gmra.mxu0 %v2024
      %v2069 = vpop.f32.mrf.mxu0
      %v2070 = vadd.f32 0.0, %v2069
      %v2071 = vpop.f32.mrf.mxu0
      %v2072 = vadd.f32 0.0, %v2071
      %2073 = vmatmul.bf16.gmra.mxu0 %v2027
      %v2074 = vpop.f32.mrf.mxu0
      %v2075 = vadd.f32 0.0, %v2074
      %v2076 = vpop.f32.mrf.mxu0
      %v2077 = vadd.f32 0.0, %v2076
      %2078 = vmatmul.bf16.gmra.mxu0 %v2030
      %v2079 = vpop.f32.mrf.mxu0
      %v2080 = vadd.f32 0.0, %v2079
      %v2081 = vpop.f32.mrf.mxu0
      %v2082 = vadd.f32 0.0, %v2081
      %2083 = vdwg.mxu0
      %v2084 = vadd.f32 %v1860, %v2045
      %v2085 = vadd.f32 %v1862, %v2047
      %v2086 = vadd.f32 %v1865, %v2050
      %v2087 = vadd.f32 %v1867, %v2052
      %v2088 = vadd.f32 %v1870, %v2055
      %v2089 = vadd.f32 %v1872, %v2057
      %v2090 = vadd.f32 %v1875, %v2060
      %v2091 = vadd.f32 %v1877, %v2062
      %v2092 = vadd.f32 %v1880, %v2065
      %v2093 = vadd.f32 %v1882, %v2067
      %v2094 = vadd.f32 %v1885, %v2070
      %v2095 = vadd.f32 %v1887, %v2072
      %v2096 = vadd.f32 %v1890, %v2075
      %v2097 = vadd.f32 %v1892, %v2077
      %v2098 = vadd.f32 %v1895, %v2080
      %v2099 = vadd.f32 %v1897, %v2082
      %v2100 = vld [vmem:[%s800] sm:$0xf]
      %v2101 = vld [vmem:[%s800 + $0x4] sm:$0xf]
      %v2102 = vld [vmem:[%s800 + $0xc] sm:$0xf]
      %v2103 = vld [vmem:[%s800 + $0x10] sm:$0xf]
      %v2104 = vld [vmem:[%s800 + $0x18] sm:$0xf]
      %v2105 = vld [vmem:[%s800 + $0x1c] sm:$0xf]
      %v2106 = vld [vmem:[%s800 + $0x24] sm:$0xf]
      %v2107 = vld [vmem:[%s800 + $0x28] sm:$0xf]
      %v2108 = vld [vmem:[%s800 + $0x30] sm:$0xf]
      %v2109 = vld [vmem:[%s800 + $0x34] sm:$0xf]
      %v2110 = vld [vmem:[%s800 + $0x3c] sm:$0xf]
      %v2111 = vld [vmem:[%s800 + $0x40] sm:$0xf]
      %v2112 = vld [vmem:[%s800 + $0x48] sm:$0xf]
      %v2113 = vld [vmem:[%s800 + $0x4c] sm:$0xf]
      %v2114 = vld [vmem:[%s800 + $0x54] sm:$0xf]
      %v2115 = vld [vmem:[%s800 + $0x58] sm:$0xf]
      %s2116 = scalar_lea.vmem %s2, 12
      %v2117 = vld [vmem:[%s2116] sm:$0xf]
      %v2134 = vunpack.c.l.b16 %v2100
      %v2135 = vunpack.c.l.b16 %v2101
      %v2136 = vunpack.c.l.b16 %v2102
      %v2137 = vunpack.c.l.b16 %v2103
      %v2138 = vunpack.c.l.b16 %v2104
      %v2139 = vunpack.c.l.b16 %v2105
      %v2140 = vunpack.c.l.b16 %v2106
      %v2141 = vunpack.c.l.b16 %v2107
      %v2142 = vunpack.c.l.b16 %v2108
      %v2143 = vunpack.c.l.b16 %v2109
      %v2144 = vunpack.c.l.b16 %v2110
      %v2145 = vunpack.c.l.b16 %v2111
      %v2146 = vunpack.c.l.b16 %v2112
      %v2147 = vunpack.c.l.b16 %v2113
      %v2148 = vunpack.c.l.b16 %v2114
      %v2149 = vunpack.c.l.b16 %v2115
      %v2150 = vpack.c.b16 %v2135, %v2134
      %v2151 = vpack.c.b16 %v2137, %v2136
      %v2152 = vpack.c.b16 %v2139, %v2138
      %v2153 = vpack.c.b16 %v2141, %v2140
      %v2154 = vpack.c.b16 %v2143, %v2142
      %v2155 = vpack.c.b16 %v2145, %v2144
      %v2156 = vpack.c.b16 %v2147, %v2146
      %v2157 = vpack.c.b16 %v2149, %v2148
      %v2159 = vsel %vm1705, %v2150, 0
      %v2162 = vsel %vm1705, %v2151, 0
      %v2165 = vsel %vm1705, %v2152, 0
      %v2168 = vsel %vm1705, %v2153, 0
      %v2171 = vsel %vm1705, %v2154, 0
      %v2174 = vsel %vm1705, %v2155, 0
      %v2177 = vsel %vm1705, %v2156, 0
      %v2180 = vsel %vm1705, %v2157, 0
      %v2183 = vsel %vm1730, %v2117, 0
      %2185 = vmatpush.bf16.msra.mxu0 0
      %2186 = vmatpush.bf16.msra.mxu0 0
      %2187 = vmatpush.bf16.msra.mxu0 0
      %2188 = vmatpush.bf16.msra.mxu0 0
      %2189 = vmatpush.bf16.msra.mxu0 0
      %2190 = vmatpush.bf16.msra.mxu0 0
      %2191 = vmatpush.bf16.msra.mxu0 0
      %2192 = vmatpush.bf16.msra.mxu0 %v2183
      %2193 = vmatmul.bf16.gmra.mxu0 %v2159
      %v2194 = vpop.f32.mrf.mxu0
      %v2195 = vadd.f32 0.0, %v2194
      %v2196 = vpop.f32.mrf.mxu0
      %v2197 = vadd.f32 0.0, %v2196
      %2198 = vmatmul.bf16.gmra.mxu0 %v2162
      %v2199 = vpop.f32.mrf.mxu0
      %v2200 = vadd.f32 0.0, %v2199
      %v2201 = vpop.f32.mrf.mxu0
      %v2202 = vadd.f32 0.0, %v2201
      %2203 = vmatmul.bf16.gmra.mxu0 %v2165
      %v2204 = vpop.f32.mrf.mxu0
      %v2205 = vadd.f32 0.0, %v2204
      %v2206 = vpop.f32.mrf.mxu0
      %v2207 = vadd.f32 0.0, %v2206
      %2208 = vmatmul.bf16.gmra.mxu0 %v2168
      %v2209 = vpop.f32.mrf.mxu0
      %v2210 = vadd.f32 0.0, %v2209
      %v2211 = vpop.f32.mrf.mxu0
      %v2212 = vadd.f32 0.0, %v2211
      %2213 = vmatmul.bf16.gmra.mxu0 %v2171
      %v2214 = vpop.f32.mrf.mxu0
      %v2215 = vadd.f32 0.0, %v2214
      %v2216 = vpop.f32.mrf.mxu0
      %v2217 = vadd.f32 0.0, %v2216
      %2218 = vmatmul.bf16.gmra.mxu0 %v2174
      %v2219 = vpop.f32.mrf.mxu0
      %v2220 = vadd.f32 0.0, %v2219
      %v2221 = vpop.f32.mrf.mxu0
      %v2222 = vadd.f32 0.0, %v2221
      %2223 = vmatmul.bf16.gmra.mxu0 %v2177
      %v2224 = vpop.f32.mrf.mxu0
      %v2225 = vadd.f32 0.0, %v2224
      %v2226 = vpop.f32.mrf.mxu0
      %v2227 = vadd.f32 0.0, %v2226
      %2228 = vmatmul.bf16.gmra.mxu0 %v2180
      %v2229 = vpop.f32.mrf.mxu0
      %v2230 = vadd.f32 0.0, %v2229
      %v2231 = vpop.f32.mrf.mxu0
      %v2232 = vadd.f32 0.0, %v2231
      %2233 = vdwg.mxu0
      %v2234 = vadd.f32 %v2084, %v2195
      %v2235 = vadd.f32 %v2085, %v2197
      %v2236 = vadd.f32 %v2086, %v2200
      %v2237 = vadd.f32 %v2087, %v2202
      %v2238 = vadd.f32 %v2088, %v2205
      %v2239 = vadd.f32 %v2089, %v2207
      %v2240 = vadd.f32 %v2090, %v2210
      %v2241 = vadd.f32 %v2091, %v2212
      %v2242 = vadd.f32 %v2092, %v2215
      %v2243 = vadd.f32 %v2093, %v2217
      %v2244 = vadd.f32 %v2094, %v2220
      %v2245 = vadd.f32 %v2095, %v2222
      %v2246 = vadd.f32 %v2096, %v2225
      %v2247 = vadd.f32 %v2097, %v2227
      %v2248 = vadd.f32 %v2098, %v2230
      %v2249 = vadd.f32 %v2099, %v2232
      %v2250 = vld [vmem:[%s800] sm:$0xf]
      %v2251 = vld [vmem:[%s800 + $0x4] sm:$0xf]
      %v2252 = vld [vmem:[%s800 + $0x8] sm:$0x1]
      %v2253 = vld [vmem:[%s800 + $0xc] sm:$0xf]
      %v2254 = vld [vmem:[%s800 + $0x10] sm:$0xf]
      %v2255 = vld [vmem:[%s800 + $0x14] sm:$0x1]
      %v2256 = vld [vmem:[%s800 + $0x18] sm:$0xf]
      %v2257 = vld [vmem:[%s800 + $0x1c] sm:$0xf]
      %v2258 = vld [vmem:[%s800 + $0x20] sm:$0x1]
      %v2259 = vld [vmem:[%s800 + $0x24] sm:$0xf]
      %v2260 = vld [vmem:[%s800 + $0x28] sm:$0xf]
      %v2261 = vld [vmem:[%s800 + $0x2c] sm:$0x1]
      %v2262 = vld [vmem:[%s800 + $0x30] sm:$0xf]
      %v2263 = vld [vmem:[%s800 + $0x34] sm:$0xf]
      %v2264 = vld [vmem:[%s800 + $0x38] sm:$0x1]
      %v2265 = vld [vmem:[%s800 + $0x3c] sm:$0xf]
      %v2266 = vld [vmem:[%s800 + $0x40] sm:$0xf]
      %v2267 = vld [vmem:[%s800 + $0x44] sm:$0x1]
      %v2268 = vld [vmem:[%s800 + $0x48] sm:$0xf]
      %v2269 = vld [vmem:[%s800 + $0x4c] sm:$0xf]
      %v2270 = vld [vmem:[%s800 + $0x50] sm:$0x1]
      %v2271 = vld [vmem:[%s800 + $0x54] sm:$0xf]
      %v2272 = vld [vmem:[%s800 + $0x58] sm:$0xf]
      %v2273 = vld [vmem:[%s800 + $0x5c] sm:$0x1]
      %v2275 = vshrl.u32 %v2250, 16
      %v2277 = vrot.slane %v2275, 4
      %v2278 = vshll.u32 %v2250, 16
      %v2280 = vrot.slane %v2278, 5
      %v2281 = vor.u32 %v2277, %v2280
      %v2282 = vrot.slane %v2281, 4
      %v2284 = vshll.u32 %v2251, 16
      %v2286 = vrot.slane %v2284, 5
      %v2287 = vsel %vm1486, %v2282, %v2286
      %v2288 = vshrl.u32 %v2251, 16
      %v2290 = vrot.slane %v2288, 4
      %v2291 = vor.u32 %v2290, %v2286
      %v2292 = vrot.slane %v2291, 4
      %v2294 = vshll.u32 %v2252, 16
      %v2296 = vrot.slane %v2294, 5
      %v2297 = vsel %vm1486, %v2292, %v2296
      %v2299 = vshrl.u32 %v2253, 16
      %v2301 = vrot.slane %v2299, 4
      %v2302 = vshll.u32 %v2253, 16
      %v2304 = vrot.slane %v2302, 5
      %v2305 = vor.u32 %v2301, %v2304
      %v2306 = vrot.slane %v2305, 4
      %v2308 = vshll.u32 %v2254, 16
      %v2310 = vrot.slane %v2308, 5
      %v2311 = vsel %vm1486, %v2306, %v2310
      %v2312 = vshrl.u32 %v2254, 16
      %v2314 = vrot.slane %v2312, 4
      %v2315 = vor.u32 %v2314, %v2310
      %v2316 = vrot.slane %v2315, 4
      %v2318 = vshll.u32 %v2255, 16
      %v2320 = vrot.slane %v2318, 5
      %v2321 = vsel %vm1486, %v2316, %v2320
      %v2323 = vshrl.u32 %v2256, 16
      %v2325 = vrot.slane %v2323, 4
      %v2326 = vshll.u32 %v2256, 16
      %v2328 = vrot.slane %v2326, 5
      %v2329 = vor.u32 %v2325, %v2328
      %v2330 = vrot.slane %v2329, 4
      %v2332 = vshll.u32 %v2257, 16
      %v2334 = vrot.slane %v2332, 5
      %v2335 = vsel %vm1486, %v2330, %v2334
      %v2336 = vshrl.u32 %v2257, 16
      %v2338 = vrot.slane %v2336, 4
      %v2339 = vor.u32 %v2338, %v2334
      %v2340 = vrot.slane %v2339, 4
      %v2342 = vshll.u32 %v2258, 16
      %v2344 = vrot.slane %v2342, 5
      %v2345 = vsel %vm1486, %v2340, %v2344
      %v2347 = vshrl.u32 %v2259, 16
      %v2349 = vrot.slane %v2347, 4
      %v2350 = vshll.u32 %v2259, 16
      %v2352 = vrot.slane %v2350, 5
      %v2353 = vor.u32 %v2349, %v2352
      %v2354 = vrot.slane %v2353, 4
      %v2356 = vshll.u32 %v2260, 16
      %v2358 = vrot.slane %v2356, 5
      %v2359 = vsel %vm1486, %v2354, %v2358
      %v2360 = vshrl.u32 %v2260, 16
      %v2362 = vrot.slane %v2360, 4
      %v2363 = vor.u32 %v2362, %v2358
      %v2364 = vrot.slane %v2363, 4
      %v2366 = vshll.u32 %v2261, 16
      %v2368 = vrot.slane %v2366, 5
      %v2369 = vsel %vm1486, %v2364, %v2368
      %v2371 = vshrl.u32 %v2262, 16
      %v2373 = vrot.slane %v2371, 4
      %v2374 = vshll.u32 %v2262, 16
      %v2376 = vrot.slane %v2374, 5
      %v2377 = vor.u32 %v2373, %v2376
      %v2378 = vrot.slane %v2377, 4
      %v2380 = vshll.u32 %v2263, 16
      %v2382 = vrot.slane %v2380, 5
      %v2383 = vsel %vm1486, %v2378, %v2382
      %v2384 = vshrl.u32 %v2263, 16
      %v2386 = vrot.slane %v2384, 4
      %v2387 = vor.u32 %v2386, %v2382
      %v2388 = vrot.slane %v2387, 4
      %v2390 = vshll.u32 %v2264, 16
      %v2392 = vrot.slane %v2390, 5
      %v2393 = vsel %vm1486, %v2388, %v2392
      %v2395 = vshrl.u32 %v2265, 16
      %v2397 = vrot.slane %v2395, 4
      %v2398 = vshll.u32 %v2265, 16
      %v2400 = vrot.slane %v2398, 5
      %v2401 = vor.u32 %v2397, %v2400
      %v2402 = vrot.slane %v2401, 4
      %v2404 = vshll.u32 %v2266, 16
      %v2406 = vrot.slane %v2404, 5
      %v2407 = vsel %vm1486, %v2402, %v2406
      %v2408 = vshrl.u32 %v2266, 16
      %v2410 = vrot.slane %v2408, 4
      %v2411 = vor.u32 %v2410, %v2406
      %v2412 = vrot.slane %v2411, 4
      %v2414 = vshll.u32 %v2267, 16
      %v2416 = vrot.slane %v2414, 5
      %v2417 = vsel %vm1486, %v2412, %v2416
      %v2419 = vshrl.u32 %v2268, 16
      %v2421 = vrot.slane %v2419, 4
      %v2422 = vshll.u32 %v2268, 16
      %v2424 = vrot.slane %v2422, 5
      %v2425 = vor.u32 %v2421, %v2424
      %v2426 = vrot.slane %v2425, 4
      %v2428 = vshll.u32 %v2269, 16
      %v2430 = vrot.slane %v2428, 5
      %v2431 = vsel %vm1486, %v2426, %v2430
      %v2432 = vshrl.u32 %v2269, 16
      %v2434 = vrot.slane %v2432, 4
      %v2435 = vor.u32 %v2434, %v2430
      %v2436 = vrot.slane %v2435, 4
      %v2438 = vshll.u32 %v2270, 16
      %v2440 = vrot.slane %v2438, 5
      %v2441 = vsel %vm1486, %v2436, %v2440
      %v2443 = vshrl.u32 %v2271, 16
      %v2445 = vrot.slane %v2443, 4
      %v2446 = vshll.u32 %v2271, 16
      %v2448 = vrot.slane %v2446, 5
      %v2449 = vor.u32 %v2445, %v2448
      %v2450 = vrot.slane %v2449, 4
      %v2452 = vshll.u32 %v2272, 16
      %v2454 = vrot.slane %v2452, 5
      %v2455 = vsel %vm1486, %v2450, %v2454
      %v2456 = vshrl.u32 %v2272, 16
      %v2458 = vrot.slane %v2456, 4
      %v2459 = vor.u32 %v2458, %v2454
      %v2460 = vrot.slane %v2459, 4
      %v2462 = vshll.u32 %v2273, 16
      %v2464 = vrot.slane %v2462, 5
      %v2465 = vsel %vm1486, %v2460, %v2464
      %s2466 = scalar_lea.vmem %s2, 16
      %v2467 = vld [vmem:[%s2466] sm:$0xf]
      %v2468 = vunpack.c.l.b16 %v2287
      %v2469 = vunpack.c.l.b16 %v2297
      %v2470 = vunpack.c.l.b16 %v2311
      %v2471 = vunpack.c.l.b16 %v2321
      %v2472 = vunpack.c.l.b16 %v2335
      %v2473 = vunpack.c.l.b16 %v2345
      %v2474 = vunpack.c.l.b16 %v2359
      %v2475 = vunpack.c.l.b16 %v2369
      %v2476 = vunpack.c.l.b16 %v2383
      %v2477 = vunpack.c.l.b16 %v2393
      %v2478 = vunpack.c.l.b16 %v2407
      %v2479 = vunpack.c.l.b16 %v2417
      %v2480 = vunpack.c.l.b16 %v2431
      %v2481 = vunpack.c.l.b16 %v2441
      %v2482 = vunpack.c.l.b16 %v2455
      %v2483 = vunpack.c.l.b16 %v2465
      %v2484 = vpack.c.b16 %v2469, %v2468
      %v2485 = vpack.c.b16 %v2471, %v2470
      %v2486 = vpack.c.b16 %v2473, %v2472
      %v2487 = vpack.c.b16 %v2475, %v2474
      %v2488 = vpack.c.b16 %v2477, %v2476
      %v2489 = vpack.c.b16 %v2479, %v2478
      %v2490 = vpack.c.b16 %v2481, %v2480
      %v2491 = vpack.c.b16 %v2483, %v2482
      %v2493 = vsel %vm1705, %v2484, 0
      %v2496 = vsel %vm1705, %v2485, 0
      %v2499 = vsel %vm1705, %v2486, 0
      %v2502 = vsel %vm1705, %v2487, 0
      %v2505 = vsel %vm1705, %v2488, 0
      %v2508 = vsel %vm1705, %v2489, 0
      %v2511 = vsel %vm1705, %v2490, 0
      %v2514 = vsel %vm1705, %v2491, 0
      %v2517 = vsel %vm1730, %v2467, 0
      %2519 = vmatpush.bf16.msra.mxu0 0
      %2520 = vmatpush.bf16.msra.mxu0 0
      %2521 = vmatpush.bf16.msra.mxu0 0
      %2522 = vmatpush.bf16.msra.mxu0 0
      %2523 = vmatpush.bf16.msra.mxu0 0
      %2524 = vmatpush.bf16.msra.mxu0 0
      %2525 = vmatpush.bf16.msra.mxu0 0
      %2526 = vmatpush.bf16.msra.mxu0 %v2517
      %2527 = vmatmul.bf16.gmra.mxu0 %v2493
      %v2528 = vpop.f32.mrf.mxu0
      %v2529 = vadd.f32 0.0, %v2528
      %v2530 = vpop.f32.mrf.mxu0
      %v2531 = vadd.f32 0.0, %v2530
      %2532 = vmatmul.bf16.gmra.mxu0 %v2496
      %v2533 = vpop.f32.mrf.mxu0
      %v2534 = vadd.f32 0.0, %v2533
      %v2535 = vpop.f32.mrf.mxu0
      %v2536 = vadd.f32 0.0, %v2535
      %2537 = vmatmul.bf16.gmra.mxu0 %v2499
      %v2538 = vpop.f32.mrf.mxu0
      %v2539 = vadd.f32 0.0, %v2538
      %v2540 = vpop.f32.mrf.mxu0
      %v2541 = vadd.f32 0.0, %v2540
      %2542 = vmatmul.bf16.gmra.mxu0 %v2502
      %v2543 = vpop.f32.mrf.mxu0
      %v2544 = vadd.f32 0.0, %v2543
      %v2545 = vpop.f32.mrf.mxu0
      %v2546 = vadd.f32 0.0, %v2545
      %2547 = vmatmul.bf16.gmra.mxu0 %v2505
      %v2548 = vpop.f32.mrf.mxu0
      %v2549 = vadd.f32 0.0, %v2548
      %v2550 = vpop.f32.mrf.mxu0
      %v2551 = vadd.f32 0.0, %v2550
      %2552 = vmatmul.bf16.gmra.mxu0 %v2508
      %v2553 = vpop.f32.mrf.mxu0
      %v2554 = vadd.f32 0.0, %v2553
      %v2555 = vpop.f32.mrf.mxu0
      %v2556 = vadd.f32 0.0, %v2555
      %2557 = vmatmul.bf16.gmra.mxu0 %v2511
      %v2558 = vpop.f32.mrf.mxu0
      %v2559 = vadd.f32 0.0, %v2558
      %v2560 = vpop.f32.mrf.mxu0
      %v2561 = vadd.f32 0.0, %v2560
      %2562 = vmatmul.bf16.gmra.mxu0 %v2514
      %v2563 = vpop.f32.mrf.mxu0
      %v2564 = vadd.f32 0.0, %v2563
      %v2565 = vpop.f32.mrf.mxu0
      %v2566 = vadd.f32 0.0, %v2565
      %2567 = vdwg.mxu0
      %v2568 = vadd.f32 %v2234, %v2529
      %v2569 = vadd.f32 %v2235, %v2531
      %v2570 = vadd.f32 %v2236, %v2534
      %v2571 = vadd.f32 %v2237, %v2536
      %v2572 = vadd.f32 %v2238, %v2539
      %v2573 = vadd.f32 %v2239, %v2541
      %v2574 = vadd.f32 %v2240, %v2544
      %v2575 = vadd.f32 %v2241, %v2546
      %v2576 = vadd.f32 %v2242, %v2549
      %v2577 = vadd.f32 %v2243, %v2551
      %v2578 = vadd.f32 %v2244, %v2554
      %v2579 = vadd.f32 %v2245, %v2556
      %v2580 = vadd.f32 %v2246, %v2559
      %v2581 = vadd.f32 %v2247, %v2561
      %v2582 = vadd.f32 %v2248, %v2564
      %v2583 = vadd.f32 %v2249, %v2566
      %v2584 = vld [vmem:[%s800] sm:$0xe]
      %v2585 = vld [vmem:[%s800 + $0xc] sm:$0xe]
      %v2586 = vld [vmem:[%s800 + $0x18] sm:$0xe]
      %v2587 = vld [vmem:[%s800 + $0x24] sm:$0xe]
      %v2588 = vld [vmem:[%s800 + $0x30] sm:$0xe]
      %v2589 = vld [vmem:[%s800 + $0x3c] sm:$0xe]
      %v2590 = vld [vmem:[%s800 + $0x48] sm:$0xe]
      %v2591 = vld [vmem:[%s800 + $0x54] sm:$0xe]
      %v2616 = vrot.slane %v2584, 5
      %v2617 = vrot.slane %v2616, 4
      %v2618 = vrot.slane %v2251, 5
      %v2619 = vsel %vm1925, %v2617, %v2618
      %v2620 = vrot.slane %v2618, 4
      %v2621 = vrot.slane %v2252, 5
      %v2622 = vsel %vm1925, %v2620, %v2621
      %v2623 = vrot.slane %v2585, 5
      %v2624 = vrot.slane %v2623, 4
      %v2625 = vrot.slane %v2254, 5
      %v2626 = vsel %vm1925, %v2624, %v2625
      %v2627 = vrot.slane %v2625, 4
      %v2628 = vrot.slane %v2255, 5
      %v2629 = vsel %vm1925, %v2627, %v2628
      %v2630 = vrot.slane %v2586, 5
      %v2631 = vrot.slane %v2630, 4
      %v2632 = vrot.slane %v2257, 5
      %v2633 = vsel %vm1925, %v2631, %v2632
      %v2634 = vrot.slane %v2632, 4
      %v2635 = vrot.slane %v2258, 5
      %v2636 = vsel %vm1925, %v2634, %v2635
      %v2637 = vrot.slane %v2587, 5
      %v2638 = vrot.slane %v2637, 4
      %v2639 = vrot.slane %v2260, 5
      %v2640 = vsel %vm1925, %v2638, %v2639
      %v2641 = vrot.slane %v2639, 4
      %v2642 = vrot.slane %v2261, 5
      %v2643 = vsel %vm1925, %v2641, %v2642
      %v2644 = vrot.slane %v2588, 5
      %v2645 = vrot.slane %v2644, 4
      %v2646 = vrot.slane %v2263, 5
      %v2647 = vsel %vm1925, %v2645, %v2646
      %v2648 = vrot.slane %v2646, 4
      %v2649 = vrot.slane %v2264, 5
      %v2650 = vsel %vm1925, %v2648, %v2649
      %v2651 = vrot.slane %v2589, 5
      %v2652 = vrot.slane %v2651, 4
      %v2653 = vrot.slane %v2266, 5
      %v2654 = vsel %vm1925, %v2652, %v2653
      %v2655 = vrot.slane %v2653, 4
      %v2656 = vrot.slane %v2267, 5
      %v2657 = vsel %vm1925, %v2655, %v2656
      %v2658 = vrot.slane %v2590, 5
      %v2659 = vrot.slane %v2658, 4
      %v2660 = vrot.slane %v2269, 5
      %v2661 = vsel %vm1925, %v2659, %v2660
      %v2662 = vrot.slane %v2660, 4
      %v2663 = vrot.slane %v2270, 5
      %v2664 = vsel %vm1925, %v2662, %v2663
      %v2665 = vrot.slane %v2591, 5
      %v2666 = vrot.slane %v2665, 4
      %v2667 = vrot.slane %v2272, 5
      %v2668 = vsel %vm1925, %v2666, %v2667
      %v2669 = vrot.slane %v2667, 4
      %v2670 = vrot.slane %v2273, 5
      %v2671 = vsel %vm1925, %v2669, %v2670
      %s2672 = scalar_lea.vmem %s2, 20
      %v2673 = vld [vmem:[%s2672] sm:$0xf]
      %v2674 = vunpack.c.l.b16 %v2619
      %v2675 = vunpack.c.l.b16 %v2622
      %v2676 = vunpack.c.l.b16 %v2626
      %v2677 = vunpack.c.l.b16 %v2629
      %v2678 = vunpack.c.l.b16 %v2633
      %v2679 = vunpack.c.l.b16 %v2636
      %v2680 = vunpack.c.l.b16 %v2640
      %v2681 = vunpack.c.l.b16 %v2643
      %v2682 = vunpack.c.l.b16 %v2647
      %v2683 = vunpack.c.l.b16 %v2650
      %v2684 = vunpack.c.l.b16 %v2654
      %v2685 = vunpack.c.l.b16 %v2657
      %v2686 = vunpack.c.l.b16 %v2661
      %v2687 = vunpack.c.l.b16 %v2664
      %v2688 = vunpack.c.l.b16 %v2668
      %v2689 = vunpack.c.l.b16 %v2671
      %v2690 = vpack.c.b16 %v2675, %v2674
      %v2691 = vpack.c.b16 %v2677, %v2676
      %v2692 = vpack.c.b16 %v2679, %v2678
      %v2693 = vpack.c.b16 %v2681, %v2680
      %v2694 = vpack.c.b16 %v2683, %v2682
      %v2695 = vpack.c.b16 %v2685, %v2684
      %v2696 = vpack.c.b16 %v2687, %v2686
      %v2697 = vpack.c.b16 %v2689, %v2688
      %v2699 = vsel %vm1705, %v2690, 0
      %v2702 = vsel %vm1705, %v2691, 0
      %v2705 = vsel %vm1705, %v2692, 0
      %v2708 = vsel %vm1705, %v2693, 0
      %v2711 = vsel %vm1705, %v2694, 0
      %v2714 = vsel %vm1705, %v2695, 0
      %v2717 = vsel %vm1705, %v2696, 0
      %v2720 = vsel %vm1705, %v2697, 0
      %v2723 = vsel %vm1730, %v2673, 0
      %2725 = vmatpush.bf16.msra.mxu0 0
      %2726 = vmatpush.bf16.msra.mxu0 0
      %2727 = vmatpush.bf16.msra.mxu0 0
      %2728 = vmatpush.bf16.msra.mxu0 0
      %2729 = vmatpush.bf16.msra.mxu0 0
      %2730 = vmatpush.bf16.msra.mxu0 0
      %2731 = vmatpush.bf16.msra.mxu0 0
      %2732 = vmatpush.bf16.msra.mxu0 %v2723
      %2733 = vmatmul.bf16.gmra.mxu0 %v2699
      %v2734 = vpop.f32.mrf.mxu0
      %v2735 = vadd.f32 0.0, %v2734
      %v2736 = vpop.f32.mrf.mxu0
      %v2737 = vadd.f32 0.0, %v2736
      %2738 = vmatmul.bf16.gmra.mxu0 %v2702
      %v2739 = vpop.f32.mrf.mxu0
      %v2740 = vadd.f32 0.0, %v2739
      %v2741 = vpop.f32.mrf.mxu0
      %v2742 = vadd.f32 0.0, %v2741
      %2743 = vmatmul.bf16.gmra.mxu0 %v2705
      %v2744 = vpop.f32.mrf.mxu0
      %v2745 = vadd.f32 0.0, %v2744
      %v2746 = vpop.f32.mrf.mxu0
      %v2747 = vadd.f32 0.0, %v2746
      %2748 = vmatmul.bf16.gmra.mxu0 %v2708
      %v2749 = vpop.f32.mrf.mxu0
      %v2750 = vadd.f32 0.0, %v2749
      %v2751 = vpop.f32.mrf.mxu0
      %v2752 = vadd.f32 0.0, %v2751
      %2753 = vmatmul.bf16.gmra.mxu0 %v2711
      %v2754 = vpop.f32.mrf.mxu0
      %v2755 = vadd.f32 0.0, %v2754
      %v2756 = vpop.f32.mrf.mxu0
      %v2757 = vadd.f32 0.0, %v2756
      %2758 = vmatmul.bf16.gmra.mxu0 %v2714
      %v2759 = vpop.f32.mrf.mxu0
      %v2760 = vadd.f32 0.0, %v2759
      %v2761 = vpop.f32.mrf.mxu0
      %v2762 = vadd.f32 0.0, %v2761
      %2763 = vmatmul.bf16.gmra.mxu0 %v2717
      %v2764 = vpop.f32.mrf.mxu0
      %v2765 = vadd.f32 0.0, %v2764
      %v2766 = vpop.f32.mrf.mxu0
      %v2767 = vadd.f32 0.0, %v2766
      %2768 = vmatmul.bf16.gmra.mxu0 %v2720
      %v2769 = vpop.f32.mrf.mxu0
      %v2770 = vadd.f32 0.0, %v2769
      %v2771 = vpop.f32.mrf.mxu0
      %v2772 = vadd.f32 0.0, %v2771
      %2773 = vdwg.mxu0
      %v2774 = vadd.f32 %v2568, %v2735
      %v2775 = vadd.f32 %v2569, %v2737
      %v2776 = vadd.f32 %v2570, %v2740
      %v2777 = vadd.f32 %v2571, %v2742
      %v2778 = vadd.f32 %v2572, %v2745
      %v2779 = vadd.f32 %v2573, %v2747
      %v2780 = vadd.f32 %v2574, %v2750
      %v2781 = vadd.f32 %v2575, %v2752
      %v2782 = vadd.f32 %v2576, %v2755
      %v2783 = vadd.f32 %v2577, %v2757
      %v2784 = vadd.f32 %v2578, %v2760
      %v2785 = vadd.f32 %v2579, %v2762
      %v2786 = vadd.f32 %v2580, %v2765
      %v2787 = vadd.f32 %v2581, %v2767
      %v2788 = vadd.f32 %v2582, %v2770
      %v2789 = vadd.f32 %v2583, %v2772
      %s2790 = scalar_lea.vmem [#allocation2], 24
      %v2791 = vld [vmem:[%s2790] sm:$0xf]
      %v2792 = vld [vmem:[%s2790 + $0x4] sm:$0xf]
      %v2793 = vld [vmem:[%s2790 + $0xc] sm:$0xf]
      %v2794 = vld [vmem:[%s2790 + $0x10] sm:$0xf]
      %v2795 = vld [vmem:[%s2790 + $0x18] sm:$0xf]
      %v2796 = vld [vmem:[%s2790 + $0x1c] sm:$0xf]
      %v2797 = vld [vmem:[%s2790 + $0x24] sm:$0xf]
      %v2798 = vld [vmem:[%s2790 + $0x28] sm:$0xf]
      %v2799 = vld [vmem:[%s2790 + $0x30] sm:$0xf]
      %v2800 = vld [vmem:[%s2790 + $0x34] sm:$0xf]
      %v2801 = vld [vmem:[%s2790 + $0x3c] sm:$0xf]
      %v2802 = vld [vmem:[%s2790 + $0x40] sm:$0xf]
      %v2803 = vld [vmem:[%s2790 + $0x48] sm:$0xf]
      %v2804 = vld [vmem:[%s2790 + $0x4c] sm:$0xf]
      %v2805 = vld [vmem:[%s2790 + $0x54] sm:$0xf]
      %v2806 = vld [vmem:[%s2790 + $0x58] sm:$0xf]
      %s2807 = scalar_lea.vmem %s2, 24
      %v2808 = vld [vmem:[%s2807] sm:$0xf]
      %v2825 = vunpack.c.l.b16 %v2791
      %v2826 = vunpack.c.l.b16 %v2792
      %v2827 = vunpack.c.l.b16 %v2793
      %v2828 = vunpack.c.l.b16 %v2794
      %v2829 = vunpack.c.l.b16 %v2795
      %v2830 = vunpack.c.l.b16 %v2796
      %v2831 = vunpack.c.l.b16 %v2797
      %v2832 = vunpack.c.l.b16 %v2798
      %v2833 = vunpack.c.l.b16 %v2799
      %v2834 = vunpack.c.l.b16 %v2800
      %v2835 = vunpack.c.l.b16 %v2801
      %v2836 = vunpack.c.l.b16 %v2802
      %v2837 = vunpack.c.l.b16 %v2803
      %v2838 = vunpack.c.l.b16 %v2804
      %v2839 = vunpack.c.l.b16 %v2805
      %v2840 = vunpack.c.l.b16 %v2806
      %v2841 = vpack.c.b16 %v2826, %v2825
      %v2842 = vpack.c.b16 %v2828, %v2827
      %v2843 = vpack.c.b16 %v2830, %v2829
      %v2844 = vpack.c.b16 %v2832, %v2831
      %v2845 = vpack.c.b16 %v2834, %v2833
      %v2846 = vpack.c.b16 %v2836, %v2835
      %v2847 = vpack.c.b16 %v2838, %v2837
      %v2848 = vpack.c.b16 %v2840, %v2839
      %v2850 = vsel %vm1705, %v2841, 0
      %v2853 = vsel %vm1705, %v2842, 0
      %v2856 = vsel %vm1705, %v2843, 0
      %v2859 = vsel %vm1705, %v2844, 0
      %v2862 = vsel %vm1705, %v2845, 0
      %v2865 = vsel %vm1705, %v2846, 0
      %v2868 = vsel %vm1705, %v2847, 0
      %v2871 = vsel %vm1705, %v2848, 0
      %v2874 = vsel %vm1730, %v2808, 0
      %2876 = vmatpush.bf16.msra.mxu0 0
      %2877 = vmatpush.bf16.msra.mxu0 0
      %2878 = vmatpush.bf16.msra.mxu0 0
      %2879 = vmatpush.bf16.msra.mxu0 0
      %2880 = vmatpush.bf16.msra.mxu0 0
      %2881 = vmatpush.bf16.msra.mxu0 0
      %2882 = vmatpush.bf16.msra.mxu0 0
      %2883 = vmatpush.bf16.msra.mxu0 %v2874
      %2884 = vmatmul.bf16.gmra.mxu0 %v2850
      %v2885 = vpop.f32.mrf.mxu0
      %v2886 = vadd.f32 0.0, %v2885
      %v2887 = vpop.f32.mrf.mxu0
      %v2888 = vadd.f32 0.0, %v2887
      %2889 = vmatmul.bf16.gmra.mxu0 %v2853
      %v2890 = vpop.f32.mrf.mxu0
      %v2891 = vadd.f32 0.0, %v2890
      %v2892 = vpop.f32.mrf.mxu0
      %v2893 = vadd.f32 0.0, %v2892
      %2894 = vmatmul.bf16.gmra.mxu0 %v2856
      %v2895 = vpop.f32.mrf.mxu0
      %v2896 = vadd.f32 0.0, %v2895
      %v2897 = vpop.f32.mrf.mxu0
      %v2898 = vadd.f32 0.0, %v2897
      %2899 = vmatmul.bf16.gmra.mxu0 %v2859
      %v2900 = vpop.f32.mrf.mxu0
      %v2901 = vadd.f32 0.0, %v2900
      %v2902 = vpop.f32.mrf.mxu0
      %v2903 = vadd.f32 0.0, %v2902
      %2904 = vmatmul.bf16.gmra.mxu0 %v2862
      %v2905 = vpop.f32.mrf.mxu0
      %v2906 = vadd.f32 0.0, %v2905
      %v2907 = vpop.f32.mrf.mxu0
      %v2908 = vadd.f32 0.0, %v2907
      %2909 = vmatmul.bf16.gmra.mxu0 %v2865
      %v2910 = vpop.f32.mrf.mxu0
      %v2911 = vadd.f32 0.0, %v2910
      %v2912 = vpop.f32.mrf.mxu0
      %v2913 = vadd.f32 0.0, %v2912
      %2914 = vmatmul.bf16.gmra.mxu0 %v2868
      %v2915 = vpop.f32.mrf.mxu0
      %v2916 = vadd.f32 0.0, %v2915
      %v2917 = vpop.f32.mrf.mxu0
      %v2918 = vadd.f32 0.0, %v2917
      %2919 = vmatmul.bf16.gmra.mxu0 %v2871
      %v2920 = vpop.f32.mrf.mxu0
      %v2921 = vadd.f32 0.0, %v2920
      %v2922 = vpop.f32.mrf.mxu0
      %v2923 = vadd.f32 0.0, %v2922
      %2924 = vdwg.mxu0
      %v2925 = vadd.f32 %v2774, %v2886
      %v2926 = vadd.f32 %v2775, %v2888
      %v2927 = vadd.f32 %v2776, %v2891
      %v2928 = vadd.f32 %v2777, %v2893
      %v2929 = vadd.f32 %v2778, %v2896
      %v2930 = vadd.f32 %v2779, %v2898
      %v2931 = vadd.f32 %v2780, %v2901
      %v2932 = vadd.f32 %v2781, %v2903
      %v2933 = vadd.f32 %v2782, %v2906
      %v2934 = vadd.f32 %v2783, %v2908
      %v2935 = vadd.f32 %v2784, %v2911
      %v2936 = vadd.f32 %v2785, %v2913
      %v2937 = vadd.f32 %v2786, %v2916
      %v2938 = vadd.f32 %v2787, %v2918
      %v2939 = vadd.f32 %v2788, %v2921
      %v2940 = vadd.f32 %v2789, %v2923
      %v2941 = vld [vmem:[%s2790] sm:$0xf]
      %v2942 = vld [vmem:[%s2790 + $0x4] sm:$0xf]
      %v2943 = vld [vmem:[%s2790 + $0x8] sm:$0x1]
      %v2944 = vld [vmem:[%s2790 + $0xc] sm:$0xf]
      %v2945 = vld [vmem:[%s2790 + $0x10] sm:$0xf]
      %v2946 = vld [vmem:[%s2790 + $0x14] sm:$0x1]
      %v2947 = vld [vmem:[%s2790 + $0x18] sm:$0xf]
      %v2948 = vld [vmem:[%s2790 + $0x1c] sm:$0xf]
      %v2949 = vld [vmem:[%s2790 + $0x20] sm:$0x1]
      %v2950 = vld [vmem:[%s2790 + $0x24] sm:$0xf]
      %v2951 = vld [vmem:[%s2790 + $0x28] sm:$0xf]
      %v2952 = vld [vmem:[%s2790 + $0x2c] sm:$0x1]
      %v2953 = vld [vmem:[%s2790 + $0x30] sm:$0xf]
      %v2954 = vld [vmem:[%s2790 + $0x34] sm:$0xf]
      %v2955 = vld [vmem:[%s2790 + $0x38] sm:$0x1]
      %v2956 = vld [vmem:[%s2790 + $0x3c] sm:$0xf]
      %v2957 = vld [vmem:[%s2790 + $0x40] sm:$0xf]
      %v2958 = vld [vmem:[%s2790 + $0x44] sm:$0x1]
      %v2959 = vld [vmem:[%s2790 + $0x48] sm:$0xf]
      %v2960 = vld [vmem:[%s2790 + $0x4c] sm:$0xf]
      %v2961 = vld [vmem:[%s2790 + $0x50] sm:$0x1]
      %v2962 = vld [vmem:[%s2790 + $0x54] sm:$0xf]
      %v2963 = vld [vmem:[%s2790 + $0x58] sm:$0xf]
      %v2964 = vld [vmem:[%s2790 + $0x5c] sm:$0x1]
      %v2966 = vshrl.u32 %v2941, 16
      %v2968 = vrot.slane %v2966, 4
      %v2969 = vshll.u32 %v2941, 16
      %v2971 = vrot.slane %v2969, 5
      %v2972 = vor.u32 %v2968, %v2971
      %v2973 = vrot.slane %v2972, 4
      %v2975 = vshll.u32 %v2942, 16
      %v2977 = vrot.slane %v2975, 5
      %v2978 = vsel %vm1486, %v2973, %v2977
      %v2979 = vshrl.u32 %v2942, 16
      %v2981 = vrot.slane %v2979, 4
      %v2982 = vor.u32 %v2981, %v2977
      %v2983 = vrot.slane %v2982, 4
      %v2985 = vshll.u32 %v2943, 16
      %v2987 = vrot.slane %v2985, 5
      %v2988 = vsel %vm1486, %v2983, %v2987
      %v2990 = vshrl.u32 %v2944, 16
      %v2992 = vrot.slane %v2990, 4
      %v2993 = vshll.u32 %v2944, 16
      %v2995 = vrot.slane %v2993, 5
      %v2996 = vor.u32 %v2992, %v2995
      %v2997 = vrot.slane %v2996, 4
      %v2999 = vshll.u32 %v2945, 16
      %v3001 = vrot.slane %v2999, 5
      %v3002 = vsel %vm1486, %v2997, %v3001
      %v3003 = vshrl.u32 %v2945, 16
      %v3005 = vrot.slane %v3003, 4
      %v3006 = vor.u32 %v3005, %v3001
      %v3007 = vrot.slane %v3006, 4
      %v3009 = vshll.u32 %v2946, 16
      %v3011 = vrot.slane %v3009, 5
      %v3012 = vsel %vm1486, %v3007, %v3011
      %v3014 = vshrl.u32 %v2947, 16
      %v3016 = vrot.slane %v3014, 4
      %v3017 = vshll.u32 %v2947, 16
      %v3019 = vrot.slane %v3017, 5
      %v3020 = vor.u32 %v3016, %v3019
      %v3021 = vrot.slane %v3020, 4
      %v3023 = vshll.u32 %v2948, 16
      %v3025 = vrot.slane %v3023, 5
      %v3026 = vsel %vm1486, %v3021, %v3025
      %v3027 = vshrl.u32 %v2948, 16
      %v3029 = vrot.slane %v3027, 4
      %v3030 = vor.u32 %v3029, %v3025
      %v3031 = vrot.slane %v3030, 4
      %v3033 = vshll.u32 %v2949, 16
      %v3035 = vrot.slane %v3033, 5
      %v3036 = vsel %vm1486, %v3031, %v3035
      %v3038 = vshrl.u32 %v2950, 16
      %v3040 = vrot.slane %v3038, 4
      %v3041 = vshll.u32 %v2950, 16
      %v3043 = vrot.slane %v3041, 5
      %v3044 = vor.u32 %v3040, %v3043
      %v3045 = vrot.slane %v3044, 4
      %v3047 = vshll.u32 %v2951, 16
      %v3049 = vrot.slane %v3047, 5
      %v3050 = vsel %vm1486, %v3045, %v3049
      %v3051 = vshrl.u32 %v2951, 16
      %v3053 = vrot.slane %v3051, 4
      %v3054 = vor.u32 %v3053, %v3049
      %v3055 = vrot.slane %v3054, 4
      %v3057 = vshll.u32 %v2952, 16
      %v3059 = vrot.slane %v3057, 5
      %v3060 = vsel %vm1486, %v3055, %v3059
      %v3062 = vshrl.u32 %v2953, 16
      %v3064 = vrot.slane %v3062, 4
      %v3065 = vshll.u32 %v2953, 16
      %v3067 = vrot.slane %v3065, 5
      %v3068 = vor.u32 %v3064, %v3067
      %v3069 = vrot.slane %v3068, 4
      %v3071 = vshll.u32 %v2954, 16
      %v3073 = vrot.slane %v3071, 5
      %v3074 = vsel %vm1486, %v3069, %v3073
      %v3075 = vshrl.u32 %v2954, 16
      %v3077 = vrot.slane %v3075, 4
      %v3078 = vor.u32 %v3077, %v3073
      %v3079 = vrot.slane %v3078, 4
      %v3081 = vshll.u32 %v2955, 16
      %v3083 = vrot.slane %v3081, 5
      %v3084 = vsel %vm1486, %v3079, %v3083
      %v3086 = vshrl.u32 %v2956, 16
      %v3088 = vrot.slane %v3086, 4
      %v3089 = vshll.u32 %v2956, 16
      %v3091 = vrot.slane %v3089, 5
      %v3092 = vor.u32 %v3088, %v3091
      %v3093 = vrot.slane %v3092, 4
      %v3095 = vshll.u32 %v2957, 16
      %v3097 = vrot.slane %v3095, 5
      %v3098 = vsel %vm1486, %v3093, %v3097
      %v3099 = vshrl.u32 %v2957, 16
      %v3101 = vrot.slane %v3099, 4
      %v3102 = vor.u32 %v3101, %v3097
      %v3103 = vrot.slane %v3102, 4
      %v3105 = vshll.u32 %v2958, 16
      %v3107 = vrot.slane %v3105, 5
      %v3108 = vsel %vm1486, %v3103, %v3107
      %v3110 = vshrl.u32 %v2959, 16
      %v3112 = vrot.slane %v3110, 4
      %v3113 = vshll.u32 %v2959, 16
      %v3115 = vrot.slane %v3113, 5
      %v3116 = vor.u32 %v3112, %v3115
      %v3117 = vrot.slane %v3116, 4
      %v3119 = vshll.u32 %v2960, 16
      %v3121 = vrot.slane %v3119, 5
      %v3122 = vsel %vm1486, %v3117, %v3121
      %v3123 = vshrl.u32 %v2960, 16
      %v3125 = vrot.slane %v3123, 4
      %v3126 = vor.u32 %v3125, %v3121
      %v3127 = vrot.slane %v3126, 4
      %v3129 = vshll.u32 %v2961, 16
      %v3131 = vrot.slane %v3129, 5
      %v3132 = vsel %vm1486, %v3127, %v3131
      %v3134 = vshrl.u32 %v2962, 16
      %v3136 = vrot.slane %v3134, 4
      %v3137 = vshll.u32 %v2962, 16
      %v3139 = vrot.slane %v3137, 5
      %v3140 = vor.u32 %v3136, %v3139
      %v3141 = vrot.slane %v3140, 4
      %v3143 = vshll.u32 %v2963, 16
      %v3145 = vrot.slane %v3143, 5
      %v3146 = vsel %vm1486, %v3141, %v3145
      %v3147 = vshrl.u32 %v2963, 16
      %v3149 = vrot.slane %v3147, 4
      %v3150 = vor.u32 %v3149, %v3145
      %v3151 = vrot.slane %v3150, 4
      %v3153 = vshll.u32 %v2964, 16
      %v3155 = vrot.slane %v3153, 5
      %v3156 = vsel %vm1486, %v3151, %v3155
      %s3157 = scalar_lea.vmem %s2, 28
      %v3158 = vld [vmem:[%s3157] sm:$0xf]
      %v3159 = vunpack.c.l.b16 %v2978
      %v3160 = vunpack.c.l.b16 %v2988
      %v3161 = vunpack.c.l.b16 %v3002
      %v3162 = vunpack.c.l.b16 %v3012
      %v3163 = vunpack.c.l.b16 %v3026
      %v3164 = vunpack.c.l.b16 %v3036
      %v3165 = vunpack.c.l.b16 %v3050
      %v3166 = vunpack.c.l.b16 %v3060
      %v3167 = vunpack.c.l.b16 %v3074
      %v3168 = vunpack.c.l.b16 %v3084
      %v3169 = vunpack.c.l.b16 %v3098
      %v3170 = vunpack.c.l.b16 %v3108
      %v3171 = vunpack.c.l.b16 %v3122
      %v3172 = vunpack.c.l.b16 %v3132
      %v3173 = vunpack.c.l.b16 %v3146
      %v3174 = vunpack.c.l.b16 %v3156
      %v3175 = vpack.c.b16 %v3160, %v3159
      %v3176 = vpack.c.b16 %v3162, %v3161
      %v3177 = vpack.c.b16 %v3164, %v3163
      %v3178 = vpack.c.b16 %v3166, %v3165
      %v3179 = vpack.c.b16 %v3168, %v3167
      %v3180 = vpack.c.b16 %v3170, %v3169
      %v3181 = vpack.c.b16 %v3172, %v3171
      %v3182 = vpack.c.b16 %v3174, %v3173
      %v3184 = vsel %vm1705, %v3175, 0
      %v3187 = vsel %vm1705, %v3176, 0
      %v3190 = vsel %vm1705, %v3177, 0
      %v3193 = vsel %vm1705, %v3178, 0
      %v3196 = vsel %vm1705, %v3179, 0
      %v3199 = vsel %vm1705, %v3180, 0
      %v3202 = vsel %vm1705, %v3181, 0
      %v3205 = vsel %vm1705, %v3182, 0
      %v3208 = vsel %vm1730, %v3158, 0
      %3210 = vmatpush.bf16.msra.mxu0 0
      %3211 = vmatpush.bf16.msra.mxu0 0
      %3212 = vmatpush.bf16.msra.mxu0 0
      %3213 = vmatpush.bf16.msra.mxu0 0
      %3214 = vmatpush.bf16.msra.mxu0 0
      %3215 = vmatpush.bf16.msra.mxu0 0
      %3216 = vmatpush.bf16.msra.mxu0 0
      %3217 = vmatpush.bf16.msra.mxu0 %v3208
      %3218 = vmatmul.bf16.gmra.mxu0 %v3184
      %v3219 = vpop.f32.mrf.mxu0
      %v3220 = vadd.f32 0.0, %v3219
      %v3221 = vpop.f32.mrf.mxu0
      %v3222 = vadd.f32 0.0, %v3221
      %3223 = vmatmul.bf16.gmra.mxu0 %v3187
      %v3224 = vpop.f32.mrf.mxu0
      %v3225 = vadd.f32 0.0, %v3224
      %v3226 = vpop.f32.mrf.mxu0
      %v3227 = vadd.f32 0.0, %v3226
      %3228 = vmatmul.bf16.gmra.mxu0 %v3190
      %v3229 = vpop.f32.mrf.mxu0
      %v3230 = vadd.f32 0.0, %v3229
      %v3231 = vpop.f32.mrf.mxu0
      %v3232 = vadd.f32 0.0, %v3231
      %3233 = vmatmul.bf16.gmra.mxu0 %v3193
      %v3234 = vpop.f32.mrf.mxu0
      %v3235 = vadd.f32 0.0, %v3234
      %v3236 = vpop.f32.mrf.mxu0
      %v3237 = vadd.f32 0.0, %v3236
      %3238 = vmatmul.bf16.gmra.mxu0 %v3196
      %v3239 = vpop.f32.mrf.mxu0
      %v3240 = vadd.f32 0.0, %v3239
      %v3241 = vpop.f32.mrf.mxu0
      %v3242 = vadd.f32 0.0, %v3241
      %3243 = vmatmul.bf16.gmra.mxu0 %v3199
      %v3244 = vpop.f32.mrf.mxu0
      %v3245 = vadd.f32 0.0, %v3244
      %v3246 = vpop.f32.mrf.mxu0
      %v3247 = vadd.f32 0.0, %v3246
      %3248 = vmatmul.bf16.gmra.mxu0 %v3202
      %v3249 = vpop.f32.mrf.mxu0
      %v3250 = vadd.f32 0.0, %v3249
      %v3251 = vpop.f32.mrf.mxu0
      %v3252 = vadd.f32 0.0, %v3251
      %3253 = vmatmul.bf16.gmra.mxu0 %v3205
      %v3254 = vpop.f32.mrf.mxu0
      %v3255 = vadd.f32 0.0, %v3254
      %v3256 = vpop.f32.mrf.mxu0
      %v3257 = vadd.f32 0.0, %v3256
      %3258 = vdwg.mxu0
      %v3259 = vadd.f32 %v2925, %v3220
      %v3260 = vadd.f32 %v2926, %v3222
      %v3261 = vadd.f32 %v2927, %v3225
      %v3262 = vadd.f32 %v2928, %v3227
      %v3263 = vadd.f32 %v2929, %v3230
      %v3264 = vadd.f32 %v2930, %v3232
      %v3265 = vadd.f32 %v2931, %v3235
      %v3266 = vadd.f32 %v2932, %v3237
      %v3267 = vadd.f32 %v2933, %v3240
      %v3268 = vadd.f32 %v2934, %v3242
      %v3269 = vadd.f32 %v2935, %v3245
      %v3270 = vadd.f32 %v2936, %v3247
      %v3271 = vadd.f32 %v2937, %v3250
      %v3272 = vadd.f32 %v2938, %v3252
      %v3273 = vadd.f32 %v2939, %v3255
      %v3274 = vadd.f32 %v2940, %v3257
      %v3275 = vld [vmem:[%s2790] sm:$0xe]
      %v3276 = vld [vmem:[%s2790 + $0xc] sm:$0xe]
      %v3277 = vld [vmem:[%s2790 + $0x18] sm:$0xe]
      %v3278 = vld [vmem:[%s2790 + $0x24] sm:$0xe]
      %v3279 = vld [vmem:[%s2790 + $0x30] sm:$0xe]
      %v3280 = vld [vmem:[%s2790 + $0x3c] sm:$0xe]
      %v3281 = vld [vmem:[%s2790 + $0x48] sm:$0xe]
      %v3282 = vld [vmem:[%s2790 + $0x54] sm:$0xe]
      %v3307 = vrot.slane %v3275, 5
      %v3308 = vrot.slane %v3307, 4
      %v3309 = vrot.slane %v2942, 5
      %v3310 = vsel %vm1925, %v3308, %v3309
      %v3311 = vrot.slane %v3309, 4
      %v3312 = vrot.slane %v2943, 5
      %v3313 = vsel %vm1925, %v3311, %v3312
      %v3314 = vrot.slane %v3276, 5
      %v3315 = vrot.slane %v3314, 4
      %v3316 = vrot.slane %v2945, 5
      %v3317 = vsel %vm1925, %v3315, %v3316
      %v3318 = vrot.slane %v3316, 4
      %v3319 = vrot.slane %v2946, 5
      %v3320 = vsel %vm1925, %v3318, %v3319
      %v3321 = vrot.slane %v3277, 5
      %v3322 = vrot.slane %v3321, 4
      %v3323 = vrot.slane %v2948, 5
      %v3324 = vsel %vm1925, %v3322, %v3323
      %v3325 = vrot.slane %v3323, 4
      %v3326 = vrot.slane %v2949, 5
      %v3327 = vsel %vm1925, %v3325, %v3326
      %v3328 = vrot.slane %v3278, 5
      %v3329 = vrot.slane %v3328, 4
      %v3330 = vrot.slane %v2951, 5
      %v3331 = vsel %vm1925, %v3329, %v3330
      %v3332 = vrot.slane %v3330, 4
      %v3333 = vrot.slane %v2952, 5
      %v3334 = vsel %vm1925, %v3332, %v3333
      %v3335 = vrot.slane %v3279, 5
      %v3336 = vrot.slane %v3335, 4
      %v3337 = vrot.slane %v2954, 5
      %v3338 = vsel %vm1925, %v3336, %v3337
      %v3339 = vrot.slane %v3337, 4
      %v3340 = vrot.slane %v2955, 5
      %v3341 = vsel %vm1925, %v3339, %v3340
      %v3342 = vrot.slane %v3280, 5
      %v3343 = vrot.slane %v3342, 4
      %v3344 = vrot.slane %v2957, 5
      %v3345 = vsel %vm1925, %v3343, %v3344
      %v3346 = vrot.slane %v3344, 4
      %v3347 = vrot.slane %v2958, 5
      %v3348 = vsel %vm1925, %v3346, %v3347
      %v3349 = vrot.slane %v3281, 5
      %v3350 = vrot.slane %v3349, 4
      %v3351 = vrot.slane %v2960, 5
      %v3352 = vsel %vm1925, %v3350, %v3351
      %v3353 = vrot.slane %v3351, 4
      %v3354 = vrot.slane %v2961, 5
      %v3355 = vsel %vm1925, %v3353, %v3354
      %v3356 = vrot.slane %v3282, 5
      %v3357 = vrot.slane %v3356, 4
      %v3358 = vrot.slane %v2963, 5
      %v3359 = vsel %vm1925, %v3357, %v3358
      %v3360 = vrot.slane %v3358, 4
      %v3361 = vrot.slane %v2964, 5
      %v3362 = vsel %vm1925, %v3360, %v3361
      %s3363 = scalar_lea.vmem %s2, 32
      %v3364 = vld [vmem:[%s3363] sm:$0xf]
      %v3365 = vunpack.c.l.b16 %v3310
      %v3366 = vunpack.c.l.b16 %v3313
      %v3367 = vunpack.c.l.b16 %v3317
      %v3368 = vunpack.c.l.b16 %v3320
      %v3369 = vunpack.c.l.b16 %v3324
      %v3370 = vunpack.c.l.b16 %v3327
      %v3371 = vunpack.c.l.b16 %v3331
      %v3372 = vunpack.c.l.b16 %v3334
      %v3373 = vunpack.c.l.b16 %v3338
      %v3374 = vunpack.c.l.b16 %v3341
      %v3375 = vunpack.c.l.b16 %v3345
      %v3376 = vunpack.c.l.b16 %v3348
      %v3377 = vunpack.c.l.b16 %v3352
      %v3378 = vunpack.c.l.b16 %v3355
      %v3379 = vunpack.c.l.b16 %v3359
      %v3380 = vunpack.c.l.b16 %v3362
      %v3381 = vpack.c.b16 %v3366, %v3365
      %v3382 = vpack.c.b16 %v3368, %v3367
      %v3383 = vpack.c.b16 %v3370, %v3369
      %v3384 = vpack.c.b16 %v3372, %v3371
      %v3385 = vpack.c.b16 %v3374, %v3373
      %v3386 = vpack.c.b16 %v3376, %v3375
      %v3387 = vpack.c.b16 %v3378, %v3377
      %v3388 = vpack.c.b16 %v3380, %v3379
      %v3390 = vsel %vm1705, %v3381, 0
      %v3393 = vsel %vm1705, %v3382, 0
      %v3396 = vsel %vm1705, %v3383, 0
      %v3399 = vsel %vm1705, %v3384, 0
      %v3402 = vsel %vm1705, %v3385, 0
      %v3405 = vsel %vm1705, %v3386, 0
      %v3408 = vsel %vm1705, %v3387, 0
      %v3411 = vsel %vm1705, %v3388, 0
      %v3414 = vsel %vm1730, %v3364, 0
      %3416 = vmatpush.bf16.msra.mxu0 0
      %3417 = vmatpush.bf16.msra.mxu0 0
      %3418 = vmatpush.bf16.msra.mxu0 0
      %3419 = vmatpush.bf16.msra.mxu0 0
      %3420 = vmatpush.bf16.msra.mxu0 0
      %3421 = vmatpush.bf16.msra.mxu0 0
      %3422 = vmatpush.bf16.msra.mxu0 0
      %3423 = vmatpush.bf16.msra.mxu0 %v3414
      %3424 = vmatmul.bf16.gmra.mxu0 %v3390
      %v3425 = vpop.f32.mrf.mxu0
      %v3426 = vadd.f32 0.0, %v3425
      %v3427 = vpop.f32.mrf.mxu0
      %v3428 = vadd.f32 0.0, %v3427
      %3429 = vmatmul.bf16.gmra.mxu0 %v3393
      %v3430 = vpop.f32.mrf.mxu0
      %v3431 = vadd.f32 0.0, %v3430
      %v3432 = vpop.f32.mrf.mxu0
      %v3433 = vadd.f32 0.0, %v3432
      %3434 = vmatmul.bf16.gmra.mxu0 %v3396
      %v3435 = vpop.f32.mrf.mxu0
      %v3436 = vadd.f32 0.0, %v3435
      %v3437 = vpop.f32.mrf.mxu0
      %v3438 = vadd.f32 0.0, %v3437
      %3439 = vmatmul.bf16.gmra.mxu0 %v3399
      %v3440 = vpop.f32.mrf.mxu0
      %v3441 = vadd.f32 0.0, %v3440
      %v3442 = vpop.f32.mrf.mxu0
      %v3443 = vadd.f32 0.0, %v3442
      %3444 = vmatmul.bf16.gmra.mxu0 %v3402
      %v3445 = vpop.f32.mrf.mxu0
      %v3446 = vadd.f32 0.0, %v3445
      %v3447 = vpop.f32.mrf.mxu0
      %v3448 = vadd.f32 0.0, %v3447
      %3449 = vmatmul.bf16.gmra.mxu0 %v3405
      %v3450 = vpop.f32.mrf.mxu0
      %v3451 = vadd.f32 0.0, %v3450
      %v3452 = vpop.f32.mrf.mxu0
      %v3453 = vadd.f32 0.0, %v3452
      %3454 = vmatmul.bf16.gmra.mxu0 %v3408
      %v3455 = vpop.f32.mrf.mxu0
      %v3456 = vadd.f32 0.0, %v3455
      %v3457 = vpop.f32.mrf.mxu0
      %v3458 = vadd.f32 0.0, %v3457
      %3459 = vmatmul.bf16.gmra.mxu0 %v3411
      %v3460 = vpop.f32.mrf.mxu0
      %v3461 = vadd.f32 0.0, %v3460
      %v3462 = vpop.f32.mrf.mxu0
      %v3463 = vadd.f32 0.0, %v3462
      %3464 = vdwg.mxu0
      %v3465 = vadd.f32 %v3259, %v3426
      %v3466 = vadd.f32 %v3260, %v3428
      %v3467 = vadd.f32 %v3261, %v3431
      %v3468 = vadd.f32 %v3262, %v3433
      %v3469 = vadd.f32 %v3263, %v3436
      %v3470 = vadd.f32 %v3264, %v3438
      %v3471 = vadd.f32 %v3265, %v3441
      %v3472 = vadd.f32 %v3266, %v3443
      %v3473 = vadd.f32 %v3267, %v3446
      %v3474 = vadd.f32 %v3268, %v3448
      %v3475 = vadd.f32 %v3269, %v3451
      %v3476 = vadd.f32 %v3270, %v3453
      %v3477 = vadd.f32 %v3271, %v3456
      %v3478 = vadd.f32 %v3272, %v3458
      %v3479 = vadd.f32 %v3273, %v3461
      %v3480 = vadd.f32 %v3274, %v3463
      %v3481 = vld [vmem:[%s3] sm:$0x1]
      %v3483 = vperm.slane %v3481, 0
      %v3485 = vmul.f32 %v3465, %v3483
      %v3486 = vmul.f32 %v3466, %v3483
      %v3487 = vmul.f32 %v3467, %v3483
      %v3488 = vmul.f32 %v3468, %v3483
      %v3489 = vmul.f32 %v3469, %v3483
      %v3490 = vmul.f32 %v3470, %v3483
      %v3491 = vmul.f32 %v3471, %v3483
      %v3492 = vmul.f32 %v3472, %v3483
      %v3493 = vmul.f32 %v3473, %v3483
      %v3494 = vmul.f32 %v3474, %v3483
      %v3495 = vmul.f32 %v3475, %v3483
      %v3496 = vmul.f32 %v3476, %v3483
      %v3497 = vmul.f32 %v3477, %v3483
      %v3498 = vmul.f32 %v3478, %v3483
      %v3499 = vmul.f32 %v3479, %v3483
      %v3500 = vmul.f32 %v3480, %v3483
      %v3501 = vld [vmem:[%s4] sm:$0x1]
      %v3503 = vperm.slane %v3501, 0
      %v3505 = vadd.f32 %v3485, %v3503
      %v3506 = vadd.f32 %v3486, %v3503
      %v3507 = vadd.f32 %v3487, %v3503
      %v3508 = vadd.f32 %v3488, %v3503
      %v3509 = vadd.f32 %v3489, %v3503
      %v3510 = vadd.f32 %v3490, %v3503
      %v3511 = vadd.f32 %v3491, %v3503
      %v3512 = vadd.f32 %v3492, %v3503
      %v3513 = vadd.f32 %v3493, %v3503
      %v3514 = vadd.f32 %v3494, %v3503
      %v3515 = vadd.f32 %v3495, %v3503
      %v3516 = vadd.f32 %v3496, %v3503
      %v3517 = vadd.f32 %v3497, %v3503
      %v3518 = vadd.f32 %v3498, %v3503
      %v3519 = vadd.f32 %v3499, %v3503
      %v3520 = vadd.f32 %v3500, %v3503
      %v3521 = vmax.f32 %v3505, 0.0
      %v3522 = vmax.f32 %v3506, 0.0
      %v3523 = vmax.f32 %v3507, 0.0
      %v3524 = vmax.f32 %v3508, 0.0
      %v3525 = vmax.f32 %v3509, 0.0
      %v3526 = vmax.f32 %v3510, 0.0
      %v3527 = vmax.f32 %v3511, 0.0
      %v3528 = vmax.f32 %v3512, 0.0
      %v3529 = vmax.f32 %v3513, 0.0
      %v3530 = vmax.f32 %v3514, 0.0
      %v3531 = vmax.f32 %v3515, 0.0
      %v3532 = vmax.f32 %v3516, 0.0
      %v3533 = vmax.f32 %v3517, 0.0
      %v3534 = vmax.f32 %v3518, 0.0
      %v3535 = vmax.f32 %v3519, 0.0
      %v3536 = vmax.f32 %v3520, 0.0
      %v3537 = vpack.c.bf16 %v3521, %v3521
      %v3538 = vpack.c.bf16 %v3522, %v3522
      %v3539 = vpack.c.bf16 %v3523, %v3523
      %v3540 = vpack.c.bf16 %v3524, %v3524
      %v3541 = vpack.c.bf16 %v3525, %v3525
      %v3542 = vpack.c.bf16 %v3526, %v3526
      %v3543 = vpack.c.bf16 %v3527, %v3527
      %v3544 = vpack.c.bf16 %v3528, %v3528
      %v3545 = vpack.c.bf16 %v3529, %v3529
      %v3546 = vpack.c.bf16 %v3530, %v3530
      %v3547 = vpack.c.bf16 %v3531, %v3531
      %v3548 = vpack.c.bf16 %v3532, %v3532
      %v3549 = vpack.c.bf16 %v3533, %v3533
      %v3550 = vpack.c.bf16 %v3534, %v3534
      %v3551 = vpack.c.bf16 %v3535, %v3535
      %v3552 = vpack.c.bf16 %v3536, %v3536
      %v3554 = vshrl.u32 %v3537, 16
      %v3556 = vrot.slane %v3554, 7
      %v3557 = vshll.u32 %v3537, 16
      %v3559 = vor.u32 %v3556, %v3557
      %v3560 = vrot.slane %v3556, 4
      %v3562 = vshrl.u32 %v3538, 16
      %v3564 = vrot.slane %v3562, 7
      %v3565 = vshll.u32 %v3538, 16
      %v3567 = vor.u32 %v3564, %v3565
      %v3568 = vsel %vm479, %v3560, %v3567
      %v3569 = vrot.slane %v3564, 4
      %v3571 = vshrl.u32 %v3539, 16
      %v3573 = vrot.slane %v3571, 7
      %v3574 = vshll.u32 %v3539, 16
      %v3576 = vor.u32 %v3573, %v3574
      %v3577 = vrot.slane %v3573, 4
      %v3579 = vshrl.u32 %v3540, 16
      %v3581 = vrot.slane %v3579, 7
      %v3582 = vshll.u32 %v3540, 16
      %v3584 = vor.u32 %v3581, %v3582
      %v3585 = vsel %vm479, %v3577, %v3584
      %v3586 = vrot.slane %v3581, 4
      %v3588 = vshrl.u32 %v3541, 16
      %v3590 = vrot.slane %v3588, 7
      %v3591 = vshll.u32 %v3541, 16
      %v3593 = vor.u32 %v3590, %v3591
      %v3594 = vrot.slane %v3590, 4
      %v3596 = vshrl.u32 %v3542, 16
      %v3598 = vrot.slane %v3596, 7
      %v3599 = vshll.u32 %v3542, 16
      %v3601 = vor.u32 %v3598, %v3599
      %v3602 = vsel %vm479, %v3594, %v3601
      %v3603 = vrot.slane %v3598, 4
      %v3605 = vshrl.u32 %v3543, 16
      %v3607 = vrot.slane %v3605, 7
      %v3608 = vshll.u32 %v3543, 16
      %v3610 = vor.u32 %v3607, %v3608
      %v3611 = vrot.slane %v3607, 4
      %v3613 = vshrl.u32 %v3544, 16
      %v3615 = vrot.slane %v3613, 7
      %v3616 = vshll.u32 %v3544, 16
      %v3618 = vor.u32 %v3615, %v3616
      %v3619 = vsel %vm479, %v3611, %v3618
      %v3620 = vrot.slane %v3615, 4
      %v3622 = vshrl.u32 %v3545, 16
      %v3624 = vrot.slane %v3622, 7
      %v3625 = vshll.u32 %v3545, 16
      %v3627 = vor.u32 %v3624, %v3625
      %v3628 = vrot.slane %v3624, 4
      %v3630 = vshrl.u32 %v3546, 16
      %v3632 = vrot.slane %v3630, 7
      %v3633 = vshll.u32 %v3546, 16
      %v3635 = vor.u32 %v3632, %v3633
      %v3636 = vsel %vm479, %v3628, %v3635
      %v3637 = vrot.slane %v3632, 4
      %v3639 = vshrl.u32 %v3547, 16
      %v3641 = vrot.slane %v3639, 7
      %v3642 = vshll.u32 %v3547, 16
      %v3644 = vor.u32 %v3641, %v3642
      %v3645 = vrot.slane %v3641, 4
      %v3647 = vshrl.u32 %v3548, 16
      %v3649 = vrot.slane %v3647, 7
      %v3650 = vshll.u32 %v3548, 16
      %v3652 = vor.u32 %v3649, %v3650
      %v3653 = vsel %vm479, %v3645, %v3652
      %v3654 = vrot.slane %v3649, 4
      %v3656 = vshrl.u32 %v3549, 16
      %v3658 = vrot.slane %v3656, 7
      %v3659 = vshll.u32 %v3549, 16
      %v3661 = vor.u32 %v3658, %v3659
      %v3662 = vrot.slane %v3658, 4
      %v3664 = vshrl.u32 %v3550, 16
      %v3666 = vrot.slane %v3664, 7
      %v3667 = vshll.u32 %v3550, 16
      %v3669 = vor.u32 %v3666, %v3667
      %v3670 = vsel %vm479, %v3662, %v3669
      %v3671 = vrot.slane %v3666, 4
      %v3673 = vshrl.u32 %v3551, 16
      %v3675 = vrot.slane %v3673, 7
      %v3676 = vshll.u32 %v3551, 16
      %v3678 = vor.u32 %v3675, %v3676
      %v3679 = vrot.slane %v3675, 4
      %v3681 = vshrl.u32 %v3552, 16
      %v3683 = vrot.slane %v3681, 7
      %v3684 = vshll.u32 %v3552, 16
      %v3686 = vor.u32 %v3683, %v3684
      %v3687 = vsel %vm479, %v3679, %v3686
      %v3688 = vrot.slane %v3683, 4
      %s3713 = scalar_lea.vmem [#allocation3], 12
      %v3714 = vld [vmem:[%s3713] sm:$0xf]
      %v3715 = vsel %vm803, %v3559, %v3714
      %3716 = vst [vmem:[%s3713] sm:$0xf] %v3715
      %3717 = vst.msk [vmem:[%s3713 + $0x4] sm:$0xf] %vm807, %v3568
      %v3718 = vld [vmem:[%s3713 + $0x8] sm:$0x1]
      %v3719 = vsel %vm810, %v3569, %v3718
      %3720 = vst [vmem:[%s3713 + $0x8] sm:$0x1] %v3719
      %v3721 = vld [vmem:[%s3713 + $0xc] sm:$0xf]
      %v3722 = vsel %vm803, %v3576, %v3721
      %3723 = vst [vmem:[%s3713 + $0xc] sm:$0xf] %v3722
      %3724 = vst.msk [vmem:[%s3713 + $0x10] sm:$0xf] %vm807, %v3585
      %v3725 = vld [vmem:[%s3713 + $0x14] sm:$0x1]
      %v3726 = vsel %vm810, %v3586, %v3725
      %3727 = vst [vmem:[%s3713 + $0x14] sm:$0x1] %v3726
      %v3728 = vld [vmem:[%s3713 + $0x18] sm:$0xf]
      %v3729 = vsel %vm803, %v3593, %v3728
      %3730 = vst [vmem:[%s3713 + $0x18] sm:$0xf] %v3729
      %3731 = vst.msk [vmem:[%s3713 + $0x1c] sm:$0xf] %vm807, %v3602
      %v3732 = vld [vmem:[%s3713 + $0x20] sm:$0x1]
      %v3733 = vsel %vm810, %v3603, %v3732
      %3734 = vst [vmem:[%s3713 + $0x20] sm:$0x1] %v3733
      %v3735 = vld [vmem:[%s3713 + $0x24] sm:$0xf]
      %v3736 = vsel %vm803, %v3610, %v3735
      %3737 = vst [vmem:[%s3713 + $0x24] sm:$0xf] %v3736
      %3738 = vst.msk [vmem:[%s3713 + $0x28] sm:$0xf] %vm807, %v3619
      %v3739 = vld [vmem:[%s3713 + $0x2c] sm:$0x1]
      %v3740 = vsel %vm810, %v3620, %v3739
      %3741 = vst [vmem:[%s3713 + $0x2c] sm:$0x1] %v3740
      %v3742 = vld [vmem:[%s3713 + $0x30] sm:$0xf]
      %v3743 = vsel %vm803, %v3627, %v3742
      %3744 = vst [vmem:[%s3713 + $0x30] sm:$0xf] %v3743
      %3745 = vst.msk [vmem:[%s3713 + $0x34] sm:$0xf] %vm807, %v3636
      %v3746 = vld [vmem:[%s3713 + $0x38] sm:$0x1]
      %v3747 = vsel %vm810, %v3637, %v3746
      %3748 = vst [vmem:[%s3713 + $0x38] sm:$0x1] %v3747
      %v3749 = vld [vmem:[%s3713 + $0x3c] sm:$0xf]
      %v3750 = vsel %vm803, %v3644, %v3749
      %3751 = vst [vmem:[%s3713 + $0x3c] sm:$0xf] %v3750
      %3752 = vst.msk [vmem:[%s3713 + $0x40] sm:$0xf] %vm807, %v3653
      %v3753 = vld [vmem:[%s3713 + $0x44] sm:$0x1]
      %v3754 = vsel %vm810, %v3654, %v3753
      %3755 = vst [vmem:[%s3713 + $0x44] sm:$0x1] %v3754
      %v3756 = vld [vmem:[%s3713 + $0x48] sm:$0xf]
      %v3757 = vsel %vm803, %v3661, %v3756
      %3758 = vst [vmem:[%s3713 + $0x48] sm:$0xf] %v3757
      %3759 = vst.msk [vmem:[%s3713 + $0x4c] sm:$0xf] %vm807, %v3670
      %v3760 = vld [vmem:[%s3713 + $0x50] sm:$0x1]
      %v3761 = vsel %vm810, %v3671, %v3760
      %3762 = vst [vmem:[%s3713 + $0x50] sm:$0x1] %v3761
      %v3763 = vld [vmem:[%s3713 + $0x54] sm:$0xf]
      %v3764 = vsel %vm803, %v3678, %v3763
      %3765 = vst [vmem:[%s3713 + $0x54] sm:$0xf] %v3764
      %3766 = vst.msk [vmem:[%s3713 + $0x58] sm:$0xf] %vm807, %v3687
      %v3767 = vld [vmem:[%s3713 + $0x5c] sm:$0x1]
      %v3768 = vsel %vm810, %v3688, %v3767
      %3769 = vst [vmem:[%s3713 + $0x5c] sm:$0x1] %v3768
      %s3770 = scalar_lea.vmem [#allocation2], 96
      %v3771 = vld [vmem:[%s3770] sm:$0xf]
      %v3772 = vld [vmem:[%s3770 + $0x4] sm:$0xf]
      %v3773 = vld [vmem:[%s3770 + $0xc] sm:$0xf]
      %v3774 = vld [vmem:[%s3770 + $0x10] sm:$0xf]
      %v3775 = vld [vmem:[%s3770 + $0x18] sm:$0xf]
      %v3776 = vld [vmem:[%s3770 + $0x1c] sm:$0xf]
      %v3777 = vld [vmem:[%s3770 + $0x24] sm:$0xf]
      %v3778 = vld [vmem:[%s3770 + $0x28] sm:$0xf]
      %v3779 = vld [vmem:[%s3770 + $0x30] sm:$0xf]
      %v3780 = vld [vmem:[%s3770 + $0x34] sm:$0xf]
      %v3781 = vld [vmem:[%s3770 + $0x3c] sm:$0xf]
      %v3782 = vld [vmem:[%s3770 + $0x40] sm:$0xf]
      %v3783 = vld [vmem:[%s3770 + $0x48] sm:$0xf]
      %v3784 = vld [vmem:[%s3770 + $0x4c] sm:$0xf]
      %v3785 = vld [vmem:[%s3770 + $0x54] sm:$0xf]
      %v3786 = vld [vmem:[%s3770 + $0x58] sm:$0xf]
      %v3787 = vld [vmem:[%s2] sm:$0xf]
      %v3788 = vld [vmem:[%s3770 + $0x8] sm:$0x1]
      %v3789 = vld [vmem:[%s3770 + $0x14] sm:$0x1]
      %v3790 = vld [vmem:[%s3770 + $0x20] sm:$0x1]
      %v3791 = vld [vmem:[%s3770 + $0x2c] sm:$0x1]
      %v3792 = vld [vmem:[%s3770 + $0x38] sm:$0x1]
      %v3793 = vld [vmem:[%s3770 + $0x44] sm:$0x1]
      %v3794 = vld [vmem:[%s3770 + $0x50] sm:$0x1]
      %v3795 = vld [vmem:[%s3770 + $0x5c] sm:$0x1]
      %v3797 = vshrl.u32 %v3771, 16
      %v3799 = vrot.slane %v3797, 4
      %v3800 = vshll.u32 %v3771, 16
      %v3802 = vrot.slane %v3800, 5
      %v3803 = vor.u32 %v3799, %v3802
      %v3804 = vrot.slane %v3803, 4
      %v3806 = vshll.u32 %v3772, 16
      %v3808 = vrot.slane %v3806, 5
      %v3809 = vsel %vm1486, %v3804, %v3808
      %v3810 = vshrl.u32 %v3772, 16
      %v3812 = vrot.slane %v3810, 4
      %v3813 = vor.u32 %v3812, %v3808
      %v3814 = vrot.slane %v3813, 4
      %v3816 = vshll.u32 %v3788, 16
      %v3818 = vrot.slane %v3816, 5
      %v3819 = vsel %vm1486, %v3814, %v3818
      %v3821 = vshrl.u32 %v3773, 16
      %v3823 = vrot.slane %v3821, 4
      %v3824 = vshll.u32 %v3773, 16
      %v3826 = vrot.slane %v3824, 5
      %v3827 = vor.u32 %v3823, %v3826
      %v3828 = vrot.slane %v3827, 4
      %v3830 = vshll.u32 %v3774, 16
      %v3832 = vrot.slane %v3830, 5
      %v3833 = vsel %vm1486, %v3828, %v3832
      %v3834 = vshrl.u32 %v3774, 16
      %v3836 = vrot.slane %v3834, 4
      %v3837 = vor.u32 %v3836, %v3832
      %v3838 = vrot.slane %v3837, 4
      %v3840 = vshll.u32 %v3789, 16
      %v3842 = vrot.slane %v3840, 5
      %v3843 = vsel %vm1486, %v3838, %v3842
      %v3845 = vshrl.u32 %v3775, 16
      %v3847 = vrot.slane %v3845, 4
      %v3848 = vshll.u32 %v3775, 16
      %v3850 = vrot.slane %v3848, 5
      %v3851 = vor.u32 %v3847, %v3850
      %v3852 = vrot.slane %v3851, 4
      %v3854 = vshll.u32 %v3776, 16
      %v3856 = vrot.slane %v3854, 5
      %v3857 = vsel %vm1486, %v3852, %v3856
      %v3858 = vshrl.u32 %v3776, 16
      %v3860 = vrot.slane %v3858, 4
      %v3861 = vor.u32 %v3860, %v3856
      %v3862 = vrot.slane %v3861, 4
      %v3864 = vshll.u32 %v3790, 16
      %v3866 = vrot.slane %v3864, 5
      %v3867 = vsel %vm1486, %v3862, %v3866
      %v3869 = vshrl.u32 %v3777, 16
      %v3871 = vrot.slane %v3869, 4
      %v3872 = vshll.u32 %v3777, 16
      %v3874 = vrot.slane %v3872, 5
      %v3875 = vor.u32 %v3871, %v3874
      %v3876 = vrot.slane %v3875, 4
      %v3878 = vshll.u32 %v3778, 16
      %v3880 = vrot.slane %v3878, 5
      %v3881 = vsel %vm1486, %v3876, %v3880
      %v3882 = vshrl.u32 %v3778, 16
      %v3884 = vrot.slane %v3882, 4
      %v3885 = vor.u32 %v3884, %v3880
      %v3886 = vrot.slane %v3885, 4
      %v3888 = vshll.u32 %v3791, 16
      %v3890 = vrot.slane %v3888, 5
      %v3891 = vsel %vm1486, %v3886, %v3890
      %v3893 = vshrl.u32 %v3779, 16
      %v3895 = vrot.slane %v3893, 4
      %v3896 = vshll.u32 %v3779, 16
      %v3898 = vrot.slane %v3896, 5
      %v3899 = vor.u32 %v3895, %v3898
      %v3900 = vrot.slane %v3899, 4
      %v3902 = vshll.u32 %v3780, 16
      %v3904 = vrot.slane %v3902, 5
      %v3905 = vsel %vm1486, %v3900, %v3904
      %v3906 = vshrl.u32 %v3780, 16
      %v3908 = vrot.slane %v3906, 4
      %v3909 = vor.u32 %v3908, %v3904
      %v3910 = vrot.slane %v3909, 4
      %v3912 = vshll.u32 %v3792, 16
      %v3914 = vrot.slane %v3912, 5
      %v3915 = vsel %vm1486, %v3910, %v3914
      %v3917 = vshrl.u32 %v3781, 16
      %v3919 = vrot.slane %v3917, 4
      %v3920 = vshll.u32 %v3781, 16
      %v3922 = vrot.slane %v3920, 5
      %v3923 = vor.u32 %v3919, %v3922
      %v3924 = vrot.slane %v3923, 4
      %v3926 = vshll.u32 %v3782, 16
      %v3928 = vrot.slane %v3926, 5
      %v3929 = vsel %vm1486, %v3924, %v3928
      %v3930 = vshrl.u32 %v3782, 16
      %v3932 = vrot.slane %v3930, 4
      %v3933 = vor.u32 %v3932, %v3928
      %v3934 = vrot.slane %v3933, 4
      %v3936 = vshll.u32 %v3793, 16
      %v3938 = vrot.slane %v3936, 5
      %v3939 = vsel %vm1486, %v3934, %v3938
      %v3941 = vshrl.u32 %v3783, 16
      %v3943 = vrot.slane %v3941, 4
      %v3944 = vshll.u32 %v3783, 16
      %v3946 = vrot.slane %v3944, 5
      %v3947 = vor.u32 %v3943, %v3946
      %v3948 = vrot.slane %v3947, 4
      %v3950 = vshll.u32 %v3784, 16
      %v3952 = vrot.slane %v3950, 5
      %v3953 = vsel %vm1486, %v3948, %v3952
      %v3954 = vshrl.u32 %v3784, 16
      %v3956 = vrot.slane %v3954, 4
      %v3957 = vor.u32 %v3956, %v3952
      %v3958 = vrot.slane %v3957, 4
      %v3960 = vshll.u32 %v3794, 16
      %v3962 = vrot.slane %v3960, 5
      %v3963 = vsel %vm1486, %v3958, %v3962
      %v3965 = vshrl.u32 %v3785, 16
      %v3967 = vrot.slane %v3965, 4
      %v3968 = vshll.u32 %v3785, 16
      %v3970 = vrot.slane %v3968, 5
      %v3971 = vor.u32 %v3967, %v3970
      %v3972 = vrot.slane %v3971, 4
      %v3974 = vshll.u32 %v3786, 16
      %v3976 = vrot.slane %v3974, 5
      %v3977 = vsel %vm1486, %v3972, %v3976
      %v3978 = vshrl.u32 %v3786, 16
      %v3980 = vrot.slane %v3978, 4
      %v3981 = vor.u32 %v3980, %v3976
      %v3982 = vrot.slane %v3981, 4
      %v3984 = vshll.u32 %v3795, 16
      %v3986 = vrot.slane %v3984, 5
      %v3987 = vsel %vm1486, %v3982, %v3986
      %v3988 = vld [vmem:[%s1679] sm:$0xf]
      %v3989 = vunpack.c.l.b16 %v3809
      %v3990 = vunpack.c.l.b16 %v3819
      %v3991 = vunpack.c.l.b16 %v3833
      %v3992 = vunpack.c.l.b16 %v3843
      %v3993 = vunpack.c.l.b16 %v3857
      %v3994 = vunpack.c.l.b16 %v3867
      %v3995 = vunpack.c.l.b16 %v3881
      %v3996 = vunpack.c.l.b16 %v3891
      %v3997 = vunpack.c.l.b16 %v3905
      %v3998 = vunpack.c.l.b16 %v3915
      %v3999 = vunpack.c.l.b16 %v3929
      %v4000 = vunpack.c.l.b16 %v3939
      %v4001 = vunpack.c.l.b16 %v3953
      %v4002 = vunpack.c.l.b16 %v3963
      %v4003 = vunpack.c.l.b16 %v3977
      %v4004 = vunpack.c.l.b16 %v3987
      %v4005 = vpack.c.b16 %v3990, %v3989
      %v4006 = vpack.c.b16 %v3992, %v3991
      %v4007 = vpack.c.b16 %v3994, %v3993
      %v4008 = vpack.c.b16 %v3996, %v3995
      %v4009 = vpack.c.b16 %v3998, %v3997
      %v4010 = vpack.c.b16 %v4000, %v3999
      %v4011 = vpack.c.b16 %v4002, %v4001
      %v4012 = vpack.c.b16 %v4004, %v4003
      %v4014 = vsel %vm1705, %v4005, 0
      %v4017 = vsel %vm1705, %v4006, 0
      %v4020 = vsel %vm1705, %v4007, 0
      %v4023 = vsel %vm1705, %v4008, 0
      %v4026 = vsel %vm1705, %v4009, 0
      %v4029 = vsel %vm1705, %v4010, 0
      %v4032 = vsel %vm1705, %v4011, 0
      %v4035 = vsel %vm1705, %v4012, 0
      %v4038 = vsel %vm1730, %v3988, 0
      %4040 = vmatpush.bf16.msra.mxu0 0
      %4041 = vmatpush.bf16.msra.mxu0 0
      %4042 = vmatpush.bf16.msra.mxu0 0
      %4043 = vmatpush.bf16.msra.mxu0 0
      %4044 = vmatpush.bf16.msra.mxu0 0
      %4045 = vmatpush.bf16.msra.mxu0 0
      %4046 = vmatpush.bf16.msra.mxu0 0
      %4047 = vmatpush.bf16.msra.mxu0 %v4038
      %4048 = vmatmul.bf16.gmra.mxu0 %v4014
      %v4049 = vpop.f32.mrf.mxu0
      %v4050 = vadd.f32 0.0, %v4049
      %v4051 = vpop.f32.mrf.mxu0
      %v4052 = vadd.f32 0.0, %v4051
      %4053 = vmatmul.bf16.gmra.mxu0 %v4017
      %v4054 = vpop.f32.mrf.mxu0
      %v4055 = vadd.f32 0.0, %v4054
      %v4056 = vpop.f32.mrf.mxu0
      %v4057 = vadd.f32 0.0, %v4056
      %4058 = vmatmul.bf16.gmra.mxu0 %v4020
      %v4059 = vpop.f32.mrf.mxu0
      %v4060 = vadd.f32 0.0, %v4059
      %v4061 = vpop.f32.mrf.mxu0
      %v4062 = vadd.f32 0.0, %v4061
      %4063 = vmatmul.bf16.gmra.mxu0 %v4023
      %v4064 = vpop.f32.mrf.mxu0
      %v4065 = vadd.f32 0.0, %v4064
      %v4066 = vpop.f32.mrf.mxu0
      %v4067 = vadd.f32 0.0, %v4066
      %4068 = vmatmul.bf16.gmra.mxu0 %v4026
      %v4069 = vpop.f32.mrf.mxu0
      %v4070 = vadd.f32 0.0, %v4069
      %v4071 = vpop.f32.mrf.mxu0
      %v4072 = vadd.f32 0.0, %v4071
      %4073 = vmatmul.bf16.gmra.mxu0 %v4029
      %v4074 = vpop.f32.mrf.mxu0
      %v4075 = vadd.f32 0.0, %v4074
      %v4076 = vpop.f32.mrf.mxu0
      %v4077 = vadd.f32 0.0, %v4076
      %4078 = vmatmul.bf16.gmra.mxu0 %v4032
      %v4079 = vpop.f32.mrf.mxu0
      %v4080 = vadd.f32 0.0, %v4079
      %v4081 = vpop.f32.mrf.mxu0
      %v4082 = vadd.f32 0.0, %v4081
      %4083 = vmatmul.bf16.gmra.mxu0 %v4035
      %v4084 = vpop.f32.mrf.mxu0
      %v4085 = vadd.f32 0.0, %v4084
      %v4086 = vpop.f32.mrf.mxu0
      %v4087 = vadd.f32 0.0, %v4086
      %4088 = vdwg.mxu0
      %v4105 = vunpack.c.l.b16 %v3771
      %v4106 = vunpack.c.l.b16 %v3772
      %v4107 = vunpack.c.l.b16 %v3773
      %v4108 = vunpack.c.l.b16 %v3774
      %v4109 = vunpack.c.l.b16 %v3775
      %v4110 = vunpack.c.l.b16 %v3776
      %v4111 = vunpack.c.l.b16 %v3777
      %v4112 = vunpack.c.l.b16 %v3778
      %v4113 = vunpack.c.l.b16 %v3779
      %v4114 = vunpack.c.l.b16 %v3780
      %v4115 = vunpack.c.l.b16 %v3781
      %v4116 = vunpack.c.l.b16 %v3782
      %v4117 = vunpack.c.l.b16 %v3783
      %v4118 = vunpack.c.l.b16 %v3784
      %v4119 = vunpack.c.l.b16 %v3785
      %v4120 = vunpack.c.l.b16 %v3786
      %v4121 = vpack.c.b16 %v4106, %v4105
      %v4122 = vpack.c.b16 %v4108, %v4107
      %v4123 = vpack.c.b16 %v4110, %v4109
      %v4124 = vpack.c.b16 %v4112, %v4111
      %v4125 = vpack.c.b16 %v4114, %v4113
      %v4126 = vpack.c.b16 %v4116, %v4115
      %v4127 = vpack.c.b16 %v4118, %v4117
      %v4128 = vpack.c.b16 %v4120, %v4119
      %v4130 = vsel %vm1705, %v4121, 0
      %v4133 = vsel %vm1705, %v4122, 0
      %v4136 = vsel %vm1705, %v4123, 0
      %v4139 = vsel %vm1705, %v4124, 0
      %v4142 = vsel %vm1705, %v4125, 0
      %v4145 = vsel %vm1705, %v4126, 0
      %v4148 = vsel %vm1705, %v4127, 0
      %v4151 = vsel %vm1705, %v4128, 0
      %v4154 = vsel %vm1730, %v3787, 0
      %4156 = vmatpush.bf16.msra.mxu0 0
      %4157 = vmatpush.bf16.msra.mxu0 0
      %4158 = vmatpush.bf16.msra.mxu0 0
      %4159 = vmatpush.bf16.msra.mxu0 0
      %4160 = vmatpush.bf16.msra.mxu0 0
      %4161 = vmatpush.bf16.msra.mxu0 0
      %4162 = vmatpush.bf16.msra.mxu0 0
      %4163 = vmatpush.bf16.msra.mxu0 %v4154
      %4164 = vmatmul.bf16.gmra.mxu0 %v4130
      %v4165 = vpop.f32.mrf.mxu0
      %v4166 = vadd.f32 %v4050, %v4165
      %v4167 = vpop.f32.mrf.mxu0
      %v4168 = vadd.f32 %v4052, %v4167
      %4169 = vmatmul.bf16.gmra.mxu0 %v4133
      %v4170 = vpop.f32.mrf.mxu0
      %v4171 = vadd.f32 %v4055, %v4170
      %v4172 = vpop.f32.mrf.mxu0
      %v4173 = vadd.f32 %v4057, %v4172
      %4174 = vmatmul.bf16.gmra.mxu0 %v4136
      %v4175 = vpop.f32.mrf.mxu0
      %v4176 = vadd.f32 %v4060, %v4175
      %v4177 = vpop.f32.mrf.mxu0
      %v4178 = vadd.f32 %v4062, %v4177
      %4179 = vmatmul.bf16.gmra.mxu0 %v4139
      %v4180 = vpop.f32.mrf.mxu0
      %v4181 = vadd.f32 %v4065, %v4180
      %v4182 = vpop.f32.mrf.mxu0
      %v4183 = vadd.f32 %v4067, %v4182
      %4184 = vmatmul.bf16.gmra.mxu0 %v4142
      %v4185 = vpop.f32.mrf.mxu0
      %v4186 = vadd.f32 %v4070, %v4185
      %v4187 = vpop.f32.mrf.mxu0
      %v4188 = vadd.f32 %v4072, %v4187
      %4189 = vmatmul.bf16.gmra.mxu0 %v4145
      %v4190 = vpop.f32.mrf.mxu0
      %v4191 = vadd.f32 %v4075, %v4190
      %v4192 = vpop.f32.mrf.mxu0
      %v4193 = vadd.f32 %v4077, %v4192
      %4194 = vmatmul.bf16.gmra.mxu0 %v4148
      %v4195 = vpop.f32.mrf.mxu0
      %v4196 = vadd.f32 %v4080, %v4195
      %v4197 = vpop.f32.mrf.mxu0
      %v4198 = vadd.f32 %v4082, %v4197
      %4199 = vmatmul.bf16.gmra.mxu0 %v4151
      %v4200 = vpop.f32.mrf.mxu0
      %v4201 = vadd.f32 %v4085, %v4200
      %v4202 = vpop.f32.mrf.mxu0
      %v4203 = vadd.f32 %v4087, %v4202
      %4204 = vdwg.mxu0
      %v4205 = vld [vmem:[%s3770] sm:$0xe]
      %v4206 = vld [vmem:[%s3770 + $0xc] sm:$0xe]
      %v4207 = vld [vmem:[%s3770 + $0x18] sm:$0xe]
      %v4208 = vld [vmem:[%s3770 + $0x24] sm:$0xe]
      %v4209 = vld [vmem:[%s3770 + $0x30] sm:$0xe]
      %v4210 = vld [vmem:[%s3770 + $0x3c] sm:$0xe]
      %v4211 = vld [vmem:[%s3770 + $0x48] sm:$0xe]
      %v4212 = vld [vmem:[%s3770 + $0x54] sm:$0xe]
      %v4229 = vrot.slane %v4205, 5
      %v4230 = vrot.slane %v4229, 4
      %v4231 = vrot.slane %v3772, 5
      %v4232 = vsel %vm1925, %v4230, %v4231
      %v4233 = vrot.slane %v4231, 4
      %v4234 = vrot.slane %v3788, 5
      %v4235 = vsel %vm1925, %v4233, %v4234
      %v4236 = vrot.slane %v4206, 5
      %v4237 = vrot.slane %v4236, 4
      %v4238 = vrot.slane %v3774, 5
      %v4239 = vsel %vm1925, %v4237, %v4238
      %v4240 = vrot.slane %v4238, 4
      %v4241 = vrot.slane %v3789, 5
      %v4242 = vsel %vm1925, %v4240, %v4241
      %v4243 = vrot.slane %v4207, 5
      %v4244 = vrot.slane %v4243, 4
      %v4245 = vrot.slane %v3776, 5
      %v4246 = vsel %vm1925, %v4244, %v4245
      %v4247 = vrot.slane %v4245, 4
      %v4248 = vrot.slane %v3790, 5
      %v4249 = vsel %vm1925, %v4247, %v4248
      %v4250 = vrot.slane %v4208, 5
      %v4251 = vrot.slane %v4250, 4
      %v4252 = vrot.slane %v3778, 5
      %v4253 = vsel %vm1925, %v4251, %v4252
      %v4254 = vrot.slane %v4252, 4
      %v4255 = vrot.slane %v3791, 5
      %v4256 = vsel %vm1925, %v4254, %v4255
      %v4257 = vrot.slane %v4209, 5
      %v4258 = vrot.slane %v4257, 4
      %v4259 = vrot.slane %v3780, 5
      %v4260 = vsel %vm1925, %v4258, %v4259
      %v4261 = vrot.slane %v4259, 4
      %v4262 = vrot.slane %v3792, 5
      %v4263 = vsel %vm1925, %v4261, %v4262
      %v4264 = vrot.slane %v4210, 5
      %v4265 = vrot.slane %v4264, 4
      %v4266 = vrot.slane %v3782, 5
      %v4267 = vsel %vm1925, %v4265, %v4266
      %v4268 = vrot.slane %v4266, 4
      %v4269 = vrot.slane %v3793, 5
      %v4270 = vsel %vm1925, %v4268, %v4269
      %v4271 = vrot.slane %v4211, 5
      %v4272 = vrot.slane %v4271, 4
      %v4273 = vrot.slane %v3784, 5
      %v4274 = vsel %vm1925, %v4272, %v4273
      %v4275 = vrot.slane %v4273, 4
      %v4276 = vrot.slane %v3794, 5
      %v4277 = vsel %vm1925, %v4275, %v4276
      %v4278 = vrot.slane %v4212, 5
      %v4279 = vrot.slane %v4278, 4
      %v4280 = vrot.slane %v3786, 5
      %v4281 = vsel %vm1925, %v4279, %v4280
      %v4282 = vrot.slane %v4280, 4
      %v4283 = vrot.slane %v3795, 5
      %v4284 = vsel %vm1925, %v4282, %v4283
      %v4285 = vld [vmem:[%s1982] sm:$0xf]
      %v4286 = vunpack.c.l.b16 %v4232
      %v4287 = vunpack.c.l.b16 %v4235
      %v4288 = vunpack.c.l.b16 %v4239
      %v4289 = vunpack.c.l.b16 %v4242
      %v4290 = vunpack.c.l.b16 %v4246
      %v4291 = vunpack.c.l.b16 %v4249
      %v4292 = vunpack.c.l.b16 %v4253
      %v4293 = vunpack.c.l.b16 %v4256
      %v4294 = vunpack.c.l.b16 %v4260
      %v4295 = vunpack.c.l.b16 %v4263
      %v4296 = vunpack.c.l.b16 %v4267
      %v4297 = vunpack.c.l.b16 %v4270
      %v4298 = vunpack.c.l.b16 %v4274
      %v4299 = vunpack.c.l.b16 %v4277
      %v4300 = vunpack.c.l.b16 %v4281
      %v4301 = vunpack.c.l.b16 %v4284
      %v4302 = vpack.c.b16 %v4287, %v4286
      %v4303 = vpack.c.b16 %v4289, %v4288
      %v4304 = vpack.c.b16 %v4291, %v4290
      %v4305 = vpack.c.b16 %v4293, %v4292
      %v4306 = vpack.c.b16 %v4295, %v4294
      %v4307 = vpack.c.b16 %v4297, %v4296
      %v4308 = vpack.c.b16 %v4299, %v4298
      %v4309 = vpack.c.b16 %v4301, %v4300
      %v4311 = vsel %vm1705, %v4302, 0
      %v4314 = vsel %vm1705, %v4303, 0
      %v4317 = vsel %vm1705, %v4304, 0
      %v4320 = vsel %vm1705, %v4305, 0
      %v4323 = vsel %vm1705, %v4306, 0
      %v4326 = vsel %vm1705, %v4307, 0
      %v4329 = vsel %vm1705, %v4308, 0
      %v4332 = vsel %vm1705, %v4309, 0
      %v4335 = vsel %vm1730, %v4285, 0
      %4337 = vmatpush.bf16.msra.mxu0 0
      %4338 = vmatpush.bf16.msra.mxu0 0
      %4339 = vmatpush.bf16.msra.mxu0 0
      %4340 = vmatpush.bf16.msra.mxu0 0
      %4341 = vmatpush.bf16.msra.mxu0 0
      %4342 = vmatpush.bf16.msra.mxu0 0
      %4343 = vmatpush.bf16.msra.mxu0 0
      %4344 = vmatpush.bf16.msra.mxu0 %v4335
      %4345 = vmatmul.bf16.gmra.mxu0 %v4311
      %v4346 = vpop.f32.mrf.mxu0
      %v4347 = vadd.f32 0.0, %v4346
      %v4348 = vpop.f32.mrf.mxu0
      %v4349 = vadd.f32 0.0, %v4348
      %4350 = vmatmul.bf16.gmra.mxu0 %v4314
      %v4351 = vpop.f32.mrf.mxu0
      %v4352 = vadd.f32 0.0, %v4351
      %v4353 = vpop.f32.mrf.mxu0
      %v4354 = vadd.f32 0.0, %v4353
      %4355 = vmatmul.bf16.gmra.mxu0 %v4317
      %v4356 = vpop.f32.mrf.mxu0
      %v4357 = vadd.f32 0.0, %v4356
      %v4358 = vpop.f32.mrf.mxu0
      %v4359 = vadd.f32 0.0, %v4358
      %4360 = vmatmul.bf16.gmra.mxu0 %v4320
      %v4361 = vpop.f32.mrf.mxu0
      %v4362 = vadd.f32 0.0, %v4361
      %v4363 = vpop.f32.mrf.mxu0
      %v4364 = vadd.f32 0.0, %v4363
      %4365 = vmatmul.bf16.gmra.mxu0 %v4323
      %v4366 = vpop.f32.mrf.mxu0
      %v4367 = vadd.f32 0.0, %v4366
      %v4368 = vpop.f32.mrf.mxu0
      %v4369 = vadd.f32 0.0, %v4368
      %4370 = vmatmul.bf16.gmra.mxu0 %v4326
      %v4371 = vpop.f32.mrf.mxu0
      %v4372 = vadd.f32 0.0, %v4371
      %v4373 = vpop.f32.mrf.mxu0
      %v4374 = vadd.f32 0.0, %v4373
      %4375 = vmatmul.bf16.gmra.mxu0 %v4329
      %v4376 = vpop.f32.mrf.mxu0
      %v4377 = vadd.f32 0.0, %v4376
      %v4378 = vpop.f32.mrf.mxu0
      %v4379 = vadd.f32 0.0, %v4378
      %4380 = vmatmul.bf16.gmra.mxu0 %v4332
      %v4381 = vpop.f32.mrf.mxu0
      %v4382 = vadd.f32 0.0, %v4381
      %v4383 = vpop.f32.mrf.mxu0
      %v4384 = vadd.f32 0.0, %v4383
      %4385 = vdwg.mxu0
      %v4386 = vadd.f32 %v4166, %v4347
      %v4387 = vadd.f32 %v4168, %v4349
      %v4388 = vadd.f32 %v4171, %v4352
      %v4389 = vadd.f32 %v4173, %v4354
      %v4390 = vadd.f32 %v4176, %v4357
      %v4391 = vadd.f32 %v4178, %v4359
      %v4392 = vadd.f32 %v4181, %v4362
      %v4393 = vadd.f32 %v4183, %v4364
      %v4394 = vadd.f32 %v4186, %v4367
      %v4395 = vadd.f32 %v4188, %v4369
      %v4396 = vadd.f32 %v4191, %v4372
      %v4397 = vadd.f32 %v4193, %v4374
      %v4398 = vadd.f32 %v4196, %v4377
      %v4399 = vadd.f32 %v4198, %v4379
      %v4400 = vadd.f32 %v4201, %v4382
      %v4401 = vadd.f32 %v4203, %v4384
      %s4402 = scalar_lea.vmem [#allocation2], 108
      %v4403 = vld [vmem:[%s4402] sm:$0xf]
      %v4404 = vld [vmem:[%s4402 + $0x4] sm:$0xf]
      %v4405 = vld [vmem:[%s4402 + $0xc] sm:$0xf]
      %v4406 = vld [vmem:[%s4402 + $0x10] sm:$0xf]
      %v4407 = vld [vmem:[%s4402 + $0x18] sm:$0xf]
      %v4408 = vld [vmem:[%s4402 + $0x1c] sm:$0xf]
      %v4409 = vld [vmem:[%s4402 + $0x24] sm:$0xf]
      %v4410 = vld [vmem:[%s4402 + $0x28] sm:$0xf]
      %v4411 = vld [vmem:[%s4402 + $0x30] sm:$0xf]
      %v4412 = vld [vmem:[%s4402 + $0x34] sm:$0xf]
      %v4413 = vld [vmem:[%s4402 + $0x3c] sm:$0xf]
      %v4414 = vld [vmem:[%s4402 + $0x40] sm:$0xf]
      %v4415 = vld [vmem:[%s4402 + $0x48] sm:$0xf]
      %v4416 = vld [vmem:[%s4402 + $0x4c] sm:$0xf]
      %v4417 = vld [vmem:[%s4402 + $0x54] sm:$0xf]
      %v4418 = vld [vmem:[%s4402 + $0x58] sm:$0xf]
      %v4419 = vld [vmem:[%s2116] sm:$0xf]
      %v4436 = vunpack.c.l.b16 %v4403
      %v4437 = vunpack.c.l.b16 %v4404
      %v4438 = vunpack.c.l.b16 %v4405
      %v4439 = vunpack.c.l.b16 %v4406
      %v4440 = vunpack.c.l.b16 %v4407
      %v4441 = vunpack.c.l.b16 %v4408
      %v4442 = vunpack.c.l.b16 %v4409
      %v4443 = vunpack.c.l.b16 %v4410
      %v4444 = vunpack.c.l.b16 %v4411
      %v4445 = vunpack.c.l.b16 %v4412
      %v4446 = vunpack.c.l.b16 %v4413
      %v4447 = vunpack.c.l.b16 %v4414
      %v4448 = vunpack.c.l.b16 %v4415
      %v4449 = vunpack.c.l.b16 %v4416
      %v4450 = vunpack.c.l.b16 %v4417
      %v4451 = vunpack.c.l.b16 %v4418
      %v4452 = vpack.c.b16 %v4437, %v4436
      %v4453 = vpack.c.b16 %v4439, %v4438
      %v4454 = vpack.c.b16 %v4441, %v4440
      %v4455 = vpack.c.b16 %v4443, %v4442
      %v4456 = vpack.c.b16 %v4445, %v4444
      %v4457 = vpack.c.b16 %v4447, %v4446
      %v4458 = vpack.c.b16 %v4449, %v4448
      %v4459 = vpack.c.b16 %v4451, %v4450
      %v4461 = vsel %vm1705, %v4452, 0
      %v4464 = vsel %vm1705, %v4453, 0
      %v4467 = vsel %vm1705, %v4454, 0
      %v4470 = vsel %vm1705, %v4455, 0
      %v4473 = vsel %vm1705, %v4456, 0
      %v4476 = vsel %vm1705, %v4457, 0
      %v4479 = vsel %vm1705, %v4458, 0
      %v4482 = vsel %vm1705, %v4459, 0
      %v4485 = vsel %vm1730, %v4419, 0
      %4487 = vmatpush.bf16.msra.mxu0 0
      %4488 = vmatpush.bf16.msra.mxu0 0
      %4489 = vmatpush.bf16.msra.mxu0 0
      %4490 = vmatpush.bf16.msra.mxu0 0
      %4491 = vmatpush.bf16.msra.mxu0 0
      %4492 = vmatpush.bf16.msra.mxu0 0
      %4493 = vmatpush.bf16.msra.mxu0 0
      %4494 = vmatpush.bf16.msra.mxu0 %v4485
      %4495 = vmatmul.bf16.gmra.mxu0 %v4461
      %v4496 = vpop.f32.mrf.mxu0
      %v4497 = vadd.f32 0.0, %v4496
      %v4498 = vpop.f32.mrf.mxu0
      %v4499 = vadd.f32 0.0, %v4498
      %4500 = vmatmul.bf16.gmra.mxu0 %v4464
      %v4501 = vpop.f32.mrf.mxu0
      %v4502 = vadd.f32 0.0, %v4501
      %v4503 = vpop.f32.mrf.mxu0
      %v4504 = vadd.f32 0.0, %v4503
      %4505 = vmatmul.bf16.gmra.mxu0 %v4467
      %v4506 = vpop.f32.mrf.mxu0
      %v4507 = vadd.f32 0.0, %v4506
      %v4508 = vpop.f32.mrf.mxu0
      %v4509 = vadd.f32 0.0, %v4508
      %4510 = vmatmul.bf16.gmra.mxu0 %v4470
      %v4511 = vpop.f32.mrf.mxu0
      %v4512 = vadd.f32 0.0, %v4511
      %v4513 = vpop.f32.mrf.mxu0
      %v4514 = vadd.f32 0.0, %v4513
      %4515 = vmatmul.bf16.gmra.mxu0 %v4473
      %v4516 = vpop.f32.mrf.mxu0
      %v4517 = vadd.f32 0.0, %v4516
      %v4518 = vpop.f32.mrf.mxu0
      %v4519 = vadd.f32 0.0, %v4518
      %4520 = vmatmul.bf16.gmra.mxu0 %v4476
      %v4521 = vpop.f32.mrf.mxu0
      %v4522 = vadd.f32 0.0, %v4521
      %v4523 = vpop.f32.mrf.mxu0
      %v4524 = vadd.f32 0.0, %v4523
      %4525 = vmatmul.bf16.gmra.mxu0 %v4479
      %v4526 = vpop.f32.mrf.mxu0
      %v4527 = vadd.f32 0.0, %v4526
      %v4528 = vpop.f32.mrf.mxu0
      %v4529 = vadd.f32 0.0, %v4528
      %4530 = vmatmul.bf16.gmra.mxu0 %v4482
      %v4531 = vpop.f32.mrf.mxu0
      %v4532 = vadd.f32 0.0, %v4531
      %v4533 = vpop.f32.mrf.mxu0
      %v4534 = vadd.f32 0.0, %v4533
      %4535 = vdwg.mxu0
      %v4536 = vadd.f32 %v4386, %v4497
      %v4537 = vadd.f32 %v4387, %v4499
      %v4538 = vadd.f32 %v4388, %v4502
      %v4539 = vadd.f32 %v4389, %v4504
      %v4540 = vadd.f32 %v4390, %v4507
      %v4541 = vadd.f32 %v4391, %v4509
      %v4542 = vadd.f32 %v4392, %v4512
      %v4543 = vadd.f32 %v4393, %v4514
      %v4544 = vadd.f32 %v4394, %v4517
      %v4545 = vadd.f32 %v4395, %v4519
      %v4546 = vadd.f32 %v4396, %v4522
      %v4547 = vadd.f32 %v4397, %v4524
      %v4548 = vadd.f32 %v4398, %v4527
      %v4549 = vadd.f32 %v4399, %v4529
      %v4550 = vadd.f32 %v4400, %v4532
      %v4551 = vadd.f32 %v4401, %v4534
      %v4552 = vld [vmem:[%s4402] sm:$0xf]
      %v4553 = vld [vmem:[%s4402 + $0x4] sm:$0xf]
      %v4554 = vld [vmem:[%s4402 + $0x8] sm:$0x1]
      %v4555 = vld [vmem:[%s4402 + $0xc] sm:$0xf]
      %v4556 = vld [vmem:[%s4402 + $0x10] sm:$0xf]
      %v4557 = vld [vmem:[%s4402 + $0x14] sm:$0x1]
      %v4558 = vld [vmem:[%s4402 + $0x18] sm:$0xf]
      %v4559 = vld [vmem:[%s4402 + $0x1c] sm:$0xf]
      %v4560 = vld [vmem:[%s4402 + $0x20] sm:$0x1]
      %v4561 = vld [vmem:[%s4402 + $0x24] sm:$0xf]
      %v4562 = vld [vmem:[%s4402 + $0x28] sm:$0xf]
      %v4563 = vld [vmem:[%s4402 + $0x2c] sm:$0x1]
      %v4564 = vld [vmem:[%s4402 + $0x30] sm:$0xf]
      %v4565 = vld [vmem:[%s4402 + $0x34] sm:$0xf]
      %v4566 = vld [vmem:[%s4402 + $0x38] sm:$0x1]
      %v4567 = vld [vmem:[%s4402 + $0x3c] sm:$0xf]
      %v4568 = vld [vmem:[%s4402 + $0x40] sm:$0xf]
      %v4569 = vld [vmem:[%s4402 + $0x44] sm:$0x1]
      %v4570 = vld [vmem:[%s4402 + $0x48] sm:$0xf]
      %v4571 = vld [vmem:[%s4402 + $0x4c] sm:$0xf]
      %v4572 = vld [vmem:[%s4402 + $0x50] sm:$0x1]
      %v4573 = vld [vmem:[%s4402 + $0x54] sm:$0xf]
      %v4574 = vld [vmem:[%s4402 + $0x58] sm:$0xf]
      %v4575 = vld [vmem:[%s4402 + $0x5c] sm:$0x1]
      %v4577 = vshrl.u32 %v4552, 16
      %v4579 = vrot.slane %v4577, 4
      %v4580 = vshll.u32 %v4552, 16
      %v4582 = vrot.slane %v4580, 5
      %v4583 = vor.u32 %v4579, %v4582
      %v4584 = vrot.slane %v4583, 4
      %v4586 = vshll.u32 %v4553, 16
      %v4588 = vrot.slane %v4586, 5
      %v4589 = vsel %vm1486, %v4584, %v4588
      %v4590 = vshrl.u32 %v4553, 16
      %v4592 = vrot.slane %v4590, 4
      %v4593 = vor.u32 %v4592, %v4588
      %v4594 = vrot.slane %v4593, 4
      %v4596 = vshll.u32 %v4554, 16
      %v4598 = vrot.slane %v4596, 5
      %v4599 = vsel %vm1486, %v4594, %v4598
      %v4601 = vshrl.u32 %v4555, 16
      %v4603 = vrot.slane %v4601, 4
      %v4604 = vshll.u32 %v4555, 16
      %v4606 = vrot.slane %v4604, 5
      %v4607 = vor.u32 %v4603, %v4606
      %v4608 = vrot.slane %v4607, 4
      %v4610 = vshll.u32 %v4556, 16
      %v4612 = vrot.slane %v4610, 5
      %v4613 = vsel %vm1486, %v4608, %v4612
      %v4614 = vshrl.u32 %v4556, 16
      %v4616 = vrot.slane %v4614, 4
      %v4617 = vor.u32 %v4616, %v4612
      %v4618 = vrot.slane %v4617, 4
      %v4620 = vshll.u32 %v4557, 16
      %v4622 = vrot.slane %v4620, 5
      %v4623 = vsel %vm1486, %v4618, %v4622
      %v4625 = vshrl.u32 %v4558, 16
      %v4627 = vrot.slane %v4625, 4
      %v4628 = vshll.u32 %v4558, 16
      %v4630 = vrot.slane %v4628, 5
      %v4631 = vor.u32 %v4627, %v4630
      %v4632 = vrot.slane %v4631, 4
      %v4634 = vshll.u32 %v4559, 16
      %v4636 = vrot.slane %v4634, 5
      %v4637 = vsel %vm1486, %v4632, %v4636
      %v4638 = vshrl.u32 %v4559, 16
      %v4640 = vrot.slane %v4638, 4
      %v4641 = vor.u32 %v4640, %v4636
      %v4642 = vrot.slane %v4641, 4
      %v4644 = vshll.u32 %v4560, 16
      %v4646 = vrot.slane %v4644, 5
      %v4647 = vsel %vm1486, %v4642, %v4646
      %v4649 = vshrl.u32 %v4561, 16
      %v4651 = vrot.slane %v4649, 4
      %v4652 = vshll.u32 %v4561, 16
      %v4654 = vrot.slane %v4652, 5
      %v4655 = vor.u32 %v4651, %v4654
      %v4656 = vrot.slane %v4655, 4
      %v4658 = vshll.u32 %v4562, 16
      %v4660 = vrot.slane %v4658, 5
      %v4661 = vsel %vm1486, %v4656, %v4660
      %v4662 = vshrl.u32 %v4562, 16
      %v4664 = vrot.slane %v4662, 4
      %v4665 = vor.u32 %v4664, %v4660
      %v4666 = vrot.slane %v4665, 4
      %v4668 = vshll.u32 %v4563, 16
      %v4670 = vrot.slane %v4668, 5
      %v4671 = vsel %vm1486, %v4666, %v4670
      %v4673 = vshrl.u32 %v4564, 16
      %v4675 = vrot.slane %v4673, 4
      %v4676 = vshll.u32 %v4564, 16
      %v4678 = vrot.slane %v4676, 5
      %v4679 = vor.u32 %v4675, %v4678
      %v4680 = vrot.slane %v4679, 4
      %v4682 = vshll.u32 %v4565, 16
      %v4684 = vrot.slane %v4682, 5
      %v4685 = vsel %vm1486, %v4680, %v4684
      %v4686 = vshrl.u32 %v4565, 16
      %v4688 = vrot.slane %v4686, 4
      %v4689 = vor.u32 %v4688, %v4684
      %v4690 = vrot.slane %v4689, 4
      %v4692 = vshll.u32 %v4566, 16
      %v4694 = vrot.slane %v4692, 5
      %v4695 = vsel %vm1486, %v4690, %v4694
      %v4697 = vshrl.u32 %v4567, 16
      %v4699 = vrot.slane %v4697, 4
      %v4700 = vshll.u32 %v4567, 16
      %v4702 = vrot.slane %v4700, 5
      %v4703 = vor.u32 %v4699, %v4702
      %v4704 = vrot.slane %v4703, 4
      %v4706 = vshll.u32 %v4568, 16
      %v4708 = vrot.slane %v4706, 5
      %v4709 = vsel %vm1486, %v4704, %v4708
      %v4710 = vshrl.u32 %v4568, 16
      %v4712 = vrot.slane %v4710, 4
      %v4713 = vor.u32 %v4712, %v4708
      %v4714 = vrot.slane %v4713, 4
      %v4716 = vshll.u32 %v4569, 16
      %v4718 = vrot.slane %v4716, 5
      %v4719 = vsel %vm1486, %v4714, %v4718
      %v4721 = vshrl.u32 %v4570, 16
      %v4723 = vrot.slane %v4721, 4
      %v4724 = vshll.u32 %v4570, 16
      %v4726 = vrot.slane %v4724, 5
      %v4727 = vor.u32 %v4723, %v4726
      %v4728 = vrot.slane %v4727, 4
      %v4730 = vshll.u32 %v4571, 16
      %v4732 = vrot.slane %v4730, 5
      %v4733 = vsel %vm1486, %v4728, %v4732
      %v4734 = vshrl.u32 %v4571, 16
      %v4736 = vrot.slane %v4734, 4
      %v4737 = vor.u32 %v4736, %v4732
      %v4738 = vrot.slane %v4737, 4
      %v4740 = vshll.u32 %v4572, 16
      %v4742 = vrot.slane %v4740, 5
      %v4743 = vsel %vm1486, %v4738, %v4742
      %v4745 = vshrl.u32 %v4573, 16
      %v4747 = vrot.slane %v4745, 4
      %v4748 = vshll.u32 %v4573, 16
      %v4750 = vrot.slane %v4748, 5
      %v4751 = vor.u32 %v4747, %v4750
      %v4752 = vrot.slane %v4751, 4
      %v4754 = vshll.u32 %v4574, 16
      %v4756 = vrot.slane %v4754, 5
      %v4757 = vsel %vm1486, %v4752, %v4756
      %v4758 = vshrl.u32 %v4574, 16
      %v4760 = vrot.slane %v4758, 4
      %v4761 = vor.u32 %v4760, %v4756
      %v4762 = vrot.slane %v4761, 4
      %v4764 = vshll.u32 %v4575, 16
      %v4766 = vrot.slane %v4764, 5
      %v4767 = vsel %vm1486, %v4762, %v4766
      %v4768 = vld [vmem:[%s2466] sm:$0xf]
      %v4769 = vunpack.c.l.b16 %v4589
      %v4770 = vunpack.c.l.b16 %v4599
      %v4771 = vunpack.c.l.b16 %v4613
      %v4772 = vunpack.c.l.b16 %v4623
      %v4773 = vunpack.c.l.b16 %v4637
      %v4774 = vunpack.c.l.b16 %v4647
      %v4775 = vunpack.c.l.b16 %v4661
      %v4776 = vunpack.c.l.b16 %v4671
      %v4777 = vunpack.c.l.b16 %v4685
      %v4778 = vunpack.c.l.b16 %v4695
      %v4779 = vunpack.c.l.b16 %v4709
      %v4780 = vunpack.c.l.b16 %v4719
      %v4781 = vunpack.c.l.b16 %v4733
      %v4782 = vunpack.c.l.b16 %v4743
      %v4783 = vunpack.c.l.b16 %v4757
      %v4784 = vunpack.c.l.b16 %v4767
      %v4785 = vpack.c.b16 %v4770, %v4769
      %v4786 = vpack.c.b16 %v4772, %v4771
      %v4787 = vpack.c.b16 %v4774, %v4773
      %v4788 = vpack.c.b16 %v4776, %v4775
      %v4789 = vpack.c.b16 %v4778, %v4777
      %v4790 = vpack.c.b16 %v4780, %v4779
      %v4791 = vpack.c.b16 %v4782, %v4781
      %v4792 = vpack.c.b16 %v4784, %v4783
      %v4794 = vsel %vm1705, %v4785, 0
      %v4797 = vsel %vm1705, %v4786, 0
      %v4800 = vsel %vm1705, %v4787, 0
      %v4803 = vsel %vm1705, %v4788, 0
      %v4806 = vsel %vm1705, %v4789, 0
      %v4809 = vsel %vm1705, %v4790, 0
      %v4812 = vsel %vm1705, %v4791, 0
      %v4815 = vsel %vm1705, %v4792, 0
      %v4818 = vsel %vm1730, %v4768, 0
      %4820 = vmatpush.bf16.msra.mxu0 0
      %4821 = vmatpush.bf16.msra.mxu0 0
      %4822 = vmatpush.bf16.msra.mxu0 0
      %4823 = vmatpush.bf16.msra.mxu0 0
      %4824 = vmatpush.bf16.msra.mxu0 0
      %4825 = vmatpush.bf16.msra.mxu0 0
      %4826 = vmatpush.bf16.msra.mxu0 0
      %4827 = vmatpush.bf16.msra.mxu0 %v4818
      %4828 = vmatmul.bf16.gmra.mxu0 %v4794
      %v4829 = vpop.f32.mrf.mxu0
      %v4830 = vadd.f32 0.0, %v4829
      %v4831 = vpop.f32.mrf.mxu0
      %v4832 = vadd.f32 0.0, %v4831
      %4833 = vmatmul.bf16.gmra.mxu0 %v4797
      %v4834 = vpop.f32.mrf.mxu0
      %v4835 = vadd.f32 0.0, %v4834
      %v4836 = vpop.f32.mrf.mxu0
      %v4837 = vadd.f32 0.0, %v4836
      %4838 = vmatmul.bf16.gmra.mxu0 %v4800
      %v4839 = vpop.f32.mrf.mxu0
      %v4840 = vadd.f32 0.0, %v4839
      %v4841 = vpop.f32.mrf.mxu0
      %v4842 = vadd.f32 0.0, %v4841
      %4843 = vmatmul.bf16.gmra.mxu0 %v4803
      %v4844 = vpop.f32.mrf.mxu0
      %v4845 = vadd.f32 0.0, %v4844
      %v4846 = vpop.f32.mrf.mxu0
      %v4847 = vadd.f32 0.0, %v4846
      %4848 = vmatmul.bf16.gmra.mxu0 %v4806
      %v4849 = vpop.f32.mrf.mxu0
      %v4850 = vadd.f32 0.0, %v4849
      %v4851 = vpop.f32.mrf.mxu0
      %v4852 = vadd.f32 0.0, %v4851
      %4853 = vmatmul.bf16.gmra.mxu0 %v4809
      %v4854 = vpop.f32.mrf.mxu0
      %v4855 = vadd.f32 0.0, %v4854
      %v4856 = vpop.f32.mrf.mxu0
      %v4857 = vadd.f32 0.0, %v4856
      %4858 = vmatmul.bf16.gmra.mxu0 %v4812
      %v4859 = vpop.f32.mrf.mxu0
      %v4860 = vadd.f32 0.0, %v4859
      %v4861 = vpop.f32.mrf.mxu0
      %v4862 = vadd.f32 0.0, %v4861
      %4863 = vmatmul.bf16.gmra.mxu0 %v4815
      %v4864 = vpop.f32.mrf.mxu0
      %v4865 = vadd.f32 0.0, %v4864
      %v4866 = vpop.f32.mrf.mxu0
      %v4867 = vadd.f32 0.0, %v4866
      %4868 = vdwg.mxu0
      %v4869 = vadd.f32 %v4536, %v4830
      %v4870 = vadd.f32 %v4537, %v4832
      %v4871 = vadd.f32 %v4538, %v4835
      %v4872 = vadd.f32 %v4539, %v4837
      %v4873 = vadd.f32 %v4540, %v4840
      %v4874 = vadd.f32 %v4541, %v4842
      %v4875 = vadd.f32 %v4542, %v4845
      %v4876 = vadd.f32 %v4543, %v4847
      %v4877 = vadd.f32 %v4544, %v4850
      %v4878 = vadd.f32 %v4545, %v4852
      %v4879 = vadd.f32 %v4546, %v4855
      %v4880 = vadd.f32 %v4547, %v4857
      %v4881 = vadd.f32 %v4548, %v4860
      %v4882 = vadd.f32 %v4549, %v4862
      %v4883 = vadd.f32 %v4550, %v4865
      %v4884 = vadd.f32 %v4551, %v4867
      %v4885 = vld [vmem:[%s4402] sm:$0xe]
      %v4886 = vld [vmem:[%s4402 + $0xc] sm:$0xe]
      %v4887 = vld [vmem:[%s4402 + $0x18] sm:$0xe]
      %v4888 = vld [vmem:[%s4402 + $0x24] sm:$0xe]
      %v4889 = vld [vmem:[%s4402 + $0x30] sm:$0xe]
      %v4890 = vld [vmem:[%s4402 + $0x3c] sm:$0xe]
      %v4891 = vld [vmem:[%s4402 + $0x48] sm:$0xe]
      %v4892 = vld [vmem:[%s4402 + $0x54] sm:$0xe]
      %v4917 = vrot.slane %v4885, 5
      %v4918 = vrot.slane %v4917, 4
      %v4919 = vrot.slane %v4553, 5
      %v4920 = vsel %vm1925, %v4918, %v4919
      %v4921 = vrot.slane %v4919, 4
      %v4922 = vrot.slane %v4554, 5
      %v4923 = vsel %vm1925, %v4921, %v4922
      %v4924 = vrot.slane %v4886, 5
      %v4925 = vrot.slane %v4924, 4
      %v4926 = vrot.slane %v4556, 5
      %v4927 = vsel %vm1925, %v4925, %v4926
      %v4928 = vrot.slane %v4926, 4
      %v4929 = vrot.slane %v4557, 5
      %v4930 = vsel %vm1925, %v4928, %v4929
      %v4931 = vrot.slane %v4887, 5
      %v4932 = vrot.slane %v4931, 4
      %v4933 = vrot.slane %v4559, 5
      %v4934 = vsel %vm1925, %v4932, %v4933
      %v4935 = vrot.slane %v4933, 4
      %v4936 = vrot.slane %v4560, 5
      %v4937 = vsel %vm1925, %v4935, %v4936
      %v4938 = vrot.slane %v4888, 5
      %v4939 = vrot.slane %v4938, 4
      %v4940 = vrot.slane %v4562, 5
      %v4941 = vsel %vm1925, %v4939, %v4940
      %v4942 = vrot.slane %v4940, 4
      %v4943 = vrot.slane %v4563, 5
      %v4944 = vsel %vm1925, %v4942, %v4943
      %v4945 = vrot.slane %v4889, 5
      %v4946 = vrot.slane %v4945, 4
      %v4947 = vrot.slane %v4565, 5
      %v4948 = vsel %vm1925, %v4946, %v4947
      %v4949 = vrot.slane %v4947, 4
      %v4950 = vrot.slane %v4566, 5
      %v4951 = vsel %vm1925, %v4949, %v4950
      %v4952 = vrot.slane %v4890, 5
      %v4953 = vrot.slane %v4952, 4
      %v4954 = vrot.slane %v4568, 5
      %v4955 = vsel %vm1925, %v4953, %v4954
      %v4956 = vrot.slane %v4954, 4
      %v4957 = vrot.slane %v4569, 5
      %v4958 = vsel %vm1925, %v4956, %v4957
      %v4959 = vrot.slane %v4891, 5
      %v4960 = vrot.slane %v4959, 4
      %v4961 = vrot.slane %v4571, 5
      %v4962 = vsel %vm1925, %v4960, %v4961
      %v4963 = vrot.slane %v4961, 4
      %v4964 = vrot.slane %v4572, 5
      %v4965 = vsel %vm1925, %v4963, %v4964
      %v4966 = vrot.slane %v4892, 5
      %v4967 = vrot.slane %v4966, 4
      %v4968 = vrot.slane %v4574, 5
      %v4969 = vsel %vm1925, %v4967, %v4968
      %v4970 = vrot.slane %v4968, 4
      %v4971 = vrot.slane %v4575, 5
      %v4972 = vsel %vm1925, %v4970, %v4971
      %v4973 = vld [vmem:[%s2672] sm:$0xf]
      %v4974 = vunpack.c.l.b16 %v4920
      %v4975 = vunpack.c.l.b16 %v4923
      %v4976 = vunpack.c.l.b16 %v4927
      %v4977 = vunpack.c.l.b16 %v4930
      %v4978 = vunpack.c.l.b16 %v4934
      %v4979 = vunpack.c.l.b16 %v4937
      %v4980 = vunpack.c.l.b16 %v4941
      %v4981 = vunpack.c.l.b16 %v4944
      %v4982 = vunpack.c.l.b16 %v4948
      %v4983 = vunpack.c.l.b16 %v4951
      %v4984 = vunpack.c.l.b16 %v4955
      %v4985 = vunpack.c.l.b16 %v4958
      %v4986 = vunpack.c.l.b16 %v4962
      %v4987 = vunpack.c.l.b16 %v4965
      %v4988 = vunpack.c.l.b16 %v4969
      %v4989 = vunpack.c.l.b16 %v4972
      %v4990 = vpack.c.b16 %v4975, %v4974
      %v4991 = vpack.c.b16 %v4977, %v4976
      %v4992 = vpack.c.b16 %v4979, %v4978
      %v4993 = vpack.c.b16 %v4981, %v4980
      %v4994 = vpack.c.b16 %v4983, %v4982
      %v4995 = vpack.c.b16 %v4985, %v4984
      %v4996 = vpack.c.b16 %v4987, %v4986
      %v4997 = vpack.c.b16 %v4989, %v4988
      %v4999 = vsel %vm1705, %v4990, 0
      %v5002 = vsel %vm1705, %v4991, 0
      %v5005 = vsel %vm1705, %v4992, 0
      %v5008 = vsel %vm1705, %v4993, 0
      %v5011 = vsel %vm1705, %v4994, 0
      %v5014 = vsel %vm1705, %v4995, 0
      %v5017 = vsel %vm1705, %v4996, 0
      %v5020 = vsel %vm1705, %v4997, 0
      %v5023 = vsel %vm1730, %v4973, 0
      %5025 = vmatpush.bf16.msra.mxu0 0
      %5026 = vmatpush.bf16.msra.mxu0 0
      %5027 = vmatpush.bf16.msra.mxu0 0
      %5028 = vmatpush.bf16.msra.mxu0 0
      %5029 = vmatpush.bf16.msra.mxu0 0
      %5030 = vmatpush.bf16.msra.mxu0 0
      %5031 = vmatpush.bf16.msra.mxu0 0
      %5032 = vmatpush.bf16.msra.mxu0 %v5023
      %5033 = vmatmul.bf16.gmra.mxu0 %v4999
      %v5034 = vpop.f32.mrf.mxu0
      %v5035 = vadd.f32 0.0, %v5034
      %v5036 = vpop.f32.mrf.mxu0
      %v5037 = vadd.f32 0.0, %v5036
      %5038 = vmatmul.bf16.gmra.mxu0 %v5002
      %v5039 = vpop.f32.mrf.mxu0
      %v5040 = vadd.f32 0.0, %v5039
      %v5041 = vpop.f32.mrf.mxu0
      %v5042 = vadd.f32 0.0, %v5041
      %5043 = vmatmul.bf16.gmra.mxu0 %v5005
      %v5044 = vpop.f32.mrf.mxu0
      %v5045 = vadd.f32 0.0, %v5044
      %v5046 = vpop.f32.mrf.mxu0
      %v5047 = vadd.f32 0.0, %v5046
      %5048 = vmatmul.bf16.gmra.mxu0 %v5008
      %v5049 = vpop.f32.mrf.mxu0
      %v5050 = vadd.f32 0.0, %v5049
      %v5051 = vpop.f32.mrf.mxu0
      %v5052 = vadd.f32 0.0, %v5051
      %5053 = vmatmul.bf16.gmra.mxu0 %v5011
      %v5054 = vpop.f32.mrf.mxu0
      %v5055 = vadd.f32 0.0, %v5054
      %v5056 = vpop.f32.mrf.mxu0
      %v5057 = vadd.f32 0.0, %v5056
      %5058 = vmatmul.bf16.gmra.mxu0 %v5014
      %v5059 = vpop.f32.mrf.mxu0
      %v5060 = vadd.f32 0.0, %v5059
      %v5061 = vpop.f32.mrf.mxu0
      %v5062 = vadd.f32 0.0, %v5061
      %5063 = vmatmul.bf16.gmra.mxu0 %v5017
      %v5064 = vpop.f32.mrf.mxu0
      %v5065 = vadd.f32 0.0, %v5064
      %v5066 = vpop.f32.mrf.mxu0
      %v5067 = vadd.f32 0.0, %v5066
      %5068 = vmatmul.bf16.gmra.mxu0 %v5020
      %v5069 = vpop.f32.mrf.mxu0
      %v5070 = vadd.f32 0.0, %v5069
      %v5071 = vpop.f32.mrf.mxu0
      %v5072 = vadd.f32 0.0, %v5071
      %5073 = vdwg.mxu0
      %v5074 = vadd.f32 %v4869, %v5035
      %v5075 = vadd.f32 %v4870, %v5037
      %v5076 = vadd.f32 %v4871, %v5040
      %v5077 = vadd.f32 %v4872, %v5042
      %v5078 = vadd.f32 %v4873, %v5045
      %v5079 = vadd.f32 %v4874, %v5047
      %v5080 = vadd.f32 %v4875, %v5050
      %v5081 = vadd.f32 %v4876, %v5052
      %v5082 = vadd.f32 %v4877, %v5055
      %v5083 = vadd.f32 %v4878, %v5057
      %v5084 = vadd.f32 %v4879, %v5060
      %v5085 = vadd.f32 %v4880, %v5062
      %v5086 = vadd.f32 %v4881, %v5065
      %v5087 = vadd.f32 %v4882, %v5067
      %v5088 = vadd.f32 %v4883, %v5070
      %v5089 = vadd.f32 %v4884, %v5072
      %s5090 = scalar_lea.vmem [#allocation2], 120
      %v5091 = vld [vmem:[%s5090] sm:$0xf]
      %v5092 = vld [vmem:[%s5090 + $0x4] sm:$0xf]
      %v5093 = vld [vmem:[%s5090 + $0xc] sm:$0xf]
      %v5094 = vld [vmem:[%s5090 + $0x10] sm:$0xf]
      %v5095 = vld [vmem:[%s5090 + $0x18] sm:$0xf]
      %v5096 = vld [vmem:[%s5090 + $0x1c] sm:$0xf]
      %v5097 = vld [vmem:[%s5090 + $0x24] sm:$0xf]
      %v5098 = vld [vmem:[%s5090 + $0x28] sm:$0xf]
      %v5099 = vld [vmem:[%s5090 + $0x30] sm:$0xf]
      %v5100 = vld [vmem:[%s5090 + $0x34] sm:$0xf]
      %v5101 = vld [vmem:[%s5090 + $0x3c] sm:$0xf]
      %v5102 = vld [vmem:[%s5090 + $0x40] sm:$0xf]
      %v5103 = vld [vmem:[%s5090 + $0x48] sm:$0xf]
      %v5104 = vld [vmem:[%s5090 + $0x4c] sm:$0xf]
      %v5105 = vld [vmem:[%s5090 + $0x54] sm:$0xf]
      %v5106 = vld [vmem:[%s5090 + $0x58] sm:$0xf]
      %v5107 = vld [vmem:[%s2807] sm:$0xf]
      %v5124 = vunpack.c.l.b16 %v5091
      %v5125 = vunpack.c.l.b16 %v5092
      %v5126 = vunpack.c.l.b16 %v5093
      %v5127 = vunpack.c.l.b16 %v5094
      %v5128 = vunpack.c.l.b16 %v5095
      %v5129 = vunpack.c.l.b16 %v5096
      %v5130 = vunpack.c.l.b16 %v5097
      %v5131 = vunpack.c.l.b16 %v5098
      %v5132 = vunpack.c.l.b16 %v5099
      %v5133 = vunpack.c.l.b16 %v5100
      %v5134 = vunpack.c.l.b16 %v5101
      %v5135 = vunpack.c.l.b16 %v5102
      %v5136 = vunpack.c.l.b16 %v5103
      %v5137 = vunpack.c.l.b16 %v5104
      %v5138 = vunpack.c.l.b16 %v5105
      %v5139 = vunpack.c.l.b16 %v5106
      %v5140 = vpack.c.b16 %v5125, %v5124
      %v5141 = vpack.c.b16 %v5127, %v5126
      %v5142 = vpack.c.b16 %v5129, %v5128
      %v5143 = vpack.c.b16 %v5131, %v5130
      %v5144 = vpack.c.b16 %v5133, %v5132
      %v5145 = vpack.c.b16 %v5135, %v5134
      %v5146 = vpack.c.b16 %v5137, %v5136
      %v5147 = vpack.c.b16 %v5139, %v5138
      %v5149 = vsel %vm1705, %v5140, 0
      %v5152 = vsel %vm1705, %v5141, 0
      %v5155 = vsel %vm1705, %v5142, 0
      %v5158 = vsel %vm1705, %v5143, 0
      %v5161 = vsel %vm1705, %v5144, 0
      %v5164 = vsel %vm1705, %v5145, 0
      %v5167 = vsel %vm1705, %v5146, 0
      %v5170 = vsel %vm1705, %v5147, 0
      %v5173 = vsel %vm1730, %v5107, 0
      %5175 = vmatpush.bf16.msra.mxu0 0
      %5176 = vmatpush.bf16.msra.mxu0 0
      %5177 = vmatpush.bf16.msra.mxu0 0
      %5178 = vmatpush.bf16.msra.mxu0 0
      %5179 = vmatpush.bf16.msra.mxu0 0
      %5180 = vmatpush.bf16.msra.mxu0 0
      %5181 = vmatpush.bf16.msra.mxu0 0
      %5182 = vmatpush.bf16.msra.mxu0 %v5173
      %5183 = vmatmul.bf16.gmra.mxu0 %v5149
      %v5184 = vpop.f32.mrf.mxu0
      %v5185 = vadd.f32 0.0, %v5184
      %v5186 = vpop.f32.mrf.mxu0
      %v5187 = vadd.f32 0.0, %v5186
      %5188 = vmatmul.bf16.gmra.mxu0 %v5152
      %v5189 = vpop.f32.mrf.mxu0
      %v5190 = vadd.f32 0.0, %v5189
      %v5191 = vpop.f32.mrf.mxu0
      %v5192 = vadd.f32 0.0, %v5191
      %5193 = vmatmul.bf16.gmra.mxu0 %v5155
      %v5194 = vpop.f32.mrf.mxu0
      %v5195 = vadd.f32 0.0, %v5194
      %v5196 = vpop.f32.mrf.mxu0
      %v5197 = vadd.f32 0.0, %v5196
      %5198 = vmatmul.bf16.gmra.mxu0 %v5158
      %v5199 = vpop.f32.mrf.mxu0
      %v5200 = vadd.f32 0.0, %v5199
      %v5201 = vpop.f32.mrf.mxu0
      %v5202 = vadd.f32 0.0, %v5201
      %5203 = vmatmul.bf16.gmra.mxu0 %v5161
      %v5204 = vpop.f32.mrf.mxu0
      %v5205 = vadd.f32 0.0, %v5204
      %v5206 = vpop.f32.mrf.mxu0
      %v5207 = vadd.f32 0.0, %v5206
      %5208 = vmatmul.bf16.gmra.mxu0 %v5164
      %v5209 = vpop.f32.mrf.mxu0
      %v5210 = vadd.f32 0.0, %v5209
      %v5211 = vpop.f32.mrf.mxu0
      %v5212 = vadd.f32 0.0, %v5211
      %5213 = vmatmul.bf16.gmra.mxu0 %v5167
      %v5214 = vpop.f32.mrf.mxu0
      %v5215 = vadd.f32 0.0, %v5214
      %v5216 = vpop.f32.mrf.mxu0
      %v5217 = vadd.f32 0.0, %v5216
      %5218 = vmatmul.bf16.gmra.mxu0 %v5170
      %v5219 = vpop.f32.mrf.mxu0
      %v5220 = vadd.f32 0.0, %v5219
      %v5221 = vpop.f32.mrf.mxu0
      %v5222 = vadd.f32 0.0, %v5221
      %5223 = vdwg.mxu0
      %v5224 = vadd.f32 %v5074, %v5185
      %v5225 = vadd.f32 %v5075, %v5187
      %v5226 = vadd.f32 %v5076, %v5190
      %v5227 = vadd.f32 %v5077, %v5192
      %v5228 = vadd.f32 %v5078, %v5195
      %v5229 = vadd.f32 %v5079, %v5197
      %v5230 = vadd.f32 %v5080, %v5200
      %v5231 = vadd.f32 %v5081, %v5202
      %v5232 = vadd.f32 %v5082, %v5205
      %v5233 = vadd.f32 %v5083, %v5207
      %v5234 = vadd.f32 %v5084, %v5210
      %v5235 = vadd.f32 %v5085, %v5212
      %v5236 = vadd.f32 %v5086, %v5215
      %v5237 = vadd.f32 %v5087, %v5217
      %v5238 = vadd.f32 %v5088, %v5220
      %v5239 = vadd.f32 %v5089, %v5222
      %v5240 = vld [vmem:[%s5090] sm:$0xf]
      %v5241 = vld [vmem:[%s5090 + $0x4] sm:$0xf]
      %v5242 = vld [vmem:[%s5090 + $0x8] sm:$0x1]
      %v5243 = vld [vmem:[%s5090 + $0xc] sm:$0xf]
      %v5244 = vld [vmem:[%s5090 + $0x10] sm:$0xf]
      %v5245 = vld [vmem:[%s5090 + $0x14] sm:$0x1]
      %v5246 = vld [vmem:[%s5090 + $0x18] sm:$0xf]
      %v5247 = vld [vmem:[%s5090 + $0x1c] sm:$0xf]
      %v5248 = vld [vmem:[%s5090 + $0x20] sm:$0x1]
      %v5249 = vld [vmem:[%s5090 + $0x24] sm:$0xf]
      %v5250 = vld [vmem:[%s5090 + $0x28] sm:$0xf]
      %v5251 = vld [vmem:[%s5090 + $0x2c] sm:$0x1]
      %v5252 = vld [vmem:[%s5090 + $0x30] sm:$0xf]
      %v5253 = vld [vmem:[%s5090 + $0x34] sm:$0xf]
      %v5254 = vld [vmem:[%s5090 + $0x38] sm:$0x1]
      %v5255 = vld [vmem:[%s5090 + $0x3c] sm:$0xf]
      %v5256 = vld [vmem:[%s5090 + $0x40] sm:$0xf]
      %v5257 = vld [vmem:[%s5090 + $0x44] sm:$0x1]
      %v5258 = vld [vmem:[%s5090 + $0x48] sm:$0xf]
      %v5259 = vld [vmem:[%s5090 + $0x4c] sm:$0xf]
      %v5260 = vld [vmem:[%s5090 + $0x50] sm:$0x1]
      %v5261 = vld [vmem:[%s5090 + $0x54] sm:$0xf]
      %v5262 = vld [vmem:[%s5090 + $0x58] sm:$0xf]
      %v5263 = vld [vmem:[%s5090 + $0x5c] sm:$0x1]
      %v5265 = vshrl.u32 %v5240, 16
      %v5267 = vrot.slane %v5265, 4
      %v5268 = vshll.u32 %v5240, 16
      %v5270 = vrot.slane %v5268, 5
      %v5271 = vor.u32 %v5267, %v5270
      %v5272 = vrot.slane %v5271, 4
      %v5274 = vshll.u32 %v5241, 16
      %v5276 = vrot.slane %v5274, 5
      %v5277 = vsel %vm1486, %v5272, %v5276
      %v5278 = vshrl.u32 %v5241, 16
      %v5280 = vrot.slane %v5278, 4
      %v5281 = vor.u32 %v5280, %v5276
      %v5282 = vrot.slane %v5281, 4
      %v5284 = vshll.u32 %v5242, 16
      %v5286 = vrot.slane %v5284, 5
      %v5287 = vsel %vm1486, %v5282, %v5286
      %v5289 = vshrl.u32 %v5243, 16
      %v5291 = vrot.slane %v5289, 4
      %v5292 = vshll.u32 %v5243, 16
      %v5294 = vrot.slane %v5292, 5
      %v5295 = vor.u32 %v5291, %v5294
      %v5296 = vrot.slane %v5295, 4
      %v5298 = vshll.u32 %v5244, 16
      %v5300 = vrot.slane %v5298, 5
      %v5301 = vsel %vm1486, %v5296, %v5300
      %v5302 = vshrl.u32 %v5244, 16
      %v5304 = vrot.slane %v5302, 4
      %v5305 = vor.u32 %v5304, %v5300
      %v5306 = vrot.slane %v5305, 4
      %v5308 = vshll.u32 %v5245, 16
      %v5310 = vrot.slane %v5308, 5
      %v5311 = vsel %vm1486, %v5306, %v5310
      %v5313 = vshrl.u32 %v5246, 16
      %v5315 = vrot.slane %v5313, 4
      %v5316 = vshll.u32 %v5246, 16
      %v5318 = vrot.slane %v5316, 5
      %v5319 = vor.u32 %v5315, %v5318
      %v5320 = vrot.slane %v5319, 4
      %v5322 = vshll.u32 %v5247, 16
      %v5324 = vrot.slane %v5322, 5
      %v5325 = vsel %vm1486, %v5320, %v5324
      %v5326 = vshrl.u32 %v5247, 16
      %v5328 = vrot.slane %v5326, 4
      %v5329 = vor.u32 %v5328, %v5324
      %v5330 = vrot.slane %v5329, 4
      %v5332 = vshll.u32 %v5248, 16
      %v5334 = vrot.slane %v5332, 5
      %v5335 = vsel %vm1486, %v5330, %v5334
      %v5337 = vshrl.u32 %v5249, 16
      %v5339 = vrot.slane %v5337, 4
      %v5340 = vshll.u32 %v5249, 16
      %v5342 = vrot.slane %v5340, 5
      %v5343 = vor.u32 %v5339, %v5342
      %v5344 = vrot.slane %v5343, 4
      %v5346 = vshll.u32 %v5250, 16
      %v5348 = vrot.slane %v5346, 5
      %v5349 = vsel %vm1486, %v5344, %v5348
      %v5350 = vshrl.u32 %v5250, 16
      %v5352 = vrot.slane %v5350, 4
      %v5353 = vor.u32 %v5352, %v5348
      %v5354 = vrot.slane %v5353, 4
      %v5356 = vshll.u32 %v5251, 16
      %v5358 = vrot.slane %v5356, 5
      %v5359 = vsel %vm1486, %v5354, %v5358
      %v5361 = vshrl.u32 %v5252, 16
      %v5363 = vrot.slane %v5361, 4
      %v5364 = vshll.u32 %v5252, 16
      %v5366 = vrot.slane %v5364, 5
      %v5367 = vor.u32 %v5363, %v5366
      %v5368 = vrot.slane %v5367, 4
      %v5370 = vshll.u32 %v5253, 16
      %v5372 = vrot.slane %v5370, 5
      %v5373 = vsel %vm1486, %v5368, %v5372
      %v5374 = vshrl.u32 %v5253, 16
      %v5376 = vrot.slane %v5374, 4
      %v5377 = vor.u32 %v5376, %v5372
      %v5378 = vrot.slane %v5377, 4
      %v5380 = vshll.u32 %v5254, 16
      %v5382 = vrot.slane %v5380, 5
      %v5383 = vsel %vm1486, %v5378, %v5382
      %v5385 = vshrl.u32 %v5255, 16
      %v5387 = vrot.slane %v5385, 4
      %v5388 = vshll.u32 %v5255, 16
      %v5390 = vrot.slane %v5388, 5
      %v5391 = vor.u32 %v5387, %v5390
      %v5392 = vrot.slane %v5391, 4
      %v5394 = vshll.u32 %v5256, 16
      %v5396 = vrot.slane %v5394, 5
      %v5397 = vsel %vm1486, %v5392, %v5396
      %v5398 = vshrl.u32 %v5256, 16
      %v5400 = vrot.slane %v5398, 4
      %v5401 = vor.u32 %v5400, %v5396
      %v5402 = vrot.slane %v5401, 4
      %v5404 = vshll.u32 %v5257, 16
      %v5406 = vrot.slane %v5404, 5
      %v5407 = vsel %vm1486, %v5402, %v5406
      %v5409 = vshrl.u32 %v5258, 16
      %v5411 = vrot.slane %v5409, 4
      %v5412 = vshll.u32 %v5258, 16
      %v5414 = vrot.slane %v5412, 5
      %v5415 = vor.u32 %v5411, %v5414
      %v5416 = vrot.slane %v5415, 4
      %v5418 = vshll.u32 %v5259, 16
      %v5420 = vrot.slane %v5418, 5
      %v5421 = vsel %vm1486, %v5416, %v5420
      %v5422 = vshrl.u32 %v5259, 16
      %v5424 = vrot.slane %v5422, 4
      %v5425 = vor.u32 %v5424, %v5420
      %v5426 = vrot.slane %v5425, 4
      %v5428 = vshll.u32 %v5260, 16
      %v5430 = vrot.slane %v5428, 5
      %v5431 = vsel %vm1486, %v5426, %v5430
      %v5433 = vshrl.u32 %v5261, 16
      %v5435 = vrot.slane %v5433, 4
      %v5436 = vshll.u32 %v5261, 16
      %v5438 = vrot.slane %v5436, 5
      %v5439 = vor.u32 %v5435, %v5438
      %v5440 = vrot.slane %v5439, 4
      %v5442 = vshll.u32 %v5262, 16
      %v5444 = vrot.slane %v5442, 5
      %v5445 = vsel %vm1486, %v5440, %v5444
      %v5446 = vshrl.u32 %v5262, 16
      %v5448 = vrot.slane %v5446, 4
      %v5449 = vor.u32 %v5448, %v5444
      %v5450 = vrot.slane %v5449, 4
      %v5452 = vshll.u32 %v5263, 16
      %v5454 = vrot.slane %v5452, 5
      %v5455 = vsel %vm1486, %v5450, %v5454
      %v5456 = vld [vmem:[%s3157] sm:$0xf]
      %v5457 = vunpack.c.l.b16 %v5277
      %v5458 = vunpack.c.l.b16 %v5287
      %v5459 = vunpack.c.l.b16 %v5301
      %v5460 = vunpack.c.l.b16 %v5311
      %v5461 = vunpack.c.l.b16 %v5325
      %v5462 = vunpack.c.l.b16 %v5335
      %v5463 = vunpack.c.l.b16 %v5349
      %v5464 = vunpack.c.l.b16 %v5359
      %v5465 = vunpack.c.l.b16 %v5373
      %v5466 = vunpack.c.l.b16 %v5383
      %v5467 = vunpack.c.l.b16 %v5397
      %v5468 = vunpack.c.l.b16 %v5407
      %v5469 = vunpack.c.l.b16 %v5421
      %v5470 = vunpack.c.l.b16 %v5431
      %v5471 = vunpack.c.l.b16 %v5445
      %v5472 = vunpack.c.l.b16 %v5455
      %v5473 = vpack.c.b16 %v5458, %v5457
      %v5474 = vpack.c.b16 %v5460, %v5459
      %v5475 = vpack.c.b16 %v5462, %v5461
      %v5476 = vpack.c.b16 %v5464, %v5463
      %v5477 = vpack.c.b16 %v5466, %v5465
      %v5478 = vpack.c.b16 %v5468, %v5467
      %v5479 = vpack.c.b16 %v5470, %v5469
      %v5480 = vpack.c.b16 %v5472, %v5471
      %v5482 = vsel %vm1705, %v5473, 0
      %v5485 = vsel %vm1705, %v5474, 0
      %v5488 = vsel %vm1705, %v5475, 0
      %v5491 = vsel %vm1705, %v5476, 0
      %v5494 = vsel %vm1705, %v5477, 0
      %v5497 = vsel %vm1705, %v5478, 0
      %v5500 = vsel %vm1705, %v5479, 0
      %v5503 = vsel %vm1705, %v5480, 0
      %v5506 = vsel %vm1730, %v5456, 0
      %5508 = vmatpush.bf16.msra.mxu0 0
      %5509 = vmatpush.bf16.msra.mxu0 0
      %5510 = vmatpush.bf16.msra.mxu0 0
      %5511 = vmatpush.bf16.msra.mxu0 0
      %5512 = vmatpush.bf16.msra.mxu0 0
      %5513 = vmatpush.bf16.msra.mxu0 0
      %5514 = vmatpush.bf16.msra.mxu0 0
      %5515 = vmatpush.bf16.msra.mxu0 %v5506
      %5516 = vmatmul.bf16.gmra.mxu0 %v5482
      %v5517 = vpop.f32.mrf.mxu0
      %v5518 = vadd.f32 0.0, %v5517
      %v5519 = vpop.f32.mrf.mxu0
      %v5520 = vadd.f32 0.0, %v5519
      %5521 = vmatmul.bf16.gmra.mxu0 %v5485
      %v5522 = vpop.f32.mrf.mxu0
      %v5523 = vadd.f32 0.0, %v5522
      %v5524 = vpop.f32.mrf.mxu0
      %v5525 = vadd.f32 0.0, %v5524
      %5526 = vmatmul.bf16.gmra.mxu0 %v5488
      %v5527 = vpop.f32.mrf.mxu0
      %v5528 = vadd.f32 0.0, %v5527
      %v5529 = vpop.f32.mrf.mxu0
      %v5530 = vadd.f32 0.0, %v5529
      %5531 = vmatmul.bf16.gmra.mxu0 %v5491
      %v5532 = vpop.f32.mrf.mxu0
      %v5533 = vadd.f32 0.0, %v5532
      %v5534 = vpop.f32.mrf.mxu0
      %v5535 = vadd.f32 0.0, %v5534
      %5536 = vmatmul.bf16.gmra.mxu0 %v5494
      %v5537 = vpop.f32.mrf.mxu0
      %v5538 = vadd.f32 0.0, %v5537
      %v5539 = vpop.f32.mrf.mxu0
      %v5540 = vadd.f32 0.0, %v5539
      %5541 = vmatmul.bf16.gmra.mxu0 %v5497
      %v5542 = vpop.f32.mrf.mxu0
      %v5543 = vadd.f32 0.0, %v5542
      %v5544 = vpop.f32.mrf.mxu0
      %v5545 = vadd.f32 0.0, %v5544
      %5546 = vmatmul.bf16.gmra.mxu0 %v5500
      %v5547 = vpop.f32.mrf.mxu0
      %v5548 = vadd.f32 0.0, %v5547
      %v5549 = vpop.f32.mrf.mxu0
      %v5550 = vadd.f32 0.0, %v5549
      %5551 = vmatmul.bf16.gmra.mxu0 %v5503
      %v5552 = vpop.f32.mrf.mxu0
      %v5553 = vadd.f32 0.0, %v5552
      %v5554 = vpop.f32.mrf.mxu0
      %v5555 = vadd.f32 0.0, %v5554
      %5556 = vdwg.mxu0
      %v5557 = vadd.f32 %v5224, %v5518
      %v5558 = vadd.f32 %v5225, %v5520
      %v5559 = vadd.f32 %v5226, %v5523
      %v5560 = vadd.f32 %v5227, %v5525
      %v5561 = vadd.f32 %v5228, %v5528
      %v5562 = vadd.f32 %v5229, %v5530
      %v5563 = vadd.f32 %v5230, %v5533
      %v5564 = vadd.f32 %v5231, %v5535
      %v5565 = vadd.f32 %v5232, %v5538
      %v5566 = vadd.f32 %v5233, %v5540
      %v5567 = vadd.f32 %v5234, %v5543
      %v5568 = vadd.f32 %v5235, %v5545
      %v5569 = vadd.f32 %v5236, %v5548
      %v5570 = vadd.f32 %v5237, %v5550
      %v5571 = vadd.f32 %v5238, %v5553
      %v5572 = vadd.f32 %v5239, %v5555
      %v5573 = vld [vmem:[%s5090] sm:$0xe]
      %v5574 = vld [vmem:[%s5090 + $0xc] sm:$0xe]
      %v5575 = vld [vmem:[%s5090 + $0x18] sm:$0xe]
      %v5576 = vld [vmem:[%s5090 + $0x24] sm:$0xe]
      %v5577 = vld [vmem:[%s5090 + $0x30] sm:$0xe]
      %v5578 = vld [vmem:[%s5090 + $0x3c] sm:$0xe]
      %v5579 = vld [vmem:[%s5090 + $0x48] sm:$0xe]
      %v5580 = vld [vmem:[%s5090 + $0x54] sm:$0xe]
      %v5605 = vrot.slane %v5573, 5
      %v5606 = vrot.slane %v5605, 4
      %v5607 = vrot.slane %v5241, 5
      %v5608 = vsel %vm1925, %v5606, %v5607
      %v5609 = vrot.slane %v5607, 4
      %v5610 = vrot.slane %v5242, 5
      %v5611 = vsel %vm1925, %v5609, %v5610
      %v5612 = vrot.slane %v5574, 5
      %v5613 = vrot.slane %v5612, 4
      %v5614 = vrot.slane %v5244, 5
      %v5615 = vsel %vm1925, %v5613, %v5614
      %v5616 = vrot.slane %v5614, 4
      %v5617 = vrot.slane %v5245, 5
      %v5618 = vsel %vm1925, %v5616, %v5617
      %v5619 = vrot.slane %v5575, 5
      %v5620 = vrot.slane %v5619, 4
      %v5621 = vrot.slane %v5247, 5
      %v5622 = vsel %vm1925, %v5620, %v5621
      %v5623 = vrot.slane %v5621, 4
      %v5624 = vrot.slane %v5248, 5
      %v5625 = vsel %vm1925, %v5623, %v5624
      %v5626 = vrot.slane %v5576, 5
      %v5627 = vrot.slane %v5626, 4
      %v5628 = vrot.slane %v5250, 5
      %v5629 = vsel %vm1925, %v5627, %v5628
      %v5630 = vrot.slane %v5628, 4
      %v5631 = vrot.slane %v5251, 5
      %v5632 = vsel %vm1925, %v5630, %v5631
      %v5633 = vrot.slane %v5577, 5
      %v5634 = vrot.slane %v5633, 4
      %v5635 = vrot.slane %v5253, 5
      %v5636 = vsel %vm1925, %v5634, %v5635
      %v5637 = vrot.slane %v5635, 4
      %v5638 = vrot.slane %v5254, 5
      %v5639 = vsel %vm1925, %v5637, %v5638
      %v5640 = vrot.slane %v5578, 5
      %v5641 = vrot.slane %v5640, 4
      %v5642 = vrot.slane %v5256, 5
      %v5643 = vsel %vm1925, %v5641, %v5642
      %v5644 = vrot.slane %v5642, 4
      %v5645 = vrot.slane %v5257, 5
      %v5646 = vsel %vm1925, %v5644, %v5645
      %v5647 = vrot.slane %v5579, 5
      %v5648 = vrot.slane %v5647, 4
      %v5649 = vrot.slane %v5259, 5
      %v5650 = vsel %vm1925, %v5648, %v5649
      %v5651 = vrot.slane %v5649, 4
      %v5652 = vrot.slane %v5260, 5
      %v5653 = vsel %vm1925, %v5651, %v5652
      %v5654 = vrot.slane %v5580, 5
      %v5655 = vrot.slane %v5654, 4
      %v5656 = vrot.slane %v5262, 5
      %v5657 = vsel %vm1925, %v5655, %v5656
      %v5658 = vrot.slane %v5656, 4
      %v5659 = vrot.slane %v5263, 5
      %v5660 = vsel %vm1925, %v5658, %v5659
      %v5661 = vld [vmem:[%s3363] sm:$0xf]
      %v5662 = vunpack.c.l.b16 %v5608
      %v5663 = vunpack.c.l.b16 %v5611
      %v5664 = vunpack.c.l.b16 %v5615
      %v5665 = vunpack.c.l.b16 %v5618
      %v5666 = vunpack.c.l.b16 %v5622
      %v5667 = vunpack.c.l.b16 %v5625
      %v5668 = vunpack.c.l.b16 %v5629
      %v5669 = vunpack.c.l.b16 %v5632
      %v5670 = vunpack.c.l.b16 %v5636
      %v5671 = vunpack.c.l.b16 %v5639
      %v5672 = vunpack.c.l.b16 %v5643
      %v5673 = vunpack.c.l.b16 %v5646
      %v5674 = vunpack.c.l.b16 %v5650
      %v5675 = vunpack.c.l.b16 %v5653
      %v5676 = vunpack.c.l.b16 %v5657
      %v5677 = vunpack.c.l.b16 %v5660
      %v5678 = vpack.c.b16 %v5663, %v5662
      %v5679 = vpack.c.b16 %v5665, %v5664
      %v5680 = vpack.c.b16 %v5667, %v5666
      %v5681 = vpack.c.b16 %v5669, %v5668
      %v5682 = vpack.c.b16 %v5671, %v5670
      %v5683 = vpack.c.b16 %v5673, %v5672
      %v5684 = vpack.c.b16 %v5675, %v5674
      %v5685 = vpack.c.b16 %v5677, %v5676
      %v5687 = vsel %vm1705, %v5678, 0
      %v5690 = vsel %vm1705, %v5679, 0
      %v5693 = vsel %vm1705, %v5680, 0
      %v5696 = vsel %vm1705, %v5681, 0
      %v5699 = vsel %vm1705, %v5682, 0
      %v5702 = vsel %vm1705, %v5683, 0
      %v5705 = vsel %vm1705, %v5684, 0
      %v5708 = vsel %vm1705, %v5685, 0
      %v5711 = vsel %vm1730, %v5661, 0
      %5713 = vmatpush.bf16.msra.mxu0 0
      %5714 = vmatpush.bf16.msra.mxu0 0
      %5715 = vmatpush.bf16.msra.mxu0 0
      %5716 = vmatpush.bf16.msra.mxu0 0
      %5717 = vmatpush.bf16.msra.mxu0 0
      %5718 = vmatpush.bf16.msra.mxu0 0
      %5719 = vmatpush.bf16.msra.mxu0 0
      %5720 = vmatpush.bf16.msra.mxu0 %v5711
      %5721 = vmatmul.bf16.gmra.mxu0 %v5687
      %v5722 = vpop.f32.mrf.mxu0
      %v5723 = vadd.f32 0.0, %v5722
      %v5724 = vpop.f32.mrf.mxu0
      %v5725 = vadd.f32 0.0, %v5724
      %5726 = vmatmul.bf16.gmra.mxu0 %v5690
      %v5727 = vpop.f32.mrf.mxu0
      %v5728 = vadd.f32 0.0, %v5727
      %v5729 = vpop.f32.mrf.mxu0
      %v5730 = vadd.f32 0.0, %v5729
      %5731 = vmatmul.bf16.gmra.mxu0 %v5693
      %v5732 = vpop.f32.mrf.mxu0
      %v5733 = vadd.f32 0.0, %v5732
      %v5734 = vpop.f32.mrf.mxu0
      %v5735 = vadd.f32 0.0, %v5734
      %5736 = vmatmul.bf16.gmra.mxu0 %v5696
      %v5737 = vpop.f32.mrf.mxu0
      %v5738 = vadd.f32 0.0, %v5737
      %v5739 = vpop.f32.mrf.mxu0
      %v5740 = vadd.f32 0.0, %v5739
      %5741 = vmatmul.bf16.gmra.mxu0 %v5699
      %v5742 = vpop.f32.mrf.mxu0
      %v5743 = vadd.f32 0.0, %v5742
      %v5744 = vpop.f32.mrf.mxu0
      %v5745 = vadd.f32 0.0, %v5744
      %5746 = vmatmul.bf16.gmra.mxu0 %v5702
      %v5747 = vpop.f32.mrf.mxu0
      %v5748 = vadd.f32 0.0, %v5747
      %v5749 = vpop.f32.mrf.mxu0
      %v5750 = vadd.f32 0.0, %v5749
      %5751 = vmatmul.bf16.gmra.mxu0 %v5705
      %v5752 = vpop.f32.mrf.mxu0
      %v5753 = vadd.f32 0.0, %v5752
      %v5754 = vpop.f32.mrf.mxu0
      %v5755 = vadd.f32 0.0, %v5754
      %5756 = vmatmul.bf16.gmra.mxu0 %v5708
      %v5757 = vpop.f32.mrf.mxu0
      %v5758 = vadd.f32 0.0, %v5757
      %v5759 = vpop.f32.mrf.mxu0
      %v5760 = vadd.f32 0.0, %v5759
      %5761 = vdwg.mxu0
      %v5762 = vadd.f32 %v5557, %v5723
      %v5763 = vadd.f32 %v5558, %v5725
      %v5764 = vadd.f32 %v5559, %v5728
      %v5765 = vadd.f32 %v5560, %v5730
      %v5766 = vadd.f32 %v5561, %v5733
      %v5767 = vadd.f32 %v5562, %v5735
      %v5768 = vadd.f32 %v5563, %v5738
      %v5769 = vadd.f32 %v5564, %v5740
      %v5770 = vadd.f32 %v5565, %v5743
      %v5771 = vadd.f32 %v5566, %v5745
      %v5772 = vadd.f32 %v5567, %v5748
      %v5773 = vadd.f32 %v5568, %v5750
      %v5774 = vadd.f32 %v5569, %v5753
      %v5775 = vadd.f32 %v5570, %v5755
      %v5776 = vadd.f32 %v5571, %v5758
      %v5777 = vadd.f32 %v5572, %v5760
      %v5778 = vld [vmem:[%s3] sm:$0x1]
      %v5780 = vperm.slane %v5778, 0
      %v5782 = vmul.f32 %v5762, %v5780
      %v5783 = vmul.f32 %v5763, %v5780
      %v5784 = vmul.f32 %v5764, %v5780
      %v5785 = vmul.f32 %v5765, %v5780
      %v5786 = vmul.f32 %v5766, %v5780
      %v5787 = vmul.f32 %v5767, %v5780
      %v5788 = vmul.f32 %v5768, %v5780
      %v5789 = vmul.f32 %v5769, %v5780
      %v5790 = vmul.f32 %v5770, %v5780
      %v5791 = vmul.f32 %v5771, %v5780
      %v5792 = vmul.f32 %v5772, %v5780
      %v5793 = vmul.f32 %v5773, %v5780
      %v5794 = vmul.f32 %v5774, %v5780
      %v5795 = vmul.f32 %v5775, %v5780
      %v5796 = vmul.f32 %v5776, %v5780
      %v5797 = vmul.f32 %v5777, %v5780
      %v5798 = vld [vmem:[%s4] sm:$0x1]
      %v5800 = vperm.slane %v5798, 0
      %v5802 = vadd.f32 %v5782, %v5800
      %v5803 = vadd.f32 %v5783, %v5800
      %v5804 = vadd.f32 %v5784, %v5800
      %v5805 = vadd.f32 %v5785, %v5800
      %v5806 = vadd.f32 %v5786, %v5800
      %v5807 = vadd.f32 %v5787, %v5800
      %v5808 = vadd.f32 %v5788, %v5800
      %v5809 = vadd.f32 %v5789, %v5800
      %v5810 = vadd.f32 %v5790, %v5800
      %v5811 = vadd.f32 %v5791, %v5800
      %v5812 = vadd.f32 %v5792, %v5800
      %v5813 = vadd.f32 %v5793, %v5800
      %v5814 = vadd.f32 %v5794, %v5800
      %v5815 = vadd.f32 %v5795, %v5800
      %v5816 = vadd.f32 %v5796, %v5800
      %v5817 = vadd.f32 %v5797, %v5800
      %v5818 = vmax.f32 %v5802, 0.0
      %v5819 = vmax.f32 %v5803, 0.0
      %v5820 = vmax.f32 %v5804, 0.0
      %v5821 = vmax.f32 %v5805, 0.0
      %v5822 = vmax.f32 %v5806, 0.0
      %v5823 = vmax.f32 %v5807, 0.0
      %v5824 = vmax.f32 %v5808, 0.0
      %v5825 = vmax.f32 %v5809, 0.0
      %v5826 = vmax.f32 %v5810, 0.0
      %v5827 = vmax.f32 %v5811, 0.0
      %v5828 = vmax.f32 %v5812, 0.0
      %v5829 = vmax.f32 %v5813, 0.0
      %v5830 = vmax.f32 %v5814, 0.0
      %v5831 = vmax.f32 %v5815, 0.0
      %v5832 = vmax.f32 %v5816, 0.0
      %v5833 = vmax.f32 %v5817, 0.0
      %v5834 = vpack.c.bf16 %v5818, %v5818
      %v5835 = vpack.c.bf16 %v5819, %v5819
      %v5836 = vpack.c.bf16 %v5820, %v5820
      %v5837 = vpack.c.bf16 %v5821, %v5821
      %v5838 = vpack.c.bf16 %v5822, %v5822
      %v5839 = vpack.c.bf16 %v5823, %v5823
      %v5840 = vpack.c.bf16 %v5824, %v5824
      %v5841 = vpack.c.bf16 %v5825, %v5825
      %v5842 = vpack.c.bf16 %v5826, %v5826
      %v5843 = vpack.c.bf16 %v5827, %v5827
      %v5844 = vpack.c.bf16 %v5828, %v5828
      %v5845 = vpack.c.bf16 %v5829, %v5829
      %v5846 = vpack.c.bf16 %v5830, %v5830
      %v5847 = vpack.c.bf16 %v5831, %v5831
      %v5848 = vpack.c.bf16 %v5832, %v5832
      %v5849 = vpack.c.bf16 %v5833, %v5833
      %v5851 = vshrl.u32 %v5834, 16
      %v5853 = vrot.slane %v5851, 7
      %v5854 = vshll.u32 %v5834, 16
      %v5856 = vor.u32 %v5853, %v5854
      %v5857 = vrot.slane %v5853, 4
      %v5859 = vshrl.u32 %v5835, 16
      %v5861 = vrot.slane %v5859, 7
      %v5862 = vshll.u32 %v5835, 16
      %v5864 = vor.u32 %v5861, %v5862
      %v5865 = vsel %vm479, %v5857, %v5864
      %v5866 = vrot.slane %v5861, 4
      %v5868 = vshrl.u32 %v5836, 16
      %v5870 = vrot.slane %v5868, 7
      %v5871 = vshll.u32 %v5836, 16
      %v5873 = vor.u32 %v5870, %v5871
      %v5874 = vrot.slane %v5870, 4
      %v5876 = vshrl.u32 %v5837, 16
      %v5878 = vrot.slane %v5876, 7
      %v5879 = vshll.u32 %v5837, 16
      %v5881 = vor.u32 %v5878, %v5879
      %v5882 = vsel %vm479, %v5874, %v5881
      %v5883 = vrot.slane %v5878, 4
      %v5885 = vshrl.u32 %v5838, 16
      %v5887 = vrot.slane %v5885, 7
      %v5888 = vshll.u32 %v5838, 16
      %v5890 = vor.u32 %v5887, %v5888
      %v5891 = vrot.slane %v5887, 4
      %v5893 = vshrl.u32 %v5839, 16
      %v5895 = vrot.slane %v5893, 7
      %v5896 = vshll.u32 %v5839, 16
      %v5898 = vor.u32 %v5895, %v5896
      %v5899 = vsel %vm479, %v5891, %v5898
      %v5900 = vrot.slane %v5895, 4
      %v5902 = vshrl.u32 %v5840, 16
      %v5904 = vrot.slane %v5902, 7
      %v5905 = vshll.u32 %v5840, 16
      %v5907 = vor.u32 %v5904, %v5905
      %v5908 = vrot.slane %v5904, 4
      %v5910 = vshrl.u32 %v5841, 16
      %v5912 = vrot.slane %v5910, 7
      %v5913 = vshll.u32 %v5841, 16
      %v5915 = vor.u32 %v5912, %v5913
      %v5916 = vsel %vm479, %v5908, %v5915
      %v5917 = vrot.slane %v5912, 4
      %v5919 = vshrl.u32 %v5842, 16
      %v5921 = vrot.slane %v5919, 7
      %v5922 = vshll.u32 %v5842, 16
      %v5924 = vor.u32 %v5921, %v5922
      %v5925 = vrot.slane %v5921, 4
      %v5927 = vshrl.u32 %v5843, 16
      %v5929 = vrot.slane %v5927, 7
      %v5930 = vshll.u32 %v5843, 16
      %v5932 = vor.u32 %v5929, %v5930
      %v5933 = vsel %vm479, %v5925, %v5932
      %v5934 = vrot.slane %v5929, 4
      %v5936 = vshrl.u32 %v5844, 16
      %v5938 = vrot.slane %v5936, 7
      %v5939 = vshll.u32 %v5844, 16
      %v5941 = vor.u32 %v5938, %v5939
      %v5942 = vrot.slane %v5938, 4
      %v5944 = vshrl.u32 %v5845, 16
      %v5946 = vrot.slane %v5944, 7
      %v5947 = vshll.u32 %v5845, 16
      %v5949 = vor.u32 %v5946, %v5947
      %v5950 = vsel %vm479, %v5942, %v5949
      %v5951 = vrot.slane %v5946, 4
      %v5953 = vshrl.u32 %v5846, 16
      %v5955 = vrot.slane %v5953, 7
      %v5956 = vshll.u32 %v5846, 16
      %v5958 = vor.u32 %v5955, %v5956
      %v5959 = vrot.slane %v5955, 4
      %v5961 = vshrl.u32 %v5847, 16
      %v5963 = vrot.slane %v5961, 7
      %v5964 = vshll.u32 %v5847, 16
      %v5966 = vor.u32 %v5963, %v5964
      %v5967 = vsel %vm479, %v5959, %v5966
      %v5968 = vrot.slane %v5963, 4
      %v5970 = vshrl.u32 %v5848, 16
      %v5972 = vrot.slane %v5970, 7
      %v5973 = vshll.u32 %v5848, 16
      %v5975 = vor.u32 %v5972, %v5973
      %v5976 = vrot.slane %v5972, 4
      %v5978 = vshrl.u32 %v5849, 16
      %v5980 = vrot.slane %v5978, 7
      %v5981 = vshll.u32 %v5849, 16
      %v5983 = vor.u32 %v5980, %v5981
      %v5984 = vsel %vm479, %v5976, %v5983
      %v5985 = vrot.slane %v5980, 4
      %s6010 = scalar_lea.vmem [#allocation3], 108
      %v6011 = vld [vmem:[%s6010] sm:$0xf]
      %v6012 = vsel %vm803, %v5856, %v6011
      %6013 = vst [vmem:[%s6010] sm:$0xf] %v6012
      %6014 = vst.msk [vmem:[%s6010 + $0x4] sm:$0xf] %vm807, %v5865
      %v6015 = vld [vmem:[%s6010 + $0x8] sm:$0x1]
      %v6016 = vsel %vm810, %v5866, %v6015
      %6017 = vst [vmem:[%s6010 + $0x8] sm:$0x1] %v6016
      %v6018 = vld [vmem:[%s6010 + $0xc] sm:$0xf]
      %v6019 = vsel %vm803, %v5873, %v6018
      %6020 = vst [vmem:[%s6010 + $0xc] sm:$0xf] %v6019
      %6021 = vst.msk [vmem:[%s6010 + $0x10] sm:$0xf] %vm807, %v5882
      %v6022 = vld [vmem:[%s6010 + $0x14] sm:$0x1]
      %v6023 = vsel %vm810, %v5883, %v6022
      %6024 = vst [vmem:[%s6010 + $0x14] sm:$0x1] %v6023
      %v6025 = vld [vmem:[%s6010 + $0x18] sm:$0xf]
      %v6026 = vsel %vm803, %v5890, %v6025
      %6027 = vst [vmem:[%s6010 + $0x18] sm:$0xf] %v6026
      %6028 = vst.msk [vmem:[%s6010 + $0x1c] sm:$0xf] %vm807, %v5899
      %v6029 = vld [vmem:[%s6010 + $0x20] sm:$0x1]
      %v6030 = vsel %vm810, %v5900, %v6029
      %6031 = vst [vmem:[%s6010 + $0x20] sm:$0x1] %v6030
      %v6032 = vld [vmem:[%s6010 + $0x24] sm:$0xf]
      %v6033 = vsel %vm803, %v5907, %v6032
      %6034 = vst [vmem:[%s6010 + $0x24] sm:$0xf] %v6033
      %6035 = vst.msk [vmem:[%s6010 + $0x28] sm:$0xf] %vm807, %v5916
      %v6036 = vld [vmem:[%s6010 + $0x2c] sm:$0x1]
      %v6037 = vsel %vm810, %v5917, %v6036
      %6038 = vst [vmem:[%s6010 + $0x2c] sm:$0x1] %v6037
      %v6039 = vld [vmem:[%s6010 + $0x30] sm:$0xf]
      %v6040 = vsel %vm803, %v5924, %v6039
      %6041 = vst [vmem:[%s6010 + $0x30] sm:$0xf] %v6040
      %6042 = vst.msk [vmem:[%s6010 + $0x34] sm:$0xf] %vm807, %v5933
      %v6043 = vld [vmem:[%s6010 + $0x38] sm:$0x1]
      %v6044 = vsel %vm810, %v5934, %v6043
      %6045 = vst [vmem:[%s6010 + $0x38] sm:$0x1] %v6044
      %v6046 = vld [vmem:[%s6010 + $0x3c] sm:$0xf]
      %v6047 = vsel %vm803, %v5941, %v6046
      %6048 = vst [vmem:[%s6010 + $0x3c] sm:$0xf] %v6047
      %6049 = vst.msk [vmem:[%s6010 + $0x40] sm:$0xf] %vm807, %v5950
      %v6050 = vld [vmem:[%s6010 + $0x44] sm:$0x1]
      %v6051 = vsel %vm810, %v5951, %v6050
      %6052 = vst [vmem:[%s6010 + $0x44] sm:$0x1] %v6051
      %v6053 = vld [vmem:[%s6010 + $0x48] sm:$0xf]
      %v6054 = vsel %vm803, %v5958, %v6053
      %6055 = vst [vmem:[%s6010 + $0x48] sm:$0xf] %v6054
      %6056 = vst.msk [vmem:[%s6010 + $0x4c] sm:$0xf] %vm807, %v5967
      %v6057 = vld [vmem:[%s6010 + $0x50] sm:$0x1]
      %v6058 = vsel %vm810, %v5968, %v6057
      %6059 = vst [vmem:[%s6010 + $0x50] sm:$0x1] %v6058
      %v6060 = vld [vmem:[%s6010 + $0x54] sm:$0xf]
      %v6061 = vsel %vm803, %v5975, %v6060
      %6062 = vst [vmem:[%s6010 + $0x54] sm:$0xf] %v6061
      %6063 = vst.msk [vmem:[%s6010 + $0x58] sm:$0xf] %vm807, %v5984
      %v6064 = vld [vmem:[%s6010 + $0x5c] sm:$0x1]
      %v6065 = vsel %vm810, %v5985, %v6064
      %6066 = vst [vmem:[%s6010 + $0x5c] sm:$0x1] %v6065
      %v6067 = vld [vmem:[#allocation3] sm:$0xf]
      %v6068 = vld [vmem:[#allocation3 + $0x4] sm:$0xf]
      %v6069 = vld [vmem:[#allocation3 + $0xc] sm:$0xf]
      %v6070 = vld [vmem:[#allocation3 + $0x10] sm:$0xf]
      %v6071 = vld [vmem:[#allocation3 + $0x18] sm:$0xf]
      %v6072 = vld [vmem:[#allocation3 + $0x1c] sm:$0xf]
      %v6073 = vld [vmem:[#allocation3 + $0x24] sm:$0xf]
      %v6074 = vld [vmem:[#allocation3 + $0x28] sm:$0xf]
      %v6075 = vld [vmem:[#allocation3 + $0x30] sm:$0xf]
      %v6076 = vld [vmem:[#allocation3 + $0x34] sm:$0xf]
      %v6077 = vld [vmem:[#allocation3 + $0x3c] sm:$0xf]
      %v6078 = vld [vmem:[#allocation3 + $0x40] sm:$0xf]
      %v6079 = vld [vmem:[#allocation3 + $0x48] sm:$0xf]
      %v6080 = vld [vmem:[#allocation3 + $0x4c] sm:$0xf]
      %v6081 = vld [vmem:[#allocation3 + $0x54] sm:$0xf]
      %v6082 = vld [vmem:[#allocation3 + $0x58] sm:$0xf]
      %v6083 = vld [vmem:[%s5] sm:$0x3]
      %v6084 = vld [vmem:[#allocation3 + $0x8] sm:$0x1]
      %v6085 = vld [vmem:[#allocation3 + $0x14] sm:$0x1]
      %v6086 = vld [vmem:[#allocation3 + $0x20] sm:$0x1]
      %v6087 = vld [vmem:[#allocation3 + $0x2c] sm:$0x1]
      %v6088 = vld [vmem:[#allocation3 + $0x38] sm:$0x1]
      %v6089 = vld [vmem:[#allocation3 + $0x44] sm:$0x1]
      %v6090 = vld [vmem:[#allocation3 + $0x50] sm:$0x1]
      %v6091 = vld [vmem:[#allocation3 + $0x5c] sm:$0x1]
      %v6093 = vshrl.u32 %v6067, 16
      %v6095 = vrot.slane %v6093, 4
      %v6096 = vshll.u32 %v6067, 16
      %v6098 = vrot.slane %v6096, 5
      %v6099 = vor.u32 %v6095, %v6098
      %v6100 = vrot.slane %v6099, 4
      %v6102 = vshll.u32 %v6068, 16
      %v6104 = vrot.slane %v6102, 5
      %v6105 = vsel %vm1486, %v6100, %v6104
      %v6106 = vshrl.u32 %v6068, 16
      %v6108 = vrot.slane %v6106, 4
      %v6109 = vor.u32 %v6108, %v6104
      %v6110 = vrot.slane %v6109, 4
      %v6112 = vshll.u32 %v6084, 16
      %v6114 = vrot.slane %v6112, 5
      %v6115 = vsel %vm1486, %v6110, %v6114
      %v6117 = vshrl.u32 %v6069, 16
      %v6119 = vrot.slane %v6117, 4
      %v6120 = vshll.u32 %v6069, 16
      %v6122 = vrot.slane %v6120, 5
      %v6123 = vor.u32 %v6119, %v6122
      %v6124 = vrot.slane %v6123, 4
      %v6126 = vshll.u32 %v6070, 16
      %v6128 = vrot.slane %v6126, 5
      %v6129 = vsel %vm1486, %v6124, %v6128
      %v6130 = vshrl.u32 %v6070, 16
      %v6132 = vrot.slane %v6130, 4
      %v6133 = vor.u32 %v6132, %v6128
      %v6134 = vrot.slane %v6133, 4
      %v6136 = vshll.u32 %v6085, 16
      %v6138 = vrot.slane %v6136, 5
      %v6139 = vsel %vm1486, %v6134, %v6138
      %v6141 = vshrl.u32 %v6071, 16
      %v6143 = vrot.slane %v6141, 4
      %v6144 = vshll.u32 %v6071, 16
      %v6146 = vrot.slane %v6144, 5
      %v6147 = vor.u32 %v6143, %v6146
      %v6148 = vrot.slane %v6147, 4
      %v6150 = vshll.u32 %v6072, 16
      %v6152 = vrot.slane %v6150, 5
      %v6153 = vsel %vm1486, %v6148, %v6152
      %v6154 = vshrl.u32 %v6072, 16
      %v6156 = vrot.slane %v6154, 4
      %v6157 = vor.u32 %v6156, %v6152
      %v6158 = vrot.slane %v6157, 4
      %v6160 = vshll.u32 %v6086, 16
      %v6162 = vrot.slane %v6160, 5
      %v6163 = vsel %vm1486, %v6158, %v6162
      %v6165 = vshrl.u32 %v6073, 16
      %v6167 = vrot.slane %v6165, 4
      %v6168 = vshll.u32 %v6073, 16
      %v6170 = vrot.slane %v6168, 5
      %v6171 = vor.u32 %v6167, %v6170
      %v6172 = vrot.slane %v6171, 4
      %v6174 = vshll.u32 %v6074, 16
      %v6176 = vrot.slane %v6174, 5
      %v6177 = vsel %vm1486, %v6172, %v6176
      %v6178 = vshrl.u32 %v6074, 16
      %v6180 = vrot.slane %v6178, 4
      %v6181 = vor.u32 %v6180, %v6176
      %v6182 = vrot.slane %v6181, 4
      %v6184 = vshll.u32 %v6087, 16
      %v6186 = vrot.slane %v6184, 5
      %v6187 = vsel %vm1486, %v6182, %v6186
      %v6189 = vshrl.u32 %v6075, 16
      %v6191 = vrot.slane %v6189, 4
      %v6192 = vshll.u32 %v6075, 16
      %v6194 = vrot.slane %v6192, 5
      %v6195 = vor.u32 %v6191, %v6194
      %v6196 = vrot.slane %v6195, 4
      %v6198 = vshll.u32 %v6076, 16
      %v6200 = vrot.slane %v6198, 5
      %v6201 = vsel %vm1486, %v6196, %v6200
      %v6202 = vshrl.u32 %v6076, 16
      %v6204 = vrot.slane %v6202, 4
      %v6205 = vor.u32 %v6204, %v6200
      %v6206 = vrot.slane %v6205, 4
      %v6208 = vshll.u32 %v6088, 16
      %v6210 = vrot.slane %v6208, 5
      %v6211 = vsel %vm1486, %v6206, %v6210
      %v6213 = vshrl.u32 %v6077, 16
      %v6215 = vrot.slane %v6213, 4
      %v6216 = vshll.u32 %v6077, 16
      %v6218 = vrot.slane %v6216, 5
      %v6219 = vor.u32 %v6215, %v6218
      %v6220 = vrot.slane %v6219, 4
      %v6222 = vshll.u32 %v6078, 16
      %v6224 = vrot.slane %v6222, 5
      %v6225 = vsel %vm1486, %v6220, %v6224
      %v6226 = vshrl.u32 %v6078, 16
      %v6228 = vrot.slane %v6226, 4
      %v6229 = vor.u32 %v6228, %v6224
      %v6230 = vrot.slane %v6229, 4
      %v6232 = vshll.u32 %v6089, 16
      %v6234 = vrot.slane %v6232, 5
      %v6235 = vsel %vm1486, %v6230, %v6234
      %v6237 = vshrl.u32 %v6079, 16
      %v6239 = vrot.slane %v6237, 4
      %v6240 = vshll.u32 %v6079, 16
      %v6242 = vrot.slane %v6240, 5
      %v6243 = vor.u32 %v6239, %v6242
      %v6244 = vrot.slane %v6243, 4
      %v6246 = vshll.u32 %v6080, 16
      %v6248 = vrot.slane %v6246, 5
      %v6249 = vsel %vm1486, %v6244, %v6248
      %v6250 = vshrl.u32 %v6080, 16
      %v6252 = vrot.slane %v6250, 4
      %v6253 = vor.u32 %v6252, %v6248
      %v6254 = vrot.slane %v6253, 4
      %v6256 = vshll.u32 %v6090, 16
      %v6258 = vrot.slane %v6256, 5
      %v6259 = vsel %vm1486, %v6254, %v6258
      %v6261 = vshrl.u32 %v6081, 16
      %v6263 = vrot.slane %v6261, 4
      %v6264 = vshll.u32 %v6081, 16
      %v6266 = vrot.slane %v6264, 5
      %v6267 = vor.u32 %v6263, %v6266
      %v6268 = vrot.slane %v6267, 4
      %v6270 = vshll.u32 %v6082, 16
      %v6272 = vrot.slane %v6270, 5
      %v6273 = vsel %vm1486, %v6268, %v6272
      %v6274 = vshrl.u32 %v6082, 16
      %v6276 = vrot.slane %v6274, 4
      %v6277 = vor.u32 %v6276, %v6272
      %v6278 = vrot.slane %v6277, 4
      %v6280 = vshll.u32 %v6091, 16
      %v6282 = vrot.slane %v6280, 5
      %v6283 = vsel %vm1486, %v6278, %v6282
      %s6284 = scalar_lea.vmem %s5, 2
      %v6285 = vld [vmem:[%s6284] sm:$0x3]
      %v6286 = vunpack.c.l.b16 %v6105
      %v6287 = vunpack.c.l.b16 %v6115
      %v6288 = vunpack.c.l.b16 %v6129
      %v6289 = vunpack.c.l.b16 %v6139
      %v6290 = vunpack.c.l.b16 %v6153
      %v6291 = vunpack.c.l.b16 %v6163
      %v6292 = vunpack.c.l.b16 %v6177
      %v6293 = vunpack.c.l.b16 %v6187
      %v6294 = vunpack.c.l.b16 %v6201
      %v6295 = vunpack.c.l.b16 %v6211
      %v6296 = vunpack.c.l.b16 %v6225
      %v6297 = vunpack.c.l.b16 %v6235
      %v6298 = vunpack.c.l.b16 %v6249
      %v6299 = vunpack.c.l.b16 %v6259
      %v6300 = vunpack.c.l.b16 %v6273
      %v6301 = vunpack.c.l.b16 %v6283
      %v6302 = vpack.c.b16 %v6287, %v6286
      %v6303 = vpack.c.b16 %v6289, %v6288
      %v6304 = vpack.c.b16 %v6291, %v6290
      %v6305 = vpack.c.b16 %v6293, %v6292
      %v6306 = vpack.c.b16 %v6295, %v6294
      %v6307 = vpack.c.b16 %v6297, %v6296
      %v6308 = vpack.c.b16 %v6299, %v6298
      %v6309 = vpack.c.b16 %v6301, %v6300
      %vm6310 = vcmask 31744
      %v6312 = vsel %vm6310, %v6302, 0
      %v6315 = vsel %vm6310, %v6303, 0
      %v6318 = vsel %vm6310, %v6304, 0
      %v6321 = vsel %vm6310, %v6305, 0
      %v6324 = vsel %vm6310, %v6306, 0
      %v6327 = vsel %vm6310, %v6307, 0
      %v6330 = vsel %vm6310, %v6308, 0
      %v6333 = vsel %vm6310, %v6309, 0
      %vm6335 = vcmask 1041408
      %v6337 = vsel %vm6335, %v6285, 0
      %6339 = vmatpush.bf16.msra.mxu0 0
      %6340 = vmatpush.bf16.msra.mxu0 0
      %6341 = vmatpush.bf16.msra.mxu0 0
      %6342 = vmatpush.bf16.msra.mxu0 0
      %6343 = vmatpush.bf16.msra.mxu0 0
      %6344 = vmatpush.bf16.msra.mxu0 0
      %6345 = vmatpush.bf16.msra.mxu0 0
      %6346 = vmatpush.bf16.msra.mxu0 %v6337
      %6347 = vmatmul.bf16.gmra.mxu0 %v6312
      %v6348 = vpop.f32.mrf.mxu0
      %v6349 = vadd.f32 0.0, %v6348
      %v6350 = vpop.f32.mrf.mxu0
      %v6351 = vadd.f32 0.0, %v6350
      %6352 = vmatmul.bf16.gmra.mxu0 %v6315
      %v6353 = vpop.f32.mrf.mxu0
      %v6354 = vadd.f32 0.0, %v6353
      %v6355 = vpop.f32.mrf.mxu0
      %v6356 = vadd.f32 0.0, %v6355
      %6357 = vmatmul.bf16.gmra.mxu0 %v6318
      %v6358 = vpop.f32.mrf.mxu0
      %v6359 = vadd.f32 0.0, %v6358
      %v6360 = vpop.f32.mrf.mxu0
      %v6361 = vadd.f32 0.0, %v6360
      %6362 = vmatmul.bf16.gmra.mxu0 %v6321
      %v6363 = vpop.f32.mrf.mxu0
      %v6364 = vadd.f32 0.0, %v6363
      %v6365 = vpop.f32.mrf.mxu0
      %v6366 = vadd.f32 0.0, %v6365
      %6367 = vmatmul.bf16.gmra.mxu0 %v6324
      %v6368 = vpop.f32.mrf.mxu0
      %v6369 = vadd.f32 0.0, %v6368
      %v6370 = vpop.f32.mrf.mxu0
      %v6371 = vadd.f32 0.0, %v6370
      %6372 = vmatmul.bf16.gmra.mxu0 %v6327
      %v6373 = vpop.f32.mrf.mxu0
      %v6374 = vadd.f32 0.0, %v6373
      %v6375 = vpop.f32.mrf.mxu0
      %v6376 = vadd.f32 0.0, %v6375
      %6377 = vmatmul.bf16.gmra.mxu0 %v6330
      %v6378 = vpop.f32.mrf.mxu0
      %v6379 = vadd.f32 0.0, %v6378
      %v6380 = vpop.f32.mrf.mxu0
      %v6381 = vadd.f32 0.0, %v6380
      %6382 = vmatmul.bf16.gmra.mxu0 %v6333
      %v6383 = vpop.f32.mrf.mxu0
      %v6384 = vadd.f32 0.0, %v6383
      %v6385 = vpop.f32.mrf.mxu0
      %v6386 = vadd.f32 0.0, %v6385
      %6387 = vdwg.mxu0
      %v6404 = vunpack.c.l.b16 %v6067
      %v6405 = vunpack.c.l.b16 %v6068
      %v6406 = vunpack.c.l.b16 %v6069
      %v6407 = vunpack.c.l.b16 %v6070
      %v6408 = vunpack.c.l.b16 %v6071
      %v6409 = vunpack.c.l.b16 %v6072
      %v6410 = vunpack.c.l.b16 %v6073
      %v6411 = vunpack.c.l.b16 %v6074
      %v6412 = vunpack.c.l.b16 %v6075
      %v6413 = vunpack.c.l.b16 %v6076
      %v6414 = vunpack.c.l.b16 %v6077
      %v6415 = vunpack.c.l.b16 %v6078
      %v6416 = vunpack.c.l.b16 %v6079
      %v6417 = vunpack.c.l.b16 %v6080
      %v6418 = vunpack.c.l.b16 %v6081
      %v6419 = vunpack.c.l.b16 %v6082
      %v6420 = vpack.c.b16 %v6405, %v6404
      %v6421 = vpack.c.b16 %v6407, %v6406
      %v6422 = vpack.c.b16 %v6409, %v6408
      %v6423 = vpack.c.b16 %v6411, %v6410
      %v6424 = vpack.c.b16 %v6413, %v6412
      %v6425 = vpack.c.b16 %v6415, %v6414
      %v6426 = vpack.c.b16 %v6417, %v6416
      %v6427 = vpack.c.b16 %v6419, %v6418
      %v6429 = vsel %vm6310, %v6420, 0
      %v6432 = vsel %vm6310, %v6421, 0
      %v6435 = vsel %vm6310, %v6422, 0
      %v6438 = vsel %vm6310, %v6423, 0
      %v6441 = vsel %vm6310, %v6424, 0
      %v6444 = vsel %vm6310, %v6425, 0
      %v6447 = vsel %vm6310, %v6426, 0
      %v6450 = vsel %vm6310, %v6427, 0
      %v6453 = vsel %vm6335, %v6083, 0
      %6455 = vmatpush.bf16.msra.mxu0 0
      %6456 = vmatpush.bf16.msra.mxu0 0
      %6457 = vmatpush.bf16.msra.mxu0 0
      %6458 = vmatpush.bf16.msra.mxu0 0
      %6459 = vmatpush.bf16.msra.mxu0 0
      %6460 = vmatpush.bf16.msra.mxu0 0
      %6461 = vmatpush.bf16.msra.mxu0 0
      %6462 = vmatpush.bf16.msra.mxu0 %v6453
      %6463 = vmatmul.bf16.gmra.mxu0 %v6429
      %v6464 = vpop.f32.mrf.mxu0
      %v6465 = vadd.f32 %v6349, %v6464
      %v6466 = vpop.f32.mrf.mxu0
      %v6467 = vadd.f32 %v6351, %v6466
      %6468 = vmatmul.bf16.gmra.mxu0 %v6432
      %v6469 = vpop.f32.mrf.mxu0
      %v6470 = vadd.f32 %v6354, %v6469
      %v6471 = vpop.f32.mrf.mxu0
      %v6472 = vadd.f32 %v6356, %v6471
      %6473 = vmatmul.bf16.gmra.mxu0 %v6435
      %v6474 = vpop.f32.mrf.mxu0
      %v6475 = vadd.f32 %v6359, %v6474
      %v6476 = vpop.f32.mrf.mxu0
      %v6477 = vadd.f32 %v6361, %v6476
      %6478 = vmatmul.bf16.gmra.mxu0 %v6438
      %v6479 = vpop.f32.mrf.mxu0
      %v6480 = vadd.f32 %v6364, %v6479
      %v6481 = vpop.f32.mrf.mxu0
      %v6482 = vadd.f32 %v6366, %v6481
      %6483 = vmatmul.bf16.gmra.mxu0 %v6441
      %v6484 = vpop.f32.mrf.mxu0
      %v6485 = vadd.f32 %v6369, %v6484
      %v6486 = vpop.f32.mrf.mxu0
      %v6487 = vadd.f32 %v6371, %v6486
      %6488 = vmatmul.bf16.gmra.mxu0 %v6444
      %v6489 = vpop.f32.mrf.mxu0
      %v6490 = vadd.f32 %v6374, %v6489
      %v6491 = vpop.f32.mrf.mxu0
      %v6492 = vadd.f32 %v6376, %v6491
      %6493 = vmatmul.bf16.gmra.mxu0 %v6447
      %v6494 = vpop.f32.mrf.mxu0
      %v6495 = vadd.f32 %v6379, %v6494
      %v6496 = vpop.f32.mrf.mxu0
      %v6497 = vadd.f32 %v6381, %v6496
      %6498 = vmatmul.bf16.gmra.mxu0 %v6450
      %v6499 = vpop.f32.mrf.mxu0
      %v6500 = vadd.f32 %v6384, %v6499
      %v6501 = vpop.f32.mrf.mxu0
      %v6502 = vadd.f32 %v6386, %v6501
      %6503 = vdwg.mxu0
      %v6504 = vld [vmem:[#allocation3] sm:$0xe]
      %v6505 = vld [vmem:[#allocation3 + $0xc] sm:$0xe]
      %v6506 = vld [vmem:[#allocation3 + $0x18] sm:$0xe]
      %v6507 = vld [vmem:[#allocation3 + $0x24] sm:$0xe]
      %v6508 = vld [vmem:[#allocation3 + $0x30] sm:$0xe]
      %v6509 = vld [vmem:[#allocation3 + $0x3c] sm:$0xe]
      %v6510 = vld [vmem:[#allocation3 + $0x48] sm:$0xe]
      %v6511 = vld [vmem:[#allocation3 + $0x54] sm:$0xe]
      %v6528 = vrot.slane %v6504, 5
      %v6529 = vrot.slane %v6528, 4
      %v6530 = vrot.slane %v6068, 5
      %v6531 = vsel %vm1925, %v6529, %v6530
      %v6532 = vrot.slane %v6530, 4
      %v6533 = vrot.slane %v6084, 5
      %v6534 = vsel %vm1925, %v6532, %v6533
      %v6535 = vrot.slane %v6505, 5
      %v6536 = vrot.slane %v6535, 4
      %v6537 = vrot.slane %v6070, 5
      %v6538 = vsel %vm1925, %v6536, %v6537
      %v6539 = vrot.slane %v6537, 4
      %v6540 = vrot.slane %v6085, 5
      %v6541 = vsel %vm1925, %v6539, %v6540
      %v6542 = vrot.slane %v6506, 5
      %v6543 = vrot.slane %v6542, 4
      %v6544 = vrot.slane %v6072, 5
      %v6545 = vsel %vm1925, %v6543, %v6544
      %v6546 = vrot.slane %v6544, 4
      %v6547 = vrot.slane %v6086, 5
      %v6548 = vsel %vm1925, %v6546, %v6547
      %v6549 = vrot.slane %v6507, 5
      %v6550 = vrot.slane %v6549, 4
      %v6551 = vrot.slane %v6074, 5
      %v6552 = vsel %vm1925, %v6550, %v6551
      %v6553 = vrot.slane %v6551, 4
      %v6554 = vrot.slane %v6087, 5
      %v6555 = vsel %vm1925, %v6553, %v6554
      %v6556 = vrot.slane %v6508, 5
      %v6557 = vrot.slane %v6556, 4
      %v6558 = vrot.slane %v6076, 5
      %v6559 = vsel %vm1925, %v6557, %v6558
      %v6560 = vrot.slane %v6558, 4
      %v6561 = vrot.slane %v6088, 5
      %v6562 = vsel %vm1925, %v6560, %v6561
      %v6563 = vrot.slane %v6509, 5
      %v6564 = vrot.slane %v6563, 4
      %v6565 = vrot.slane %v6078, 5
      %v6566 = vsel %vm1925, %v6564, %v6565
      %v6567 = vrot.slane %v6565, 4
      %v6568 = vrot.slane %v6089, 5
      %v6569 = vsel %vm1925, %v6567, %v6568
      %v6570 = vrot.slane %v6510, 5
      %v6571 = vrot.slane %v6570, 4
      %v6572 = vrot.slane %v6080, 5
      %v6573 = vsel %vm1925, %v6571, %v6572
      %v6574 = vrot.slane %v6572, 4
      %v6575 = vrot.slane %v6090, 5
      %v6576 = vsel %vm1925, %v6574, %v6575
      %v6577 = vrot.slane %v6511, 5
      %v6578 = vrot.slane %v6577, 4
      %v6579 = vrot.slane %v6082, 5
      %v6580 = vsel %vm1925, %v6578, %v6579
      %v6581 = vrot.slane %v6579, 4
      %v6582 = vrot.slane %v6091, 5
      %v6583 = vsel %vm1925, %v6581, %v6582
      %s6584 = scalar_lea.vmem %s5, 4
      %v6585 = vld [vmem:[%s6584] sm:$0x3]
      %v6586 = vunpack.c.l.b16 %v6531
      %v6587 = vunpack.c.l.b16 %v6534
      %v6588 = vunpack.c.l.b16 %v6538
      %v6589 = vunpack.c.l.b16 %v6541
      %v6590 = vunpack.c.l.b16 %v6545
      %v6591 = vunpack.c.l.b16 %v6548
      %v6592 = vunpack.c.l.b16 %v6552
      %v6593 = vunpack.c.l.b16 %v6555
      %v6594 = vunpack.c.l.b16 %v6559
      %v6595 = vunpack.c.l.b16 %v6562
      %v6596 = vunpack.c.l.b16 %v6566
      %v6597 = vunpack.c.l.b16 %v6569
      %v6598 = vunpack.c.l.b16 %v6573
      %v6599 = vunpack.c.l.b16 %v6576
      %v6600 = vunpack.c.l.b16 %v6580
      %v6601 = vunpack.c.l.b16 %v6583
      %v6602 = vpack.c.b16 %v6587, %v6586
      %v6603 = vpack.c.b16 %v6589, %v6588
      %v6604 = vpack.c.b16 %v6591, %v6590
      %v6605 = vpack.c.b16 %v6593, %v6592
      %v6606 = vpack.c.b16 %v6595, %v6594
      %v6607 = vpack.c.b16 %v6597, %v6596
      %v6608 = vpack.c.b16 %v6599, %v6598
      %v6609 = vpack.c.b16 %v6601, %v6600
      %v6611 = vsel %vm6310, %v6602, 0
      %v6614 = vsel %vm6310, %v6603, 0
      %v6617 = vsel %vm6310, %v6604, 0
      %v6620 = vsel %vm6310, %v6605, 0
      %v6623 = vsel %vm6310, %v6606, 0
      %v6626 = vsel %vm6310, %v6607, 0
      %v6629 = vsel %vm6310, %v6608, 0
      %v6632 = vsel %vm6310, %v6609, 0
      %v6635 = vsel %vm6335, %v6585, 0
      %6637 = vmatpush.bf16.msra.mxu0 0
      %6638 = vmatpush.bf16.msra.mxu0 0
      %6639 = vmatpush.bf16.msra.mxu0 0
      %6640 = vmatpush.bf16.msra.mxu0 0
      %6641 = vmatpush.bf16.msra.mxu0 0
      %6642 = vmatpush.bf16.msra.mxu0 0
      %6643 = vmatpush.bf16.msra.mxu0 0
      %6644 = vmatpush.bf16.msra.mxu0 %v6635
      %6645 = vmatmul.bf16.gmra.mxu0 %v6611
      %v6646 = vpop.f32.mrf.mxu0
      %v6647 = vadd.f32 0.0, %v6646
      %v6648 = vpop.f32.mrf.mxu0
      %v6649 = vadd.f32 0.0, %v6648
      %6650 = vmatmul.bf16.gmra.mxu0 %v6614
      %v6651 = vpop.f32.mrf.mxu0
      %v6652 = vadd.f32 0.0, %v6651
      %v6653 = vpop.f32.mrf.mxu0
      %v6654 = vadd.f32 0.0, %v6653
      %6655 = vmatmul.bf16.gmra.mxu0 %v6617
      %v6656 = vpop.f32.mrf.mxu0
      %v6657 = vadd.f32 0.0, %v6656
      %v6658 = vpop.f32.mrf.mxu0
      %v6659 = vadd.f32 0.0, %v6658
      %6660 = vmatmul.bf16.gmra.mxu0 %v6620
      %v6661 = vpop.f32.mrf.mxu0
      %v6662 = vadd.f32 0.0, %v6661
      %v6663 = vpop.f32.mrf.mxu0
      %v6664 = vadd.f32 0.0, %v6663
      %6665 = vmatmul.bf16.gmra.mxu0 %v6623
      %v6666 = vpop.f32.mrf.mxu0
      %v6667 = vadd.f32 0.0, %v6666
      %v6668 = vpop.f32.mrf.mxu0
      %v6669 = vadd.f32 0.0, %v6668
      %6670 = vmatmul.bf16.gmra.mxu0 %v6626
      %v6671 = vpop.f32.mrf.mxu0
      %v6672 = vadd.f32 0.0, %v6671
      %v6673 = vpop.f32.mrf.mxu0
      %v6674 = vadd.f32 0.0, %v6673
      %6675 = vmatmul.bf16.gmra.mxu0 %v6629
      %v6676 = vpop.f32.mrf.mxu0
      %v6677 = vadd.f32 0.0, %v6676
      %v6678 = vpop.f32.mrf.mxu0
      %v6679 = vadd.f32 0.0, %v6678
      %6680 = vmatmul.bf16.gmra.mxu0 %v6632
      %v6681 = vpop.f32.mrf.mxu0
      %v6682 = vadd.f32 0.0, %v6681
      %v6683 = vpop.f32.mrf.mxu0
      %v6684 = vadd.f32 0.0, %v6683
      %6685 = vdwg.mxu0
      %v6686 = vadd.f32 %v6465, %v6647
      %v6687 = vadd.f32 %v6467, %v6649
      %v6688 = vadd.f32 %v6470, %v6652
      %v6689 = vadd.f32 %v6472, %v6654
      %v6690 = vadd.f32 %v6475, %v6657
      %v6691 = vadd.f32 %v6477, %v6659
      %v6692 = vadd.f32 %v6480, %v6662
      %v6693 = vadd.f32 %v6482, %v6664
      %v6694 = vadd.f32 %v6485, %v6667
      %v6695 = vadd.f32 %v6487, %v6669
      %v6696 = vadd.f32 %v6490, %v6672
      %v6697 = vadd.f32 %v6492, %v6674
      %v6698 = vadd.f32 %v6495, %v6677
      %v6699 = vadd.f32 %v6497, %v6679
      %v6700 = vadd.f32 %v6500, %v6682
      %v6701 = vadd.f32 %v6502, %v6684
      %v6702 = vld [vmem:[%s3713] sm:$0xf]
      %v6703 = vld [vmem:[%s3713 + $0x4] sm:$0xf]
      %v6704 = vld [vmem:[%s3713 + $0xc] sm:$0xf]
      %v6705 = vld [vmem:[%s3713 + $0x10] sm:$0xf]
      %v6706 = vld [vmem:[%s3713 + $0x18] sm:$0xf]
      %v6707 = vld [vmem:[%s3713 + $0x1c] sm:$0xf]
      %v6708 = vld [vmem:[%s3713 + $0x24] sm:$0xf]
      %v6709 = vld [vmem:[%s3713 + $0x28] sm:$0xf]
      %v6710 = vld [vmem:[%s3713 + $0x30] sm:$0xf]
      %v6711 = vld [vmem:[%s3713 + $0x34] sm:$0xf]
      %v6712 = vld [vmem:[%s3713 + $0x3c] sm:$0xf]
      %v6713 = vld [vmem:[%s3713 + $0x40] sm:$0xf]
      %v6714 = vld [vmem:[%s3713 + $0x48] sm:$0xf]
      %v6715 = vld [vmem:[%s3713 + $0x4c] sm:$0xf]
      %v6716 = vld [vmem:[%s3713 + $0x54] sm:$0xf]
      %v6717 = vld [vmem:[%s3713 + $0x58] sm:$0xf]
      %s6718 = scalar_lea.vmem %s5, 6
      %v6719 = vld [vmem:[%s6718] sm:$0x3]
      %v6736 = vunpack.c.l.b16 %v6702
      %v6737 = vunpack.c.l.b16 %v6703
      %v6738 = vunpack.c.l.b16 %v6704
      %v6739 = vunpack.c.l.b16 %v6705
      %v6740 = vunpack.c.l.b16 %v6706
      %v6741 = vunpack.c.l.b16 %v6707
      %v6742 = vunpack.c.l.b16 %v6708
      %v6743 = vunpack.c.l.b16 %v6709
      %v6744 = vunpack.c.l.b16 %v6710
      %v6745 = vunpack.c.l.b16 %v6711
      %v6746 = vunpack.c.l.b16 %v6712
      %v6747 = vunpack.c.l.b16 %v6713
      %v6748 = vunpack.c.l.b16 %v6714
      %v6749 = vunpack.c.l.b16 %v6715
      %v6750 = vunpack.c.l.b16 %v6716
      %v6751 = vunpack.c.l.b16 %v6717
      %v6752 = vpack.c.b16 %v6737, %v6736
      %v6753 = vpack.c.b16 %v6739, %v6738
      %v6754 = vpack.c.b16 %v6741, %v6740
      %v6755 = vpack.c.b16 %v6743, %v6742
      %v6756 = vpack.c.b16 %v6745, %v6744
      %v6757 = vpack.c.b16 %v6747, %v6746
      %v6758 = vpack.c.b16 %v6749, %v6748
      %v6759 = vpack.c.b16 %v6751, %v6750
      %v6761 = vsel %vm6310, %v6752, 0
      %v6764 = vsel %vm6310, %v6753, 0
      %v6767 = vsel %vm6310, %v6754, 0
      %v6770 = vsel %vm6310, %v6755, 0
      %v6773 = vsel %vm6310, %v6756, 0
      %v6776 = vsel %vm6310, %v6757, 0
      %v6779 = vsel %vm6310, %v6758, 0
      %v6782 = vsel %vm6310, %v6759, 0
      %v6785 = vsel %vm6335, %v6719, 0
      %6787 = vmatpush.bf16.msra.mxu0 0
      %6788 = vmatpush.bf16.msra.mxu0 0
      %6789 = vmatpush.bf16.msra.mxu0 0
      %6790 = vmatpush.bf16.msra.mxu0 0
      %6791 = vmatpush.bf16.msra.mxu0 0
      %6792 = vmatpush.bf16.msra.mxu0 0
      %6793 = vmatpush.bf16.msra.mxu0 0
      %6794 = vmatpush.bf16.msra.mxu0 %v6785
      %6795 = vmatmul.bf16.gmra.mxu0 %v6761
      %v6796 = vpop.f32.mrf.mxu0
      %v6797 = vadd.f32 0.0, %v6796
      %v6798 = vpop.f32.mrf.mxu0
      %v6799 = vadd.f32 0.0, %v6798
      %6800 = vmatmul.bf16.gmra.mxu0 %v6764
      %v6801 = vpop.f32.mrf.mxu0
      %v6802 = vadd.f32 0.0, %v6801
      %v6803 = vpop.f32.mrf.mxu0
      %v6804 = vadd.f32 0.0, %v6803
      %6805 = vmatmul.bf16.gmra.mxu0 %v6767
      %v6806 = vpop.f32.mrf.mxu0
      %v6807 = vadd.f32 0.0, %v6806
      %v6808 = vpop.f32.mrf.mxu0
      %v6809 = vadd.f32 0.0, %v6808
      %6810 = vmatmul.bf16.gmra.mxu0 %v6770
      %v6811 = vpop.f32.mrf.mxu0
      %v6812 = vadd.f32 0.0, %v6811
      %v6813 = vpop.f32.mrf.mxu0
      %v6814 = vadd.f32 0.0, %v6813
      %6815 = vmatmul.bf16.gmra.mxu0 %v6773
      %v6816 = vpop.f32.mrf.mxu0
      %v6817 = vadd.f32 0.0, %v6816
      %v6818 = vpop.f32.mrf.mxu0
      %v6819 = vadd.f32 0.0, %v6818
      %6820 = vmatmul.bf16.gmra.mxu0 %v6776
      %v6821 = vpop.f32.mrf.mxu0
      %v6822 = vadd.f32 0.0, %v6821
      %v6823 = vpop.f32.mrf.mxu0
      %v6824 = vadd.f32 0.0, %v6823
      %6825 = vmatmul.bf16.gmra.mxu0 %v6779
      %v6826 = vpop.f32.mrf.mxu0
      %v6827 = vadd.f32 0.0, %v6826
      %v6828 = vpop.f32.mrf.mxu0
      %v6829 = vadd.f32 0.0, %v6828
      %6830 = vmatmul.bf16.gmra.mxu0 %v6782
      %v6831 = vpop.f32.mrf.mxu0
      %v6832 = vadd.f32 0.0, %v6831
      %v6833 = vpop.f32.mrf.mxu0
      %v6834 = vadd.f32 0.0, %v6833
      %6835 = vdwg.mxu0
      %v6836 = vadd.f32 %v6686, %v6797
      %v6837 = vadd.f32 %v6687, %v6799
      %v6838 = vadd.f32 %v6688, %v6802
      %v6839 = vadd.f32 %v6689, %v6804
      %v6840 = vadd.f32 %v6690, %v6807
      %v6841 = vadd.f32 %v6691, %v6809
      %v6842 = vadd.f32 %v6692, %v6812
      %v6843 = vadd.f32 %v6693, %v6814
      %v6844 = vadd.f32 %v6694, %v6817
      %v6845 = vadd.f32 %v6695, %v6819
      %v6846 = vadd.f32 %v6696, %v6822
      %v6847 = vadd.f32 %v6697, %v6824
      %v6848 = vadd.f32 %v6698, %v6827
      %v6849 = vadd.f32 %v6699, %v6829
      %v6850 = vadd.f32 %v6700, %v6832
      %v6851 = vadd.f32 %v6701, %v6834
      %v6852 = vld [vmem:[%s3713] sm:$0xf]
      %v6853 = vld [vmem:[%s3713 + $0x4] sm:$0xf]
      %v6854 = vld [vmem:[%s3713 + $0x8] sm:$0x1]
      %v6855 = vld [vmem:[%s3713 + $0xc] sm:$0xf]
      %v6856 = vld [vmem:[%s3713 + $0x10] sm:$0xf]
      %v6857 = vld [vmem:[%s3713 + $0x14] sm:$0x1]
      %v6858 = vld [vmem:[%s3713 + $0x18] sm:$0xf]
      %v6859 = vld [vmem:[%s3713 + $0x1c] sm:$0xf]
      %v6860 = vld [vmem:[%s3713 + $0x20] sm:$0x1]
      %v6861 = vld [vmem:[%s3713 + $0x24] sm:$0xf]
      %v6862 = vld [vmem:[%s3713 + $0x28] sm:$0xf]
      %v6863 = vld [vmem:[%s3713 + $0x2c] sm:$0x1]
      %v6864 = vld [vmem:[%s3713 + $0x30] sm:$0xf]
      %v6865 = vld [vmem:[%s3713 + $0x34] sm:$0xf]
      %v6866 = vld [vmem:[%s3713 + $0x38] sm:$0x1]
      %v6867 = vld [vmem:[%s3713 + $0x3c] sm:$0xf]
      %v6868 = vld [vmem:[%s3713 + $0x40] sm:$0xf]
      %v6869 = vld [vmem:[%s3713 + $0x44] sm:$0x1]
      %v6870 = vld [vmem:[%s3713 + $0x48] sm:$0xf]
      %v6871 = vld [vmem:[%s3713 + $0x4c] sm:$0xf]
      %v6872 = vld [vmem:[%s3713 + $0x50] sm:$0x1]
      %v6873 = vld [vmem:[%s3713 + $0x54] sm:$0xf]
      %v6874 = vld [vmem:[%s3713 + $0x58] sm:$0xf]
      %v6875 = vld [vmem:[%s3713 + $0x5c] sm:$0x1]
      %v6877 = vshrl.u32 %v6852, 16
      %v6879 = vrot.slane %v6877, 4
      %v6880 = vshll.u32 %v6852, 16
      %v6882 = vrot.slane %v6880, 5
      %v6883 = vor.u32 %v6879, %v6882
      %v6884 = vrot.slane %v6883, 4
      %v6886 = vshll.u32 %v6853, 16
      %v6888 = vrot.slane %v6886, 5
      %v6889 = vsel %vm1486, %v6884, %v6888
      %v6890 = vshrl.u32 %v6853, 16
      %v6892 = vrot.slane %v6890, 4
      %v6893 = vor.u32 %v6892, %v6888
      %v6894 = vrot.slane %v6893, 4
      %v6896 = vshll.u32 %v6854, 16
      %v6898 = vrot.slane %v6896, 5
      %v6899 = vsel %vm1486, %v6894, %v6898
      %v6901 = vshrl.u32 %v6855, 16
      %v6903 = vrot.slane %v6901, 4
      %v6904 = vshll.u32 %v6855, 16
      %v6906 = vrot.slane %v6904, 5
      %v6907 = vor.u32 %v6903, %v6906
      %v6908 = vrot.slane %v6907, 4
      %v6910 = vshll.u32 %v6856, 16
      %v6912 = vrot.slane %v6910, 5
      %v6913 = vsel %vm1486, %v6908, %v6912
      %v6914 = vshrl.u32 %v6856, 16
      %v6916 = vrot.slane %v6914, 4
      %v6917 = vor.u32 %v6916, %v6912
      %v6918 = vrot.slane %v6917, 4
      %v6920 = vshll.u32 %v6857, 16
      %v6922 = vrot.slane %v6920, 5
      %v6923 = vsel %vm1486, %v6918, %v6922
      %v6925 = vshrl.u32 %v6858, 16
      %v6927 = vrot.slane %v6925, 4
      %v6928 = vshll.u32 %v6858, 16
      %v6930 = vrot.slane %v6928, 5
      %v6931 = vor.u32 %v6927, %v6930
      %v6932 = vrot.slane %v6931, 4
      %v6934 = vshll.u32 %v6859, 16
      %v6936 = vrot.slane %v6934, 5
      %v6937 = vsel %vm1486, %v6932, %v6936
      %v6938 = vshrl.u32 %v6859, 16
      %v6940 = vrot.slane %v6938, 4
      %v6941 = vor.u32 %v6940, %v6936
      %v6942 = vrot.slane %v6941, 4
      %v6944 = vshll.u32 %v6860, 16
      %v6946 = vrot.slane %v6944, 5
      %v6947 = vsel %vm1486, %v6942, %v6946
      %v6949 = vshrl.u32 %v6861, 16
      %v6951 = vrot.slane %v6949, 4
      %v6952 = vshll.u32 %v6861, 16
      %v6954 = vrot.slane %v6952, 5
      %v6955 = vor.u32 %v6951, %v6954
      %v6956 = vrot.slane %v6955, 4
      %v6958 = vshll.u32 %v6862, 16
      %v6960 = vrot.slane %v6958, 5
      %v6961 = vsel %vm1486, %v6956, %v6960
      %v6962 = vshrl.u32 %v6862, 16
      %v6964 = vrot.slane %v6962, 4
      %v6965 = vor.u32 %v6964, %v6960
      %v6966 = vrot.slane %v6965, 4
      %v6968 = vshll.u32 %v6863, 16
      %v6970 = vrot.slane %v6968, 5
      %v6971 = vsel %vm1486, %v6966, %v6970
      %v6973 = vshrl.u32 %v6864, 16
      %v6975 = vrot.slane %v6973, 4
      %v6976 = vshll.u32 %v6864, 16
      %v6978 = vrot.slane %v6976, 5
      %v6979 = vor.u32 %v6975, %v6978
      %v6980 = vrot.slane %v6979, 4
      %v6982 = vshll.u32 %v6865, 16
      %v6984 = vrot.slane %v6982, 5
      %v6985 = vsel %vm1486, %v6980, %v6984
      %v6986 = vshrl.u32 %v6865, 16
      %v6988 = vrot.slane %v6986, 4
      %v6989 = vor.u32 %v6988, %v6984
      %v6990 = vrot.slane %v6989, 4
      %v6992 = vshll.u32 %v6866, 16
      %v6994 = vrot.slane %v6992, 5
      %v6995 = vsel %vm1486, %v6990, %v6994
      %v6997 = vshrl.u32 %v6867, 16
      %v6999 = vrot.slane %v6997, 4
      %v7000 = vshll.u32 %v6867, 16
      %v7002 = vrot.slane %v7000, 5
      %v7003 = vor.u32 %v6999, %v7002
      %v7004 = vrot.slane %v7003, 4
      %v7006 = vshll.u32 %v6868, 16
      %v7008 = vrot.slane %v7006, 5
      %v7009 = vsel %vm1486, %v7004, %v7008
      %v7010 = vshrl.u32 %v6868, 16
      %v7012 = vrot.slane %v7010, 4
      %v7013 = vor.u32 %v7012, %v7008
      %v7014 = vrot.slane %v7013, 4
      %v7016 = vshll.u32 %v6869, 16
      %v7018 = vrot.slane %v7016, 5
      %v7019 = vsel %vm1486, %v7014, %v7018
      %v7021 = vshrl.u32 %v6870, 16
      %v7023 = vrot.slane %v7021, 4
      %v7024 = vshll.u32 %v6870, 16
      %v7026 = vrot.slane %v7024, 5
      %v7027 = vor.u32 %v7023, %v7026
      %v7028 = vrot.slane %v7027, 4
      %v7030 = vshll.u32 %v6871, 16
      %v7032 = vrot.slane %v7030, 5
      %v7033 = vsel %vm1486, %v7028, %v7032
      %v7034 = vshrl.u32 %v6871, 16
      %v7036 = vrot.slane %v7034, 4
      %v7037 = vor.u32 %v7036, %v7032
      %v7038 = vrot.slane %v7037, 4
      %v7040 = vshll.u32 %v6872, 16
      %v7042 = vrot.slane %v7040, 5
      %v7043 = vsel %vm1486, %v7038, %v7042
      %v7045 = vshrl.u32 %v6873, 16
      %v7047 = vrot.slane %v7045, 4
      %v7048 = vshll.u32 %v6873, 16
      %v7050 = vrot.slane %v7048, 5
      %v7051 = vor.u32 %v7047, %v7050
      %v7052 = vrot.slane %v7051, 4
      %v7054 = vshll.u32 %v6874, 16
      %v7056 = vrot.slane %v7054, 5
      %v7057 = vsel %vm1486, %v7052, %v7056
      %v7058 = vshrl.u32 %v6874, 16
      %v7060 = vrot.slane %v7058, 4
      %v7061 = vor.u32 %v7060, %v7056
      %v7062 = vrot.slane %v7061, 4
      %v7064 = vshll.u32 %v6875, 16
      %v7066 = vrot.slane %v7064, 5
      %v7067 = vsel %vm1486, %v7062, %v7066
      %s7068 = scalar_lea.vmem %s5, 8
      %v7069 = vld [vmem:[%s7068] sm:$0x3]
      %v7070 = vunpack.c.l.b16 %v6889
      %v7071 = vunpack.c.l.b16 %v6899
      %v7072 = vunpack.c.l.b16 %v6913
      %v7073 = vunpack.c.l.b16 %v6923
      %v7074 = vunpack.c.l.b16 %v6937
      %v7075 = vunpack.c.l.b16 %v6947
      %v7076 = vunpack.c.l.b16 %v6961
      %v7077 = vunpack.c.l.b16 %v6971
      %v7078 = vunpack.c.l.b16 %v6985
      %v7079 = vunpack.c.l.b16 %v6995
      %v7080 = vunpack.c.l.b16 %v7009
      %v7081 = vunpack.c.l.b16 %v7019
      %v7082 = vunpack.c.l.b16 %v7033
      %v7083 = vunpack.c.l.b16 %v7043
      %v7084 = vunpack.c.l.b16 %v7057
      %v7085 = vunpack.c.l.b16 %v7067
      %v7086 = vpack.c.b16 %v7071, %v7070
      %v7087 = vpack.c.b16 %v7073, %v7072
      %v7088 = vpack.c.b16 %v7075, %v7074
      %v7089 = vpack.c.b16 %v7077, %v7076
      %v7090 = vpack.c.b16 %v7079, %v7078
      %v7091 = vpack.c.b16 %v7081, %v7080
      %v7092 = vpack.c.b16 %v7083, %v7082
      %v7093 = vpack.c.b16 %v7085, %v7084
      %v7095 = vsel %vm6310, %v7086, 0
      %v7098 = vsel %vm6310, %v7087, 0
      %v7101 = vsel %vm6310, %v7088, 0
      %v7104 = vsel %vm6310, %v7089, 0
      %v7107 = vsel %vm6310, %v7090, 0
      %v7110 = vsel %vm6310, %v7091, 0
      %v7113 = vsel %vm6310, %v7092, 0
      %v7116 = vsel %vm6310, %v7093, 0
      %v7119 = vsel %vm6335, %v7069, 0
      %7121 = vmatpush.bf16.msra.mxu0 0
      %7122 = vmatpush.bf16.msra.mxu0 0
      %7123 = vmatpush.bf16.msra.mxu0 0
      %7124 = vmatpush.bf16.msra.mxu0 0
      %7125 = vmatpush.bf16.msra.mxu0 0
      %7126 = vmatpush.bf16.msra.mxu0 0
      %7127 = vmatpush.bf16.msra.mxu0 0
      %7128 = vmatpush.bf16.msra.mxu0 %v7119
      %7129 = vmatmul.bf16.gmra.mxu0 %v7095
      %v7130 = vpop.f32.mrf.mxu0
      %v7131 = vadd.f32 0.0, %v7130
      %v7132 = vpop.f32.mrf.mxu0
      %v7133 = vadd.f32 0.0, %v7132
      %7134 = vmatmul.bf16.gmra.mxu0 %v7098
      %v7135 = vpop.f32.mrf.mxu0
      %v7136 = vadd.f32 0.0, %v7135
      %v7137 = vpop.f32.mrf.mxu0
      %v7138 = vadd.f32 0.0, %v7137
      %7139 = vmatmul.bf16.gmra.mxu0 %v7101
      %v7140 = vpop.f32.mrf.mxu0
      %v7141 = vadd.f32 0.0, %v7140
      %v7142 = vpop.f32.mrf.mxu0
      %v7143 = vadd.f32 0.0, %v7142
      %7144 = vmatmul.bf16.gmra.mxu0 %v7104
      %v7145 = vpop.f32.mrf.mxu0
      %v7146 = vadd.f32 0.0, %v7145
      %v7147 = vpop.f32.mrf.mxu0
      %v7148 = vadd.f32 0.0, %v7147
      %7149 = vmatmul.bf16.gmra.mxu0 %v7107
      %v7150 = vpop.f32.mrf.mxu0
      %v7151 = vadd.f32 0.0, %v7150
      %v7152 = vpop.f32.mrf.mxu0
      %v7153 = vadd.f32 0.0, %v7152
      %7154 = vmatmul.bf16.gmra.mxu0 %v7110
      %v7155 = vpop.f32.mrf.mxu0
      %v7156 = vadd.f32 0.0, %v7155
      %v7157 = vpop.f32.mrf.mxu0
      %v7158 = vadd.f32 0.0, %v7157
      %7159 = vmatmul.bf16.gmra.mxu0 %v7113
      %v7160 = vpop.f32.mrf.mxu0
      %v7161 = vadd.f32 0.0, %v7160
      %v7162 = vpop.f32.mrf.mxu0
      %v7163 = vadd.f32 0.0, %v7162
      %7164 = vmatmul.bf16.gmra.mxu0 %v7116
      %v7165 = vpop.f32.mrf.mxu0
      %v7166 = vadd.f32 0.0, %v7165
      %v7167 = vpop.f32.mrf.mxu0
      %v7168 = vadd.f32 0.0, %v7167
      %7169 = vdwg.mxu0
      %v7170 = vadd.f32 %v6836, %v7131
      %v7171 = vadd.f32 %v6837, %v7133
      %v7172 = vadd.f32 %v6838, %v7136
      %v7173 = vadd.f32 %v6839, %v7138
      %v7174 = vadd.f32 %v6840, %v7141
      %v7175 = vadd.f32 %v6841, %v7143
      %v7176 = vadd.f32 %v6842, %v7146
      %v7177 = vadd.f32 %v6843, %v7148
      %v7178 = vadd.f32 %v6844, %v7151
      %v7179 = vadd.f32 %v6845, %v7153
      %v7180 = vadd.f32 %v6846, %v7156
      %v7181 = vadd.f32 %v6847, %v7158
      %v7182 = vadd.f32 %v6848, %v7161
      %v7183 = vadd.f32 %v6849, %v7163
      %v7184 = vadd.f32 %v6850, %v7166
      %v7185 = vadd.f32 %v6851, %v7168
      %v7186 = vld [vmem:[%s3713] sm:$0xe]
      %v7187 = vld [vmem:[%s3713 + $0xc] sm:$0xe]
      %v7188 = vld [vmem:[%s3713 + $0x18] sm:$0xe]
      %v7189 = vld [vmem:[%s3713 + $0x24] sm:$0xe]
      %v7190 = vld [vmem:[%s3713 + $0x30] sm:$0xe]
      %v7191 = vld [vmem:[%s3713 + $0x3c] sm:$0xe]
      %v7192 = vld [vmem:[%s3713 + $0x48] sm:$0xe]
      %v7193 = vld [vmem:[%s3713 + $0x54] sm:$0xe]
      %v7218 = vrot.slane %v7186, 5
      %v7219 = vrot.slane %v7218, 4
      %v7220 = vrot.slane %v6853, 5
      %v7221 = vsel %vm1925, %v7219, %v7220
      %v7222 = vrot.slane %v7220, 4
      %v7223 = vrot.slane %v6854, 5
      %v7224 = vsel %vm1925, %v7222, %v7223
      %v7225 = vrot.slane %v7187, 5
      %v7226 = vrot.slane %v7225, 4
      %v7227 = vrot.slane %v6856, 5
      %v7228 = vsel %vm1925, %v7226, %v7227
      %v7229 = vrot.slane %v7227, 4
      %v7230 = vrot.slane %v6857, 5
      %v7231 = vsel %vm1925, %v7229, %v7230
      %v7232 = vrot.slane %v7188, 5
      %v7233 = vrot.slane %v7232, 4
      %v7234 = vrot.slane %v6859, 5
      %v7235 = vsel %vm1925, %v7233, %v7234
      %v7236 = vrot.slane %v7234, 4
      %v7237 = vrot.slane %v6860, 5
      %v7238 = vsel %vm1925, %v7236, %v7237
      %v7239 = vrot.slane %v7189, 5
      %v7240 = vrot.slane %v7239, 4
      %v7241 = vrot.slane %v6862, 5
      %v7242 = vsel %vm1925, %v7240, %v7241
      %v7243 = vrot.slane %v7241, 4
      %v7244 = vrot.slane %v6863, 5
      %v7245 = vsel %vm1925, %v7243, %v7244
      %v7246 = vrot.slane %v7190, 5
      %v7247 = vrot.slane %v7246, 4
      %v7248 = vrot.slane %v6865, 5
      %v7249 = vsel %vm1925, %v7247, %v7248
      %v7250 = vrot.slane %v7248, 4
      %v7251 = vrot.slane %v6866, 5
      %v7252 = vsel %vm1925, %v7250, %v7251
      %v7253 = vrot.slane %v7191, 5
      %v7254 = vrot.slane %v7253, 4
      %v7255 = vrot.slane %v6868, 5
      %v7256 = vsel %vm1925, %v7254, %v7255
      %v7257 = vrot.slane %v7255, 4
      %v7258 = vrot.slane %v6869, 5
      %v7259 = vsel %vm1925, %v7257, %v7258
      %v7260 = vrot.slane %v7192, 5
      %v7261 = vrot.slane %v7260, 4
      %v7262 = vrot.slane %v6871, 5
      %v7263 = vsel %vm1925, %v7261, %v7262
      %v7264 = vrot.slane %v7262, 4
      %v7265 = vrot.slane %v6872, 5
      %v7266 = vsel %vm1925, %v7264, %v7265
      %v7267 = vrot.slane %v7193, 5
      %v7268 = vrot.slane %v7267, 4
      %v7269 = vrot.slane %v6874, 5
      %v7270 = vsel %vm1925, %v7268, %v7269
      %v7271 = vrot.slane %v7269, 4
      %v7272 = vrot.slane %v6875, 5
      %v7273 = vsel %vm1925, %v7271, %v7272
      %s7274 = scalar_lea.vmem %s5, 10
      %v7275 = vld [vmem:[%s7274] sm:$0x3]
      %v7276 = vunpack.c.l.b16 %v7221
      %v7277 = vunpack.c.l.b16 %v7224
      %v7278 = vunpack.c.l.b16 %v7228
      %v7279 = vunpack.c.l.b16 %v7231
      %v7280 = vunpack.c.l.b16 %v7235
      %v7281 = vunpack.c.l.b16 %v7238
      %v7282 = vunpack.c.l.b16 %v7242
      %v7283 = vunpack.c.l.b16 %v7245
      %v7284 = vunpack.c.l.b16 %v7249
      %v7285 = vunpack.c.l.b16 %v7252
      %v7286 = vunpack.c.l.b16 %v7256
      %v7287 = vunpack.c.l.b16 %v7259
      %v7288 = vunpack.c.l.b16 %v7263
      %v7289 = vunpack.c.l.b16 %v7266
      %v7290 = vunpack.c.l.b16 %v7270
      %v7291 = vunpack.c.l.b16 %v7273
      %v7292 = vpack.c.b16 %v7277, %v7276
      %v7293 = vpack.c.b16 %v7279, %v7278
      %v7294 = vpack.c.b16 %v7281, %v7280
      %v7295 = vpack.c.b16 %v7283, %v7282
      %v7296 = vpack.c.b16 %v7285, %v7284
      %v7297 = vpack.c.b16 %v7287, %v7286
      %v7298 = vpack.c.b16 %v7289, %v7288
      %v7299 = vpack.c.b16 %v7291, %v7290
      %v7301 = vsel %vm6310, %v7292, 0
      %v7304 = vsel %vm6310, %v7293, 0
      %v7307 = vsel %vm6310, %v7294, 0
      %v7310 = vsel %vm6310, %v7295, 0
      %v7313 = vsel %vm6310, %v7296, 0
      %v7316 = vsel %vm6310, %v7297, 0
      %v7319 = vsel %vm6310, %v7298, 0
      %v7322 = vsel %vm6310, %v7299, 0
      %v7325 = vsel %vm6335, %v7275, 0
      %7327 = vmatpush.bf16.msra.mxu0 0
      %7328 = vmatpush.bf16.msra.mxu0 0
      %7329 = vmatpush.bf16.msra.mxu0 0
      %7330 = vmatpush.bf16.msra.mxu0 0
      %7331 = vmatpush.bf16.msra.mxu0 0
      %7332 = vmatpush.bf16.msra.mxu0 0
      %7333 = vmatpush.bf16.msra.mxu0 0
      %7334 = vmatpush.bf16.msra.mxu0 %v7325
      %7335 = vmatmul.bf16.gmra.mxu0 %v7301
      %v7336 = vpop.f32.mrf.mxu0
      %v7337 = vadd.f32 0.0, %v7336
      %v7338 = vpop.f32.mrf.mxu0
      %v7339 = vadd.f32 0.0, %v7338
      %7340 = vmatmul.bf16.gmra.mxu0 %v7304
      %v7341 = vpop.f32.mrf.mxu0
      %v7342 = vadd.f32 0.0, %v7341
      %v7343 = vpop.f32.mrf.mxu0
      %v7344 = vadd.f32 0.0, %v7343
      %7345 = vmatmul.bf16.gmra.mxu0 %v7307
      %v7346 = vpop.f32.mrf.mxu0
      %v7347 = vadd.f32 0.0, %v7346
      %v7348 = vpop.f32.mrf.mxu0
      %v7349 = vadd.f32 0.0, %v7348
      %7350 = vmatmul.bf16.gmra.mxu0 %v7310
      %v7351 = vpop.f32.mrf.mxu0
      %v7352 = vadd.f32 0.0, %v7351
      %v7353 = vpop.f32.mrf.mxu0
      %v7354 = vadd.f32 0.0, %v7353
      %7355 = vmatmul.bf16.gmra.mxu0 %v7313
      %v7356 = vpop.f32.mrf.mxu0
      %v7357 = vadd.f32 0.0, %v7356
      %v7358 = vpop.f32.mrf.mxu0
      %v7359 = vadd.f32 0.0, %v7358
      %7360 = vmatmul.bf16.gmra.mxu0 %v7316
      %v7361 = vpop.f32.mrf.mxu0
      %v7362 = vadd.f32 0.0, %v7361
      %v7363 = vpop.f32.mrf.mxu0
      %v7364 = vadd.f32 0.0, %v7363
      %7365 = vmatmul.bf16.gmra.mxu0 %v7319
      %v7366 = vpop.f32.mrf.mxu0
      %v7367 = vadd.f32 0.0, %v7366
      %v7368 = vpop.f32.mrf.mxu0
      %v7369 = vadd.f32 0.0, %v7368
      %7370 = vmatmul.bf16.gmra.mxu0 %v7322
      %v7371 = vpop.f32.mrf.mxu0
      %v7372 = vadd.f32 0.0, %v7371
      %v7373 = vpop.f32.mrf.mxu0
      %v7374 = vadd.f32 0.0, %v7373
      %7375 = vdwg.mxu0
      %v7376 = vadd.f32 %v7170, %v7337
      %v7377 = vadd.f32 %v7171, %v7339
      %v7378 = vadd.f32 %v7172, %v7342
      %v7379 = vadd.f32 %v7173, %v7344
      %v7380 = vadd.f32 %v7174, %v7347
      %v7381 = vadd.f32 %v7175, %v7349
      %v7382 = vadd.f32 %v7176, %v7352
      %v7383 = vadd.f32 %v7177, %v7354
      %v7384 = vadd.f32 %v7178, %v7357
      %v7385 = vadd.f32 %v7179, %v7359
      %v7386 = vadd.f32 %v7180, %v7362
      %v7387 = vadd.f32 %v7181, %v7364
      %v7388 = vadd.f32 %v7182, %v7367
      %v7389 = vadd.f32 %v7183, %v7369
      %v7390 = vadd.f32 %v7184, %v7372
      %v7391 = vadd.f32 %v7185, %v7374
      %s7392 = scalar_lea.vmem [#allocation3], 24
      %v7393 = vld [vmem:[%s7392] sm:$0xf]
      %v7394 = vld [vmem:[%s7392 + $0x4] sm:$0xf]
      %v7395 = vld [vmem:[%s7392 + $0xc] sm:$0xf]
      %v7396 = vld [vmem:[%s7392 + $0x10] sm:$0xf]
      %v7397 = vld [vmem:[%s7392 + $0x18] sm:$0xf]
      %v7398 = vld [vmem:[%s7392 + $0x1c] sm:$0xf]
      %v7399 = vld [vmem:[%s7392 + $0x24] sm:$0xf]
      %v7400 = vld [vmem:[%s7392 + $0x28] sm:$0xf]
      %v7401 = vld [vmem:[%s7392 + $0x30] sm:$0xf]
      %v7402 = vld [vmem:[%s7392 + $0x34] sm:$0xf]
      %v7403 = vld [vmem:[%s7392 + $0x3c] sm:$0xf]
      %v7404 = vld [vmem:[%s7392 + $0x40] sm:$0xf]
      %v7405 = vld [vmem:[%s7392 + $0x48] sm:$0xf]
      %v7406 = vld [vmem:[%s7392 + $0x4c] sm:$0xf]
      %v7407 = vld [vmem:[%s7392 + $0x54] sm:$0xf]
      %v7408 = vld [vmem:[%s7392 + $0x58] sm:$0xf]
      %s7409 = scalar_lea.vmem %s5, 12
      %v7410 = vld [vmem:[%s7409] sm:$0x3]
      %v7427 = vunpack.c.l.b16 %v7393
      %v7428 = vunpack.c.l.b16 %v7394
      %v7429 = vunpack.c.l.b16 %v7395
      %v7430 = vunpack.c.l.b16 %v7396
      %v7431 = vunpack.c.l.b16 %v7397
      %v7432 = vunpack.c.l.b16 %v7398
      %v7433 = vunpack.c.l.b16 %v7399
      %v7434 = vunpack.c.l.b16 %v7400
      %v7435 = vunpack.c.l.b16 %v7401
      %v7436 = vunpack.c.l.b16 %v7402
      %v7437 = vunpack.c.l.b16 %v7403
      %v7438 = vunpack.c.l.b16 %v7404
      %v7439 = vunpack.c.l.b16 %v7405
      %v7440 = vunpack.c.l.b16 %v7406
      %v7441 = vunpack.c.l.b16 %v7407
      %v7442 = vunpack.c.l.b16 %v7408
      %v7443 = vpack.c.b16 %v7428, %v7427
      %v7444 = vpack.c.b16 %v7430, %v7429
      %v7445 = vpack.c.b16 %v7432, %v7431
      %v7446 = vpack.c.b16 %v7434, %v7433
      %v7447 = vpack.c.b16 %v7436, %v7435
      %v7448 = vpack.c.b16 %v7438, %v7437
      %v7449 = vpack.c.b16 %v7440, %v7439
      %v7450 = vpack.c.b16 %v7442, %v7441
      %v7452 = vsel %vm6310, %v7443, 0
      %v7455 = vsel %vm6310, %v7444, 0
      %v7458 = vsel %vm6310, %v7445, 0
      %v7461 = vsel %vm6310, %v7446, 0
      %v7464 = vsel %vm6310, %v7447, 0
      %v7467 = vsel %vm6310, %v7448, 0
      %v7470 = vsel %vm6310, %v7449, 0
      %v7473 = vsel %vm6310, %v7450, 0
      %v7476 = vsel %vm6335, %v7410, 0
      %7478 = vmatpush.bf16.msra.mxu0 0
      %7479 = vmatpush.bf16.msra.mxu0 0
      %7480 = vmatpush.bf16.msra.mxu0 0
      %7481 = vmatpush.bf16.msra.mxu0 0
      %7482 = vmatpush.bf16.msra.mxu0 0
      %7483 = vmatpush.bf16.msra.mxu0 0
      %7484 = vmatpush.bf16.msra.mxu0 0
      %7485 = vmatpush.bf16.msra.mxu0 %v7476
      %7486 = vmatmul.bf16.gmra.mxu0 %v7452
      %v7487 = vpop.f32.mrf.mxu0
      %v7488 = vadd.f32 0.0, %v7487
      %v7489 = vpop.f32.mrf.mxu0
      %v7490 = vadd.f32 0.0, %v7489
      %7491 = vmatmul.bf16.gmra.mxu0 %v7455
      %v7492 = vpop.f32.mrf.mxu0
      %v7493 = vadd.f32 0.0, %v7492
      %v7494 = vpop.f32.mrf.mxu0
      %v7495 = vadd.f32 0.0, %v7494
      %7496 = vmatmul.bf16.gmra.mxu0 %v7458
      %v7497 = vpop.f32.mrf.mxu0
      %v7498 = vadd.f32 0.0, %v7497
      %v7499 = vpop.f32.mrf.mxu0
      %v7500 = vadd.f32 0.0, %v7499
      %7501 = vmatmul.bf16.gmra.mxu0 %v7461
      %v7502 = vpop.f32.mrf.mxu0
      %v7503 = vadd.f32 0.0, %v7502
      %v7504 = vpop.f32.mrf.mxu0
      %v7505 = vadd.f32 0.0, %v7504
      %7506 = vmatmul.bf16.gmra.mxu0 %v7464
      %v7507 = vpop.f32.mrf.mxu0
      %v7508 = vadd.f32 0.0, %v7507
      %v7509 = vpop.f32.mrf.mxu0
      %v7510 = vadd.f32 0.0, %v7509
      %7511 = vmatmul.bf16.gmra.mxu0 %v7467
      %v7512 = vpop.f32.mrf.mxu0
      %v7513 = vadd.f32 0.0, %v7512
      %v7514 = vpop.f32.mrf.mxu0
      %v7515 = vadd.f32 0.0, %v7514
      %7516 = vmatmul.bf16.gmra.mxu0 %v7470
      %v7517 = vpop.f32.mrf.mxu0
      %v7518 = vadd.f32 0.0, %v7517
      %v7519 = vpop.f32.mrf.mxu0
      %v7520 = vadd.f32 0.0, %v7519
      %7521 = vmatmul.bf16.gmra.mxu0 %v7473
      %v7522 = vpop.f32.mrf.mxu0
      %v7523 = vadd.f32 0.0, %v7522
      %v7524 = vpop.f32.mrf.mxu0
      %v7525 = vadd.f32 0.0, %v7524
      %7526 = vdwg.mxu0
      %v7527 = vadd.f32 %v7376, %v7488
      %v7528 = vadd.f32 %v7377, %v7490
      %v7529 = vadd.f32 %v7378, %v7493
      %v7530 = vadd.f32 %v7379, %v7495
      %v7531 = vadd.f32 %v7380, %v7498
      %v7532 = vadd.f32 %v7381, %v7500
      %v7533 = vadd.f32 %v7382, %v7503
      %v7534 = vadd.f32 %v7383, %v7505
      %v7535 = vadd.f32 %v7384, %v7508
      %v7536 = vadd.f32 %v7385, %v7510
      %v7537 = vadd.f32 %v7386, %v7513
      %v7538 = vadd.f32 %v7387, %v7515
      %v7539 = vadd.f32 %v7388, %v7518
      %v7540 = vadd.f32 %v7389, %v7520
      %v7541 = vadd.f32 %v7390, %v7523
      %v7542 = vadd.f32 %v7391, %v7525
      %v7543 = vld [vmem:[%s7392] sm:$0xf]
      %v7544 = vld [vmem:[%s7392 + $0x4] sm:$0xf]
      %v7545 = vld [vmem:[%s7392 + $0x8] sm:$0x1]
      %v7546 = vld [vmem:[%s7392 + $0xc] sm:$0xf]
      %v7547 = vld [vmem:[%s7392 + $0x10] sm:$0xf]
      %v7548 = vld [vmem:[%s7392 + $0x14] sm:$0x1]
      %v7549 = vld [vmem:[%s7392 + $0x18] sm:$0xf]
      %v7550 = vld [vmem:[%s7392 + $0x1c] sm:$0xf]
      %v7551 = vld [vmem:[%s7392 + $0x20] sm:$0x1]
      %v7552 = vld [vmem:[%s7392 + $0x24] sm:$0xf]
      %v7553 = vld [vmem:[%s7392 + $0x28] sm:$0xf]
      %v7554 = vld [vmem:[%s7392 + $0x2c] sm:$0x1]
      %v7555 = vld [vmem:[%s7392 + $0x30] sm:$0xf]
      %v7556 = vld [vmem:[%s7392 + $0x34] sm:$0xf]
      %v7557 = vld [vmem:[%s7392 + $0x38] sm:$0x1]
      %v7558 = vld [vmem:[%s7392 + $0x3c] sm:$0xf]
      %v7559 = vld [vmem:[%s7392 + $0x40] sm:$0xf]
      %v7560 = vld [vmem:[%s7392 + $0x44] sm:$0x1]
      %v7561 = vld [vmem:[%s7392 + $0x48] sm:$0xf]
      %v7562 = vld [vmem:[%s7392 + $0x4c] sm:$0xf]
      %v7563 = vld [vmem:[%s7392 + $0x50] sm:$0x1]
      %v7564 = vld [vmem:[%s7392 + $0x54] sm:$0xf]
      %v7565 = vld [vmem:[%s7392 + $0x58] sm:$0xf]
      %v7566 = vld [vmem:[%s7392 + $0x5c] sm:$0x1]
      %v7568 = vshrl.u32 %v7543, 16
      %v7570 = vrot.slane %v7568, 4
      %v7571 = vshll.u32 %v7543, 16
      %v7573 = vrot.slane %v7571, 5
      %v7574 = vor.u32 %v7570, %v7573
      %v7575 = vrot.slane %v7574, 4
      %v7577 = vshll.u32 %v7544, 16
      %v7579 = vrot.slane %v7577, 5
      %v7580 = vsel %vm1486, %v7575, %v7579
      %v7581 = vshrl.u32 %v7544, 16
      %v7583 = vrot.slane %v7581, 4
      %v7584 = vor.u32 %v7583, %v7579
      %v7585 = vrot.slane %v7584, 4
      %v7587 = vshll.u32 %v7545, 16
      %v7589 = vrot.slane %v7587, 5
      %v7590 = vsel %vm1486, %v7585, %v7589
      %v7592 = vshrl.u32 %v7546, 16
      %v7594 = vrot.slane %v7592, 4
      %v7595 = vshll.u32 %v7546, 16
      %v7597 = vrot.slane %v7595, 5
      %v7598 = vor.u32 %v7594, %v7597
      %v7599 = vrot.slane %v7598, 4
      %v7601 = vshll.u32 %v7547, 16
      %v7603 = vrot.slane %v7601, 5
      %v7604 = vsel %vm1486, %v7599, %v7603
      %v7605 = vshrl.u32 %v7547, 16
      %v7607 = vrot.slane %v7605, 4
      %v7608 = vor.u32 %v7607, %v7603
      %v7609 = vrot.slane %v7608, 4
      %v7611 = vshll.u32 %v7548, 16
      %v7613 = vrot.slane %v7611, 5
      %v7614 = vsel %vm1486, %v7609, %v7613
      %v7616 = vshrl.u32 %v7549, 16
      %v7618 = vrot.slane %v7616, 4
      %v7619 = vshll.u32 %v7549, 16
      %v7621 = vrot.slane %v7619, 5
      %v7622 = vor.u32 %v7618, %v7621
      %v7623 = vrot.slane %v7622, 4
      %v7625 = vshll.u32 %v7550, 16
      %v7627 = vrot.slane %v7625, 5
      %v7628 = vsel %vm1486, %v7623, %v7627
      %v7629 = vshrl.u32 %v7550, 16
      %v7631 = vrot.slane %v7629, 4
      %v7632 = vor.u32 %v7631, %v7627
      %v7633 = vrot.slane %v7632, 4
      %v7635 = vshll.u32 %v7551, 16
      %v7637 = vrot.slane %v7635, 5
      %v7638 = vsel %vm1486, %v7633, %v7637
      %v7640 = vshrl.u32 %v7552, 16
      %v7642 = vrot.slane %v7640, 4
      %v7643 = vshll.u32 %v7552, 16
      %v7645 = vrot.slane %v7643, 5
      %v7646 = vor.u32 %v7642, %v7645
      %v7647 = vrot.slane %v7646, 4
      %v7649 = vshll.u32 %v7553, 16
      %v7651 = vrot.slane %v7649, 5
      %v7652 = vsel %vm1486, %v7647, %v7651
      %v7653 = vshrl.u32 %v7553, 16
      %v7655 = vrot.slane %v7653, 4
      %v7656 = vor.u32 %v7655, %v7651
      %v7657 = vrot.slane %v7656, 4
      %v7659 = vshll.u32 %v7554, 16
      %v7661 = vrot.slane %v7659, 5
      %v7662 = vsel %vm1486, %v7657, %v7661
      %v7664 = vshrl.u32 %v7555, 16
      %v7666 = vrot.slane %v7664, 4
      %v7667 = vshll.u32 %v7555, 16
      %v7669 = vrot.slane %v7667, 5
      %v7670 = vor.u32 %v7666, %v7669
      %v7671 = vrot.slane %v7670, 4
      %v7673 = vshll.u32 %v7556, 16
      %v7675 = vrot.slane %v7673, 5
      %v7676 = vsel %vm1486, %v7671, %v7675
      %v7677 = vshrl.u32 %v7556, 16
      %v7679 = vrot.slane %v7677, 4
      %v7680 = vor.u32 %v7679, %v7675
      %v7681 = vrot.slane %v7680, 4
      %v7683 = vshll.u32 %v7557, 16
      %v7685 = vrot.slane %v7683, 5
      %v7686 = vsel %vm1486, %v7681, %v7685
      %v7688 = vshrl.u32 %v7558, 16
      %v7690 = vrot.slane %v7688, 4
      %v7691 = vshll.u32 %v7558, 16
      %v7693 = vrot.slane %v7691, 5
      %v7694 = vor.u32 %v7690, %v7693
      %v7695 = vrot.slane %v7694, 4
      %v7697 = vshll.u32 %v7559, 16
      %v7699 = vrot.slane %v7697, 5
      %v7700 = vsel %vm1486, %v7695, %v7699
      %v7701 = vshrl.u32 %v7559, 16
      %v7703 = vrot.slane %v7701, 4
      %v7704 = vor.u32 %v7703, %v7699
      %v7705 = vrot.slane %v7704, 4
      %v7707 = vshll.u32 %v7560, 16
      %v7709 = vrot.slane %v7707, 5
      %v7710 = vsel %vm1486, %v7705, %v7709
      %v7712 = vshrl.u32 %v7561, 16
      %v7714 = vrot.slane %v7712, 4
      %v7715 = vshll.u32 %v7561, 16
      %v7717 = vrot.slane %v7715, 5
      %v7718 = vor.u32 %v7714, %v7717
      %v7719 = vrot.slane %v7718, 4
      %v7721 = vshll.u32 %v7562, 16
      %v7723 = vrot.slane %v7721, 5
      %v7724 = vsel %vm1486, %v7719, %v7723
      %v7725 = vshrl.u32 %v7562, 16
      %v7727 = vrot.slane %v7725, 4
      %v7728 = vor.u32 %v7727, %v7723
      %v7729 = vrot.slane %v7728, 4
      %v7731 = vshll.u32 %v7563, 16
      %v7733 = vrot.slane %v7731, 5
      %v7734 = vsel %vm1486, %v7729, %v7733
      %v7736 = vshrl.u32 %v7564, 16
      %v7738 = vrot.slane %v7736, 4
      %v7739 = vshll.u32 %v7564, 16
      %v7741 = vrot.slane %v7739, 5
      %v7742 = vor.u32 %v7738, %v7741
      %v7743 = vrot.slane %v7742, 4
      %v7745 = vshll.u32 %v7565, 16
      %v7747 = vrot.slane %v7745, 5
      %v7748 = vsel %vm1486, %v7743, %v7747
      %v7749 = vshrl.u32 %v7565, 16
      %v7751 = vrot.slane %v7749, 4
      %v7752 = vor.u32 %v7751, %v7747
      %v7753 = vrot.slane %v7752, 4
      %v7755 = vshll.u32 %v7566, 16
      %v7757 = vrot.slane %v7755, 5
      %v7758 = vsel %vm1486, %v7753, %v7757
      %s7759 = scalar_lea.vmem %s5, 14
      %v7760 = vld [vmem:[%s7759] sm:$0x3]
      %v7761 = vunpack.c.l.b16 %v7580
      %v7762 = vunpack.c.l.b16 %v7590
      %v7763 = vunpack.c.l.b16 %v7604
      %v7764 = vunpack.c.l.b16 %v7614
      %v7765 = vunpack.c.l.b16 %v7628
      %v7766 = vunpack.c.l.b16 %v7638
      %v7767 = vunpack.c.l.b16 %v7652
      %v7768 = vunpack.c.l.b16 %v7662
      %v7769 = vunpack.c.l.b16 %v7676
      %v7770 = vunpack.c.l.b16 %v7686
      %v7771 = vunpack.c.l.b16 %v7700
      %v7772 = vunpack.c.l.b16 %v7710
      %v7773 = vunpack.c.l.b16 %v7724
      %v7774 = vunpack.c.l.b16 %v7734
      %v7775 = vunpack.c.l.b16 %v7748
      %v7776 = vunpack.c.l.b16 %v7758
      %v7777 = vpack.c.b16 %v7762, %v7761
      %v7778 = vpack.c.b16 %v7764, %v7763
      %v7779 = vpack.c.b16 %v7766, %v7765
      %v7780 = vpack.c.b16 %v7768, %v7767
      %v7781 = vpack.c.b16 %v7770, %v7769
      %v7782 = vpack.c.b16 %v7772, %v7771
      %v7783 = vpack.c.b16 %v7774, %v7773
      %v7784 = vpack.c.b16 %v7776, %v7775
      %v7786 = vsel %vm6310, %v7777, 0
      %v7789 = vsel %vm6310, %v7778, 0
      %v7792 = vsel %vm6310, %v7779, 0
      %v7795 = vsel %vm6310, %v7780, 0
      %v7798 = vsel %vm6310, %v7781, 0
      %v7801 = vsel %vm6310, %v7782, 0
      %v7804 = vsel %vm6310, %v7783, 0
      %v7807 = vsel %vm6310, %v7784, 0
      %v7810 = vsel %vm6335, %v7760, 0
      %7812 = vmatpush.bf16.msra.mxu0 0
      %7813 = vmatpush.bf16.msra.mxu0 0
      %7814 = vmatpush.bf16.msra.mxu0 0
      %7815 = vmatpush.bf16.msra.mxu0 0
      %7816 = vmatpush.bf16.msra.mxu0 0
      %7817 = vmatpush.bf16.msra.mxu0 0
      %7818 = vmatpush.bf16.msra.mxu0 0
      %7819 = vmatpush.bf16.msra.mxu0 %v7810
      %7820 = vmatmul.bf16.gmra.mxu0 %v7786
      %v7821 = vpop.f32.mrf.mxu0
      %v7822 = vadd.f32 0.0, %v7821
      %v7823 = vpop.f32.mrf.mxu0
      %v7824 = vadd.f32 0.0, %v7823
      %7825 = vmatmul.bf16.gmra.mxu0 %v7789
      %v7826 = vpop.f32.mrf.mxu0
      %v7827 = vadd.f32 0.0, %v7826
      %v7828 = vpop.f32.mrf.mxu0
      %v7829 = vadd.f32 0.0, %v7828
      %7830 = vmatmul.bf16.gmra.mxu0 %v7792
      %v7831 = vpop.f32.mrf.mxu0
      %v7832 = vadd.f32 0.0, %v7831
      %v7833 = vpop.f32.mrf.mxu0
      %v7834 = vadd.f32 0.0, %v7833
      %7835 = vmatmul.bf16.gmra.mxu0 %v7795
      %v7836 = vpop.f32.mrf.mxu0
      %v7837 = vadd.f32 0.0, %v7836
      %v7838 = vpop.f32.mrf.mxu0
      %v7839 = vadd.f32 0.0, %v7838
      %7840 = vmatmul.bf16.gmra.mxu0 %v7798
      %v7841 = vpop.f32.mrf.mxu0
      %v7842 = vadd.f32 0.0, %v7841
      %v7843 = vpop.f32.mrf.mxu0
      %v7844 = vadd.f32 0.0, %v7843
      %7845 = vmatmul.bf16.gmra.mxu0 %v7801
      %v7846 = vpop.f32.mrf.mxu0
      %v7847 = vadd.f32 0.0, %v7846
      %v7848 = vpop.f32.mrf.mxu0
      %v7849 = vadd.f32 0.0, %v7848
      %7850 = vmatmul.bf16.gmra.mxu0 %v7804
      %v7851 = vpop.f32.mrf.mxu0
      %v7852 = vadd.f32 0.0, %v7851
      %v7853 = vpop.f32.mrf.mxu0
      %v7854 = vadd.f32 0.0, %v7853
      %7855 = vmatmul.bf16.gmra.mxu0 %v7807
      %v7856 = vpop.f32.mrf.mxu0
      %v7857 = vadd.f32 0.0, %v7856
      %v7858 = vpop.f32.mrf.mxu0
      %v7859 = vadd.f32 0.0, %v7858
      %7860 = vdwg.mxu0
      %v7861 = vadd.f32 %v7527, %v7822
      %v7862 = vadd.f32 %v7528, %v7824
      %v7863 = vadd.f32 %v7529, %v7827
      %v7864 = vadd.f32 %v7530, %v7829
      %v7865 = vadd.f32 %v7531, %v7832
      %v7866 = vadd.f32 %v7532, %v7834
      %v7867 = vadd.f32 %v7533, %v7837
      %v7868 = vadd.f32 %v7534, %v7839
      %v7869 = vadd.f32 %v7535, %v7842
      %v7870 = vadd.f32 %v7536, %v7844
      %v7871 = vadd.f32 %v7537, %v7847
      %v7872 = vadd.f32 %v7538, %v7849
      %v7873 = vadd.f32 %v7539, %v7852
      %v7874 = vadd.f32 %v7540, %v7854
      %v7875 = vadd.f32 %v7541, %v7857
      %v7876 = vadd.f32 %v7542, %v7859
      %v7877 = vld [vmem:[%s7392] sm:$0xe]
      %v7878 = vld [vmem:[%s7392 + $0xc] sm:$0xe]
      %v7879 = vld [vmem:[%s7392 + $0x18] sm:$0xe]
      %v7880 = vld [vmem:[%s7392 + $0x24] sm:$0xe]
      %v7881 = vld [vmem:[%s7392 + $0x30] sm:$0xe]
      %v7882 = vld [vmem:[%s7392 + $0x3c] sm:$0xe]
      %v7883 = vld [vmem:[%s7392 + $0x48] sm:$0xe]
      %v7884 = vld [vmem:[%s7392 + $0x54] sm:$0xe]
      %v7909 = vrot.slane %v7877, 5
      %v7910 = vrot.slane %v7909, 4
      %v7911 = vrot.slane %v7544, 5
      %v7912 = vsel %vm1925, %v7910, %v7911
      %v7913 = vrot.slane %v7911, 4
      %v7914 = vrot.slane %v7545, 5
      %v7915 = vsel %vm1925, %v7913, %v7914
      %v7916 = vrot.slane %v7878, 5
      %v7917 = vrot.slane %v7916, 4
      %v7918 = vrot.slane %v7547, 5
      %v7919 = vsel %vm1925, %v7917, %v7918
      %v7920 = vrot.slane %v7918, 4
      %v7921 = vrot.slane %v7548, 5
      %v7922 = vsel %vm1925, %v7920, %v7921
      %v7923 = vrot.slane %v7879, 5
      %v7924 = vrot.slane %v7923, 4
      %v7925 = vrot.slane %v7550, 5
      %v7926 = vsel %vm1925, %v7924, %v7925
      %v7927 = vrot.slane %v7925, 4
      %v7928 = vrot.slane %v7551, 5
      %v7929 = vsel %vm1925, %v7927, %v7928
      %v7930 = vrot.slane %v7880, 5
      %v7931 = vrot.slane %v7930, 4
      %v7932 = vrot.slane %v7553, 5
      %v7933 = vsel %vm1925, %v7931, %v7932
      %v7934 = vrot.slane %v7932, 4
      %v7935 = vrot.slane %v7554, 5
      %v7936 = vsel %vm1925, %v7934, %v7935
      %v7937 = vrot.slane %v7881, 5
      %v7938 = vrot.slane %v7937, 4
      %v7939 = vrot.slane %v7556, 5
      %v7940 = vsel %vm1925, %v7938, %v7939
      %v7941 = vrot.slane %v7939, 4
      %v7942 = vrot.slane %v7557, 5
      %v7943 = vsel %vm1925, %v7941, %v7942
      %v7944 = vrot.slane %v7882, 5
      %v7945 = vrot.slane %v7944, 4
      %v7946 = vrot.slane %v7559, 5
      %v7947 = vsel %vm1925, %v7945, %v7946
      %v7948 = vrot.slane %v7946, 4
      %v7949 = vrot.slane %v7560, 5
      %v7950 = vsel %vm1925, %v7948, %v7949
      %v7951 = vrot.slane %v7883, 5
      %v7952 = vrot.slane %v7951, 4
      %v7953 = vrot.slane %v7562, 5
      %v7954 = vsel %vm1925, %v7952, %v7953
      %v7955 = vrot.slane %v7953, 4
      %v7956 = vrot.slane %v7563, 5
      %v7957 = vsel %vm1925, %v7955, %v7956
      %v7958 = vrot.slane %v7884, 5
      %v7959 = vrot.slane %v7958, 4
      %v7960 = vrot.slane %v7565, 5
      %v7961 = vsel %vm1925, %v7959, %v7960
      %v7962 = vrot.slane %v7960, 4
      %v7963 = vrot.slane %v7566, 5
      %v7964 = vsel %vm1925, %v7962, %v7963
      %s7965 = scalar_lea.vmem %s5, 16
      %v7966 = vld [vmem:[%s7965] sm:$0x3]
      %v7967 = vunpack.c.l.b16 %v7912
      %v7968 = vunpack.c.l.b16 %v7915
      %v7969 = vunpack.c.l.b16 %v7919
      %v7970 = vunpack.c.l.b16 %v7922
      %v7971 = vunpack.c.l.b16 %v7926
      %v7972 = vunpack.c.l.b16 %v7929
      %v7973 = vunpack.c.l.b16 %v7933
      %v7974 = vunpack.c.l.b16 %v7936
      %v7975 = vunpack.c.l.b16 %v7940
      %v7976 = vunpack.c.l.b16 %v7943
      %v7977 = vunpack.c.l.b16 %v7947
      %v7978 = vunpack.c.l.b16 %v7950
      %v7979 = vunpack.c.l.b16 %v7954
      %v7980 = vunpack.c.l.b16 %v7957
      %v7981 = vunpack.c.l.b16 %v7961
      %v7982 = vunpack.c.l.b16 %v7964
      %v7983 = vpack.c.b16 %v7968, %v7967
      %v7984 = vpack.c.b16 %v7970, %v7969
      %v7985 = vpack.c.b16 %v7972, %v7971
      %v7986 = vpack.c.b16 %v7974, %v7973
      %v7987 = vpack.c.b16 %v7976, %v7975
      %v7988 = vpack.c.b16 %v7978, %v7977
      %v7989 = vpack.c.b16 %v7980, %v7979
      %v7990 = vpack.c.b16 %v7982, %v7981
      %v7992 = vsel %vm6310, %v7983, 0
      %v7995 = vsel %vm6310, %v7984, 0
      %v7998 = vsel %vm6310, %v7985, 0
      %v8001 = vsel %vm6310, %v7986, 0
      %v8004 = vsel %vm6310, %v7987, 0
      %v8007 = vsel %vm6310, %v7988, 0
      %v8010 = vsel %vm6310, %v7989, 0
      %v8013 = vsel %vm6310, %v7990, 0
      %v8016 = vsel %vm6335, %v7966, 0
      %8018 = vmatpush.bf16.msra.mxu0 0
      %8019 = vmatpush.bf16.msra.mxu0 0
      %8020 = vmatpush.bf16.msra.mxu0 0
      %8021 = vmatpush.bf16.msra.mxu0 0
      %8022 = vmatpush.bf16.msra.mxu0 0
      %8023 = vmatpush.bf16.msra.mxu0 0
      %8024 = vmatpush.bf16.msra.mxu0 0
      %8025 = vmatpush.bf16.msra.mxu0 %v8016
      %8026 = vmatmul.bf16.gmra.mxu0 %v7992
      %v8027 = vpop.f32.mrf.mxu0
      %v8028 = vadd.f32 0.0, %v8027
      %v8029 = vpop.f32.mrf.mxu0
      %v8030 = vadd.f32 0.0, %v8029
      %8031 = vmatmul.bf16.gmra.mxu0 %v7995
      %v8032 = vpop.f32.mrf.mxu0
      %v8033 = vadd.f32 0.0, %v8032
      %v8034 = vpop.f32.mrf.mxu0
      %v8035 = vadd.f32 0.0, %v8034
      %8036 = vmatmul.bf16.gmra.mxu0 %v7998
      %v8037 = vpop.f32.mrf.mxu0
      %v8038 = vadd.f32 0.0, %v8037
      %v8039 = vpop.f32.mrf.mxu0
      %v8040 = vadd.f32 0.0, %v8039
      %8041 = vmatmul.bf16.gmra.mxu0 %v8001
      %v8042 = vpop.f32.mrf.mxu0
      %v8043 = vadd.f32 0.0, %v8042
      %v8044 = vpop.f32.mrf.mxu0
      %v8045 = vadd.f32 0.0, %v8044
      %8046 = vmatmul.bf16.gmra.mxu0 %v8004
      %v8047 = vpop.f32.mrf.mxu0
      %v8048 = vadd.f32 0.0, %v8047
      %v8049 = vpop.f32.mrf.mxu0
      %v8050 = vadd.f32 0.0, %v8049
      %8051 = vmatmul.bf16.gmra.mxu0 %v8007
      %v8052 = vpop.f32.mrf.mxu0
      %v8053 = vadd.f32 0.0, %v8052
      %v8054 = vpop.f32.mrf.mxu0
      %v8055 = vadd.f32 0.0, %v8054
      %8056 = vmatmul.bf16.gmra.mxu0 %v8010
      %v8057 = vpop.f32.mrf.mxu0
      %v8058 = vadd.f32 0.0, %v8057
      %v8059 = vpop.f32.mrf.mxu0
      %v8060 = vadd.f32 0.0, %v8059
      %8061 = vmatmul.bf16.gmra.mxu0 %v8013
      %v8062 = vpop.f32.mrf.mxu0
      %v8063 = vadd.f32 0.0, %v8062
      %v8064 = vpop.f32.mrf.mxu0
      %v8065 = vadd.f32 0.0, %v8064
      %8066 = vdwg.mxu0
      %v8067 = vadd.f32 %v7861, %v8028
      %v8068 = vadd.f32 %v7862, %v8030
      %v8069 = vadd.f32 %v7863, %v8033
      %v8070 = vadd.f32 %v7864, %v8035
      %v8071 = vadd.f32 %v7865, %v8038
      %v8072 = vadd.f32 %v7866, %v8040
      %v8073 = vadd.f32 %v7867, %v8043
      %v8074 = vadd.f32 %v7868, %v8045
      %v8075 = vadd.f32 %v7869, %v8048
      %v8076 = vadd.f32 %v7870, %v8050
      %v8077 = vadd.f32 %v7871, %v8053
      %v8078 = vadd.f32 %v7872, %v8055
      %v8079 = vadd.f32 %v7873, %v8058
      %v8080 = vadd.f32 %v7874, %v8060
      %v8081 = vadd.f32 %v7875, %v8063
      %v8082 = vadd.f32 %v7876, %v8065
      %v8083 = vld [vmem:[%s6] sm:$0x1]
      %v8085 = vperm.slane %v8083, 0
      %v8087 = vmul.f32 %v8067, %v8085
      %v8088 = vmul.f32 %v8068, %v8085
      %v8089 = vmul.f32 %v8069, %v8085
      %v8090 = vmul.f32 %v8070, %v8085
      %v8091 = vmul.f32 %v8071, %v8085
      %v8092 = vmul.f32 %v8072, %v8085
      %v8093 = vmul.f32 %v8073, %v8085
      %v8094 = vmul.f32 %v8074, %v8085
      %v8095 = vmul.f32 %v8075, %v8085
      %v8096 = vmul.f32 %v8076, %v8085
      %v8097 = vmul.f32 %v8077, %v8085
      %v8098 = vmul.f32 %v8078, %v8085
      %v8099 = vmul.f32 %v8079, %v8085
      %v8100 = vmul.f32 %v8080, %v8085
      %v8101 = vmul.f32 %v8081, %v8085
      %v8102 = vmul.f32 %v8082, %v8085
      %v8103 = vld [vmem:[%s7] sm:$0x1]
      %v8105 = vperm.slane %v8103, 0
      %v8107 = vadd.f32 %v8087, %v8105
      %v8108 = vadd.f32 %v8088, %v8105
      %v8109 = vadd.f32 %v8089, %v8105
      %v8110 = vadd.f32 %v8090, %v8105
      %v8111 = vadd.f32 %v8091, %v8105
      %v8112 = vadd.f32 %v8092, %v8105
      %v8113 = vadd.f32 %v8093, %v8105
      %v8114 = vadd.f32 %v8094, %v8105
      %v8115 = vadd.f32 %v8095, %v8105
      %v8116 = vadd.f32 %v8096, %v8105
      %v8117 = vadd.f32 %v8097, %v8105
      %v8118 = vadd.f32 %v8098, %v8105
      %v8119 = vadd.f32 %v8099, %v8105
      %v8120 = vadd.f32 %v8100, %v8105
      %v8121 = vadd.f32 %v8101, %v8105
      %v8122 = vadd.f32 %v8102, %v8105
      %v8123 = vmax.f32 %v8107, 0.0
      %v8124 = vmax.f32 %v8108, 0.0
      %v8125 = vmax.f32 %v8109, 0.0
      %v8126 = vmax.f32 %v8110, 0.0
      %v8127 = vmax.f32 %v8111, 0.0
      %v8128 = vmax.f32 %v8112, 0.0
      %v8129 = vmax.f32 %v8113, 0.0
      %v8130 = vmax.f32 %v8114, 0.0
      %v8131 = vmax.f32 %v8115, 0.0
      %v8132 = vmax.f32 %v8116, 0.0
      %v8133 = vmax.f32 %v8117, 0.0
      %v8134 = vmax.f32 %v8118, 0.0
      %v8135 = vmax.f32 %v8119, 0.0
      %v8136 = vmax.f32 %v8120, 0.0
      %v8137 = vmax.f32 %v8121, 0.0
      %v8138 = vmax.f32 %v8122, 0.0
      %8139 = vst [vmem:[%s325] sm:$0xff] %v8123
      %8140 = vst [vmem:[%s325 + $0x8] sm:$0xff] %v8124
      %8141 = vst [vmem:[%s325 + $0x10] sm:$0xff] %v8125
      %8142 = vst [vmem:[%s325 + $0x18] sm:$0xff] %v8126
      %8143 = vst [vmem:[%s325 + $0x20] sm:$0xff] %v8127
      %8144 = vst [vmem:[%s325 + $0x28] sm:$0xff] %v8128
      %8145 = vst [vmem:[%s325 + $0x30] sm:$0xff] %v8129
      %8146 = vst [vmem:[%s325 + $0x38] sm:$0xff] %v8130
      %8147 = vst [vmem:[%s325 + $0x40] sm:$0xff] %v8131
      %8148 = vst [vmem:[%s325 + $0x48] sm:$0xff] %v8132
      %8149 = vst [vmem:[%s325 + $0x50] sm:$0xff] %v8133
      %8150 = vst [vmem:[%s325 + $0x58] sm:$0xff] %v8134
      %8151 = vst [vmem:[%s325 + $0x60] sm:$0xff] %v8135
      %8152 = vst [vmem:[%s325 + $0x68] sm:$0xff] %v8136
      %8153 = vst [vmem:[%s325 + $0x70] sm:$0xff] %v8137
      %8154 = vst [vmem:[%s325 + $0x78] sm:$0xff] %v8138
      %s8155 = scalar_lea.vmem [#allocation3], 96
      %v8156 = vld [vmem:[%s8155] sm:$0xf]
      %v8157 = vld [vmem:[%s8155 + $0x4] sm:$0xf]
      %v8158 = vld [vmem:[%s8155 + $0xc] sm:$0xf]
      %v8159 = vld [vmem:[%s8155 + $0x10] sm:$0xf]
      %v8160 = vld [vmem:[%s8155 + $0x18] sm:$0xf]
      %v8161 = vld [vmem:[%s8155 + $0x1c] sm:$0xf]
      %v8162 = vld [vmem:[%s8155 + $0x24] sm:$0xf]
      %v8163 = vld [vmem:[%s8155 + $0x28] sm:$0xf]
      %v8164 = vld [vmem:[%s8155 + $0x30] sm:$0xf]
      %v8165 = vld [vmem:[%s8155 + $0x34] sm:$0xf]
      %v8166 = vld [vmem:[%s8155 + $0x3c] sm:$0xf]
      %v8167 = vld [vmem:[%s8155 + $0x40] sm:$0xf]
      %v8168 = vld [vmem:[%s8155 + $0x48] sm:$0xf]
      %v8169 = vld [vmem:[%s8155 + $0x4c] sm:$0xf]
      %v8170 = vld [vmem:[%s8155 + $0x54] sm:$0xf]
      %v8171 = vld [vmem:[%s8155 + $0x58] sm:$0xf]
      %v8172 = vld [vmem:[%s5] sm:$0x3]
      %v8173 = vld [vmem:[%s8155 + $0x8] sm:$0x1]
      %v8174 = vld [vmem:[%s8155 + $0x14] sm:$0x1]
      %v8175 = vld [vmem:[%s8155 + $0x20] sm:$0x1]
      %v8176 = vld [vmem:[%s8155 + $0x2c] sm:$0x1]
      %v8177 = vld [vmem:[%s8155 + $0x38] sm:$0x1]
      %v8178 = vld [vmem:[%s8155 + $0x44] sm:$0x1]
      %v8179 = vld [vmem:[%s8155 + $0x50] sm:$0x1]
      %v8180 = vld [vmem:[%s8155 + $0x5c] sm:$0x1]
      %v8182 = vshrl.u32 %v8156, 16
      %v8184 = vrot.slane %v8182, 4
      %v8185 = vshll.u32 %v8156, 16
      %v8187 = vrot.slane %v8185, 5
      %v8188 = vor.u32 %v8184, %v8187
      %v8189 = vrot.slane %v8188, 4
      %v8191 = vshll.u32 %v8157, 16
      %v8193 = vrot.slane %v8191, 5
      %v8194 = vsel %vm1486, %v8189, %v8193
      %v8195 = vshrl.u32 %v8157, 16
      %v8197 = vrot.slane %v8195, 4
      %v8198 = vor.u32 %v8197, %v8193
      %v8199 = vrot.slane %v8198, 4
      %v8201 = vshll.u32 %v8173, 16
      %v8203 = vrot.slane %v8201, 5
      %v8204 = vsel %vm1486, %v8199, %v8203
      %v8206 = vshrl.u32 %v8158, 16
      %v8208 = vrot.slane %v8206, 4
      %v8209 = vshll.u32 %v8158, 16
      %v8211 = vrot.slane %v8209, 5
      %v8212 = vor.u32 %v8208, %v8211
      %v8213 = vrot.slane %v8212, 4
      %v8215 = vshll.u32 %v8159, 16
      %v8217 = vrot.slane %v8215, 5
      %v8218 = vsel %vm1486, %v8213, %v8217
      %v8219 = vshrl.u32 %v8159, 16
      %v8221 = vrot.slane %v8219, 4
      %v8222 = vor.u32 %v8221, %v8217
      %v8223 = vrot.slane %v8222, 4
      %v8225 = vshll.u32 %v8174, 16
      %v8227 = vrot.slane %v8225, 5
      %v8228 = vsel %vm1486, %v8223, %v8227
      %v8230 = vshrl.u32 %v8160, 16
      %v8232 = vrot.slane %v8230, 4
      %v8233 = vshll.u32 %v8160, 16
      %v8235 = vrot.slane %v8233, 5
      %v8236 = vor.u32 %v8232, %v8235
      %v8237 = vrot.slane %v8236, 4
      %v8239 = vshll.u32 %v8161, 16
      %v8241 = vrot.slane %v8239, 5
      %v8242 = vsel %vm1486, %v8237, %v8241
      %v8243 = vshrl.u32 %v8161, 16
      %v8245 = vrot.slane %v8243, 4
      %v8246 = vor.u32 %v8245, %v8241
      %v8247 = vrot.slane %v8246, 4
      %v8249 = vshll.u32 %v8175, 16
      %v8251 = vrot.slane %v8249, 5
      %v8252 = vsel %vm1486, %v8247, %v8251
      %v8254 = vshrl.u32 %v8162, 16
      %v8256 = vrot.slane %v8254, 4
      %v8257 = vshll.u32 %v8162, 16
      %v8259 = vrot.slane %v8257, 5
      %v8260 = vor.u32 %v8256, %v8259
      %v8261 = vrot.slane %v8260, 4
      %v8263 = vshll.u32 %v8163, 16
      %v8265 = vrot.slane %v8263, 5
      %v8266 = vsel %vm1486, %v8261, %v8265
      %v8267 = vshrl.u32 %v8163, 16
      %v8269 = vrot.slane %v8267, 4
      %v8270 = vor.u32 %v8269, %v8265
      %v8271 = vrot.slane %v8270, 4
      %v8273 = vshll.u32 %v8176, 16
      %v8275 = vrot.slane %v8273, 5
      %v8276 = vsel %vm1486, %v8271, %v8275
      %v8278 = vshrl.u32 %v8164, 16
      %v8280 = vrot.slane %v8278, 4
      %v8281 = vshll.u32 %v8164, 16
      %v8283 = vrot.slane %v8281, 5
      %v8284 = vor.u32 %v8280, %v8283
      %v8285 = vrot.slane %v8284, 4
      %v8287 = vshll.u32 %v8165, 16
      %v8289 = vrot.slane %v8287, 5
      %v8290 = vsel %vm1486, %v8285, %v8289
      %v8291 = vshrl.u32 %v8165, 16
      %v8293 = vrot.slane %v8291, 4
      %v8294 = vor.u32 %v8293, %v8289
      %v8295 = vrot.slane %v8294, 4
      %v8297 = vshll.u32 %v8177, 16
      %v8299 = vrot.slane %v8297, 5
      %v8300 = vsel %vm1486, %v8295, %v8299
      %v8302 = vshrl.u32 %v8166, 16
      %v8304 = vrot.slane %v8302, 4
      %v8305 = vshll.u32 %v8166, 16
      %v8307 = vrot.slane %v8305, 5
      %v8308 = vor.u32 %v8304, %v8307
      %v8309 = vrot.slane %v8308, 4
      %v8311 = vshll.u32 %v8167, 16
      %v8313 = vrot.slane %v8311, 5
      %v8314 = vsel %vm1486, %v8309, %v8313
      %v8315 = vshrl.u32 %v8167, 16
      %v8317 = vrot.slane %v8315, 4
      %v8318 = vor.u32 %v8317, %v8313
      %v8319 = vrot.slane %v8318, 4
      %v8321 = vshll.u32 %v8178, 16
      %v8323 = vrot.slane %v8321, 5
      %v8324 = vsel %vm1486, %v8319, %v8323
      %v8326 = vshrl.u32 %v8168, 16
      %v8328 = vrot.slane %v8326, 4
      %v8329 = vshll.u32 %v8168, 16
      %v8331 = vrot.slane %v8329, 5
      %v8332 = vor.u32 %v8328, %v8331
      %v8333 = vrot.slane %v8332, 4
      %v8335 = vshll.u32 %v8169, 16
      %v8337 = vrot.slane %v8335, 5
      %v8338 = vsel %vm1486, %v8333, %v8337
      %v8339 = vshrl.u32 %v8169, 16
      %v8341 = vrot.slane %v8339, 4
      %v8342 = vor.u32 %v8341, %v8337
      %v8343 = vrot.slane %v8342, 4
      %v8345 = vshll.u32 %v8179, 16
      %v8347 = vrot.slane %v8345, 5
      %v8348 = vsel %vm1486, %v8343, %v8347
      %v8350 = vshrl.u32 %v8170, 16
      %v8352 = vrot.slane %v8350, 4
      %v8353 = vshll.u32 %v8170, 16
      %v8355 = vrot.slane %v8353, 5
      %v8356 = vor.u32 %v8352, %v8355
      %v8357 = vrot.slane %v8356, 4
      %v8359 = vshll.u32 %v8171, 16
      %v8361 = vrot.slane %v8359, 5
      %v8362 = vsel %vm1486, %v8357, %v8361
      %v8363 = vshrl.u32 %v8171, 16
      %v8365 = vrot.slane %v8363, 4
      %v8366 = vor.u32 %v8365, %v8361
      %v8367 = vrot.slane %v8366, 4
      %v8369 = vshll.u32 %v8180, 16
      %v8371 = vrot.slane %v8369, 5
      %v8372 = vsel %vm1486, %v8367, %v8371
      %v8373 = vld [vmem:[%s6284] sm:$0x3]
      %v8374 = vunpack.c.l.b16 %v8194
      %v8375 = vunpack.c.l.b16 %v8204
      %v8376 = vunpack.c.l.b16 %v8218
      %v8377 = vunpack.c.l.b16 %v8228
      %v8378 = vunpack.c.l.b16 %v8242
      %v8379 = vunpack.c.l.b16 %v8252
      %v8380 = vunpack.c.l.b16 %v8266
      %v8381 = vunpack.c.l.b16 %v8276
      %v8382 = vunpack.c.l.b16 %v8290
      %v8383 = vunpack.c.l.b16 %v8300
      %v8384 = vunpack.c.l.b16 %v8314
      %v8385 = vunpack.c.l.b16 %v8324
      %v8386 = vunpack.c.l.b16 %v8338
      %v8387 = vunpack.c.l.b16 %v8348
      %v8388 = vunpack.c.l.b16 %v8362
      %v8389 = vunpack.c.l.b16 %v8372
      %v8390 = vpack.c.b16 %v8375, %v8374
      %v8391 = vpack.c.b16 %v8377, %v8376
      %v8392 = vpack.c.b16 %v8379, %v8378
      %v8393 = vpack.c.b16 %v8381, %v8380
      %v8394 = vpack.c.b16 %v8383, %v8382
      %v8395 = vpack.c.b16 %v8385, %v8384
      %v8396 = vpack.c.b16 %v8387, %v8386
      %v8397 = vpack.c.b16 %v8389, %v8388
      %v8399 = vsel %vm6310, %v8390, 0
      %v8402 = vsel %vm6310, %v8391, 0
      %v8405 = vsel %vm6310, %v8392, 0
      %v8408 = vsel %vm6310, %v8393, 0
      %v8411 = vsel %vm6310, %v8394, 0
      %v8414 = vsel %vm6310, %v8395, 0
      %v8417 = vsel %vm6310, %v8396, 0
      %v8420 = vsel %vm6310, %v8397, 0
      %v8423 = vsel %vm6335, %v8373, 0
      %8425 = vmatpush.bf16.msra.mxu0 0
      %8426 = vmatpush.bf16.msra.mxu0 0
      %8427 = vmatpush.bf16.msra.mxu0 0
      %8428 = vmatpush.bf16.msra.mxu0 0
      %8429 = vmatpush.bf16.msra.mxu0 0
      %8430 = vmatpush.bf16.msra.mxu0 0
      %8431 = vmatpush.bf16.msra.mxu0 0
      %8432 = vmatpush.bf16.msra.mxu0 %v8423
      %8433 = vmatmul.bf16.gmra.mxu0 %v8399
      %v8434 = vpop.f32.mrf.mxu0
      %v8435 = vadd.f32 0.0, %v8434
      %v8436 = vpop.f32.mrf.mxu0
      %v8437 = vadd.f32 0.0, %v8436
      %8438 = vmatmul.bf16.gmra.mxu0 %v8402
      %v8439 = vpop.f32.mrf.mxu0
      %v8440 = vadd.f32 0.0, %v8439
      %v8441 = vpop.f32.mrf.mxu0
      %v8442 = vadd.f32 0.0, %v8441
      %8443 = vmatmul.bf16.gmra.mxu0 %v8405
      %v8444 = vpop.f32.mrf.mxu0
      %v8445 = vadd.f32 0.0, %v8444
      %v8446 = vpop.f32.mrf.mxu0
      %v8447 = vadd.f32 0.0, %v8446
      %8448 = vmatmul.bf16.gmra.mxu0 %v8408
      %v8449 = vpop.f32.mrf.mxu0
      %v8450 = vadd.f32 0.0, %v8449
      %v8451 = vpop.f32.mrf.mxu0
      %v8452 = vadd.f32 0.0, %v8451
      %8453 = vmatmul.bf16.gmra.mxu0 %v8411
      %v8454 = vpop.f32.mrf.mxu0
      %v8455 = vadd.f32 0.0, %v8454
      %v8456 = vpop.f32.mrf.mxu0
      %v8457 = vadd.f32 0.0, %v8456
      %8458 = vmatmul.bf16.gmra.mxu0 %v8414
      %v8459 = vpop.f32.mrf.mxu0
      %v8460 = vadd.f32 0.0, %v8459
      %v8461 = vpop.f32.mrf.mxu0
      %v8462 = vadd.f32 0.0, %v8461
      %8463 = vmatmul.bf16.gmra.mxu0 %v8417
      %v8464 = vpop.f32.mrf.mxu0
      %v8465 = vadd.f32 0.0, %v8464
      %v8466 = vpop.f32.mrf.mxu0
      %v8467 = vadd.f32 0.0, %v8466
      %8468 = vmatmul.bf16.gmra.mxu0 %v8420
      %v8469 = vpop.f32.mrf.mxu0
      %v8470 = vadd.f32 0.0, %v8469
      %v8471 = vpop.f32.mrf.mxu0
      %v8472 = vadd.f32 0.0, %v8471
      %8473 = vdwg.mxu0
      %v8490 = vunpack.c.l.b16 %v8156
      %v8491 = vunpack.c.l.b16 %v8157
      %v8492 = vunpack.c.l.b16 %v8158
      %v8493 = vunpack.c.l.b16 %v8159
      %v8494 = vunpack.c.l.b16 %v8160
      %v8495 = vunpack.c.l.b16 %v8161
      %v8496 = vunpack.c.l.b16 %v8162
      %v8497 = vunpack.c.l.b16 %v8163
      %v8498 = vunpack.c.l.b16 %v8164
      %v8499 = vunpack.c.l.b16 %v8165
      %v8500 = vunpack.c.l.b16 %v8166
      %v8501 = vunpack.c.l.b16 %v8167
      %v8502 = vunpack.c.l.b16 %v8168
      %v8503 = vunpack.c.l.b16 %v8169
      %v8504 = vunpack.c.l.b16 %v8170
      %v8505 = vunpack.c.l.b16 %v8171
      %v8506 = vpack.c.b16 %v8491, %v8490
      %v8507 = vpack.c.b16 %v8493, %v8492
      %v8508 = vpack.c.b16 %v8495, %v8494
      %v8509 = vpack.c.b16 %v8497, %v8496
      %v8510 = vpack.c.b16 %v8499, %v8498
      %v8511 = vpack.c.b16 %v8501, %v8500
      %v8512 = vpack.c.b16 %v8503, %v8502
      %v8513 = vpack.c.b16 %v8505, %v8504
      %v8515 = vsel %vm6310, %v8506, 0
      %v8518 = vsel %vm6310, %v8507, 0
      %v8521 = vsel %vm6310, %v8508, 0
      %v8524 = vsel %vm6310, %v8509, 0
      %v8527 = vsel %vm6310, %v8510, 0
      %v8530 = vsel %vm6310, %v8511, 0
      %v8533 = vsel %vm6310, %v8512, 0
      %v8536 = vsel %vm6310, %v8513, 0
      %v8539 = vsel %vm6335, %v8172, 0
      %8541 = vmatpush.bf16.msra.mxu0 0
      %8542 = vmatpush.bf16.msra.mxu0 0
      %8543 = vmatpush.bf16.msra.mxu0 0
      %8544 = vmatpush.bf16.msra.mxu0 0
      %8545 = vmatpush.bf16.msra.mxu0 0
      %8546 = vmatpush.bf16.msra.mxu0 0
      %8547 = vmatpush.bf16.msra.mxu0 0
      %8548 = vmatpush.bf16.msra.mxu0 %v8539
      %8549 = vmatmul.bf16.gmra.mxu0 %v8515
      %v8550 = vpop.f32.mrf.mxu0
      %v8551 = vadd.f32 %v8435, %v8550
      %v8552 = vpop.f32.mrf.mxu0
      %v8553 = vadd.f32 %v8437, %v8552
      %8554 = vmatmul.bf16.gmra.mxu0 %v8518
      %v8555 = vpop.f32.mrf.mxu0
      %v8556 = vadd.f32 %v8440, %v8555
      %v8557 = vpop.f32.mrf.mxu0
      %v8558 = vadd.f32 %v8442, %v8557
      %8559 = vmatmul.bf16.gmra.mxu0 %v8521
      %v8560 = vpop.f32.mrf.mxu0
      %v8561 = vadd.f32 %v8445, %v8560
      %v8562 = vpop.f32.mrf.mxu0
      %v8563 = vadd.f32 %v8447, %v8562
      %8564 = vmatmul.bf16.gmra.mxu0 %v8524
      %v8565 = vpop.f32.mrf.mxu0
      %v8566 = vadd.f32 %v8450, %v8565
      %v8567 = vpop.f32.mrf.mxu0
      %v8568 = vadd.f32 %v8452, %v8567
      %8569 = vmatmul.bf16.gmra.mxu0 %v8527
      %v8570 = vpop.f32.mrf.mxu0
      %v8571 = vadd.f32 %v8455, %v8570
      %v8572 = vpop.f32.mrf.mxu0
      %v8573 = vadd.f32 %v8457, %v8572
      %8574 = vmatmul.bf16.gmra.mxu0 %v8530
      %v8575 = vpop.f32.mrf.mxu0
      %v8576 = vadd.f32 %v8460, %v8575
      %v8577 = vpop.f32.mrf.mxu0
      %v8578 = vadd.f32 %v8462, %v8577
      %8579 = vmatmul.bf16.gmra.mxu0 %v8533
      %v8580 = vpop.f32.mrf.mxu0
      %v8581 = vadd.f32 %v8465, %v8580
      %v8582 = vpop.f32.mrf.mxu0
      %v8583 = vadd.f32 %v8467, %v8582
      %8584 = vmatmul.bf16.gmra.mxu0 %v8536
      %v8585 = vpop.f32.mrf.mxu0
      %v8586 = vadd.f32 %v8470, %v8585
      %v8587 = vpop.f32.mrf.mxu0
      %v8588 = vadd.f32 %v8472, %v8587
      %8589 = vdwg.mxu0
      %v8590 = vld [vmem:[%s8155] sm:$0xe]
      %v8591 = vld [vmem:[%s8155 + $0xc] sm:$0xe]
      %v8592 = vld [vmem:[%s8155 + $0x18] sm:$0xe]
      %v8593 = vld [vmem:[%s8155 + $0x24] sm:$0xe]
      %v8594 = vld [vmem:[%s8155 + $0x30] sm:$0xe]
      %v8595 = vld [vmem:[%s8155 + $0x3c] sm:$0xe]
      %v8596 = vld [vmem:[%s8155 + $0x48] sm:$0xe]
      %v8597 = vld [vmem:[%s8155 + $0x54] sm:$0xe]
      %v8614 = vrot.slane %v8590, 5
      %v8615 = vrot.slane %v8614, 4
      %v8616 = vrot.slane %v8157, 5
      %v8617 = vsel %vm1925, %v8615, %v8616
      %v8618 = vrot.slane %v8616, 4
      %v8619 = vrot.slane %v8173, 5
      %v8620 = vsel %vm1925, %v8618, %v8619
      %v8621 = vrot.slane %v8591, 5
      %v8622 = vrot.slane %v8621, 4
      %v8623 = vrot.slane %v8159, 5
      %v8624 = vsel %vm1925, %v8622, %v8623
      %v8625 = vrot.slane %v8623, 4
      %v8626 = vrot.slane %v8174, 5
      %v8627 = vsel %vm1925, %v8625, %v8626
      %v8628 = vrot.slane %v8592, 5
      %v8629 = vrot.slane %v8628, 4
      %v8630 = vrot.slane %v8161, 5
      %v8631 = vsel %vm1925, %v8629, %v8630
      %v8632 = vrot.slane %v8630, 4
      %v8633 = vrot.slane %v8175, 5
      %v8634 = vsel %vm1925, %v8632, %v8633
      %v8635 = vrot.slane %v8593, 5
      %v8636 = vrot.slane %v8635, 4
      %v8637 = vrot.slane %v8163, 5
      %v8638 = vsel %vm1925, %v8636, %v8637
      %v8639 = vrot.slane %v8637, 4
      %v8640 = vrot.slane %v8176, 5
      %v8641 = vsel %vm1925, %v8639, %v8640
      %v8642 = vrot.slane %v8594, 5
      %v8643 = vrot.slane %v8642, 4
      %v8644 = vrot.slane %v8165, 5
      %v8645 = vsel %vm1925, %v8643, %v8644
      %v8646 = vrot.slane %v8644, 4
      %v8647 = vrot.slane %v8177, 5
      %v8648 = vsel %vm1925, %v8646, %v8647
      %v8649 = vrot.slane %v8595, 5
      %v8650 = vrot.slane %v8649, 4
      %v8651 = vrot.slane %v8167, 5
      %v8652 = vsel %vm1925, %v8650, %v8651
      %v8653 = vrot.slane %v8651, 4
      %v8654 = vrot.slane %v8178, 5
      %v8655 = vsel %vm1925, %v8653, %v8654
      %v8656 = vrot.slane %v8596, 5
      %v8657 = vrot.slane %v8656, 4
      %v8658 = vrot.slane %v8169, 5
      %v8659 = vsel %vm1925, %v8657, %v8658
      %v8660 = vrot.slane %v8658, 4
      %v8661 = vrot.slane %v8179, 5
      %v8662 = vsel %vm1925, %v8660, %v8661
      %v8663 = vrot.slane %v8597, 5
      %v8664 = vrot.slane %v8663, 4
      %v8665 = vrot.slane %v8171, 5
      %v8666 = vsel %vm1925, %v8664, %v8665
      %v8667 = vrot.slane %v8665, 4
      %v8668 = vrot.slane %v8180, 5
      %v8669 = vsel %vm1925, %v8667, %v8668
      %v8670 = vld [vmem:[%s6584] sm:$0x3]
      %v8671 = vunpack.c.l.b16 %v8617
      %v8672 = vunpack.c.l.b16 %v8620
      %v8673 = vunpack.c.l.b16 %v8624
      %v8674 = vunpack.c.l.b16 %v8627
      %v8675 = vunpack.c.l.b16 %v8631
      %v8676 = vunpack.c.l.b16 %v8634
      %v8677 = vunpack.c.l.b16 %v8638
      %v8678 = vunpack.c.l.b16 %v8641
      %v8679 = vunpack.c.l.b16 %v8645
      %v8680 = vunpack.c.l.b16 %v8648
      %v8681 = vunpack.c.l.b16 %v8652
      %v8682 = vunpack.c.l.b16 %v8655
      %v8683 = vunpack.c.l.b16 %v8659
      %v8684 = vunpack.c.l.b16 %v8662
      %v8685 = vunpack.c.l.b16 %v8666
      %v8686 = vunpack.c.l.b16 %v8669
      %v8687 = vpack.c.b16 %v8672, %v8671
      %v8688 = vpack.c.b16 %v8674, %v8673
      %v8689 = vpack.c.b16 %v8676, %v8675
      %v8690 = vpack.c.b16 %v8678, %v8677
      %v8691 = vpack.c.b16 %v8680, %v8679
      %v8692 = vpack.c.b16 %v8682, %v8681
      %v8693 = vpack.c.b16 %v8684, %v8683
      %v8694 = vpack.c.b16 %v8686, %v8685
      %v8696 = vsel %vm6310, %v8687, 0
      %v8699 = vsel %vm6310, %v8688, 0
      %v8702 = vsel %vm6310, %v8689, 0
      %v8705 = vsel %vm6310, %v8690, 0
      %v8708 = vsel %vm6310, %v8691, 0
      %v8711 = vsel %vm6310, %v8692, 0
      %v8714 = vsel %vm6310, %v8693, 0
      %v8717 = vsel %vm6310, %v8694, 0
      %v8720 = vsel %vm6335, %v8670, 0
      %8722 = vmatpush.bf16.msra.mxu0 0
      %8723 = vmatpush.bf16.msra.mxu0 0
      %8724 = vmatpush.bf16.msra.mxu0 0
      %8725 = vmatpush.bf16.msra.mxu0 0
      %8726 = vmatpush.bf16.msra.mxu0 0
      %8727 = vmatpush.bf16.msra.mxu0 0
      %8728 = vmatpush.bf16.msra.mxu0 0
      %8729 = vmatpush.bf16.msra.mxu0 %v8720
      %8730 = vmatmul.bf16.gmra.mxu0 %v8696
      %v8731 = vpop.f32.mrf.mxu0
      %v8732 = vadd.f32 0.0, %v8731
      %v8733 = vpop.f32.mrf.mxu0
      %v8734 = vadd.f32 0.0, %v8733
      %8735 = vmatmul.bf16.gmra.mxu0 %v8699
      %v8736 = vpop.f32.mrf.mxu0
      %v8737 = vadd.f32 0.0, %v8736
      %v8738 = vpop.f32.mrf.mxu0
      %v8739 = vadd.f32 0.0, %v8738
      %8740 = vmatmul.bf16.gmra.mxu0 %v8702
      %v8741 = vpop.f32.mrf.mxu0
      %v8742 = vadd.f32 0.0, %v8741
      %v8743 = vpop.f32.mrf.mxu0
      %v8744 = vadd.f32 0.0, %v8743
      %8745 = vmatmul.bf16.gmra.mxu0 %v8705
      %v8746 = vpop.f32.mrf.mxu0
      %v8747 = vadd.f32 0.0, %v8746
      %v8748 = vpop.f32.mrf.mxu0
      %v8749 = vadd.f32 0.0, %v8748
      %8750 = vmatmul.bf16.gmra.mxu0 %v8708
      %v8751 = vpop.f32.mrf.mxu0
      %v8752 = vadd.f32 0.0, %v8751
      %v8753 = vpop.f32.mrf.mxu0
      %v8754 = vadd.f32 0.0, %v8753
      %8755 = vmatmul.bf16.gmra.mxu0 %v8711
      %v8756 = vpop.f32.mrf.mxu0
      %v8757 = vadd.f32 0.0, %v8756
      %v8758 = vpop.f32.mrf.mxu0
      %v8759 = vadd.f32 0.0, %v8758
      %8760 = vmatmul.bf16.gmra.mxu0 %v8714
      %v8761 = vpop.f32.mrf.mxu0
      %v8762 = vadd.f32 0.0, %v8761
      %v8763 = vpop.f32.mrf.mxu0
      %v8764 = vadd.f32 0.0, %v8763
      %8765 = vmatmul.bf16.gmra.mxu0 %v8717
      %v8766 = vpop.f32.mrf.mxu0
      %v8767 = vadd.f32 0.0, %v8766
      %v8768 = vpop.f32.mrf.mxu0
      %v8769 = vadd.f32 0.0, %v8768
      %8770 = vdwg.mxu0
      %v8771 = vadd.f32 %v8551, %v8732
      %v8772 = vadd.f32 %v8553, %v8734
      %v8773 = vadd.f32 %v8556, %v8737
      %v8774 = vadd.f32 %v8558, %v8739
      %v8775 = vadd.f32 %v8561, %v8742
      %v8776 = vadd.f32 %v8563, %v8744
      %v8777 = vadd.f32 %v8566, %v8747
      %v8778 = vadd.f32 %v8568, %v8749
      %v8779 = vadd.f32 %v8571, %v8752
      %v8780 = vadd.f32 %v8573, %v8754
      %v8781 = vadd.f32 %v8576, %v8757
      %v8782 = vadd.f32 %v8578, %v8759
      %v8783 = vadd.f32 %v8581, %v8762
      %v8784 = vadd.f32 %v8583, %v8764
      %v8785 = vadd.f32 %v8586, %v8767
      %v8786 = vadd.f32 %v8588, %v8769
      %v8787 = vld [vmem:[%s6010] sm:$0xf]
      %v8788 = vld [vmem:[%s6010 + $0x4] sm:$0xf]
      %v8789 = vld [vmem:[%s6010 + $0xc] sm:$0xf]
      %v8790 = vld [vmem:[%s6010 + $0x10] sm:$0xf]
      %v8791 = vld [vmem:[%s6010 + $0x18] sm:$0xf]
      %v8792 = vld [vmem:[%s6010 + $0x1c] sm:$0xf]
      %v8793 = vld [vmem:[%s6010 + $0x24] sm:$0xf]
      %v8794 = vld [vmem:[%s6010 + $0x28] sm:$0xf]
      %v8795 = vld [vmem:[%s6010 + $0x30] sm:$0xf]
      %v8796 = vld [vmem:[%s6010 + $0x34] sm:$0xf]
      %v8797 = vld [vmem:[%s6010 + $0x3c] sm:$0xf]
      %v8798 = vld [vmem:[%s6010 + $0x40] sm:$0xf]
      %v8799 = vld [vmem:[%s6010 + $0x48] sm:$0xf]
      %v8800 = vld [vmem:[%s6010 + $0x4c] sm:$0xf]
      %v8801 = vld [vmem:[%s6010 + $0x54] sm:$0xf]
      %v8802 = vld [vmem:[%s6010 + $0x58] sm:$0xf]
      %v8803 = vld [vmem:[%s6718] sm:$0x3]
      %v8820 = vunpack.c.l.b16 %v8787
      %v8821 = vunpack.c.l.b16 %v8788
      %v8822 = vunpack.c.l.b16 %v8789
      %v8823 = vunpack.c.l.b16 %v8790
      %v8824 = vunpack.c.l.b16 %v8791
      %v8825 = vunpack.c.l.b16 %v8792
      %v8826 = vunpack.c.l.b16 %v8793
      %v8827 = vunpack.c.l.b16 %v8794
      %v8828 = vunpack.c.l.b16 %v8795
      %v8829 = vunpack.c.l.b16 %v8796
      %v8830 = vunpack.c.l.b16 %v8797
      %v8831 = vunpack.c.l.b16 %v8798
      %v8832 = vunpack.c.l.b16 %v8799
      %v8833 = vunpack.c.l.b16 %v8800
      %v8834 = vunpack.c.l.b16 %v8801
      %v8835 = vunpack.c.l.b16 %v8802
      %v8836 = vpack.c.b16 %v8821, %v8820
      %v8837 = vpack.c.b16 %v8823, %v8822
      %v8838 = vpack.c.b16 %v8825, %v8824
      %v8839 = vpack.c.b16 %v8827, %v8826
      %v8840 = vpack.c.b16 %v8829, %v8828
      %v8841 = vpack.c.b16 %v8831, %v8830
      %v8842 = vpack.c.b16 %v8833, %v8832
      %v8843 = vpack.c.b16 %v8835, %v8834
      %v8845 = vsel %vm6310, %v8836, 0
      %v8848 = vsel %vm6310, %v8837, 0
      %v8851 = vsel %vm6310, %v8838, 0
      %v8854 = vsel %vm6310, %v8839, 0
      %v8857 = vsel %vm6310, %v8840, 0
      %v8860 = vsel %vm6310, %v8841, 0
      %v8863 = vsel %vm6310, %v8842, 0
      %v8866 = vsel %vm6310, %v8843, 0
      %v8869 = vsel %vm6335, %v8803, 0
      %8871 = vmatpush.bf16.msra.mxu0 0
      %8872 = vmatpush.bf16.msra.mxu0 0
      %8873 = vmatpush.bf16.msra.mxu0 0
      %8874 = vmatpush.bf16.msra.mxu0 0
      %8875 = vmatpush.bf16.msra.mxu0 0
      %8876 = vmatpush.bf16.msra.mxu0 0
      %8877 = vmatpush.bf16.msra.mxu0 0
      %8878 = vmatpush.bf16.msra.mxu0 %v8869
      %8879 = vmatmul.bf16.gmra.mxu0 %v8845
      %v8880 = vpop.f32.mrf.mxu0
      %v8881 = vadd.f32 0.0, %v8880
      %v8882 = vpop.f32.mrf.mxu0
      %v8883 = vadd.f32 0.0, %v8882
      %8884 = vmatmul.bf16.gmra.mxu0 %v8848
      %v8885 = vpop.f32.mrf.mxu0
      %v8886 = vadd.f32 0.0, %v8885
      %v8887 = vpop.f32.mrf.mxu0
      %v8888 = vadd.f32 0.0, %v8887
      %8889 = vmatmul.bf16.gmra.mxu0 %v8851
      %v8890 = vpop.f32.mrf.mxu0
      %v8891 = vadd.f32 0.0, %v8890
      %v8892 = vpop.f32.mrf.mxu0
      %v8893 = vadd.f32 0.0, %v8892
      %8894 = vmatmul.bf16.gmra.mxu0 %v8854
      %v8895 = vpop.f32.mrf.mxu0
      %v8896 = vadd.f32 0.0, %v8895
      %v8897 = vpop.f32.mrf.mxu0
      %v8898 = vadd.f32 0.0, %v8897
      %8899 = vmatmul.bf16.gmra.mxu0 %v8857
      %v8900 = vpop.f32.mrf.mxu0
      %v8901 = vadd.f32 0.0, %v8900
      %v8902 = vpop.f32.mrf.mxu0
      %v8903 = vadd.f32 0.0, %v8902
      %8904 = vmatmul.bf16.gmra.mxu0 %v8860
      %v8905 = vpop.f32.mrf.mxu0
      %v8906 = vadd.f32 0.0, %v8905
      %v8907 = vpop.f32.mrf.mxu0
      %v8908 = vadd.f32 0.0, %v8907
      %8909 = vmatmul.bf16.gmra.mxu0 %v8863
      %v8910 = vpop.f32.mrf.mxu0
      %v8911 = vadd.f32 0.0, %v8910
      %v8912 = vpop.f32.mrf.mxu0
      %v8913 = vadd.f32 0.0, %v8912
      %8914 = vmatmul.bf16.gmra.mxu0 %v8866
      %v8915 = vpop.f32.mrf.mxu0
      %v8916 = vadd.f32 0.0, %v8915
      %v8917 = vpop.f32.mrf.mxu0
      %v8918 = vadd.f32 0.0, %v8917
      %8919 = vdwg.mxu0
      %v8920 = vadd.f32 %v8771, %v8881
      %v8921 = vadd.f32 %v8772, %v8883
      %v8922 = vadd.f32 %v8773, %v8886
      %v8923 = vadd.f32 %v8774, %v8888
      %v8924 = vadd.f32 %v8775, %v8891
      %v8925 = vadd.f32 %v8776, %v8893
      %v8926 = vadd.f32 %v8777, %v8896
      %v8927 = vadd.f32 %v8778, %v8898
      %v8928 = vadd.f32 %v8779, %v8901
      %v8929 = vadd.f32 %v8780, %v8903
      %v8930 = vadd.f32 %v8781, %v8906
      %v8931 = vadd.f32 %v8782, %v8908
      %v8932 = vadd.f32 %v8783, %v8911
      %v8933 = vadd.f32 %v8784, %v8913
      %v8934 = vadd.f32 %v8785, %v8916
      %v8935 = vadd.f32 %v8786, %v8918
      %v8936 = vld [vmem:[%s6010] sm:$0xf]
      %v8937 = vld [vmem:[%s6010 + $0x4] sm:$0xf]
      %v8938 = vld [vmem:[%s6010 + $0x8] sm:$0x1]
      %v8939 = vld [vmem:[%s6010 + $0xc] sm:$0xf]
      %v8940 = vld [vmem:[%s6010 + $0x10] sm:$0xf]
      %v8941 = vld [vmem:[%s6010 + $0x14] sm:$0x1]
      %v8942 = vld [vmem:[%s6010 + $0x18] sm:$0xf]
      %v8943 = vld [vmem:[%s6010 + $0x1c] sm:$0xf]
      %v8944 = vld [vmem:[%s6010 + $0x20] sm:$0x1]
      %v8945 = vld [vmem:[%s6010 + $0x24] sm:$0xf]
      %v8946 = vld [vmem:[%s6010 + $0x28] sm:$0xf]
      %v8947 = vld [vmem:[%s6010 + $0x2c] sm:$0x1]
      %v8948 = vld [vmem:[%s6010 + $0x30] sm:$0xf]
      %v8949 = vld [vmem:[%s6010 + $0x34] sm:$0xf]
      %v8950 = vld [vmem:[%s6010 + $0x38] sm:$0x1]
      %v8951 = vld [vmem:[%s6010 + $0x3c] sm:$0xf]
      %v8952 = vld [vmem:[%s6010 + $0x40] sm:$0xf]
      %v8953 = vld [vmem:[%s6010 + $0x44] sm:$0x1]
      %v8954 = vld [vmem:[%s6010 + $0x48] sm:$0xf]
      %v8955 = vld [vmem:[%s6010 + $0x4c] sm:$0xf]
      %v8956 = vld [vmem:[%s6010 + $0x50] sm:$0x1]
      %v8957 = vld [vmem:[%s6010 + $0x54] sm:$0xf]
      %v8958 = vld [vmem:[%s6010 + $0x58] sm:$0xf]
      %v8959 = vld [vmem:[%s6010 + $0x5c] sm:$0x1]
      %v8961 = vshrl.u32 %v8936, 16
      %v8963 = vrot.slane %v8961, 4
      %v8964 = vshll.u32 %v8936, 16
      %v8966 = vrot.slane %v8964, 5
      %v8967 = vor.u32 %v8963, %v8966
      %v8968 = vrot.slane %v8967, 4
      %v8970 = vshll.u32 %v8937, 16
      %v8972 = vrot.slane %v8970, 5
      %v8973 = vsel %vm1486, %v8968, %v8972
      %v8974 = vshrl.u32 %v8937, 16
      %v8976 = vrot.slane %v8974, 4
      %v8977 = vor.u32 %v8976, %v8972
      %v8978 = vrot.slane %v8977, 4
      %v8980 = vshll.u32 %v8938, 16
      %v8982 = vrot.slane %v8980, 5
      %v8983 = vsel %vm1486, %v8978, %v8982
      %v8985 = vshrl.u32 %v8939, 16
      %v8987 = vrot.slane %v8985, 4
      %v8988 = vshll.u32 %v8939, 16
      %v8990 = vrot.slane %v8988, 5
      %v8991 = vor.u32 %v8987, %v8990
      %v8992 = vrot.slane %v8991, 4
      %v8994 = vshll.u32 %v8940, 16
      %v8996 = vrot.slane %v8994, 5
      %v8997 = vsel %vm1486, %v8992, %v8996
      %v8998 = vshrl.u32 %v8940, 16
      %v9000 = vrot.slane %v8998, 4
      %v9001 = vor.u32 %v9000, %v8996
      %v9002 = vrot.slane %v9001, 4
      %v9004 = vshll.u32 %v8941, 16
      %v9006 = vrot.slane %v9004, 5
      %v9007 = vsel %vm1486, %v9002, %v9006
      %v9009 = vshrl.u32 %v8942, 16
      %v9011 = vrot.slane %v9009, 4
      %v9012 = vshll.u32 %v8942, 16
      %v9014 = vrot.slane %v9012, 5
      %v9015 = vor.u32 %v9011, %v9014
      %v9016 = vrot.slane %v9015, 4
      %v9018 = vshll.u32 %v8943, 16
      %v9020 = vrot.slane %v9018, 5
      %v9021 = vsel %vm1486, %v9016, %v9020
      %v9022 = vshrl.u32 %v8943, 16
      %v9024 = vrot.slane %v9022, 4
      %v9025 = vor.u32 %v9024, %v9020
      %v9026 = vrot.slane %v9025, 4
      %v9028 = vshll.u32 %v8944, 16
      %v9030 = vrot.slane %v9028, 5
      %v9031 = vsel %vm1486, %v9026, %v9030
      %v9033 = vshrl.u32 %v8945, 16
      %v9035 = vrot.slane %v9033, 4
      %v9036 = vshll.u32 %v8945, 16
      %v9038 = vrot.slane %v9036, 5
      %v9039 = vor.u32 %v9035, %v9038
      %v9040 = vrot.slane %v9039, 4
      %v9042 = vshll.u32 %v8946, 16
      %v9044 = vrot.slane %v9042, 5
      %v9045 = vsel %vm1486, %v9040, %v9044
      %v9046 = vshrl.u32 %v8946, 16
      %v9048 = vrot.slane %v9046, 4
      %v9049 = vor.u32 %v9048, %v9044
      %v9050 = vrot.slane %v9049, 4
      %v9052 = vshll.u32 %v8947, 16
      %v9054 = vrot.slane %v9052, 5
      %v9055 = vsel %vm1486, %v9050, %v9054
      %v9057 = vshrl.u32 %v8948, 16
      %v9059 = vrot.slane %v9057, 4
      %v9060 = vshll.u32 %v8948, 16
      %v9062 = vrot.slane %v9060, 5
      %v9063 = vor.u32 %v9059, %v9062
      %v9064 = vrot.slane %v9063, 4
      %v9066 = vshll.u32 %v8949, 16
      %v9068 = vrot.slane %v9066, 5
      %v9069 = vsel %vm1486, %v9064, %v9068
      %v9070 = vshrl.u32 %v8949, 16
      %v9072 = vrot.slane %v9070, 4
      %v9073 = vor.u32 %v9072, %v9068
      %v9074 = vrot.slane %v9073, 4
      %v9076 = vshll.u32 %v8950, 16
      %v9078 = vrot.slane %v9076, 5
      %v9079 = vsel %vm1486, %v9074, %v9078
      %v9081 = vshrl.u32 %v8951, 16
      %v9083 = vrot.slane %v9081, 4
      %v9084 = vshll.u32 %v8951, 16
      %v9086 = vrot.slane %v9084, 5
      %v9087 = vor.u32 %v9083, %v9086
      %v9088 = vrot.slane %v9087, 4
      %v9090 = vshll.u32 %v8952, 16
      %v9092 = vrot.slane %v9090, 5
      %v9093 = vsel %vm1486, %v9088, %v9092
      %v9094 = vshrl.u32 %v8952, 16
      %v9096 = vrot.slane %v9094, 4
      %v9097 = vor.u32 %v9096, %v9092
      %v9098 = vrot.slane %v9097, 4
      %v9100 = vshll.u32 %v8953, 16
      %v9102 = vrot.slane %v9100, 5
      %v9103 = vsel %vm1486, %v9098, %v9102
      %v9105 = vshrl.u32 %v8954, 16
      %v9107 = vrot.slane %v9105, 4
      %v9108 = vshll.u32 %v8954, 16
      %v9110 = vrot.slane %v9108, 5
      %v9111 = vor.u32 %v9107, %v9110
      %v9112 = vrot.slane %v9111, 4
      %v9114 = vshll.u32 %v8955, 16
      %v9116 = vrot.slane %v9114, 5
      %v9117 = vsel %vm1486, %v9112, %v9116
      %v9118 = vshrl.u32 %v8955, 16
      %v9120 = vrot.slane %v9118, 4
      %v9121 = vor.u32 %v9120, %v9116
      %v9122 = vrot.slane %v9121, 4
      %v9124 = vshll.u32 %v8956, 16
      %v9126 = vrot.slane %v9124, 5
      %v9127 = vsel %vm1486, %v9122, %v9126
      %v9129 = vshrl.u32 %v8957, 16
      %v9131 = vrot.slane %v9129, 4
      %v9132 = vshll.u32 %v8957, 16
      %v9134 = vrot.slane %v9132, 5
      %v9135 = vor.u32 %v9131, %v9134
      %v9136 = vrot.slane %v9135, 4
      %v9138 = vshll.u32 %v8958, 16
      %v9140 = vrot.slane %v9138, 5
      %v9141 = vsel %vm1486, %v9136, %v9140
      %v9142 = vshrl.u32 %v8958, 16
      %v9144 = vrot.slane %v9142, 4
      %v9145 = vor.u32 %v9144, %v9140
      %v9146 = vrot.slane %v9145, 4
      %v9148 = vshll.u32 %v8959, 16
      %v9150 = vrot.slane %v9148, 5
      %v9151 = vsel %vm1486, %v9146, %v9150
      %v9152 = vld [vmem:[%s7068] sm:$0x3]
      %v9153 = vunpack.c.l.b16 %v8973
      %v9154 = vunpack.c.l.b16 %v8983
      %v9155 = vunpack.c.l.b16 %v8997
      %v9156 = vunpack.c.l.b16 %v9007
      %v9157 = vunpack.c.l.b16 %v9021
      %v9158 = vunpack.c.l.b16 %v9031
      %v9159 = vunpack.c.l.b16 %v9045
      %v9160 = vunpack.c.l.b16 %v9055
      %v9161 = vunpack.c.l.b16 %v9069
      %v9162 = vunpack.c.l.b16 %v9079
      %v9163 = vunpack.c.l.b16 %v9093
      %v9164 = vunpack.c.l.b16 %v9103
      %v9165 = vunpack.c.l.b16 %v9117
      %v9166 = vunpack.c.l.b16 %v9127
      %v9167 = vunpack.c.l.b16 %v9141
      %v9168 = vunpack.c.l.b16 %v9151
      %v9169 = vpack.c.b16 %v9154, %v9153
      %v9170 = vpack.c.b16 %v9156, %v9155
      %v9171 = vpack.c.b16 %v9158, %v9157
      %v9172 = vpack.c.b16 %v9160, %v9159
      %v9173 = vpack.c.b16 %v9162, %v9161
      %v9174 = vpack.c.b16 %v9164, %v9163
      %v9175 = vpack.c.b16 %v9166, %v9165
      %v9176 = vpack.c.b16 %v9168, %v9167
      %v9178 = vsel %vm6310, %v9169, 0
      %v9181 = vsel %vm6310, %v9170, 0
      %v9184 = vsel %vm6310, %v9171, 0
      %v9187 = vsel %vm6310, %v9172, 0
      %v9190 = vsel %vm6310, %v9173, 0
      %v9193 = vsel %vm6310, %v9174, 0
      %v9196 = vsel %vm6310, %v9175, 0
      %v9199 = vsel %vm6310, %v9176, 0
      %v9202 = vsel %vm6335, %v9152, 0
      %9204 = vmatpush.bf16.msra.mxu0 0
      %9205 = vmatpush.bf16.msra.mxu0 0
      %9206 = vmatpush.bf16.msra.mxu0 0
      %9207 = vmatpush.bf16.msra.mxu0 0
      %9208 = vmatpush.bf16.msra.mxu0 0
      %9209 = vmatpush.bf16.msra.mxu0 0
      %9210 = vmatpush.bf16.msra.mxu0 0
      %9211 = vmatpush.bf16.msra.mxu0 %v9202
      %9212 = vmatmul.bf16.gmra.mxu0 %v9178
      %v9213 = vpop.f32.mrf.mxu0
      %v9214 = vadd.f32 0.0, %v9213
      %v9215 = vpop.f32.mrf.mxu0
      %v9216 = vadd.f32 0.0, %v9215
      %9217 = vmatmul.bf16.gmra.mxu0 %v9181
      %v9218 = vpop.f32.mrf.mxu0
      %v9219 = vadd.f32 0.0, %v9218
      %v9220 = vpop.f32.mrf.mxu0
      %v9221 = vadd.f32 0.0, %v9220
      %9222 = vmatmul.bf16.gmra.mxu0 %v9184
      %v9223 = vpop.f32.mrf.mxu0
      %v9224 = vadd.f32 0.0, %v9223
      %v9225 = vpop.f32.mrf.mxu0
      %v9226 = vadd.f32 0.0, %v9225
      %9227 = vmatmul.bf16.gmra.mxu0 %v9187
      %v9228 = vpop.f32.mrf.mxu0
      %v9229 = vadd.f32 0.0, %v9228
      %v9230 = vpop.f32.mrf.mxu0
      %v9231 = vadd.f32 0.0, %v9230
      %9232 = vmatmul.bf16.gmra.mxu0 %v9190
      %v9233 = vpop.f32.mrf.mxu0
      %v9234 = vadd.f32 0.0, %v9233
      %v9235 = vpop.f32.mrf.mxu0
      %v9236 = vadd.f32 0.0, %v9235
      %9237 = vmatmul.bf16.gmra.mxu0 %v9193
      %v9238 = vpop.f32.mrf.mxu0
      %v9239 = vadd.f32 0.0, %v9238
      %v9240 = vpop.f32.mrf.mxu0
      %v9241 = vadd.f32 0.0, %v9240
      %9242 = vmatmul.bf16.gmra.mxu0 %v9196
      %v9243 = vpop.f32.mrf.mxu0
      %v9244 = vadd.f32 0.0, %v9243
      %v9245 = vpop.f32.mrf.mxu0
      %v9246 = vadd.f32 0.0, %v9245
      %9247 = vmatmul.bf16.gmra.mxu0 %v9199
      %v9248 = vpop.f32.mrf.mxu0
      %v9249 = vadd.f32 0.0, %v9248
      %v9250 = vpop.f32.mrf.mxu0
      %v9251 = vadd.f32 0.0, %v9250
      %9252 = vdwg.mxu0
      %v9253 = vadd.f32 %v8920, %v9214
      %v9254 = vadd.f32 %v8921, %v9216
      %v9255 = vadd.f32 %v8922, %v9219
      %v9256 = vadd.f32 %v8923, %v9221
      %v9257 = vadd.f32 %v8924, %v9224
      %v9258 = vadd.f32 %v8925, %v9226
      %v9259 = vadd.f32 %v8926, %v9229
      %v9260 = vadd.f32 %v8927, %v9231
      %v9261 = vadd.f32 %v8928, %v9234
      %v9262 = vadd.f32 %v8929, %v9236
      %v9263 = vadd.f32 %v8930, %v9239
      %v9264 = vadd.f32 %v8931, %v9241
      %v9265 = vadd.f32 %v8932, %v9244
      %v9266 = vadd.f32 %v8933, %v9246
      %v9267 = vadd.f32 %v8934, %v9249
      %v9268 = vadd.f32 %v8935, %v9251
      %v9269 = vld [vmem:[%s6010] sm:$0xe]
      %v9270 = vld [vmem:[%s6010 + $0xc] sm:$0xe]
      %v9271 = vld [vmem:[%s6010 + $0x18] sm:$0xe]
      %v9272 = vld [vmem:[%s6010 + $0x24] sm:$0xe]
      %v9273 = vld [vmem:[%s6010 + $0x30] sm:$0xe]
      %v9274 = vld [vmem:[%s6010 + $0x3c] sm:$0xe]
      %v9275 = vld [vmem:[%s6010 + $0x48] sm:$0xe]
      %v9276 = vld [vmem:[%s6010 + $0x54] sm:$0xe]
      %v9301 = vrot.slane %v9269, 5
      %v9302 = vrot.slane %v9301, 4
      %v9303 = vrot.slane %v8937, 5
      %v9304 = vsel %vm1925, %v9302, %v9303
      %v9305 = vrot.slane %v9303, 4
      %v9306 = vrot.slane %v8938, 5
      %v9307 = vsel %vm1925, %v9305, %v9306
      %v9308 = vrot.slane %v9270, 5
      %v9309 = vrot.slane %v9308, 4
      %v9310 = vrot.slane %v8940, 5
      %v9311 = vsel %vm1925, %v9309, %v9310
      %v9312 = vrot.slane %v9310, 4
      %v9313 = vrot.slane %v8941, 5
      %v9314 = vsel %vm1925, %v9312, %v9313
      %v9315 = vrot.slane %v9271, 5
      %v9316 = vrot.slane %v9315, 4
      %v9317 = vrot.slane %v8943, 5
      %v9318 = vsel %vm1925, %v9316, %v9317
      %v9319 = vrot.slane %v9317, 4
      %v9320 = vrot.slane %v8944, 5
      %v9321 = vsel %vm1925, %v9319, %v9320
      %v9322 = vrot.slane %v9272, 5
      %v9323 = vrot.slane %v9322, 4
      %v9324 = vrot.slane %v8946, 5
      %v9325 = vsel %vm1925, %v9323, %v9324
      %v9326 = vrot.slane %v9324, 4
      %v9327 = vrot.slane %v8947, 5
      %v9328 = vsel %vm1925, %v9326, %v9327
      %v9329 = vrot.slane %v9273, 5
      %v9330 = vrot.slane %v9329, 4
      %v9331 = vrot.slane %v8949, 5
      %v9332 = vsel %vm1925, %v9330, %v9331
      %v9333 = vrot.slane %v9331, 4
      %v9334 = vrot.slane %v8950, 5
      %v9335 = vsel %vm1925, %v9333, %v9334
      %v9336 = vrot.slane %v9274, 5
      %v9337 = vrot.slane %v9336, 4
      %v9338 = vrot.slane %v8952, 5
      %v9339 = vsel %vm1925, %v9337, %v9338
      %v9340 = vrot.slane %v9338, 4
      %v9341 = vrot.slane %v8953, 5
      %v9342 = vsel %vm1925, %v9340, %v9341
      %v9343 = vrot.slane %v9275, 5
      %v9344 = vrot.slane %v9343, 4
      %v9345 = vrot.slane %v8955, 5
      %v9346 = vsel %vm1925, %v9344, %v9345
      %v9347 = vrot.slane %v9345, 4
      %v9348 = vrot.slane %v8956, 5
      %v9349 = vsel %vm1925, %v9347, %v9348
      %v9350 = vrot.slane %v9276, 5
      %v9351 = vrot.slane %v9350, 4
      %v9352 = vrot.slane %v8958, 5
      %v9353 = vsel %vm1925, %v9351, %v9352
      %v9354 = vrot.slane %v9352, 4
      %v9355 = vrot.slane %v8959, 5
      %v9356 = vsel %vm1925, %v9354, %v9355
      %v9357 = vld [vmem:[%s7274] sm:$0x3]
      %v9358 = vunpack.c.l.b16 %v9304
      %v9359 = vunpack.c.l.b16 %v9307
      %v9360 = vunpack.c.l.b16 %v9311
      %v9361 = vunpack.c.l.b16 %v9314
      %v9362 = vunpack.c.l.b16 %v9318
      %v9363 = vunpack.c.l.b16 %v9321
      %v9364 = vunpack.c.l.b16 %v9325
      %v9365 = vunpack.c.l.b16 %v9328
      %v9366 = vunpack.c.l.b16 %v9332
      %v9367 = vunpack.c.l.b16 %v9335
      %v9368 = vunpack.c.l.b16 %v9339
      %v9369 = vunpack.c.l.b16 %v9342
      %v9370 = vunpack.c.l.b16 %v9346
      %v9371 = vunpack.c.l.b16 %v9349
      %v9372 = vunpack.c.l.b16 %v9353
      %v9373 = vunpack.c.l.b16 %v9356
      %v9374 = vpack.c.b16 %v9359, %v9358
      %v9375 = vpack.c.b16 %v9361, %v9360
      %v9376 = vpack.c.b16 %v9363, %v9362
      %v9377 = vpack.c.b16 %v9365, %v9364
      %v9378 = vpack.c.b16 %v9367, %v9366
      %v9379 = vpack.c.b16 %v9369, %v9368
      %v9380 = vpack.c.b16 %v9371, %v9370
      %v9381 = vpack.c.b16 %v9373, %v9372
      %v9383 = vsel %vm6310, %v9374, 0
      %v9386 = vsel %vm6310, %v9375, 0
      %v9389 = vsel %vm6310, %v9376, 0
      %v9392 = vsel %vm6310, %v9377, 0
      %v9395 = vsel %vm6310, %v9378, 0
      %v9398 = vsel %vm6310, %v9379, 0
      %v9401 = vsel %vm6310, %v9380, 0
      %v9404 = vsel %vm6310, %v9381, 0
      %v9407 = vsel %vm6335, %v9357, 0
      %9409 = vmatpush.bf16.msra.mxu0 0
      %9410 = vmatpush.bf16.msra.mxu0 0
      %9411 = vmatpush.bf16.msra.mxu0 0
      %9412 = vmatpush.bf16.msra.mxu0 0
      %9413 = vmatpush.bf16.msra.mxu0 0
      %9414 = vmatpush.bf16.msra.mxu0 0
      %9415 = vmatpush.bf16.msra.mxu0 0
      %9416 = vmatpush.bf16.msra.mxu0 %v9407
      %9417 = vmatmul.bf16.gmra.mxu0 %v9383
      %v9418 = vpop.f32.mrf.mxu0
      %v9419 = vadd.f32 0.0, %v9418
      %v9420 = vpop.f32.mrf.mxu0
      %v9421 = vadd.f32 0.0, %v9420
      %9422 = vmatmul.bf16.gmra.mxu0 %v9386
      %v9423 = vpop.f32.mrf.mxu0
      %v9424 = vadd.f32 0.0, %v9423
      %v9425 = vpop.f32.mrf.mxu0
      %v9426 = vadd.f32 0.0, %v9425
      %9427 = vmatmul.bf16.gmra.mxu0 %v9389
      %v9428 = vpop.f32.mrf.mxu0
      %v9429 = vadd.f32 0.0, %v9428
      %v9430 = vpop.f32.mrf.mxu0
      %v9431 = vadd.f32 0.0, %v9430
      %9432 = vmatmul.bf16.gmra.mxu0 %v9392
      %v9433 = vpop.f32.mrf.mxu0
      %v9434 = vadd.f32 0.0, %v9433
      %v9435 = vpop.f32.mrf.mxu0
      %v9436 = vadd.f32 0.0, %v9435
      %9437 = vmatmul.bf16.gmra.mxu0 %v9395
      %v9438 = vpop.f32.mrf.mxu0
      %v9439 = vadd.f32 0.0, %v9438
      %v9440 = vpop.f32.mrf.mxu0
      %v9441 = vadd.f32 0.0, %v9440
      %9442 = vmatmul.bf16.gmra.mxu0 %v9398
      %v9443 = vpop.f32.mrf.mxu0
      %v9444 = vadd.f32 0.0, %v9443
      %v9445 = vpop.f32.mrf.mxu0
      %v9446 = vadd.f32 0.0, %v9445
      %9447 = vmatmul.bf16.gmra.mxu0 %v9401
      %v9448 = vpop.f32.mrf.mxu0
      %v9449 = vadd.f32 0.0, %v9448
      %v9450 = vpop.f32.mrf.mxu0
      %v9451 = vadd.f32 0.0, %v9450
      %9452 = vmatmul.bf16.gmra.mxu0 %v9404
      %v9453 = vpop.f32.mrf.mxu0
      %v9454 = vadd.f32 0.0, %v9453
      %v9455 = vpop.f32.mrf.mxu0
      %v9456 = vadd.f32 0.0, %v9455
      %9457 = vdwg.mxu0
      %v9458 = vadd.f32 %v9253, %v9419
      %v9459 = vadd.f32 %v9254, %v9421
      %v9460 = vadd.f32 %v9255, %v9424
      %v9461 = vadd.f32 %v9256, %v9426
      %v9462 = vadd.f32 %v9257, %v9429
      %v9463 = vadd.f32 %v9258, %v9431
      %v9464 = vadd.f32 %v9259, %v9434
      %v9465 = vadd.f32 %v9260, %v9436
      %v9466 = vadd.f32 %v9261, %v9439
      %v9467 = vadd.f32 %v9262, %v9441
      %v9468 = vadd.f32 %v9263, %v9444
      %v9469 = vadd.f32 %v9264, %v9446
      %v9470 = vadd.f32 %v9265, %v9449
      %v9471 = vadd.f32 %v9266, %v9451
      %v9472 = vadd.f32 %v9267, %v9454
      %v9473 = vadd.f32 %v9268, %v9456
      %s9474 = scalar_lea.vmem [#allocation3], 120
      %v9475 = vld [vmem:[%s9474] sm:$0xf]
      %v9476 = vld [vmem:[%s9474 + $0x4] sm:$0xf]
      %v9477 = vld [vmem:[%s9474 + $0xc] sm:$0xf]
      %v9478 = vld [vmem:[%s9474 + $0x10] sm:$0xf]
      %v9479 = vld [vmem:[%s9474 + $0x18] sm:$0xf]
      %v9480 = vld [vmem:[%s9474 + $0x1c] sm:$0xf]
      %v9481 = vld [vmem:[%s9474 + $0x24] sm:$0xf]
      %v9482 = vld [vmem:[%s9474 + $0x28] sm:$0xf]
      %v9483 = vld [vmem:[%s9474 + $0x30] sm:$0xf]
      %v9484 = vld [vmem:[%s9474 + $0x34] sm:$0xf]
      %v9485 = vld [vmem:[%s9474 + $0x3c] sm:$0xf]
      %v9486 = vld [vmem:[%s9474 + $0x40] sm:$0xf]
      %v9487 = vld [vmem:[%s9474 + $0x48] sm:$0xf]
      %v9488 = vld [vmem:[%s9474 + $0x4c] sm:$0xf]
      %v9489 = vld [vmem:[%s9474 + $0x54] sm:$0xf]
      %v9490 = vld [vmem:[%s9474 + $0x58] sm:$0xf]
      %v9491 = vld [vmem:[%s7409] sm:$0x3]
      %v9508 = vunpack.c.l.b16 %v9475
      %v9509 = vunpack.c.l.b16 %v9476
      %v9510 = vunpack.c.l.b16 %v9477
      %v9511 = vunpack.c.l.b16 %v9478
      %v9512 = vunpack.c.l.b16 %v9479
      %v9513 = vunpack.c.l.b16 %v9480
      %v9514 = vunpack.c.l.b16 %v9481
      %v9515 = vunpack.c.l.b16 %v9482
      %v9516 = vunpack.c.l.b16 %v9483
      %v9517 = vunpack.c.l.b16 %v9484
      %v9518 = vunpack.c.l.b16 %v9485
      %v9519 = vunpack.c.l.b16 %v9486
      %v9520 = vunpack.c.l.b16 %v9487
      %v9521 = vunpack.c.l.b16 %v9488
      %v9522 = vunpack.c.l.b16 %v9489
      %v9523 = vunpack.c.l.b16 %v9490
      %v9524 = vpack.c.b16 %v9509, %v9508
      %v9525 = vpack.c.b16 %v9511, %v9510
      %v9526 = vpack.c.b16 %v9513, %v9512
      %v9527 = vpack.c.b16 %v9515, %v9514
      %v9528 = vpack.c.b16 %v9517, %v9516
      %v9529 = vpack.c.b16 %v9519, %v9518
      %v9530 = vpack.c.b16 %v9521, %v9520
      %v9531 = vpack.c.b16 %v9523, %v9522
      %v9533 = vsel %vm6310, %v9524, 0
      %v9536 = vsel %vm6310, %v9525, 0
      %v9539 = vsel %vm6310, %v9526, 0
      %v9542 = vsel %vm6310, %v9527, 0
      %v9545 = vsel %vm6310, %v9528, 0
      %v9548 = vsel %vm6310, %v9529, 0
      %v9551 = vsel %vm6310, %v9530, 0
      %v9554 = vsel %vm6310, %v9531, 0
      %v9557 = vsel %vm6335, %v9491, 0
      %9559 = vmatpush.bf16.msra.mxu0 0
      %9560 = vmatpush.bf16.msra.mxu0 0
      %9561 = vmatpush.bf16.msra.mxu0 0
      %9562 = vmatpush.bf16.msra.mxu0 0
      %9563 = vmatpush.bf16.msra.mxu0 0
      %9564 = vmatpush.bf16.msra.mxu0 0
      %9565 = vmatpush.bf16.msra.mxu0 0
      %9566 = vmatpush.bf16.msra.mxu0 %v9557
      %9567 = vmatmul.bf16.gmra.mxu0 %v9533
      %v9568 = vpop.f32.mrf.mxu0
      %v9569 = vadd.f32 0.0, %v9568
      %v9570 = vpop.f32.mrf.mxu0
      %v9571 = vadd.f32 0.0, %v9570
      %9572 = vmatmul.bf16.gmra.mxu0 %v9536
      %v9573 = vpop.f32.mrf.mxu0
      %v9574 = vadd.f32 0.0, %v9573
      %v9575 = vpop.f32.mrf.mxu0
      %v9576 = vadd.f32 0.0, %v9575
      %9577 = vmatmul.bf16.gmra.mxu0 %v9539
      %v9578 = vpop.f32.mrf.mxu0
      %v9579 = vadd.f32 0.0, %v9578
      %v9580 = vpop.f32.mrf.mxu0
      %v9581 = vadd.f32 0.0, %v9580
      %9582 = vmatmul.bf16.gmra.mxu0 %v9542
      %v9583 = vpop.f32.mrf.mxu0
      %v9584 = vadd.f32 0.0, %v9583
      %v9585 = vpop.f32.mrf.mxu0
      %v9586 = vadd.f32 0.0, %v9585
      %9587 = vmatmul.bf16.gmra.mxu0 %v9545
      %v9588 = vpop.f32.mrf.mxu0
      %v9589 = vadd.f32 0.0, %v9588
      %v9590 = vpop.f32.mrf.mxu0
      %v9591 = vadd.f32 0.0, %v9590
      %9592 = vmatmul.bf16.gmra.mxu0 %v9548
      %v9593 = vpop.f32.mrf.mxu0
      %v9594 = vadd.f32 0.0, %v9593
      %v9595 = vpop.f32.mrf.mxu0
      %v9596 = vadd.f32 0.0, %v9595
      %9597 = vmatmul.bf16.gmra.mxu0 %v9551
      %v9598 = vpop.f32.mrf.mxu0
      %v9599 = vadd.f32 0.0, %v9598
      %v9600 = vpop.f32.mrf.mxu0
      %v9601 = vadd.f32 0.0, %v9600
      %9602 = vmatmul.bf16.gmra.mxu0 %v9554
      %v9603 = vpop.f32.mrf.mxu0
      %v9604 = vadd.f32 0.0, %v9603
      %v9605 = vpop.f32.mrf.mxu0
      %v9606 = vadd.f32 0.0, %v9605
      %9607 = vdwg.mxu0
      %v9608 = vadd.f32 %v9458, %v9569
      %v9609 = vadd.f32 %v9459, %v9571
      %v9610 = vadd.f32 %v9460, %v9574
      %v9611 = vadd.f32 %v9461, %v9576
      %v9612 = vadd.f32 %v9462, %v9579
      %v9613 = vadd.f32 %v9463, %v9581
      %v9614 = vadd.f32 %v9464, %v9584
      %v9615 = vadd.f32 %v9465, %v9586
      %v9616 = vadd.f32 %v9466, %v9589
      %v9617 = vadd.f32 %v9467, %v9591
      %v9618 = vadd.f32 %v9468, %v9594
      %v9619 = vadd.f32 %v9469, %v9596
      %v9620 = vadd.f32 %v9470, %v9599
      %v9621 = vadd.f32 %v9471, %v9601
      %v9622 = vadd.f32 %v9472, %v9604
      %v9623 = vadd.f32 %v9473, %v9606
      %v9624 = vld [vmem:[%s9474] sm:$0xf]
      %v9625 = vld [vmem:[%s9474 + $0x4] sm:$0xf]
      %v9626 = vld [vmem:[%s9474 + $0x8] sm:$0x1]
      %v9627 = vld [vmem:[%s9474 + $0xc] sm:$0xf]
      %v9628 = vld [vmem:[%s9474 + $0x10] sm:$0xf]
      %v9629 = vld [vmem:[%s9474 + $0x14] sm:$0x1]
      %v9630 = vld [vmem:[%s9474 + $0x18] sm:$0xf]
      %v9631 = vld [vmem:[%s9474 + $0x1c] sm:$0xf]
      %v9632 = vld [vmem:[%s9474 + $0x20] sm:$0x1]
      %v9633 = vld [vmem:[%s9474 + $0x24] sm:$0xf]
      %v9634 = vld [vmem:[%s9474 + $0x28] sm:$0xf]
      %v9635 = vld [vmem:[%s9474 + $0x2c] sm:$0x1]
      %v9636 = vld [vmem:[%s9474 + $0x30] sm:$0xf]
      %v9637 = vld [vmem:[%s9474 + $0x34] sm:$0xf]
      %v9638 = vld [vmem:[%s9474 + $0x38] sm:$0x1]
      %v9639 = vld [vmem:[%s9474 + $0x3c] sm:$0xf]
      %v9640 = vld [vmem:[%s9474 + $0x40] sm:$0xf]
      %v9641 = vld [vmem:[%s9474 + $0x44] sm:$0x1]
      %v9642 = vld [vmem:[%s9474 + $0x48] sm:$0xf]
      %v9643 = vld [vmem:[%s9474 + $0x4c] sm:$0xf]
      %v9644 = vld [vmem:[%s9474 + $0x50] sm:$0x1]
      %v9645 = vld [vmem:[%s9474 + $0x54] sm:$0xf]
      %v9646 = vld [vmem:[%s9474 + $0x58] sm:$0xf]
      %v9647 = vld [vmem:[%s9474 + $0x5c] sm:$0x1]
      %v9649 = vshrl.u32 %v9624, 16
      %v9651 = vrot.slane %v9649, 4
      %v9652 = vshll.u32 %v9624, 16
      %v9654 = vrot.slane %v9652, 5
      %v9655 = vor.u32 %v9651, %v9654
      %v9656 = vrot.slane %v9655, 4
      %v9658 = vshll.u32 %v9625, 16
      %v9660 = vrot.slane %v9658, 5
      %v9661 = vsel %vm1486, %v9656, %v9660
      %v9662 = vshrl.u32 %v9625, 16
      %v9664 = vrot.slane %v9662, 4
      %v9665 = vor.u32 %v9664, %v9660
      %v9666 = vrot.slane %v9665, 4
      %v9668 = vshll.u32 %v9626, 16
      %v9670 = vrot.slane %v9668, 5
      %v9671 = vsel %vm1486, %v9666, %v9670
      %v9673 = vshrl.u32 %v9627, 16
      %v9675 = vrot.slane %v9673, 4
      %v9676 = vshll.u32 %v9627, 16
      %v9678 = vrot.slane %v9676, 5
      %v9679 = vor.u32 %v9675, %v9678
      %v9680 = vrot.slane %v9679, 4
      %v9682 = vshll.u32 %v9628, 16
      %v9684 = vrot.slane %v9682, 5
      %v9685 = vsel %vm1486, %v9680, %v9684
      %v9686 = vshrl.u32 %v9628, 16
      %v9688 = vrot.slane %v9686, 4
      %v9689 = vor.u32 %v9688, %v9684
      %v9690 = vrot.slane %v9689, 4
      %v9692 = vshll.u32 %v9629, 16
      %v9694 = vrot.slane %v9692, 5
      %v9695 = vsel %vm1486, %v9690, %v9694
      %v9697 = vshrl.u32 %v9630, 16
      %v9699 = vrot.slane %v9697, 4
      %v9700 = vshll.u32 %v9630, 16
      %v9702 = vrot.slane %v9700, 5
      %v9703 = vor.u32 %v9699, %v9702
      %v9704 = vrot.slane %v9703, 4
      %v9706 = vshll.u32 %v9631, 16
      %v9708 = vrot.slane %v9706, 5
      %v9709 = vsel %vm1486, %v9704, %v9708
      %v9710 = vshrl.u32 %v9631, 16
      %v9712 = vrot.slane %v9710, 4
      %v9713 = vor.u32 %v9712, %v9708
      %v9714 = vrot.slane %v9713, 4
      %v9716 = vshll.u32 %v9632, 16
      %v9718 = vrot.slane %v9716, 5
      %v9719 = vsel %vm1486, %v9714, %v9718
      %v9721 = vshrl.u32 %v9633, 16
      %v9723 = vrot.slane %v9721, 4
      %v9724 = vshll.u32 %v9633, 16
      %v9726 = vrot.slane %v9724, 5
      %v9727 = vor.u32 %v9723, %v9726
      %v9728 = vrot.slane %v9727, 4
      %v9730 = vshll.u32 %v9634, 16
      %v9732 = vrot.slane %v9730, 5
      %v9733 = vsel %vm1486, %v9728, %v9732
      %v9734 = vshrl.u32 %v9634, 16
      %v9736 = vrot.slane %v9734, 4
      %v9737 = vor.u32 %v9736, %v9732
      %v9738 = vrot.slane %v9737, 4
      %v9740 = vshll.u32 %v9635, 16
      %v9742 = vrot.slane %v9740, 5
      %v9743 = vsel %vm1486, %v9738, %v9742
      %v9745 = vshrl.u32 %v9636, 16
      %v9747 = vrot.slane %v9745, 4
      %v9748 = vshll.u32 %v9636, 16
      %v9750 = vrot.slane %v9748, 5
      %v9751 = vor.u32 %v9747, %v9750
      %v9752 = vrot.slane %v9751, 4
      %v9754 = vshll.u32 %v9637, 16
      %v9756 = vrot.slane %v9754, 5
      %v9757 = vsel %vm1486, %v9752, %v9756
      %v9758 = vshrl.u32 %v9637, 16
      %v9760 = vrot.slane %v9758, 4
      %v9761 = vor.u32 %v9760, %v9756
      %v9762 = vrot.slane %v9761, 4
      %v9764 = vshll.u32 %v9638, 16
      %v9766 = vrot.slane %v9764, 5
      %v9767 = vsel %vm1486, %v9762, %v9766
      %v9769 = vshrl.u32 %v9639, 16
      %v9771 = vrot.slane %v9769, 4
      %v9772 = vshll.u32 %v9639, 16
      %v9774 = vrot.slane %v9772, 5
      %v9775 = vor.u32 %v9771, %v9774
      %v9776 = vrot.slane %v9775, 4
      %v9778 = vshll.u32 %v9640, 16
      %v9780 = vrot.slane %v9778, 5
      %v9781 = vsel %vm1486, %v9776, %v9780
      %v9782 = vshrl.u32 %v9640, 16
      %v9784 = vrot.slane %v9782, 4
      %v9785 = vor.u32 %v9784, %v9780
      %v9786 = vrot.slane %v9785, 4
      %v9788 = vshll.u32 %v9641, 16
      %v9790 = vrot.slane %v9788, 5
      %v9791 = vsel %vm1486, %v9786, %v9790
      %v9793 = vshrl.u32 %v9642, 16
      %v9795 = vrot.slane %v9793, 4
      %v9796 = vshll.u32 %v9642, 16
      %v9798 = vrot.slane %v9796, 5
      %v9799 = vor.u32 %v9795, %v9798
      %v9800 = vrot.slane %v9799, 4
      %v9802 = vshll.u32 %v9643, 16
      %v9804 = vrot.slane %v9802, 5
      %v9805 = vsel %vm1486, %v9800, %v9804
      %v9806 = vshrl.u32 %v9643, 16
      %v9808 = vrot.slane %v9806, 4
      %v9809 = vor.u32 %v9808, %v9804
      %v9810 = vrot.slane %v9809, 4
      %v9812 = vshll.u32 %v9644, 16
      %v9814 = vrot.slane %v9812, 5
      %v9815 = vsel %vm1486, %v9810, %v9814
      %v9817 = vshrl.u32 %v9645, 16
      %v9819 = vrot.slane %v9817, 4
      %v9820 = vshll.u32 %v9645, 16
      %v9822 = vrot.slane %v9820, 5
      %v9823 = vor.u32 %v9819, %v9822
      %v9824 = vrot.slane %v9823, 4
      %v9826 = vshll.u32 %v9646, 16
      %v9828 = vrot.slane %v9826, 5
      %v9829 = vsel %vm1486, %v9824, %v9828
      %v9830 = vshrl.u32 %v9646, 16
      %v9832 = vrot.slane %v9830, 4
      %v9833 = vor.u32 %v9832, %v9828
      %v9834 = vrot.slane %v9833, 4
      %v9836 = vshll.u32 %v9647, 16
      %v9838 = vrot.slane %v9836, 5
      %v9839 = vsel %vm1486, %v9834, %v9838
      %v9840 = vld [vmem:[%s7759] sm:$0x3]
      %v9841 = vunpack.c.l.b16 %v9661
      %v9842 = vunpack.c.l.b16 %v9671
      %v9843 = vunpack.c.l.b16 %v9685
      %v9844 = vunpack.c.l.b16 %v9695
      %v9845 = vunpack.c.l.b16 %v9709
      %v9846 = vunpack.c.l.b16 %v9719
      %v9847 = vunpack.c.l.b16 %v9733
      %v9848 = vunpack.c.l.b16 %v9743
      %v9849 = vunpack.c.l.b16 %v9757
      %v9850 = vunpack.c.l.b16 %v9767
      %v9851 = vunpack.c.l.b16 %v9781
      %v9852 = vunpack.c.l.b16 %v9791
      %v9853 = vunpack.c.l.b16 %v9805
      %v9854 = vunpack.c.l.b16 %v9815
      %v9855 = vunpack.c.l.b16 %v9829
      %v9856 = vunpack.c.l.b16 %v9839
      %v9857 = vpack.c.b16 %v9842, %v9841
      %v9858 = vpack.c.b16 %v9844, %v9843
      %v9859 = vpack.c.b16 %v9846, %v9845
      %v9860 = vpack.c.b16 %v9848, %v9847
      %v9861 = vpack.c.b16 %v9850, %v9849
      %v9862 = vpack.c.b16 %v9852, %v9851
      %v9863 = vpack.c.b16 %v9854, %v9853
      %v9864 = vpack.c.b16 %v9856, %v9855
      %v9866 = vsel %vm6310, %v9857, 0
      %v9869 = vsel %vm6310, %v9858, 0
      %v9872 = vsel %vm6310, %v9859, 0
      %v9875 = vsel %vm6310, %v9860, 0
      %v9878 = vsel %vm6310, %v9861, 0
      %v9881 = vsel %vm6310, %v9862, 0
      %v9884 = vsel %vm6310, %v9863, 0
      %v9887 = vsel %vm6310, %v9864, 0
      %v9890 = vsel %vm6335, %v9840, 0
      %9892 = vmatpush.bf16.msra.mxu0 0
      %9893 = vmatpush.bf16.msra.mxu0 0
      %9894 = vmatpush.bf16.msra.mxu0 0
      %9895 = vmatpush.bf16.msra.mxu0 0
      %9896 = vmatpush.bf16.msra.mxu0 0
      %9897 = vmatpush.bf16.msra.mxu0 0
      %9898 = vmatpush.bf16.msra.mxu0 0
      %9899 = vmatpush.bf16.msra.mxu0 %v9890
      %9900 = vmatmul.bf16.gmra.mxu0 %v9866
      %v9901 = vpop.f32.mrf.mxu0
      %v9902 = vadd.f32 0.0, %v9901
      %v9903 = vpop.f32.mrf.mxu0
      %v9904 = vadd.f32 0.0, %v9903
      %9905 = vmatmul.bf16.gmra.mxu0 %v9869
      %v9906 = vpop.f32.mrf.mxu0
      %v9907 = vadd.f32 0.0, %v9906
      %v9908 = vpop.f32.mrf.mxu0
      %v9909 = vadd.f32 0.0, %v9908
      %9910 = vmatmul.bf16.gmra.mxu0 %v9872
      %v9911 = vpop.f32.mrf.mxu0
      %v9912 = vadd.f32 0.0, %v9911
      %v9913 = vpop.f32.mrf.mxu0
      %v9914 = vadd.f32 0.0, %v9913
      %9915 = vmatmul.bf16.gmra.mxu0 %v9875
      %v9916 = vpop.f32.mrf.mxu0
      %v9917 = vadd.f32 0.0, %v9916
      %v9918 = vpop.f32.mrf.mxu0
      %v9919 = vadd.f32 0.0, %v9918
      %9920 = vmatmul.bf16.gmra.mxu0 %v9878
      %v9921 = vpop.f32.mrf.mxu0
      %v9922 = vadd.f32 0.0, %v9921
      %v9923 = vpop.f32.mrf.mxu0
      %v9924 = vadd.f32 0.0, %v9923
      %9925 = vmatmul.bf16.gmra.mxu0 %v9881
      %v9926 = vpop.f32.mrf.mxu0
      %v9927 = vadd.f32 0.0, %v9926
      %v9928 = vpop.f32.mrf.mxu0
      %v9929 = vadd.f32 0.0, %v9928
      %9930 = vmatmul.bf16.gmra.mxu0 %v9884
      %v9931 = vpop.f32.mrf.mxu0
      %v9932 = vadd.f32 0.0, %v9931
      %v9933 = vpop.f32.mrf.mxu0
      %v9934 = vadd.f32 0.0, %v9933
      %9935 = vmatmul.bf16.gmra.mxu0 %v9887
      %v9936 = vpop.f32.mrf.mxu0
      %v9937 = vadd.f32 0.0, %v9936
      %v9938 = vpop.f32.mrf.mxu0
      %v9939 = vadd.f32 0.0, %v9938
      %9940 = vdwg.mxu0
      %v9941 = vadd.f32 %v9608, %v9902
      %v9942 = vadd.f32 %v9609, %v9904
      %v9943 = vadd.f32 %v9610, %v9907
      %v9944 = vadd.f32 %v9611, %v9909
      %v9945 = vadd.f32 %v9612, %v9912
      %v9946 = vadd.f32 %v9613, %v9914
      %v9947 = vadd.f32 %v9614, %v9917
      %v9948 = vadd.f32 %v9615, %v9919
      %v9949 = vadd.f32 %v9616, %v9922
      %v9950 = vadd.f32 %v9617, %v9924
      %v9951 = vadd.f32 %v9618, %v9927
      %v9952 = vadd.f32 %v9619, %v9929
      %v9953 = vadd.f32 %v9620, %v9932
      %v9954 = vadd.f32 %v9621, %v9934
      %v9955 = vadd.f32 %v9622, %v9937
      %v9956 = vadd.f32 %v9623, %v9939
      %v9957 = vld [vmem:[%s9474] sm:$0xe]
      %v9958 = vld [vmem:[%s9474 + $0xc] sm:$0xe]
      %v9959 = vld [vmem:[%s9474 + $0x18] sm:$0xe]
      %v9960 = vld [vmem:[%s9474 + $0x24] sm:$0xe]
      %v9961 = vld [vmem:[%s9474 + $0x30] sm:$0xe]
      %v9962 = vld [vmem:[%s9474 + $0x3c] sm:$0xe]
      %v9963 = vld [vmem:[%s9474 + $0x48] sm:$0xe]
      %v9964 = vld [vmem:[%s9474 + $0x54] sm:$0xe]
      %v9989 = vrot.slane %v9957, 5
      %v9990 = vrot.slane %v9989, 4
      %v9991 = vrot.slane %v9625, 5
      %v9992 = vsel %vm1925, %v9990, %v9991
      %v9993 = vrot.slane %v9991, 4
      %v9994 = vrot.slane %v9626, 5
      %v9995 = vsel %vm1925, %v9993, %v9994
      %v9996 = vrot.slane %v9958, 5
      %v9997 = vrot.slane %v9996, 4
      %v9998 = vrot.slane %v9628, 5
      %v9999 = vsel %vm1925, %v9997, %v9998
      %v10000 = vrot.slane %v9998, 4
      %v10001 = vrot.slane %v9629, 5
      %v10002 = vsel %vm1925, %v10000, %v10001
      %v10003 = vrot.slane %v9959, 5
      %v10004 = vrot.slane %v10003, 4
      %v10005 = vrot.slane %v9631, 5
      %v10006 = vsel %vm1925, %v10004, %v10005
      %v10007 = vrot.slane %v10005, 4
      %v10008 = vrot.slane %v9632, 5
      %v10009 = vsel %vm1925, %v10007, %v10008
      %v10010 = vrot.slane %v9960, 5
      %v10011 = vrot.slane %v10010, 4
      %v10012 = vrot.slane %v9634, 5
      %v10013 = vsel %vm1925, %v10011, %v10012
      %v10014 = vrot.slane %v10012, 4
      %v10015 = vrot.slane %v9635, 5
      %v10016 = vsel %vm1925, %v10014, %v10015
      %v10017 = vrot.slane %v9961, 5
      %v10018 = vrot.slane %v10017, 4
      %v10019 = vrot.slane %v9637, 5
      %v10020 = vsel %vm1925, %v10018, %v10019
      %v10021 = vrot.slane %v10019, 4
      %v10022 = vrot.slane %v9638, 5
      %v10023 = vsel %vm1925, %v10021, %v10022
      %v10024 = vrot.slane %v9962, 5
      %v10025 = vrot.slane %v10024, 4
      %v10026 = vrot.slane %v9640, 5
      %v10027 = vsel %vm1925, %v10025, %v10026
      %v10028 = vrot.slane %v10026, 4
      %v10029 = vrot.slane %v9641, 5
      %v10030 = vsel %vm1925, %v10028, %v10029
      %v10031 = vrot.slane %v9963, 5
      %v10032 = vrot.slane %v10031, 4
      %v10033 = vrot.slane %v9643, 5
      %v10034 = vsel %vm1925, %v10032, %v10033
      %v10035 = vrot.slane %v10033, 4
      %v10036 = vrot.slane %v9644, 5
      %v10037 = vsel %vm1925, %v10035, %v10036
      %v10038 = vrot.slane %v9964, 5
      %v10039 = vrot.slane %v10038, 4
      %v10040 = vrot.slane %v9646, 5
      %v10041 = vsel %vm1925, %v10039, %v10040
      %v10042 = vrot.slane %v10040, 4
      %v10043 = vrot.slane %v9647, 5
      %v10044 = vsel %vm1925, %v10042, %v10043
      %v10045 = vld [vmem:[%s7965] sm:$0x3]
      %v10046 = vunpack.c.l.b16 %v9992
      %v10047 = vunpack.c.l.b16 %v9995
      %v10048 = vunpack.c.l.b16 %v9999
      %v10049 = vunpack.c.l.b16 %v10002
      %v10050 = vunpack.c.l.b16 %v10006
      %v10051 = vunpack.c.l.b16 %v10009
      %v10052 = vunpack.c.l.b16 %v10013
      %v10053 = vunpack.c.l.b16 %v10016
      %v10054 = vunpack.c.l.b16 %v10020
      %v10055 = vunpack.c.l.b16 %v10023
      %v10056 = vunpack.c.l.b16 %v10027
      %v10057 = vunpack.c.l.b16 %v10030
      %v10058 = vunpack.c.l.b16 %v10034
      %v10059 = vunpack.c.l.b16 %v10037
      %v10060 = vunpack.c.l.b16 %v10041
      %v10061 = vunpack.c.l.b16 %v10044
      %v10062 = vpack.c.b16 %v10047, %v10046
      %v10063 = vpack.c.b16 %v10049, %v10048
      %v10064 = vpack.c.b16 %v10051, %v10050
      %v10065 = vpack.c.b16 %v10053, %v10052
      %v10066 = vpack.c.b16 %v10055, %v10054
      %v10067 = vpack.c.b16 %v10057, %v10056
      %v10068 = vpack.c.b16 %v10059, %v10058
      %v10069 = vpack.c.b16 %v10061, %v10060
      %v10071 = vsel %vm6310, %v10062, 0
      %v10074 = vsel %vm6310, %v10063, 0
      %v10077 = vsel %vm6310, %v10064, 0
      %v10080 = vsel %vm6310, %v10065, 0
      %v10083 = vsel %vm6310, %v10066, 0
      %v10086 = vsel %vm6310, %v10067, 0
      %v10089 = vsel %vm6310, %v10068, 0
      %v10092 = vsel %vm6310, %v10069, 0
      %v10095 = vsel %vm6335, %v10045, 0
      %10097 = vmatpush.bf16.msra.mxu0 0
      %10098 = vmatpush.bf16.msra.mxu0 0
      %10099 = vmatpush.bf16.msra.mxu0 0
      %10100 = vmatpush.bf16.msra.mxu0 0
      %10101 = vmatpush.bf16.msra.mxu0 0
      %10102 = vmatpush.bf16.msra.mxu0 0
      %10103 = vmatpush.bf16.msra.mxu0 0
      %10104 = vmatpush.bf16.msra.mxu0 %v10095
      %10105 = vmatmul.bf16.gmra.mxu0 %v10071
      %v10106 = vpop.f32.mrf.mxu0
      %v10107 = vadd.f32 0.0, %v10106
      %v10108 = vpop.f32.mrf.mxu0
      %v10109 = vadd.f32 0.0, %v10108
      %10110 = vmatmul.bf16.gmra.mxu0 %v10074
      %v10111 = vpop.f32.mrf.mxu0
      %v10112 = vadd.f32 0.0, %v10111
      %v10113 = vpop.f32.mrf.mxu0
      %v10114 = vadd.f32 0.0, %v10113
      %10115 = vmatmul.bf16.gmra.mxu0 %v10077
      %v10116 = vpop.f32.mrf.mxu0
      %v10117 = vadd.f32 0.0, %v10116
      %v10118 = vpop.f32.mrf.mxu0
      %v10119 = vadd.f32 0.0, %v10118
      %10120 = vmatmul.bf16.gmra.mxu0 %v10080
      %v10121 = vpop.f32.mrf.mxu0
      %v10122 = vadd.f32 0.0, %v10121
      %v10123 = vpop.f32.mrf.mxu0
      %v10124 = vadd.f32 0.0, %v10123
      %10125 = vmatmul.bf16.gmra.mxu0 %v10083
      %v10126 = vpop.f32.mrf.mxu0
      %v10127 = vadd.f32 0.0, %v10126
      %v10128 = vpop.f32.mrf.mxu0
      %v10129 = vadd.f32 0.0, %v10128
      %10130 = vmatmul.bf16.gmra.mxu0 %v10086
      %v10131 = vpop.f32.mrf.mxu0
      %v10132 = vadd.f32 0.0, %v10131
      %v10133 = vpop.f32.mrf.mxu0
      %v10134 = vadd.f32 0.0, %v10133
      %10135 = vmatmul.bf16.gmra.mxu0 %v10089
      %v10136 = vpop.f32.mrf.mxu0
      %v10137 = vadd.f32 0.0, %v10136
      %v10138 = vpop.f32.mrf.mxu0
      %v10139 = vadd.f32 0.0, %v10138
      %10140 = vmatmul.bf16.gmra.mxu0 %v10092
      %v10141 = vpop.f32.mrf.mxu0
      %v10142 = vadd.f32 0.0, %v10141
      %v10143 = vpop.f32.mrf.mxu0
      %v10144 = vadd.f32 0.0, %v10143
      %10145 = vdwg.mxu0
      %v10146 = vadd.f32 %v9941, %v10107
      %v10147 = vadd.f32 %v9942, %v10109
      %v10148 = vadd.f32 %v9943, %v10112
      %v10149 = vadd.f32 %v9944, %v10114
      %v10150 = vadd.f32 %v9945, %v10117
      %v10151 = vadd.f32 %v9946, %v10119
      %v10152 = vadd.f32 %v9947, %v10122
      %v10153 = vadd.f32 %v9948, %v10124
      %v10154 = vadd.f32 %v9949, %v10127
      %v10155 = vadd.f32 %v9950, %v10129
      %v10156 = vadd.f32 %v9951, %v10132
      %v10157 = vadd.f32 %v9952, %v10134
      %v10158 = vadd.f32 %v9953, %v10137
      %v10159 = vadd.f32 %v9954, %v10139
      %v10160 = vadd.f32 %v9955, %v10142
      %v10161 = vadd.f32 %v9956, %v10144
      %v10162 = vld [vmem:[%s6] sm:$0x1]
      %v10164 = vperm.slane %v10162, 0
      %v10166 = vmul.f32 %v10146, %v10164
      %v10167 = vmul.f32 %v10147, %v10164
      %v10168 = vmul.f32 %v10148, %v10164
      %v10169 = vmul.f32 %v10149, %v10164
      %v10170 = vmul.f32 %v10150, %v10164
      %v10171 = vmul.f32 %v10151, %v10164
      %v10172 = vmul.f32 %v10152, %v10164
      %v10173 = vmul.f32 %v10153, %v10164
      %v10174 = vmul.f32 %v10154, %v10164
      %v10175 = vmul.f32 %v10155, %v10164
      %v10176 = vmul.f32 %v10156, %v10164
      %v10177 = vmul.f32 %v10157, %v10164
      %v10178 = vmul.f32 %v10158, %v10164
      %v10179 = vmul.f32 %v10159, %v10164
      %v10180 = vmul.f32 %v10160, %v10164
      %v10181 = vmul.f32 %v10161, %v10164
      %v10182 = vld [vmem:[%s7] sm:$0x1]
      %v10184 = vperm.slane %v10182, 0
      %v10186 = vadd.f32 %v10166, %v10184
      %v10187 = vadd.f32 %v10167, %v10184
      %v10188 = vadd.f32 %v10168, %v10184
      %v10189 = vadd.f32 %v10169, %v10184
      %v10190 = vadd.f32 %v10170, %v10184
      %v10191 = vadd.f32 %v10171, %v10184
      %v10192 = vadd.f32 %v10172, %v10184
      %v10193 = vadd.f32 %v10173, %v10184
      %v10194 = vadd.f32 %v10174, %v10184
      %v10195 = vadd.f32 %v10175, %v10184
      %v10196 = vadd.f32 %v10176, %v10184
      %v10197 = vadd.f32 %v10177, %v10184
      %v10198 = vadd.f32 %v10178, %v10184
      %v10199 = vadd.f32 %v10179, %v10184
      %v10200 = vadd.f32 %v10180, %v10184
      %v10201 = vadd.f32 %v10181, %v10184
      %v10202 = vmax.f32 %v10186, 0.0
      %v10203 = vmax.f32 %v10187, 0.0
      %v10204 = vmax.f32 %v10188, 0.0
      %v10205 = vmax.f32 %v10189, 0.0
      %v10206 = vmax.f32 %v10190, 0.0
      %v10207 = vmax.f32 %v10191, 0.0
      %v10208 = vmax.f32 %v10192, 0.0
      %v10209 = vmax.f32 %v10193, 0.0
      %v10210 = vmax.f32 %v10194, 0.0
      %v10211 = vmax.f32 %v10195, 0.0
      %v10212 = vmax.f32 %v10196, 0.0
      %v10213 = vmax.f32 %v10197, 0.0
      %v10214 = vmax.f32 %v10198, 0.0
      %v10215 = vmax.f32 %v10199, 0.0
      %v10216 = vmax.f32 %v10200, 0.0
      %v10217 = vmax.f32 %v10201, 0.0
      %s10218 = scalar_lea.vmem %s325, 128
      %10219 = vst [vmem:[%s10218] sm:$0xff] %v10202
      %10220 = vst [vmem:[%s10218 + $0x8] sm:$0xff] %v10203
      %10221 = vst [vmem:[%s10218 + $0x10] sm:$0xff] %v10204
      %10222 = vst [vmem:[%s10218 + $0x18] sm:$0xff] %v10205
      %10223 = vst [vmem:[%s10218 + $0x20] sm:$0xff] %v10206
      %10224 = vst [vmem:[%s10218 + $0x28] sm:$0xff] %v10207
      %10225 = vst [vmem:[%s10218 + $0x30] sm:$0xff] %v10208
      %10226 = vst [vmem:[%s10218 + $0x38] sm:$0xff] %v10209
      %10227 = vst [vmem:[%s10218 + $0x40] sm:$0xff] %v10210
      %10228 = vst [vmem:[%s10218 + $0x48] sm:$0xff] %v10211
      %10229 = vst [vmem:[%s10218 + $0x50] sm:$0xff] %v10212
      %10230 = vst [vmem:[%s10218 + $0x58] sm:$0xff] %v10213
      %10231 = vst [vmem:[%s10218 + $0x60] sm:$0xff] %v10214
      %10232 = vst [vmem:[%s10218 + $0x68] sm:$0xff] %v10215
      %10233 = vst [vmem:[%s10218 + $0x70] sm:$0xff] %v10216
      %10234 = vst [vmem:[%s10218 + $0x78] sm:$0xff] %v10217
      %p10235 = scmp.lt.s32.totalorder %s19, 1
      %s10236 = scalar_select %p10235, %s19, 1
      %s10237 = smul.addr %s10236, 32
      %s10238 = smul.addr %s10237, 8
      %s10239 = scalar_lea.vmem %s8, %s10238
      // Predicated region
      $region53: #{up_forward.3} parent=51 // pred_check
        %p10240 = pneg %p215
      $region54: #{up_forward.3} parent=51 // pred_check_branch
        %10242 = sbr.rel (%p10240) target = $region56
      $region55: #{up_forward.3} parent=51 // pred_region
        _
      $region56: #{up_forward.3} parent=51 // pred_fallthru
        _
    $region52: #{up_forward.3} parent=5 // pred_fallthru
      _
    %p10243 = scmp.le.s32.totalorder 2, %s14
    // Predicated region
    $region57: #{up_forward.3} parent=5 // pred_check
      %p10244 = pneg %p10243
    $region58: #{up_forward.3} parent=5 // pred_check_branch
      %10246 = sbr.rel (%p10244) target = $region60
    $region59: #{up_forward.3} parent=5 // pred_region
      %s10247 = ssub.s32 %s14, 2
      // Predicated region
      $region61: #{up_forward.3} parent=59 // pred_check
        %p10248 = pneg %p221
      $region62: #{up_forward.3} parent=59 // pred_check_branch
        %10250 = sbr.rel (%p10248) target = $region64
      $region63: #{up_forward.3} parent=59 // pred_region
        %p10251 = scmp.lt.s32.totalorder %s20, 1
        %s10252 = scalar_select %p10251, %s20, 1
        %s10253 = smul.addr %s10252, 32
        %s10254 = smul.addr %s10253, 8
        %s10255 = scalar_lea.vmem %s8, %s10254
      $region64: #{up_forward.3} parent=59 // pred_fallthru
        _
    $region60: #{up_forward.3} parent=5 // pred_fallthru
      _
  $region6: #{up_forward.3} parent=0 // loop_footer
    %s18 = sadd.s32 1, %s14
  $region7: #{up_forward.3} parent=0 // loop_footer_branch
    %13 = sbr.rel target = $region3
  $region8: #{up_forward.3} parent=0 // loop_exit
    _

</llo_original>
